<compile_context>
chip_gen: v7x
topology: tpu7x:2x2x1
jax: 0.10.0
libtpu: 0.0.40
codegen_flags: <defaults>
</compile_context>

<pallas_src>
import functools

import jax
import jax.numpy as jnp
from jax.experimental import pallas as pl
from jax.experimental.pallas import tpu as pltpu

# ----- small synthetic hyper-parameters (consistent with the module) -----
B = 2            # params['batch_size']
T = 8            # question sequence length
VOCAB = 50       # txt_embed vocabulary
TXT = 32         # params['txt_emb_size']
CIMG = 16        # image feature channels (stand-in for VGG's 512)
FMAP = 7         # feature_map_side
POS = FMAP * FMAP               # 49 spatial positions
PATCH = 4                       # synthetic conv kernel / stride
IMGSZ = FMAP * PATCH            # 28
IMG_FEAT = CIMG * POS           # params['img_feature_size'] = 784
FUSE_IN = IMG_FEAT + TXT        # 816
FUSE_HID = 2500                 # hard-coded in the module
FUSE_TK = 1280                  # hidden-dim tile (multiple of 128); 2 grid steps
FUSE_HID_PAD = ((FUSE_HID + FUSE_TK - 1) // FUSE_TK) * FUSE_TK  # 2560


# ------------------------- the single fused kernel -------------------------

def _encoder_kernel(xp_ref, tok_ref, wc_ref, bc_ref, wih_ref, whh_ref, bl_ref,
                    qw_ref, qb_ref, aw_ref, ab_ref, s1_ref, t1_ref,
                    w1_ref, b1_ref, w2_ref, b2_ref,
                    ctx_ref, attn_ref,
                    x_scr, acc_scr, *, batch, seq):
    f32 = jnp.float32
    k = pl.program_id(0)

    # ---------------- step 0: all pre-fusion compute ----------------
    @pl.when(k == 0)
    def _front():
        H = TXT
        # question LSTM (batch_first, zero initial hidden), unrolled over seq.
        xg = jnp.dot(tok_ref[...], wih_ref[...],
                     preferred_element_type=f32) + bl_ref[...]      # (T*B, 4H)
        whh = whh_ref[...]
        h = jnp.zeros((batch, H), f32)
        c_t = jnp.zeros((batch, H), f32)
        for step in range(seq):                                     # seq == 8
            g = xg[step * batch:(step + 1) * batch, :] + jnp.dot(
                h, whh, preferred_element_type=f32)
            i_g = jax.nn.sigmoid(g[:, 0:H])                         # gate order i,f,g,o
            f_g = jax.nn.sigmoid(g[:, H:2 * H])
            g_g = jnp.tanh(g[:, 2 * H:3 * H])
            o_g = jax.nn.sigmoid(g[:, 3 * H:4 * H])
            c_t = f_g * c_t + i_g * g_g
            h = o_g * jnp.tanh(c_t)                                 # == hidden[0][0]

        # patch-conv image embedding (+ReLU), written straight into the fusion
        # input scratch in (B, CIMG*49) NCHW-flat layout.
        wc = wc_ref[...]                                            # (CIMG, 48)
        bc = bc_ref[...]                                            # (CIMG, 1)
        feats = []
        for bi in range(batch):
            feat = jnp.maximum(
                jnp.dot(wc, xp_ref[bi], preferred_element_type=f32) + bc, 0.0)
            feats.append(feat)                                      # (CIMG, 49)
            for ch in range(CIMG):
                x_scr[bi:bi + 1, ch * POS:(ch + 1) * POS] = feat[ch:ch + 1, :]
        x_scr[:, IMG_FEAT:FUSE_IN] = h                              # quest columns

        # BatchNorm1d(816) eval (pre-folded scale/shift) + LeakyReLU(0.01).
        xv = x_scr[...] * s1_ref[...] + t1_ref[...]
        x_scr[...] = jnp.where(xv > 0, xv, 0.01 * xv)

        # 2d-attention branch: Sigmoid(Linear(49,49)(q_rep * img_feats)).
        # torch `.repeat(CIMG, 1)` pairing: global row r uses q_feats[r % batch]
        # (mixes batches; the reference discards this output).
        q_feats = jnp.dot(h, qw_ref[...],
                          preferred_element_type=f32) + qb_ref[...]  # (B, 49)
        feat_all = jnp.concatenate(feats, axis=0)                    # (B*CIMG, 49)
        q_rep = jnp.concatenate([q_feats] * CIMG, axis=0)            # row r -> r % B
        attn_ref[...] = jax.nn.sigmoid(
            jnp.dot(feat_all * q_rep, aw_ref[...],
                    preferred_element_type=f32) + ab_ref[...])

        acc_scr[...] = jnp.zeros_like(acc_scr)

    # -------- every step: one hidden-dim chunk of the fusion MLP --------
    # h_k  = act(x) @ fc1_w'[:, chunk] + fc1_b'[chunk]   (BN2 pre-folded)
    # acc += h_k @ fc2_w[chunk, :]          (LeakyReLU(True)/Dropout == identity)
    xb = x_scr[...].astype(jnp.bfloat16)
    hk = jnp.dot(xb, w1_ref[...], preferred_element_type=f32) + b1_ref[...]
    off = pl.multiple_of(k * FUSE_TK, FUSE_TK)
    w2k = w2_ref[pl.ds(off, FUSE_TK), :]                             # (FUSE_TK, 32)
    acc_scr[...] += jnp.dot(hk.astype(jnp.bfloat16), w2k,
                            preferred_element_type=f32)

    @pl.when(k == pl.num_programs(0) - 1)
    def _finish():
        # trailing LeakyReLU(True) == identity (faithful to the module).
        ctx_ref[...] = acc_scr[...] + b2_ref[...]


def pallas_encoder(xp_t, tok_tb, wc, p, *, batch, seq):
    nk = FUSE_HID_PAD // FUSE_TK
    c2 = lambda k: (0, 0)
    c3 = lambda k: (0, 0, 0)
    return pl.pallas_call(
        functools.partial(_encoder_kernel, batch=batch, seq=seq),
        out_shape=(
            jax.ShapeDtypeStruct((batch, TXT), jnp.float32),         # context
            jax.ShapeDtypeStruct((batch * CIMG, POS), jnp.float32),  # attn map
        ),
        grid=(nk,),
        in_specs=[
            pl.BlockSpec((batch, 3 * PATCH * PATCH, POS), c3),       # xp patches
            pl.BlockSpec((seq * batch, TXT), c2),                    # token embeds
            pl.BlockSpec((CIMG, 3 * PATCH * PATCH), c2),             # conv weight
            pl.BlockSpec((CIMG, 1), c2),                             # conv bias
            pl.BlockSpec((TXT, 4 * TXT), c2),                        # lstm w_ih
            pl.BlockSpec((TXT, 4 * TXT), c2),                        # lstm w_hh
            pl.BlockSpec((1, 4 * TXT), c2),                          # lstm bias
            pl.BlockSpec((TXT, POS), c2),                            # qfc weight
            pl.BlockSpec((1, POS), c2),                              # qfc bias
            pl.BlockSpec((POS, POS), c2),                            # attn weight
            pl.BlockSpec((1, POS), c2),                              # attn bias
            pl.BlockSpec((1, FUSE_IN), c2),                          # BN1 scale
            pl.BlockSpec((1, FUSE_IN), c2),                          # BN1 shift
            pl.BlockSpec((FUSE_IN, FUSE_TK), lambda k: (0, k)),      # fc1_w chunk (bf16, streamed)
            pl.BlockSpec((1, FUSE_TK), lambda k: (0, k)),            # fc1_b' chunk
            pl.BlockSpec((FUSE_HID_PAD, TXT), c2),                   # fc2_w (bf16, resident)
            pl.BlockSpec((1, TXT), c2),                              # fc2_b
        ],
        out_specs=(pl.BlockSpec((batch, TXT), c2),
                   pl.BlockSpec((batch * CIMG, POS), c2)),
        scratch_shapes=[pltpu.VMEM((batch, FUSE_IN), jnp.float32),   # activated x
                        pltpu.VMEM((batch, TXT), jnp.float32)],      # accumulator
        compiler_params=pltpu.CompilerParams(
            dimension_semantics=("arbitrary",)),
    )(xp_t, tok_tb, wc, p["conv_b"], p["w_ih"], p["w_hh"], p["b_lstm"],
      p["qfc_w"], p["qfc_b"], p["attn_w"], p["attn_b"],
      p["bn1_scale"], p["bn1_shift"],
      p["fc1_w"], p["fc1_b"], p["fc2_w"], p["fc2_b"])


# ------------------------- parameters -------------------------

def init_params(key):
    ks = jax.random.split(key, 14)
    s = 0.05
    f32 = jnp.float32
    eps = 1e-5
    p = {}
    p["emb"] = jax.random.normal(ks[0], (VOCAB, TXT), f32) * s
    p["conv_w"] = jax.random.normal(ks[1], (CIMG, 3, PATCH, PATCH), f32) * s
    p["conv_b"] = jax.random.normal(ks[2], (CIMG, 1), f32) * s
    # LSTM (single layer, unidirectional): weights stored pre-transposed (H, 4H)
    p["w_ih"] = jax.random.normal(ks[3], (TXT, 4 * TXT), f32) * s
    p["w_hh"] = jax.random.normal(ks[4], (TXT, 4 * TXT), f32) * s
    p["b_lstm"] = jax.random.normal(ks[5], (1, 4 * TXT), f32) * s    # b_ih + b_hh
    # question -> 49 projection (stand-in for undefined question_attn_fc)
    p["qfc_w"] = jax.random.normal(ks[6], (TXT, POS), f32) * s
    p["qfc_b"] = jax.random.normal(ks[7], (1, POS), f32) * s
    # attention Linear(49, 49)
    p["attn_w"] = jax.random.normal(ks[8], (POS, POS), f32) * s
    p["attn_b"] = jax.random.normal(ks[9], (1, POS), f32) * s

    # BatchNorm1d(816) eval (PyTorch defaults) folded to per-column scale/shift.
    bn1_g = jnp.ones((1, FUSE_IN), f32); bn1_b = jnp.zeros((1, FUSE_IN), f32)
    bn1_m = jnp.zeros((1, FUSE_IN), f32); bn1_v = jnp.ones((1, FUSE_IN), f32)
    s1 = bn1_g * jax.lax.rsqrt(bn1_v + eps)
    p["bn1_scale"] = s1
    p["bn1_shift"] = bn1_b - bn1_m * s1

    # Fusion Linears; BatchNorm1d(2500) eval folded into fc1; hidden dim padded
    # 2500 -> 2560 with exact zeros (weights AND bias AND fc2 rows), so padded
    # columns can never contribute regardless of BN statistics.
    fc1_w = jax.random.normal(ks[10], (FUSE_IN, FUSE_HID), f32) * s
    fc1_b = jax.random.normal(ks[11], (1, FUSE_HID), f32) * s
    fc2_w = jax.random.normal(ks[12], (FUSE_HID, TXT), f32) * s
    p["fc2_b"] = jax.random.normal(ks[13], (1, TXT), f32) * s
    bn2_g = jnp.ones((1, FUSE_HID), f32); bn2_b = jnp.zeros((1, FUSE_HID), f32)
    bn2_m = jnp.zeros((1, FUSE_HID), f32); bn2_v = jnp.ones((1, FUSE_HID), f32)
    s2 = bn2_g * jax.lax.rsqrt(bn2_v + eps)
    w1f = fc1_w * s2
    b1f = (fc1_b - bn2_m) * s2 + bn2_b
    pad = FUSE_HID_PAD - FUSE_HID
    p["fc1_w"] = jnp.pad(w1f, ((0, 0), (0, pad))).astype(jnp.bfloat16)
    p["fc1_b"] = jnp.pad(b1f, ((0, 0), (0, pad)))
    p["fc2_w"] = jnp.pad(fc2_w, ((0, pad), (0, 0))).astype(jnp.bfloat16)
    return p


# ------------------------- forward -------------------------

def encoder_2d_attn_forward(params, img, quest):
    b, t = quest.shape

    # --- pure-layout / gather prep left to XLA (no compute, tiny tensors) ---
    # 4x4/stride-4 patch extraction -> (B, 48, 49): patch features x positions
    xp = img.reshape(b, 3, FMAP, PATCH, FMAP, PATCH)
    xp = jnp.transpose(xp, (0, 2, 4, 1, 3, 5)).reshape(b, POS, 3 * PATCH * PATCH)
    xp_t = jnp.transpose(xp, (0, 2, 1))                           # (B, 48, 49)
    wc = params["conv_w"].reshape(CIMG, 3 * PATCH * PATCH)        # (CIMG, 48)
    # token embedding lookup + time-major layout for the in-kernel LSTM
    tok = jnp.take(params["emb"], quest, axis=0)                  # (B, T, TXT)
    tok_tb = jnp.transpose(tok, (1, 0, 2)).reshape(t * b, TXT)    # (T*B, TXT)

    # --- single fused kernel: conv+ReLU, LSTM, qfc, attention, fusion MLP ---
    context, attn_map = pallas_encoder(xp_t, tok_tb, wc, params, batch=b, seq=t)
    return context, attn_map


if __name__ == "__main__":
    key = jax.random.PRNGKey(0)
    k_img, k_q, k_p = jax.random.split(key, 3)
    params = init_params(k_p)
    img = jax.random.normal(k_img, (B, 3, IMGSZ, IMGSZ), jnp.float32)
    quest = jax.random.randint(k_q, (B, T), 0, VOCAB)

    forward = jax.jit(encoder_2d_attn_forward)
    context, attn_map = forward(params, img, quest)
    jax.block_until_ready((context, attn_map))

    assert context.shape == (B, TXT), context.shape
    assert attn_map.shape == (B * CIMG, POS), attn_map.shape
    assert bool(jnp.all(jnp.isfinite(context))), "non-finite context"
    print("KERNEL_OK")
</pallas_src>

<mosaic_0001>
module attributes {stable_mosaic.version = 11 : i64} {
  func.func @_encoder_kernel(%arg0: i32, %arg1: memref<2x48x49xf32, #tpu.memory_space<vmem>>, %arg2: memref<16x32xf32, #tpu.memory_space<vmem>>, %arg3: memref<16x48xf32, #tpu.memory_space<vmem>>, %arg4: memref<16x1xf32, #tpu.memory_space<vmem>>, %arg5: memref<32x128xf32, #tpu.memory_space<vmem>>, %arg6: memref<32x128xf32, #tpu.memory_space<vmem>>, %arg7: memref<1x128xf32, #tpu.memory_space<vmem>>, %arg8: memref<32x49xf32, #tpu.memory_space<vmem>>, %arg9: memref<1x49xf32, #tpu.memory_space<vmem>>, %arg10: memref<49x49xf32, #tpu.memory_space<vmem>>, %arg11: memref<1x49xf32, #tpu.memory_space<vmem>>, %arg12: memref<1x816xf32, #tpu.memory_space<vmem>>, %arg13: memref<1x816xf32, #tpu.memory_space<vmem>>, %arg14: memref<816x1280xbf16, #tpu.memory_space<vmem>>, %arg15: memref<1x1280xf32, #tpu.memory_space<vmem>>, %arg16: memref<2560x32xbf16, #tpu.memory_space<vmem>>, %arg17: memref<1x32xf32, #tpu.memory_space<vmem>>, %arg18: memref<2x32xf32, #tpu.memory_space<vmem>>, %arg19: memref<32x49xf32, #tpu.memory_space<vmem>>, %arg20: memref<2x816xf32, #tpu.memory_space<vmem>>, %arg21: memref<2x32xf32, #tpu.memory_space<vmem>>) attributes {dimension_semantics = [#tpu.dimension_semantics<arbitrary>], iteration_bounds = array<i64: 2>, scalar_prefetch = 0 : i64, scratch_operands = 2 : i64, tpu.core_type = #tpu.core_type<tc>, window_params = [{pipeline_mode = #tpu.pipeline_mode<synchronous>, transform_indices = @transform_0, window_bounds = array<i64: 2, 48, 49>}, {pipeline_mode = #tpu.pipeline_mode<synchronous>, transform_indices = @transform_1, window_bounds = array<i64: 16, 32>}, {pipeline_mode = #tpu.pipeline_mode<synchronous>, transform_indices = @transform_2, window_bounds = array<i64: 16, 48>}, {pipeline_mode = #tpu.pipeline_mode<synchronous>, transform_indices = @transform_3, window_bounds = array<i64: 16, 1>}, {pipeline_mode = #tpu.pipeline_mode<synchronous>, transform_indices = @transform_4, window_bounds = array<i64: 32, 128>}, {pipeline_mode = #tpu.pipeline_mode<synchronous>, transform_indices = @transform_5, window_bounds = array<i64: 32, 128>}, {pipeline_mode = #tpu.pipeline_mode<synchronous>, transform_indices = @transform_6, window_bounds = array<i64: 1, 128>}, {pipeline_mode = #tpu.pipeline_mode<synchronous>, transform_indices = @transform_7, window_bounds = array<i64: 32, 49>}, {pipeline_mode = #tpu.pipeline_mode<synchronous>, transform_indices = @transform_8, window_bounds = array<i64: 1, 49>}, {pipeline_mode = #tpu.pipeline_mode<synchronous>, transform_indices = @transform_9, window_bounds = array<i64: 49, 49>}, {pipeline_mode = #tpu.pipeline_mode<synchronous>, transform_indices = @transform_10, window_bounds = array<i64: 1, 49>}, {pipeline_mode = #tpu.pipeline_mode<synchronous>, transform_indices = @transform_11, window_bounds = array<i64: 1, 816>}, {pipeline_mode = #tpu.pipeline_mode<synchronous>, transform_indices = @transform_12, window_bounds = array<i64: 1, 816>}, {transform_indices = @transform_13, window_bounds = array<i64: 816, 1280>}, {transform_indices = @transform_14, window_bounds = array<i64: 1, 1280>}, {pipeline_mode = #tpu.pipeline_mode<synchronous>, transform_indices = @transform_15, window_bounds = array<i64: 2560, 32>}, {pipeline_mode = #tpu.pipeline_mode<synchronous>, transform_indices = @transform_16, window_bounds = array<i64: 1, 32>}, {pipeline_mode = #tpu.pipeline_mode<synchronous>, transform_indices = @transform_17, window_bounds = array<i64: 2, 32>}, {pipeline_mode = #tpu.pipeline_mode<synchronous>, transform_indices = @transform_18, window_bounds = array<i64: 32, 49>}]} {
    %c0_i32 = arith.constant 0 : i32
    %0 = arith.cmpi eq, %arg0, %c0_i32 : i32
    %1 = arith.extui %0 : i1 to i32
    %c0_i32_0 = arith.constant 0 : i32
    %2 = arith.cmpi ne, %1, %c0_i32_0 : i32
    scf.if %2 {
      %c0_13 = arith.constant 0 : index
      %c0_14 = arith.constant 0 : index
      %22 = vector.load %arg2[%c0_13, %c0_14] : memref<16x32xf32, #tpu.memory_space<vmem>>, vector<16x32xf32>
      %c0_15 = arith.constant 0 : index
      %c0_16 = arith.constant 0 : index
      %23 = vector.load %arg5[%c0_15, %c0_16] : memref<32x128xf32, #tpu.memory_space<vmem>>, vector<32x128xf32>
      %cst_17 = arith.constant dense<0.000000e+00> : vector<16x128xf32>
      %24 = tpu.matmul %22, %23, %cst_17 {dimension_numbers = #tpu.dot_dimension_numbers<[1], [0], [0], [1], [0, 0, 1, 1], [], []>} : vector<16x32xf32>, vector<32x128xf32>, vector<16x128xf32> -> vector<16x128xf32>
      %c0_18 = arith.constant 0 : index
      %c0_19 = arith.constant 0 : index
      %25 = vector.load %arg7[%c0_18, %c0_19] : memref<1x128xf32, #tpu.memory_space<vmem>>, vector<1x128xf32>
      %26 = vector.broadcast %25 : vector<1x128xf32> to vector<16x128xf32>
      %27 = arith.addf %24, %26 : vector<16x128xf32>
      %c0_20 = arith.constant 0 : index
      %c0_21 = arith.constant 0 : index
      %28 = vector.load %arg6[%c0_20, %c0_21] : memref<32x128xf32, #tpu.memory_space<vmem>>, vector<32x128xf32>
      %cst_22 = arith.constant 0.000000e+00 : f32
      %29 = vector.broadcast %cst_22 : f32 to vector<2x32xf32>
      %cst_23 = arith.constant 0.000000e+00 : f32
      %30 = vector.broadcast %cst_23 : f32 to vector<2x32xf32>
      %31 = vector.extract_strided_slice %27 {offsets = [0, 0], sizes = [2, 128], strides = [1, 1]} : vector<16x128xf32> to vector<2x128xf32>
      %cst_24 = arith.constant dense<0.000000e+00> : vector<2x128xf32>
      %32 = tpu.matmul %29, %28, %cst_24 {dimension_numbers = #tpu.dot_dimension_numbers<[1], [0], [0], [1], [0, 0, 1, 1], [], []>} : vector<2x32xf32>, vector<32x128xf32>, vector<2x128xf32> -> vector<2x128xf32>
      %33 = arith.addf %31, %32 : vector<2x128xf32>
      %34 = vector.extract_strided_slice %33 {offsets = [0, 0], sizes = [2, 32], strides = [1, 1]} : vector<2x128xf32> to vector<2x32xf32>
      %35 = arith.negf %34 : vector<2x32xf32>
      %36 = math.exp %35 : vector<2x32xf32>
      %cst_25 = arith.constant 1.000000e+00 : f32
      %37 = vector.broadcast %cst_25 : f32 to vector<2x32xf32>
      %38 = arith.addf %37, %36 : vector<2x32xf32>
      %39 = arith.divf %37, %38 : vector<2x32xf32>
      %40 = vector.extract_strided_slice %33 {offsets = [0, 32], sizes = [2, 32], strides = [1, 1]} : vector<2x128xf32> to vector<2x32xf32>
      %41 = arith.negf %40 : vector<2x32xf32>
      %42 = math.exp %41 : vector<2x32xf32>
      %cst_26 = arith.constant 1.000000e+00 : f32
      %43 = vector.broadcast %cst_26 : f32 to vector<2x32xf32>
      %44 = arith.addf %43, %42 : vector<2x32xf32>
      %45 = arith.divf %43, %44 : vector<2x32xf32>
      %46 = vector.extract_strided_slice %33 {offsets = [0, 64], sizes = [2, 32], strides = [1, 1]} : vector<2x128xf32> to vector<2x32xf32>
      %47 = math.tanh %46 : vector<2x32xf32>
      %48 = vector.extract_strided_slice %33 {offsets = [0, 96], sizes = [2, 32], strides = [1, 1]} : vector<2x128xf32> to vector<2x32xf32>
      %49 = arith.negf %48 : vector<2x32xf32>
      %50 = math.exp %49 : vector<2x32xf32>
      %cst_27 = arith.constant 1.000000e+00 : f32
      %51 = vector.broadcast %cst_27 : f32 to vector<2x32xf32>
      %52 = arith.addf %51, %50 : vector<2x32xf32>
      %53 = arith.divf %51, %52 : vector<2x32xf32>
      %54 = arith.mulf %45, %30 : vector<2x32xf32>
      %55 = arith.mulf %39, %47 : vector<2x32xf32>
      %56 = arith.addf %54, %55 : vector<2x32xf32>
      %57 = math.tanh %56 : vector<2x32xf32>
      %58 = arith.mulf %53, %57 : vector<2x32xf32>
      %59 = vector.extract_strided_slice %27 {offsets = [2, 0], sizes = [2, 128], strides = [1, 1]} : vector<16x128xf32> to vector<2x128xf32>
      %cst_28 = arith.constant dense<0.000000e+00> : vector<2x128xf32>
      %60 = tpu.matmul %58, %28, %cst_28 {dimension_numbers = #tpu.dot_dimension_numbers<[1], [0], [0], [1], [0, 0, 1, 1], [], []>} : vector<2x32xf32>, vector<32x128xf32>, vector<2x128xf32> -> vector<2x128xf32>
      %61 = arith.addf %59, %60 : vector<2x128xf32>
      %62 = vector.extract_strided_slice %61 {offsets = [0, 0], sizes = [2, 32], strides = [1, 1]} : vector<2x128xf32> to vector<2x32xf32>
      %63 = arith.negf %62 : vector<2x32xf32>
      %64 = math.exp %63 : vector<2x32xf32>
      %cst_29 = arith.constant 1.000000e+00 : f32
      %65 = vector.broadcast %cst_29 : f32 to vector<2x32xf32>
      %66 = arith.addf %65, %64 : vector<2x32xf32>
      %67 = arith.divf %65, %66 : vector<2x32xf32>
      %68 = vector.extract_strided_slice %61 {offsets = [0, 32], sizes = [2, 32], strides = [1, 1]} : vector<2x128xf32> to vector<2x32xf32>
      %69 = arith.negf %68 : vector<2x32xf32>
      %70 = math.exp %69 : vector<2x32xf32>
      %cst_30 = arith.constant 1.000000e+00 : f32
      %71 = vector.broadcast %cst_30 : f32 to vector<2x32xf32>
      %72 = arith.addf %71, %70 : vector<2x32xf32>
      %73 = arith.divf %71, %72 : vector<2x32xf32>
      %74 = vector.extract_strided_slice %61 {offsets = [0, 64], sizes = [2, 32], strides = [1, 1]} : vector<2x128xf32> to vector<2x32xf32>
      %75 = math.tanh %74 : vector<2x32xf32>
      %76 = vector.extract_strided_slice %61 {offsets = [0, 96], sizes = [2, 32], strides = [1, 1]} : vector<2x128xf32> to vector<2x32xf32>
      %77 = arith.negf %76 : vector<2x32xf32>
      %78 = math.exp %77 : vector<2x32xf32>
      %cst_31 = arith.constant 1.000000e+00 : f32
      %79 = vector.broadcast %cst_31 : f32 to vector<2x32xf32>
      %80 = arith.addf %79, %78 : vector<2x32xf32>
      %81 = arith.divf %79, %80 : vector<2x32xf32>
      %82 = arith.mulf %73, %56 : vector<2x32xf32>
      %83 = arith.mulf %67, %75 : vector<2x32xf32>
      %84 = arith.addf %82, %83 : vector<2x32xf32>
      %85 = math.tanh %84 : vector<2x32xf32>
      %86 = arith.mulf %81, %85 : vector<2x32xf32>
      %87 = vector.extract_strided_slice %27 {offsets = [4, 0], sizes = [2, 128], strides = [1, 1]} : vector<16x128xf32> to vector<2x128xf32>
      %cst_32 = arith.constant dense<0.000000e+00> : vector<2x128xf32>
      %88 = tpu.matmul %86, %28, %cst_32 {dimension_numbers = #tpu.dot_dimension_numbers<[1], [0], [0], [1], [0, 0, 1, 1], [], []>} : vector<2x32xf32>, vector<32x128xf32>, vector<2x128xf32> -> vector<2x128xf32>
      %89 = arith.addf %87, %88 : vector<2x128xf32>
      %90 = vector.extract_strided_slice %89 {offsets = [0, 0], sizes = [2, 32], strides = [1, 1]} : vector<2x128xf32> to vector<2x32xf32>
      %91 = arith.negf %90 : vector<2x32xf32>
      %92 = math.exp %91 : vector<2x32xf32>
      %cst_33 = arith.constant 1.000000e+00 : f32
      %93 = vector.broadcast %cst_33 : f32 to vector<2x32xf32>
      %94 = arith.addf %93, %92 : vector<2x32xf32>
      %95 = arith.divf %93, %94 : vector<2x32xf32>
      %96 = vector.extract_strided_slice %89 {offsets = [0, 32], sizes = [2, 32], strides = [1, 1]} : vector<2x128xf32> to vector<2x32xf32>
      %97 = arith.negf %96 : vector<2x32xf32>
      %98 = math.exp %97 : vector<2x32xf32>
      %cst_34 = arith.constant 1.000000e+00 : f32
      %99 = vector.broadcast %cst_34 : f32 to vector<2x32xf32>
      %100 = arith.addf %99, %98 : vector<2x32xf32>
      %101 = arith.divf %99, %100 : vector<2x32xf32>
      %102 = vector.extract_strided_slice %89 {offsets = [0, 64], sizes = [2, 32], strides = [1, 1]} : vector<2x128xf32> to vector<2x32xf32>
      %103 = math.tanh %102 : vector<2x32xf32>
      %104 = vector.extract_strided_slice %89 {offsets = [0, 96], sizes = [2, 32], strides = [1, 1]} : vector<2x128xf32> to vector<2x32xf32>
      %105 = arith.negf %104 : vector<2x32xf32>
      %106 = math.exp %105 : vector<2x32xf32>
      %cst_35 = arith.constant 1.000000e+00 : f32
      %107 = vector.broadcast %cst_35 : f32 to vector<2x32xf32>
      %108 = arith.addf %107, %106 : vector<2x32xf32>
      %109 = arith.divf %107, %108 : vector<2x32xf32>
      %110 = arith.mulf %101, %84 : vector<2x32xf32>
      %111 = arith.mulf %95, %103 : vector<2x32xf32>
      %112 = arith.addf %110, %111 : vector<2x32xf32>
      %113 = math.tanh %112 : vector<2x32xf32>
      %114 = arith.mulf %109, %113 : vector<2x32xf32>
      %115 = vector.extract_strided_slice %27 {offsets = [6, 0], sizes = [2, 128], strides = [1, 1]} : vector<16x128xf32> to vector<2x128xf32>
      %cst_36 = arith.constant dense<0.000000e+00> : vector<2x128xf32>
      %116 = tpu.matmul %114, %28, %cst_36 {dimension_numbers = #tpu.dot_dimension_numbers<[1], [0], [0], [1], [0, 0, 1, 1], [], []>} : vector<2x32xf32>, vector<32x128xf32>, vector<2x128xf32> -> vector<2x128xf32>
      %117 = arith.addf %115, %116 : vector<2x128xf32>
      %118 = vector.extract_strided_slice %117 {offsets = [0, 0], sizes = [2, 32], strides = [1, 1]} : vector<2x128xf32> to vector<2x32xf32>
      %119 = arith.negf %118 : vector<2x32xf32>
      %120 = math.exp %119 : vector<2x32xf32>
      %cst_37 = arith.constant 1.000000e+00 : f32
      %121 = vector.broadcast %cst_37 : f32 to vector<2x32xf32>
      %122 = arith.addf %121, %120 : vector<2x32xf32>
      %123 = arith.divf %121, %122 : vector<2x32xf32>
      %124 = vector.extract_strided_slice %117 {offsets = [0, 32], sizes = [2, 32], strides = [1, 1]} : vector<2x128xf32> to vector<2x32xf32>
      %125 = arith.negf %124 : vector<2x32xf32>
      %126 = math.exp %125 : vector<2x32xf32>
      %cst_38 = arith.constant 1.000000e+00 : f32
      %127 = vector.broadcast %cst_38 : f32 to vector<2x32xf32>
      %128 = arith.addf %127, %126 : vector<2x32xf32>
      %129 = arith.divf %127, %128 : vector<2x32xf32>
      %130 = vector.extract_strided_slice %117 {offsets = [0, 64], sizes = [2, 32], strides = [1, 1]} : vector<2x128xf32> to vector<2x32xf32>
      %131 = math.tanh %130 : vector<2x32xf32>
      %132 = vector.extract_strided_slice %117 {offsets = [0, 96], sizes = [2, 32], strides = [1, 1]} : vector<2x128xf32> to vector<2x32xf32>
      %133 = arith.negf %132 : vector<2x32xf32>
      %134 = math.exp %133 : vector<2x32xf32>
      %cst_39 = arith.constant 1.000000e+00 : f32
      %135 = vector.broadcast %cst_39 : f32 to vector<2x32xf32>
      %136 = arith.addf %135, %134 : vector<2x32xf32>
      %137 = arith.divf %135, %136 : vector<2x32xf32>
      %138 = arith.mulf %129, %112 : vector<2x32xf32>
      %139 = arith.mulf %123, %131 : vector<2x32xf32>
      %140 = arith.addf %138, %139 : vector<2x32xf32>
      %141 = math.tanh %140 : vector<2x32xf32>
      %142 = arith.mulf %137, %141 : vector<2x32xf32>
      %143 = vector.extract_strided_slice %27 {offsets = [8, 0], sizes = [2, 128], strides = [1, 1]} : vector<16x128xf32> to vector<2x128xf32>
      %cst_40 = arith.constant dense<0.000000e+00> : vector<2x128xf32>
      %144 = tpu.matmul %142, %28, %cst_40 {dimension_numbers = #tpu.dot_dimension_numbers<[1], [0], [0], [1], [0, 0, 1, 1], [], []>} : vector<2x32xf32>, vector<32x128xf32>, vector<2x128xf32> -> vector<2x128xf32>
      %145 = arith.addf %143, %144 : vector<2x128xf32>
      %146 = vector.extract_strided_slice %145 {offsets = [0, 0], sizes = [2, 32], strides = [1, 1]} : vector<2x128xf32> to vector<2x32xf32>
      %147 = arith.negf %146 : vector<2x32xf32>
      %148 = math.exp %147 : vector<2x32xf32>
      %cst_41 = arith.constant 1.000000e+00 : f32
      %149 = vector.broadcast %cst_41 : f32 to vector<2x32xf32>
      %150 = arith.addf %149, %148 : vector<2x32xf32>
      %151 = arith.divf %149, %150 : vector<2x32xf32>
      %152 = vector.extract_strided_slice %145 {offsets = [0, 32], sizes = [2, 32], strides = [1, 1]} : vector<2x128xf32> to vector<2x32xf32>
      %153 = arith.negf %152 : vector<2x32xf32>
      %154 = math.exp %153 : vector<2x32xf32>
      %cst_42 = arith.constant 1.000000e+00 : f32
      %155 = vector.broadcast %cst_42 : f32 to vector<2x32xf32>
      %156 = arith.addf %155, %154 : vector<2x32xf32>
      %157 = arith.divf %155, %156 : vector<2x32xf32>
      %158 = vector.extract_strided_slice %145 {offsets = [0, 64], sizes = [2, 32], strides = [1, 1]} : vector<2x128xf32> to vector<2x32xf32>
      %159 = math.tanh %158 : vector<2x32xf32>
      %160 = vector.extract_strided_slice %145 {offsets = [0, 96], sizes = [2, 32], strides = [1, 1]} : vector<2x128xf32> to vector<2x32xf32>
      %161 = arith.negf %160 : vector<2x32xf32>
      %162 = math.exp %161 : vector<2x32xf32>
      %cst_43 = arith.constant 1.000000e+00 : f32
      %163 = vector.broadcast %cst_43 : f32 to vector<2x32xf32>
      %164 = arith.addf %163, %162 : vector<2x32xf32>
      %165 = arith.divf %163, %164 : vector<2x32xf32>
      %166 = arith.mulf %157, %140 : vector<2x32xf32>
      %167 = arith.mulf %151, %159 : vector<2x32xf32>
      %168 = arith.addf %166, %167 : vector<2x32xf32>
      %169 = math.tanh %168 : vector<2x32xf32>
      %170 = arith.mulf %165, %169 : vector<2x32xf32>
      %171 = vector.extract_strided_slice %27 {offsets = [10, 0], sizes = [2, 128], strides = [1, 1]} : vector<16x128xf32> to vector<2x128xf32>
      %cst_44 = arith.constant dense<0.000000e+00> : vector<2x128xf32>
      %172 = tpu.matmul %170, %28, %cst_44 {dimension_numbers = #tpu.dot_dimension_numbers<[1], [0], [0], [1], [0, 0, 1, 1], [], []>} : vector<2x32xf32>, vector<32x128xf32>, vector<2x128xf32> -> vector<2x128xf32>
      %173 = arith.addf %171, %172 : vector<2x128xf32>
      %174 = vector.extract_strided_slice %173 {offsets = [0, 0], sizes = [2, 32], strides = [1, 1]} : vector<2x128xf32> to vector<2x32xf32>
      %175 = arith.negf %174 : vector<2x32xf32>
      %176 = math.exp %175 : vector<2x32xf32>
      %cst_45 = arith.constant 1.000000e+00 : f32
      %177 = vector.broadcast %cst_45 : f32 to vector<2x32xf32>
      %178 = arith.addf %177, %176 : vector<2x32xf32>
      %179 = arith.divf %177, %178 : vector<2x32xf32>
      %180 = vector.extract_strided_slice %173 {offsets = [0, 32], sizes = [2, 32], strides = [1, 1]} : vector<2x128xf32> to vector<2x32xf32>
      %181 = arith.negf %180 : vector<2x32xf32>
      %182 = math.exp %181 : vector<2x32xf32>
      %cst_46 = arith.constant 1.000000e+00 : f32
      %183 = vector.broadcast %cst_46 : f32 to vector<2x32xf32>
      %184 = arith.addf %183, %182 : vector<2x32xf32>
      %185 = arith.divf %183, %184 : vector<2x32xf32>
      %186 = vector.extract_strided_slice %173 {offsets = [0, 64], sizes = [2, 32], strides = [1, 1]} : vector<2x128xf32> to vector<2x32xf32>
      %187 = math.tanh %186 : vector<2x32xf32>
      %188 = vector.extract_strided_slice %173 {offsets = [0, 96], sizes = [2, 32], strides = [1, 1]} : vector<2x128xf32> to vector<2x32xf32>
      %189 = arith.negf %188 : vector<2x32xf32>
      %190 = math.exp %189 : vector<2x32xf32>
      %cst_47 = arith.constant 1.000000e+00 : f32
      %191 = vector.broadcast %cst_47 : f32 to vector<2x32xf32>
      %192 = arith.addf %191, %190 : vector<2x32xf32>
      %193 = arith.divf %191, %192 : vector<2x32xf32>
      %194 = arith.mulf %185, %168 : vector<2x32xf32>
      %195 = arith.mulf %179, %187 : vector<2x32xf32>
      %196 = arith.addf %194, %195 : vector<2x32xf32>
      %197 = math.tanh %196 : vector<2x32xf32>
      %198 = arith.mulf %193, %197 : vector<2x32xf32>
      %199 = vector.extract_strided_slice %27 {offsets = [12, 0], sizes = [2, 128], strides = [1, 1]} : vector<16x128xf32> to vector<2x128xf32>
      %cst_48 = arith.constant dense<0.000000e+00> : vector<2x128xf32>
      %200 = tpu.matmul %198, %28, %cst_48 {dimension_numbers = #tpu.dot_dimension_numbers<[1], [0], [0], [1], [0, 0, 1, 1], [], []>} : vector<2x32xf32>, vector<32x128xf32>, vector<2x128xf32> -> vector<2x128xf32>
      %201 = arith.addf %199, %200 : vector<2x128xf32>
      %202 = vector.extract_strided_slice %201 {offsets = [0, 0], sizes = [2, 32], strides = [1, 1]} : vector<2x128xf32> to vector<2x32xf32>
      %203 = arith.negf %202 : vector<2x32xf32>
      %204 = math.exp %203 : vector<2x32xf32>
      %cst_49 = arith.constant 1.000000e+00 : f32
      %205 = vector.broadcast %cst_49 : f32 to vector<2x32xf32>
      %206 = arith.addf %205, %204 : vector<2x32xf32>
      %207 = arith.divf %205, %206 : vector<2x32xf32>
      %208 = vector.extract_strided_slice %201 {offsets = [0, 32], sizes = [2, 32], strides = [1, 1]} : vector<2x128xf32> to vector<2x32xf32>
      %209 = arith.negf %208 : vector<2x32xf32>
      %210 = math.exp %209 : vector<2x32xf32>
      %cst_50 = arith.constant 1.000000e+00 : f32
      %211 = vector.broadcast %cst_50 : f32 to vector<2x32xf32>
      %212 = arith.addf %211, %210 : vector<2x32xf32>
      %213 = arith.divf %211, %212 : vector<2x32xf32>
      %214 = vector.extract_strided_slice %201 {offsets = [0, 64], sizes = [2, 32], strides = [1, 1]} : vector<2x128xf32> to vector<2x32xf32>
      %215 = math.tanh %214 : vector<2x32xf32>
      %216 = vector.extract_strided_slice %201 {offsets = [0, 96], sizes = [2, 32], strides = [1, 1]} : vector<2x128xf32> to vector<2x32xf32>
      %217 = arith.negf %216 : vector<2x32xf32>
      %218 = math.exp %217 : vector<2x32xf32>
      %cst_51 = arith.constant 1.000000e+00 : f32
      %219 = vector.broadcast %cst_51 : f32 to vector<2x32xf32>
      %220 = arith.addf %219, %218 : vector<2x32xf32>
      %221 = arith.divf %219, %220 : vector<2x32xf32>
      %222 = arith.mulf %213, %196 : vector<2x32xf32>
      %223 = arith.mulf %207, %215 : vector<2x32xf32>
      %224 = arith.addf %222, %223 : vector<2x32xf32>
      %225 = math.tanh %224 : vector<2x32xf32>
      %226 = arith.mulf %221, %225 : vector<2x32xf32>
      %227 = vector.extract_strided_slice %27 {offsets = [14, 0], sizes = [2, 128], strides = [1, 1]} : vector<16x128xf32> to vector<2x128xf32>
      %cst_52 = arith.constant dense<0.000000e+00> : vector<2x128xf32>
      %228 = tpu.matmul %226, %28, %cst_52 {dimension_numbers = #tpu.dot_dimension_numbers<[1], [0], [0], [1], [0, 0, 1, 1], [], []>} : vector<2x32xf32>, vector<32x128xf32>, vector<2x128xf32> -> vector<2x128xf32>
      %229 = arith.addf %227, %228 : vector<2x128xf32>
      %230 = vector.extract_strided_slice %229 {offsets = [0, 0], sizes = [2, 32], strides = [1, 1]} : vector<2x128xf32> to vector<2x32xf32>
      %231 = arith.negf %230 : vector<2x32xf32>
      %232 = math.exp %231 : vector<2x32xf32>
      %cst_53 = arith.constant 1.000000e+00 : f32
      %233 = vector.broadcast %cst_53 : f32 to vector<2x32xf32>
      %234 = arith.addf %233, %232 : vector<2x32xf32>
      %235 = arith.divf %233, %234 : vector<2x32xf32>
      %236 = vector.extract_strided_slice %229 {offsets = [0, 32], sizes = [2, 32], strides = [1, 1]} : vector<2x128xf32> to vector<2x32xf32>
      %237 = arith.negf %236 : vector<2x32xf32>
      %238 = math.exp %237 : vector<2x32xf32>
      %cst_54 = arith.constant 1.000000e+00 : f32
      %239 = vector.broadcast %cst_54 : f32 to vector<2x32xf32>
      %240 = arith.addf %239, %238 : vector<2x32xf32>
      %241 = arith.divf %239, %240 : vector<2x32xf32>
      %242 = vector.extract_strided_slice %229 {offsets = [0, 64], sizes = [2, 32], strides = [1, 1]} : vector<2x128xf32> to vector<2x32xf32>
      %243 = math.tanh %242 : vector<2x32xf32>
      %244 = vector.extract_strided_slice %229 {offsets = [0, 96], sizes = [2, 32], strides = [1, 1]} : vector<2x128xf32> to vector<2x32xf32>
      %245 = arith.negf %244 : vector<2x32xf32>
      %246 = math.exp %245 : vector<2x32xf32>
      %cst_55 = arith.constant 1.000000e+00 : f32
      %247 = vector.broadcast %cst_55 : f32 to vector<2x32xf32>
      %248 = arith.addf %247, %246 : vector<2x32xf32>
      %249 = arith.divf %247, %248 : vector<2x32xf32>
      %250 = arith.mulf %241, %224 : vector<2x32xf32>
      %251 = arith.mulf %235, %243 : vector<2x32xf32>
      %252 = arith.addf %250, %251 : vector<2x32xf32>
      %253 = math.tanh %252 : vector<2x32xf32>
      %254 = arith.mulf %249, %253 : vector<2x32xf32>
      %c0_56 = arith.constant 0 : index
      %c0_57 = arith.constant 0 : index
      %255 = vector.load %arg3[%c0_56, %c0_57] : memref<16x48xf32, #tpu.memory_space<vmem>>, vector<16x48xf32>
      %c0_58 = arith.constant 0 : index
      %c0_59 = arith.constant 0 : index
      %256 = vector.load %arg4[%c0_58, %c0_59] : memref<16x1xf32, #tpu.memory_space<vmem>>, vector<16x1xf32>
      %c0_60 = arith.constant 0 : index
      %c0_61 = arith.constant 0 : index
      %c0_62 = arith.constant 0 : index
      %257 = vector.load %arg1[%c0_60, %c0_61, %c0_62] : memref<2x48x49xf32, #tpu.memory_space<vmem>>, vector<1x48x49xf32>
      %258 = vector.shape_cast %257 : vector<1x48x49xf32> to vector<48x49xf32>
      %cst_63 = arith.constant dense<0.000000e+00> : vector<16x49xf32>
      %259 = tpu.matmul %255, %258, %cst_63 {dimension_numbers = #tpu.dot_dimension_numbers<[1], [0], [0], [1], [0, 0, 1, 1], [], []>} : vector<16x48xf32>, vector<48x49xf32>, vector<16x49xf32> -> vector<16x49xf32>
      %260 = vector.broadcast %256 : vector<16x1xf32> to vector<16x49xf32>
      %261 = arith.addf %259, %260 : vector<16x49xf32>
      %cst_64 = arith.constant 0.000000e+00 : f32
      %262 = vector.broadcast %cst_64 : f32 to vector<16x49xf32>
      %263 = arith.maximumf %261, %262 : vector<16x49xf32>
      %264 = vector.extract_strided_slice %263 {offsets = [0, 0], sizes = [1, 49], strides = [1, 1]} : vector<16x49xf32> to vector<1x49xf32>
      %c0_65 = arith.constant 0 : index
      %c0_66 = arith.constant 0 : index
      %265 = vector.load %arg20[%c0_65, %c0_66] : memref<2x816xf32, #tpu.memory_space<vmem>>, vector<1x49xf32>
      tpu.vector_store %arg20[%c0_65, %c0_66], %264 {strides = array<i32>} : memref<2x816xf32, #tpu.memory_space<vmem>>, vector<1x49xf32>,
      %266 = vector.extract_strided_slice %263 {offsets = [1, 0], sizes = [1, 49], strides = [1, 1]} : vector<16x49xf32> to vector<1x49xf32>
      %c0_67 = arith.constant 0 : index
      %c49 = arith.constant 49 : index
      %267 = vector.load %arg20[%c0_67, %c49] : memref<2x816xf32, #tpu.memory_space<vmem>>, vector<1x49xf32>
      tpu.vector_store %arg20[%c0_67, %c49], %266 {strides = array<i32>} : memref<2x816xf32, #tpu.memory_space<vmem>>, vector<1x49xf32>,
      %268 = vector.extract_strided_slice %263 {offsets = [2, 0], sizes = [1, 49], strides = [1, 1]} : vector<16x49xf32> to vector<1x49xf32>
      %c0_68 = arith.constant 0 : index
      %c98 = arith.constant 98 : index
      %269 = vector.load %arg20[%c0_68, %c98] : memref<2x816xf32, #tpu.memory_space<vmem>>, vector<1x49xf32>
      tpu.vector_store %arg20[%c0_68, %c98], %268 {strides = array<i32>} : memref<2x816xf32, #tpu.memory_space<vmem>>, vector<1x49xf32>,
      %270 = vector.extract_strided_slice %263 {offsets = [3, 0], sizes = [1, 49], strides = [1, 1]} : vector<16x49xf32> to vector<1x49xf32>
      %c0_69 = arith.constant 0 : index
      %c147 = arith.constant 147 : index
      %271 = vector.load %arg20[%c0_69, %c147] : memref<2x816xf32, #tpu.memory_space<vmem>>, vector<1x49xf32>
      tpu.vector_store %arg20[%c0_69, %c147], %270 {strides = array<i32>} : memref<2x816xf32, #tpu.memory_space<vmem>>, vector<1x49xf32>,
      %272 = vector.extract_strided_slice %263 {offsets = [4, 0], sizes = [1, 49], strides = [1, 1]} : vector<16x49xf32> to vector<1x49xf32>
      %c0_70 = arith.constant 0 : index
      %c196 = arith.constant 196 : index
      %273 = vector.load %arg20[%c0_70, %c196] : memref<2x816xf32, #tpu.memory_space<vmem>>, vector<1x49xf32>
      tpu.vector_store %arg20[%c0_70, %c196], %272 {strides = array<i32>} : memref<2x816xf32, #tpu.memory_space<vmem>>, vector<1x49xf32>,
      %274 = vector.extract_strided_slice %263 {offsets = [5, 0], sizes = [1, 49], strides = [1, 1]} : vector<16x49xf32> to vector<1x49xf32>
      %c0_71 = arith.constant 0 : index
      %c245 = arith.constant 245 : index
      %275 = vector.load %arg20[%c0_71, %c245] : memref<2x816xf32, #tpu.memory_space<vmem>>, vector<1x49xf32>
      tpu.vector_store %arg20[%c0_71, %c245], %274 {strides = array<i32>} : memref<2x816xf32, #tpu.memory_space<vmem>>, vector<1x49xf32>,
      %276 = vector.extract_strided_slice %263 {offsets = [6, 0], sizes = [1, 49], strides = [1, 1]} : vector<16x49xf32> to vector<1x49xf32>
      %c0_72 = arith.constant 0 : index
      %c294 = arith.constant 294 : index
      %277 = vector.load %arg20[%c0_72, %c294] : memref<2x816xf32, #tpu.memory_space<vmem>>, vector<1x49xf32>
      tpu.vector_store %arg20[%c0_72, %c294], %276 {strides = array<i32>} : memref<2x816xf32, #tpu.memory_space<vmem>>, vector<1x49xf32>,
      %278 = vector.extract_strided_slice %263 {offsets = [7, 0], sizes = [1, 49], strides = [1, 1]} : vector<16x49xf32> to vector<1x49xf32>
      %c0_73 = arith.constant 0 : index
      %c343 = arith.constant 343 : index
      %279 = vector.load %arg20[%c0_73, %c343] : memref<2x816xf32, #tpu.memory_space<vmem>>, vector<1x49xf32>
      tpu.vector_store %arg20[%c0_73, %c343], %278 {strides = array<i32>} : memref<2x816xf32, #tpu.memory_space<vmem>>, vector<1x49xf32>,
      %280 = vector.extract_strided_slice %263 {offsets = [8, 0], sizes = [1, 49], strides = [1, 1]} : vector<16x49xf32> to vector<1x49xf32>
      %c0_74 = arith.constant 0 : index
      %c392 = arith.constant 392 : index
      %281 = vector.load %arg20[%c0_74, %c392] : memref<2x816xf32, #tpu.memory_space<vmem>>, vector<1x49xf32>
      tpu.vector_store %arg20[%c0_74, %c392], %280 {strides = array<i32>} : memref<2x816xf32, #tpu.memory_space<vmem>>, vector<1x49xf32>,
      %282 = vector.extract_strided_slice %263 {offsets = [9, 0], sizes = [1, 49], strides = [1, 1]} : vector<16x49xf32> to vector<1x49xf32>
      %c0_75 = arith.constant 0 : index
      %c441 = arith.constant 441 : index
      %283 = vector.load %arg20[%c0_75, %c441] : memref<2x816xf32, #tpu.memory_space<vmem>>, vector<1x49xf32>
      tpu.vector_store %arg20[%c0_75, %c441], %282 {strides = array<i32>} : memref<2x816xf32, #tpu.memory_space<vmem>>, vector<1x49xf32>,
      %284 = vector.extract_strided_slice %263 {offsets = [10, 0], sizes = [1, 49], strides = [1, 1]} : vector<16x49xf32> to vector<1x49xf32>
      %c0_76 = arith.constant 0 : index
      %c490 = arith.constant 490 : index
      %285 = vector.load %arg20[%c0_76, %c490] : memref<2x816xf32, #tpu.memory_space<vmem>>, vector<1x49xf32>
      tpu.vector_store %arg20[%c0_76, %c490], %284 {strides = array<i32>} : memref<2x816xf32, #tpu.memory_space<vmem>>, vector<1x49xf32>,
      %286 = vector.extract_strided_slice %263 {offsets = [11, 0], sizes = [1, 49], strides = [1, 1]} : vector<16x49xf32> to vector<1x49xf32>
      %c0_77 = arith.constant 0 : index
      %c539 = arith.constant 539 : index
      %287 = vector.load %arg20[%c0_77, %c539] : memref<2x816xf32, #tpu.memory_space<vmem>>, vector<1x49xf32>
      tpu.vector_store %arg20[%c0_77, %c539], %286 {strides = array<i32>} : memref<2x816xf32, #tpu.memory_space<vmem>>, vector<1x49xf32>,
      %288 = vector.extract_strided_slice %263 {offsets = [12, 0], sizes = [1, 49], strides = [1, 1]} : vector<16x49xf32> to vector<1x49xf32>
      %c0_78 = arith.constant 0 : index
      %c588 = arith.constant 588 : index
      %289 = vector.load %arg20[%c0_78, %c588] : memref<2x816xf32, #tpu.memory_space<vmem>>, vector<1x49xf32>
      tpu.vector_store %arg20[%c0_78, %c588], %288 {strides = array<i32>} : memref<2x816xf32, #tpu.memory_space<vmem>>, vector<1x49xf32>,
      %290 = vector.extract_strided_slice %263 {offsets = [13, 0], sizes = [1, 49], strides = [1, 1]} : vector<16x49xf32> to vector<1x49xf32>
      %c0_79 = arith.constant 0 : index
      %c637 = arith.constant 637 : index
      %291 = vector.load %arg20[%c0_79, %c637] : memref<2x816xf32, #tpu.memory_space<vmem>>, vector<1x49xf32>
      tpu.vector_store %arg20[%c0_79, %c637], %290 {strides = array<i32>} : memref<2x816xf32, #tpu.memory_space<vmem>>, vector<1x49xf32>,
      %292 = vector.extract_strided_slice %263 {offsets = [14, 0], sizes = [1, 49], strides = [1, 1]} : vector<16x49xf32> to vector<1x49xf32>
      %c0_80 = arith.constant 0 : index
      %c686 = arith.constant 686 : index
      %293 = vector.load %arg20[%c0_80, %c686] : memref<2x816xf32, #tpu.memory_space<vmem>>, vector<1x49xf32>
      tpu.vector_store %arg20[%c0_80, %c686], %292 {strides = array<i32>} : memref<2x816xf32, #tpu.memory_space<vmem>>, vector<1x49xf32>,
      %294 = vector.extract_strided_slice %263 {offsets = [15, 0], sizes = [1, 49], strides = [1, 1]} : vector<16x49xf32> to vector<1x49xf32>
      %c0_81 = arith.constant 0 : index
      %c735 = arith.constant 735 : index
      %295 = vector.load %arg20[%c0_81, %c735] : memref<2x816xf32, #tpu.memory_space<vmem>>, vector<1x49xf32>
      tpu.vector_store %arg20[%c0_81, %c735], %294 {strides = array<i32>} : memref<2x816xf32, #tpu.memory_space<vmem>>, vector<1x49xf32>,
      %c1 = arith.constant 1 : index
      %c0_82 = arith.constant 0 : index
      %c0_83 = arith.constant 0 : index
      %296 = vector.load %arg1[%c1, %c0_82, %c0_83] : memref<2x48x49xf32, #tpu.memory_space<vmem>>, vector<1x48x49xf32>
      %297 = vector.shape_cast %296 : vector<1x48x49xf32> to vector<48x49xf32>
      %cst_84 = arith.constant dense<0.000000e+00> : vector<16x49xf32>
      %298 = tpu.matmul %255, %297, %cst_84 {dimension_numbers = #tpu.dot_dimension_numbers<[1], [0], [0], [1], [0, 0, 1, 1], [], []>} : vector<16x48xf32>, vector<48x49xf32>, vector<16x49xf32> -> vector<16x49xf32>
      %299 = vector.broadcast %256 : vector<16x1xf32> to vector<16x49xf32>
      %300 = arith.addf %298, %299 : vector<16x49xf32>
      %cst_85 = arith.constant 0.000000e+00 : f32
      %301 = vector.broadcast %cst_85 : f32 to vector<16x49xf32>
      %302 = arith.maximumf %300, %301 : vector<16x49xf32>
      %303 = vector.extract_strided_slice %302 {offsets = [0, 0], sizes = [1, 49], strides = [1, 1]} : vector<16x49xf32> to vector<1x49xf32>
      %c1_86 = arith.constant 1 : index
      %c0_87 = arith.constant 0 : index
      %304 = vector.load %arg20[%c1_86, %c0_87] : memref<2x816xf32, #tpu.memory_space<vmem>>, vector<1x49xf32>
      tpu.vector_store %arg20[%c1_86, %c0_87], %303 {strides = array<i32>} : memref<2x816xf32, #tpu.memory_space<vmem>>, vector<1x49xf32>,
      %305 = vector.extract_strided_slice %302 {offsets = [1, 0], sizes = [1, 49], strides = [1, 1]} : vector<16x49xf32> to vector<1x49xf32>
      %c1_88 = arith.constant 1 : index
      %c49_89 = arith.constant 49 : index
      %306 = vector.load %arg20[%c1_88, %c49_89] : memref<2x816xf32, #tpu.memory_space<vmem>>, vector<1x49xf32>
      tpu.vector_store %arg20[%c1_88, %c49_89], %305 {strides = array<i32>} : memref<2x816xf32, #tpu.memory_space<vmem>>, vector<1x49xf32>,
      %307 = vector.extract_strided_slice %302 {offsets = [2, 0], sizes = [1, 49], strides = [1, 1]} : vector<16x49xf32> to vector<1x49xf32>
      %c1_90 = arith.constant 1 : index
      %c98_91 = arith.constant 98 : index
      %308 = vector.load %arg20[%c1_90, %c98_91] : memref<2x816xf32, #tpu.memory_space<vmem>>, vector<1x49xf32>
      tpu.vector_store %arg20[%c1_90, %c98_91], %307 {strides = array<i32>} : memref<2x816xf32, #tpu.memory_space<vmem>>, vector<1x49xf32>,
      %309 = vector.extract_strided_slice %302 {offsets = [3, 0], sizes = [1, 49], strides = [1, 1]} : vector<16x49xf32> to vector<1x49xf32>
      %c1_92 = arith.constant 1 : index
      %c147_93 = arith.constant 147 : index
      %310 = vector.load %arg20[%c1_92, %c147_93] : memref<2x816xf32, #tpu.memory_space<vmem>>, vector<1x49xf32>
      tpu.vector_store %arg20[%c1_92, %c147_93], %309 {strides = array<i32>} : memref<2x816xf32, #tpu.memory_space<vmem>>, vector<1x49xf32>,
      %311 = vector.extract_strided_slice %302 {offsets = [4, 0], sizes = [1, 49], strides = [1, 1]} : vector<16x49xf32> to vector<1x49xf32>
      %c1_94 = arith.constant 1 : index
      %c196_95 = arith.constant 196 : index
      %312 = vector.load %arg20[%c1_94, %c196_95] : memref<2x816xf32, #tpu.memory_space<vmem>>, vector<1x49xf32>
      tpu.vector_store %arg20[%c1_94, %c196_95], %311 {strides = array<i32>} : memref<2x816xf32, #tpu.memory_space<vmem>>, vector<1x49xf32>,
      %313 = vector.extract_strided_slice %302 {offsets = [5, 0], sizes = [1, 49], strides = [1, 1]} : vector<16x49xf32> to vector<1x49xf32>
      %c1_96 = arith.constant 1 : index
      %c245_97 = arith.constant 245 : index
      %314 = vector.load %arg20[%c1_96, %c245_97] : memref<2x816xf32, #tpu.memory_space<vmem>>, vector<1x49xf32>
      tpu.vector_store %arg20[%c1_96, %c245_97], %313 {strides = array<i32>} : memref<2x816xf32, #tpu.memory_space<vmem>>, vector<1x49xf32>,
      %315 = vector.extract_strided_slice %302 {offsets = [6, 0], sizes = [1, 49], strides = [1, 1]} : vector<16x49xf32> to vector<1x49xf32>
      %c1_98 = arith.constant 1 : index
      %c294_99 = arith.constant 294 : index
      %316 = vector.load %arg20[%c1_98, %c294_99] : memref<2x816xf32, #tpu.memory_space<vmem>>, vector<1x49xf32>
      tpu.vector_store %arg20[%c1_98, %c294_99], %315 {strides = array<i32>} : memref<2x816xf32, #tpu.memory_space<vmem>>, vector<1x49xf32>,
      %317 = vector.extract_strided_slice %302 {offsets = [7, 0], sizes = [1, 49], strides = [1, 1]} : vector<16x49xf32> to vector<1x49xf32>
      %c1_100 = arith.constant 1 : index
      %c343_101 = arith.constant 343 : index
      %318 = vector.load %arg20[%c1_100, %c343_101] : memref<2x816xf32, #tpu.memory_space<vmem>>, vector<1x49xf32>
      tpu.vector_store %arg20[%c1_100, %c343_101], %317 {strides = array<i32>} : memref<2x816xf32, #tpu.memory_space<vmem>>, vector<1x49xf32>,
      %319 = vector.extract_strided_slice %302 {offsets = [8, 0], sizes = [1, 49], strides = [1, 1]} : vector<16x49xf32> to vector<1x49xf32>
      %c1_102 = arith.constant 1 : index
      %c392_103 = arith.constant 392 : index
      %320 = vector.load %arg20[%c1_102, %c392_103] : memref<2x816xf32, #tpu.memory_space<vmem>>, vector<1x49xf32>
      tpu.vector_store %arg20[%c1_102, %c392_103], %319 {strides = array<i32>} : memref<2x816xf32, #tpu.memory_space<vmem>>, vector<1x49xf32>,
      %321 = vector.extract_strided_slice %302 {offsets = [9, 0], sizes = [1, 49], strides = [1, 1]} : vector<16x49xf32> to vector<1x49xf32>
      %c1_104 = arith.constant 1 : index
      %c441_105 = arith.constant 441 : index
      %322 = vector.load %arg20[%c1_104, %c441_105] : memref<2x816xf32, #tpu.memory_space<vmem>>, vector<1x49xf32>
      tpu.vector_store %arg20[%c1_104, %c441_105], %321 {strides = array<i32>} : memref<2x816xf32, #tpu.memory_space<vmem>>, vector<1x49xf32>,
      %323 = vector.extract_strided_slice %302 {offsets = [10, 0], sizes = [1, 49], strides = [1, 1]} : vector<16x49xf32> to vector<1x49xf32>
      %c1_106 = arith.constant 1 : index
      %c490_107 = arith.constant 490 : index
      %324 = vector.load %arg20[%c1_106, %c490_107] : memref<2x816xf32, #tpu.memory_space<vmem>>, vector<1x49xf32>
      tpu.vector_store %arg20[%c1_106, %c490_107], %323 {strides = array<i32>} : memref<2x816xf32, #tpu.memory_space<vmem>>, vector<1x49xf32>,
      %325 = vector.extract_strided_slice %302 {offsets = [11, 0], sizes = [1, 49], strides = [1, 1]} : vector<16x49xf32> to vector<1x49xf32>
      %c1_108 = arith.constant 1 : index
      %c539_109 = arith.constant 539 : index
      %326 = vector.load %arg20[%c1_108, %c539_109] : memref<2x816xf32, #tpu.memory_space<vmem>>, vector<1x49xf32>
      tpu.vector_store %arg20[%c1_108, %c539_109], %325 {strides = array<i32>} : memref<2x816xf32, #tpu.memory_space<vmem>>, vector<1x49xf32>,
      %327 = vector.extract_strided_slice %302 {offsets = [12, 0], sizes = [1, 49], strides = [1, 1]} : vector<16x49xf32> to vector<1x49xf32>
      %c1_110 = arith.constant 1 : index
      %c588_111 = arith.constant 588 : index
      %328 = vector.load %arg20[%c1_110, %c588_111] : memref<2x816xf32, #tpu.memory_space<vmem>>, vector<1x49xf32>
      tpu.vector_store %arg20[%c1_110, %c588_111], %327 {strides = array<i32>} : memref<2x816xf32, #tpu.memory_space<vmem>>, vector<1x49xf32>,
      %329 = vector.extract_strided_slice %302 {offsets = [13, 0], sizes = [1, 49], strides = [1, 1]} : vector<16x49xf32> to vector<1x49xf32>
      %c1_112 = arith.constant 1 : index
      %c637_113 = arith.constant 637 : index
      %330 = vector.load %arg20[%c1_112, %c637_113] : memref<2x816xf32, #tpu.memory_space<vmem>>, vector<1x49xf32>
      tpu.vector_store %arg20[%c1_112, %c637_113], %329 {strides = array<i32>} : memref<2x816xf32, #tpu.memory_space<vmem>>, vector<1x49xf32>,
      %331 = vector.extract_strided_slice %302 {offsets = [14, 0], sizes = [1, 49], strides = [1, 1]} : vector<16x49xf32> to vector<1x49xf32>
      %c1_114 = arith.constant 1 : index
      %c686_115 = arith.constant 686 : index
      %332 = vector.load %arg20[%c1_114, %c686_115] : memref<2x816xf32, #tpu.memory_space<vmem>>, vector<1x49xf32>
      tpu.vector_store %arg20[%c1_114, %c686_115], %331 {strides = array<i32>} : memref<2x816xf32, #tpu.memory_space<vmem>>, vector<1x49xf32>,
      %333 = vector.extract_strided_slice %302 {offsets = [15, 0], sizes = [1, 49], strides = [1, 1]} : vector<16x49xf32> to vector<1x49xf32>
      %c1_116 = arith.constant 1 : index
      %c735_117 = arith.constant 735 : index
      %334 = vector.load %arg20[%c1_116, %c735_117] : memref<2x816xf32, #tpu.memory_space<vmem>>, vector<1x49xf32>
      tpu.vector_store %arg20[%c1_116, %c735_117], %333 {strides = array<i32>} : memref<2x816xf32, #tpu.memory_space<vmem>>, vector<1x49xf32>,
      %c0_118 = arith.constant 0 : index
      %c784 = arith.constant 784 : index
      %335 = vector.load %arg20[%c0_118, %c784] : memref<2x816xf32, #tpu.memory_space<vmem>>, vector<2x32xf32>
      tpu.vector_store %arg20[%c0_118, %c784], %254 {strides = array<i32>} : memref<2x816xf32, #tpu.memory_space<vmem>>, vector<2x32xf32>,
      %c0_119 = arith.constant 0 : index
      %c0_120 = arith.constant 0 : index
      %336 = vector.load %arg20[%c0_119, %c0_120] : memref<2x816xf32, #tpu.memory_space<vmem>>, vector<2x816xf32>
      %c0_121 = arith.constant 0 : index
      %c0_122 = arith.constant 0 : index
      %337 = vector.load %arg12[%c0_121, %c0_122] : memref<1x816xf32, #tpu.memory_space<vmem>>, vector<1x816xf32>
      %338 = vector.broadcast %337 : vector<1x816xf32> to vector<2x816xf32>
      %339 = arith.mulf %336, %338 : vector<2x816xf32>
      %c0_123 = arith.constant 0 : index
      %c0_124 = arith.constant 0 : index
      %340 = vector.load %arg13[%c0_123, %c0_124] : memref<1x816xf32, #tpu.memory_space<vmem>>, vector<1x816xf32>
      %341 = vector.broadcast %340 : vector<1x816xf32> to vector<2x816xf32>
      %342 = arith.addf %339, %341 : vector<2x816xf32>
      %cst_125 = arith.constant 0.000000e+00 : f32
      %343 = vector.broadcast %cst_125 : f32 to vector<2x816xf32>
      %344 = arith.cmpf ogt, %342, %343 : vector<2x816xf32>
      %cst_126 = arith.constant 0.00999999977 : f32
      %345 = vector.broadcast %cst_126 : f32 to vector<2x816xf32>
      %346 = arith.mulf %345, %342 : vector<2x816xf32>
      %347 = arith.select %344, %342, %346 : vector<2x816xi1>, vector<2x816xf32>
      %c0_127 = arith.constant 0 : index
      %c0_128 = arith.constant 0 : index
      %348 = vector.load %arg20[%c0_127, %c0_128] : memref<2x816xf32, #tpu.memory_space<vmem>>, vector<2x816xf32>
      tpu.vector_store %arg20[%c0_127, %c0_128], %347 {strides = array<i32>} : memref<2x816xf32, #tpu.memory_space<vmem>>, vector<2x816xf32>,
      %c0_129 = arith.constant 0 : index
      %c0_130 = arith.constant 0 : index
      %349 = vector.load %arg8[%c0_129, %c0_130] : memref<32x49xf32, #tpu.memory_space<vmem>>, vector<32x49xf32>
      %cst_131 = arith.constant dense<0.000000e+00> : vector<2x49xf32>
      %350 = tpu.matmul %254, %349, %cst_131 {dimension_numbers = #tpu.dot_dimension_numbers<[1], [0], [0], [1], [0, 0, 1, 1], [], []>} : vector<2x32xf32>, vector<32x49xf32>, vector<2x49xf32> -> vector<2x49xf32>
      %c0_132 = arith.constant 0 : index
      %c0_133 = arith.constant 0 : index
      %351 = vector.load %arg9[%c0_132, %c0_133] : memref<1x49xf32, #tpu.memory_space<vmem>>, vector<1x49xf32>
      %352 = vector.broadcast %351 : vector<1x49xf32> to vector<2x49xf32>
      %353 = arith.addf %350, %352 : vector<2x49xf32>
      %354 = tpu.concatenate %263, %302 in 0 : vector<16x49xf32>, vector<16x49xf32> -> vector<32x49xf32>
      %355 = tpu.concatenate %353, %353, %353, %353, %353, %353, %353, %353, %353, %353, %353, %353, %353, %353, %353, %353 in 0 : vector<2x49xf32>, vector<2x49xf32>, vector<2x49xf32>, vector<2x49xf32>, vector<2x49xf32>, vector<2x49xf32>, vector<2x49xf32>, vector<2x49xf32>, vector<2x49xf32>, vector<2x49xf32>, vector<2x49xf32>, vector<2x49xf32>, vector<2x49xf32>, vector<2x49xf32>, vector<2x49xf32>, vector<2x49xf32> -> vector<32x49xf32>
      %356 = arith.mulf %354, %355 : vector<32x49xf32>
      %c0_134 = arith.constant 0 : index
      %c0_135 = arith.constant 0 : index
      %357 = vector.load %arg10[%c0_134, %c0_135] : memref<49x49xf32, #tpu.memory_space<vmem>>, vector<49x49xf32>
      %cst_136 = arith.constant dense<0.000000e+00> : vector<32x49xf32>
      %358 = tpu.matmul %356, %357, %cst_136 {dimension_numbers = #tpu.dot_dimension_numbers<[1], [0], [0], [1], [0, 0, 1, 1], [], []>} : vector<32x49xf32>, vector<49x49xf32>, vector<32x49xf32> -> vector<32x49xf32>
      %c0_137 = arith.constant 0 : index
      %c0_138 = arith.constant 0 : index
      %359 = vector.load %arg11[%c0_137, %c0_138] : memref<1x49xf32, #tpu.memory_space<vmem>>, vector<1x49xf32>
      %360 = vector.broadcast %359 : vector<1x49xf32> to vector<32x49xf32>
      %361 = arith.addf %358, %360 : vector<32x49xf32>
      %362 = arith.negf %361 : vector<32x49xf32>
      %363 = math.exp %362 : vector<32x49xf32>
      %cst_139 = arith.constant 1.000000e+00 : f32
      %364 = vector.broadcast %cst_139 : f32 to vector<32x49xf32>
      %365 = arith.addf %364, %363 : vector<32x49xf32>
      %366 = arith.divf %364, %365 : vector<32x49xf32>
      %c0_140 = arith.constant 0 : index
      %c0_141 = arith.constant 0 : index
      %367 = vector.load %arg19[%c0_140, %c0_141] : memref<32x49xf32, #tpu.memory_space<vmem>>, vector<32x49xf32>
      tpu.vector_store %arg19[%c0_140, %c0_141], %366 {strides = array<i32>} : memref<32x49xf32, #tpu.memory_space<vmem>>, vector<32x49xf32>,
      %cst_142 = arith.constant 0.000000e+00 : f32
      %368 = vector.broadcast %cst_142 : f32 to vector<2x32xf32>
      %c0_143 = arith.constant 0 : index
      %c0_144 = arith.constant 0 : index
      %369 = vector.load %arg21[%c0_143, %c0_144] : memref<2x32xf32, #tpu.memory_space<vmem>>, vector<2x32xf32>
      tpu.vector_store %arg21[%c0_143, %c0_144], %368 {strides = array<i32>} : memref<2x32xf32, #tpu.memory_space<vmem>>, vector<2x32xf32>,
    } else {
    }
    %c0 = arith.constant 0 : index
    %c0_1 = arith.constant 0 : index
    %3 = vector.load %arg20[%c0, %c0_1] : memref<2x816xf32, #tpu.memory_space<vmem>>, vector<2x816xf32>
    %4 = arith.truncf %3 : vector<2x816xf32> to vector<2x816xbf16>
    %c0_2 = arith.constant 0 : index
    %c0_3 = arith.constant 0 : index
    %5 = vector.load %arg14[%c0_2, %c0_3] : memref<816x1280xbf16, #tpu.memory_space<vmem>>, vector<816x1280xbf16>
    %cst = arith.constant dense<0.000000e+00> : vector<2x1280xf32>
    %6 = tpu.matmul %4, %5, %cst {dimension_numbers = #tpu.dot_dimension_numbers<[1], [0], [0], [1], [0, 0, 1, 1], [], []>} : vector<2x816xbf16>, vector<816x1280xbf16>, vector<2x1280xf32> -> vector<2x1280xf32>
    %c0_4 = arith.constant 0 : index
    %c0_5 = arith.constant 0 : index
    %7 = vector.load %arg15[%c0_4, %c0_5] : memref<1x1280xf32, #tpu.memory_space<vmem>>, vector<1x1280xf32>
    %8 = vector.broadcast %7 : vector<1x1280xf32> to vector<2x1280xf32>
    %9 = arith.addf %6, %8 : vector<2x1280xf32>
    %c1280_i32 = arith.constant 1280 : i32
    %10 = arith.muli %arg0, %c1280_i32 : i32
    %11 = tpu.assume_multiple %10, 1280 : i32
    %12 = arith.index_cast %11 : i32 to index
    %c0_6 = arith.constant 0 : index
    %13 = vector.load %arg16[%12, %c0_6] : memref<2560x32xbf16, #tpu.memory_space<vmem>>, vector<1280x32xbf16>
    %c0_7 = arith.constant 0 : index
    %c0_8 = arith.constant 0 : index
    %14 = vector.load %arg21[%c0_7, %c0_8] : memref<2x32xf32, #tpu.memory_space<vmem>>, vector<2x32xf32>
    %15 = arith.truncf %9 : vector<2x1280xf32> to vector<2x1280xbf16>
    %cst_9 = arith.constant dense<0.000000e+00> : vector<2x32xf32>
    %16 = tpu.matmul %15, %13, %cst_9 {dimension_numbers = #tpu.dot_dimension_numbers<[1], [0], [0], [1], [0, 0, 1, 1], [], []>} : vector<2x1280xbf16>, vector<1280x32xbf16>, vector<2x32xf32> -> vector<2x32xf32>
    %17 = arith.addf %14, %16 : vector<2x32xf32>
    %c0_10 = arith.constant 0 : index
    %c0_11 = arith.constant 0 : index
    %18 = vector.load %arg21[%c0_10, %c0_11] : memref<2x32xf32, #tpu.memory_space<vmem>>, vector<2x32xf32>
    tpu.vector_store %arg21[%c0_10, %c0_11], %17 {strides = array<i32>} : memref<2x32xf32, #tpu.memory_space<vmem>>, vector<2x32xf32>,
    %c1_i32 = arith.constant 1 : i32
    %19 = arith.cmpi eq, %arg0, %c1_i32 : i32
    %20 = arith.extui %19 : i1 to i32
    %c0_i32_12 = arith.constant 0 : i32
    %21 = arith.cmpi ne, %20, %c0_i32_12 : i32
    scf.if %21 {
      %c0_13 = arith.constant 0 : index
      %c0_14 = arith.constant 0 : index
      %22 = vector.load %arg21[%c0_13, %c0_14] : memref<2x32xf32, #tpu.memory_space<vmem>>, vector<2x32xf32>
      %c0_15 = arith.constant 0 : index
      %c0_16 = arith.constant 0 : index
      %23 = vector.load %arg17[%c0_15, %c0_16] : memref<1x32xf32, #tpu.memory_space<vmem>>, vector<1x32xf32>
      %24 = vector.broadcast %23 : vector<1x32xf32> to vector<2x32xf32>
      %25 = arith.addf %22, %24 : vector<2x32xf32>
      %c0_17 = arith.constant 0 : index
      %c0_18 = arith.constant 0 : index
      %26 = vector.load %arg18[%c0_17, %c0_18] : memref<2x32xf32, #tpu.memory_space<vmem>>, vector<2x32xf32>
      tpu.vector_store %arg18[%c0_17, %c0_18], %25 {strides = array<i32>} : memref<2x32xf32, #tpu.memory_space<vmem>>, vector<2x32xf32>,
    } else {
    }
    return
  }
  func.func @transform_0(%arg0: i32) -> (i32, i32, i32) {
    %c0_i32 = arith.constant 0 : i32
    %c0_i32_0 = arith.constant 0 : i32
    %c0_i32_1 = arith.constant 0 : i32
    %c0_i32_2 = arith.constant 0 : i32
    return %c0_i32, %c0_i32_0, %c0_i32_1 : i32, i32, i32
  }
  func.func @transform_1(%arg0: i32) -> (i32, i32) {
    %c0_i32 = arith.constant 0 : i32
    %c0_i32_0 = arith.constant 0 : i32
    %c0_i32_1 = arith.constant 0 : i32
    return %c0_i32, %c0_i32_0 : i32, i32
  }
  func.func @transform_2(%arg0: i32) -> (i32, i32) {
    %c0_i32 = arith.constant 0 : i32
    %c0_i32_0 = arith.constant 0 : i32
    %c0_i32_1 = arith.constant 0 : i32
    return %c0_i32, %c0_i32_0 : i32, i32
  }
  func.func @transform_3(%arg0: i32) -> (i32, i32) {
    %c0_i32 = arith.constant 0 : i32
    %c0_i32_0 = arith.constant 0 : i32
    %c0_i32_1 = arith.constant 0 : i32
    return %c0_i32, %c0_i32_0 : i32, i32
  }
  func.func @transform_4(%arg0: i32) -> (i32, i32) {
    %c0_i32 = arith.constant 0 : i32
    %c0_i32_0 = arith.constant 0 : i32
    %c0_i32_1 = arith.constant 0 : i32
    return %c0_i32, %c0_i32_0 : i32, i32
  }
  func.func @transform_5(%arg0: i32) -> (i32, i32) {
    %c0_i32 = arith.constant 0 : i32
    %c0_i32_0 = arith.constant 0 : i32
    %c0_i32_1 = arith.constant 0 : i32
    return %c0_i32, %c0_i32_0 : i32, i32
  }
  func.func @transform_6(%arg0: i32) -> (i32, i32) {
    %c0_i32 = arith.constant 0 : i32
    %c0_i32_0 = arith.constant 0 : i32
    %c0_i32_1 = arith.constant 0 : i32
    return %c0_i32, %c0_i32_0 : i32, i32
  }
  func.func @transform_7(%arg0: i32) -> (i32, i32) {
    %c0_i32 = arith.constant 0 : i32
    %c0_i32_0 = arith.constant 0 : i32
    %c0_i32_1 = arith.constant 0 : i32
    return %c0_i32, %c0_i32_0 : i32, i32
  }
  func.func @transform_8(%arg0: i32) -> (i32, i32) {
    %c0_i32 = arith.constant 0 : i32
    %c0_i32_0 = arith.constant 0 : i32
    %c0_i32_1 = arith.constant 0 : i32
    return %c0_i32, %c0_i32_0 : i32, i32
  }
  func.func @transform_9(%arg0: i32) -> (i32, i32) {
    %c0_i32 = arith.constant 0 : i32
    %c0_i32_0 = arith.constant 0 : i32
    %c0_i32_1 = arith.constant 0 : i32
    return %c0_i32, %c0_i32_0 : i32, i32
  }
  func.func @transform_10(%arg0: i32) -> (i32, i32) {
    %c0_i32 = arith.constant 0 : i32
    %c0_i32_0 = arith.constant 0 : i32
    %c0_i32_1 = arith.constant 0 : i32
    return %c0_i32, %c0_i32_0 : i32, i32
  }
  func.func @transform_11(%arg0: i32) -> (i32, i32) {
    %c0_i32 = arith.constant 0 : i32
    %c0_i32_0 = arith.constant 0 : i32
    %c0_i32_1 = arith.constant 0 : i32
    return %c0_i32, %c0_i32_0 : i32, i32
  }
  func.func @transform_12(%arg0: i32) -> (i32, i32) {
    %c0_i32 = arith.constant 0 : i32
    %c0_i32_0 = arith.constant 0 : i32
    %c0_i32_1 = arith.constant 0 : i32
    return %c0_i32, %c0_i32_0 : i32, i32
  }
  func.func @transform_13(%arg0: i32) -> (i32, i32) {
    %c0_i32 = arith.constant 0 : i32
    %c0_i32_0 = arith.constant 0 : i32
    return %c0_i32, %arg0 : i32, i32
  }
  func.func @transform_14(%arg0: i32) -> (i32, i32) {
    %c0_i32 = arith.constant 0 : i32
    %c0_i32_0 = arith.constant 0 : i32
    return %c0_i32, %arg0 : i32, i32
  }
  func.func @transform_15(%arg0: i32) -> (i32, i32) {
    %c0_i32 = arith.constant 0 : i32
    %c0_i32_0 = arith.constant 0 : i32
    %c0_i32_1 = arith.constant 0 : i32
    return %c0_i32, %c0_i32_0 : i32, i32
  }
  func.func @transform_16(%arg0: i32) -> (i32, i32) {
    %c0_i32 = arith.constant 0 : i32
    %c0_i32_0 = arith.constant 0 : i32
    %c0_i32_1 = arith.constant 0 : i32
    return %c0_i32, %c0_i32_0 : i32, i32
  }
  func.func @transform_17(%arg0: i32) -> (i32, i32) {
    %c0_i32 = arith.constant 0 : i32
    %c0_i32_0 = arith.constant 0 : i32
    %c0_i32_1 = arith.constant 0 : i32
    return %c0_i32, %c0_i32_0 : i32, i32
  }
  func.func @transform_18(%arg0: i32) -> (i32, i32) {
    %c0_i32 = arith.constant 0 : i32
    %c0_i32_0 = arith.constant 0 : i32
    %c0_i32_1 = arith.constant 0 : i32
    return %c0_i32, %c0_i32_0 : i32, i32
  }
}

</mosaic_0001>

<llo_original>
// kernel: encoder_2d_attn_forward.1
$region0: #{encoder_2d_attn_forward.1}
  #allocation0 [shape = 'u32[]', space=smem, size = 0x4, offset = 0x4, fixed_abs, tag = 'smem constant byte address 0x4 - core index']
  #allocation1 [shape = 'u32[144,128]{1,0:T(1,128)}', space=vmem, size = 0x12000, scoped, tag = 'internal scratch']
  #allocation2 [shape = 'f32[2,816]{1,0:T(2,128)}', space=vmem, size = 0x1c00, scoped, tag = 'scratch operand']
  #allocation3 [shape = 'f32[2,32]{1,0:T(2,128)}', space=vmem, size = 0x400, scoped, tag = 'scratch operand']
  %s0 = inlined_call_operand.vmem [shape: f32[2,48,49], index: 0, kind: input, shape index: {}]
  %s1 = inlined_call_operand.vmem [shape: f32[16,32], index: 1, kind: input, shape index: {}]
  %s2 = inlined_call_operand.vmem [shape: f32[16,48], index: 2, kind: input, shape index: {}]
  %s3 = inlined_call_operand.vmem [shape: f32[16,1], index: 3, kind: input, shape index: {}]
  %s4 = inlined_call_operand.hbm [shape: f32[32,128], index: 4, kind: input, shape index: {}]
  %s5 = inlined_call_operand.hbm [shape: f32[32,128], index: 5, kind: input, shape index: {}]
  %s6 = inlined_call_operand.hbm [shape: f32[1,128], index: 6, kind: input, shape index: {}]
  %s7 = inlined_call_operand.hbm [shape: f32[32,49], index: 7, kind: input, shape index: {}]
  %s8 = inlined_call_operand.hbm [shape: f32[1,49], index: 8, kind: input, shape index: {}]
  %s9 = inlined_call_operand.hbm [shape: f32[49,49], index: 9, kind: input, shape index: {}]
  %s10 = inlined_call_operand.hbm [shape: f32[1,49], index: 10, kind: input, shape index: {}]
  %s11 = inlined_call_operand.hbm [shape: f32[1,816], index: 11, kind: input, shape index: {}]
  %s12 = inlined_call_operand.hbm [shape: f32[1,816], index: 12, kind: input, shape index: {}]
  %s13 = inlined_call_operand.hbm [shape: bf16[816,2560], index: 13, kind: input, shape index: {}]
  %s14 = inlined_call_operand.hbm [shape: f32[1,2560], index: 14, kind: input, shape index: {}]
  %s15 = inlined_call_operand.vmem [shape: bf16[2560,32], index: 15, kind: input, shape index: {}]
  %s16 = inlined_call_operand.hbm [shape: f32[1,32], index: 16, kind: input, shape index: {}]
  %s17 = inlined_call_operand.hbm [shape: f32[2,32], index: 17, kind: output, shape index: {0}]
  %s18 = inlined_call_operand.hbm [shape: f32[32,49], index: 18, kind: output, shape index: {1}]
  %19 = xla_tuple %s17, %s18
  %s20 = sld [smem:[#allocation0]]
  $region165: #{encoder_2d_attn_forward.1} parent=0
    _
  %s22 = ssub.s32 1, %s20
  %s23 = scalar_select 0, %s22, %s20
  $region1: #{encoder_2d_attn_forward.1} parent=0
    #allocation4 [shape = 'u8[16384]{0}', space=vmem, size = 0x4000, scoped, tag = 'input window, operand 4, single buffered']
    #allocation5 [shape = 's32[2]{0}', space=sflag, size = 0x8, scoped, tag = 'scoped memory for encoder_2d_attn_forward.1']
    #allocation6 [shape = 's32[2]{0}', space=sflag, size = 0x8, scoped, tag = 'scoped memory for encoder_2d_attn_forward.1']
    #allocation7 [shape = 'u8[16384]{0}', space=vmem, size = 0x4000, scoped, tag = 'input window, operand 5, single buffered']
    #allocation8 [shape = 's32[1]{0}', space=sflag, size = 0x4, scoped, tag = 'scoped memory for encoder_2d_attn_forward.1']
    #allocation9 [shape = 'u8[512]{0}', space=vmem, size = 0x400, scoped, tag = 'input window, operand 6, single buffered']
    #allocation10 [shape = 'u8[16384]{0}', space=vmem, size = 0x4000, scoped, tag = 'input window, operand 7, single buffered']
    #allocation11 [shape = 's32[1]{0}', space=sflag, size = 0x4, scoped, tag = 'scoped memory for encoder_2d_attn_forward.1']
    #allocation12 [shape = 'u8[512]{0}', space=vmem, size = 0x400, scoped, tag = 'input window, operand 8, single buffered']
    #allocation13 [shape = 'u8[28672]{0}', space=vmem, size = 0x7000, scoped, tag = 'input window, operand 9, single buffered']
    #allocation14 [shape = 's32[1]{0}', space=sflag, size = 0x4, scoped, tag = 'scoped memory for encoder_2d_attn_forward.1']
    #allocation15 [shape = 'u8[512]{0}', space=vmem, size = 0x400, scoped, tag = 'input window, operand 10, single buffered']
    #allocation16 [shape = 'u8[3584]{0}', space=vmem, size = 0x1000, scoped, tag = 'input window, operand 11, single buffered']
    #allocation17 [shape = 's32[1]{0}', space=sflag, size = 0x4, scoped, tag = 'scoped memory for encoder_2d_attn_forward.1']
    #allocation18 [shape = 'u8[3584]{0}', space=vmem, size = 0x1000, scoped, tag = 'input window, operand 12, single buffered']
    #allocation19 [shape = 'u8[4177920]{0}', space=vmem, size = 0x3fc000, scoped, tag = 'input window, operand 13']
    #allocation20 [shape = 's32[2]{0}', space=sflag, size = 0x8, scoped, tag = 'scoped memory for encoder_2d_attn_forward.1']
    #allocation21 [shape = 'u8[10240]{0}', space=vmem, size = 0x2800, scoped, tag = 'input window, operand 14']
    #allocation22 [shape = 'u8[512]{0}', space=vmem, size = 0x400, scoped, tag = 'input window, operand 16, single buffered']
    #allocation23 [shape = 's32[1]{0}', space=sflag, size = 0x4, scoped, tag = 'scoped memory for encoder_2d_attn_forward.1']
    #allocation24 [shape = 'u8[1024]{0}', space=vmem, size = 0x400, scoped, tag = 'output window, operand 0, single buffered']
    #allocation25 [shape = 'u8[16384]{0}', space=vmem, size = 0x4000, scoped, tag = 'output window, operand 1, single buffered']
    #allocation26 [shape = 's32[1]{0}', space=sflag, size = 0x4, scoped, tag = 'scoped memory for encoder_2d_attn_forward.1']
    %24 = vsyncpa [#allocation5], 0
    %25 = vsyncpa [#allocation8], 0
    %26 = vsyncpa [#allocation11], 0
    %27 = vsyncpa [#allocation14], 0
    %28 = vsyncpa [#allocation17], 0
    %29 = vsyncpa [#allocation20], 0
    %s30 = scalar_lea.sflag [#allocation20], 1
    %31 = vsyncpa %s30, 0
    %32 = vsyncpa [#allocation23], 0
    %33 = vsyncpa [#allocation6], 0
    %34 = vsyncpa [#allocation26], 0
    loop: start=0, step=1, limit=4
    $region2: #{encoder_2d_attn_forward.1} parent=1 // loop_pre_header
      _
    $region3: #{encoder_2d_attn_forward.1} parent=1 // loop_header
      %s36 = sphi 0, %s40
      %p37 = scmp.ge.s32.totalorder %s36, 4
      %s44 = sphi 0, %s44
      %s46 = sphi 0, %s44
      %s47 = sphi 0, %s46
      %s61 = sphi 0, %s47
      %s65 = sphi 0, %s65
      %s67 = sphi 0, %s65
      %s68 = sphi 0, %s67
      %s82 = sphi 0, %s68
      %s86 = sphi 0, %s86
      %s88 = sphi 0, %s86
      %s89 = sphi 0, %s88
      %s103 = sphi 0, %s89
      %s107 = sphi 0, %s107
      %s109 = sphi 0, %s107
      %s110 = sphi 0, %s109
      %s124 = sphi 0, %s110
      %s128 = sphi 0, %s128
      %s130 = sphi 0, %s128
      %s131 = sphi 0, %s130
      %s145 = sphi 0, %s131
      %s149 = sphi 0, %s149
      %s151 = sphi 0, %s149
      %s152 = sphi 0, %s151
      %s166 = sphi 0, %s152
      %s170 = sphi 0, %s170
      %s172 = sphi 0, %s170
      %s173 = sphi 0, %s172
      %s187 = sphi 0, %s173
      %s191 = sphi 0, %s191
      %s193 = sphi 0, %s191
      %s194 = sphi 0, %s193
      %s208 = sphi 0, %s194
      %s212 = sphi 0, %s212
      %s214 = sphi 0, %s212
      %s215 = sphi 0, %s214
      %s229 = sphi 0, %s215
      %s233 = sphi 0, %s233
      %s235 = sphi 0, %s233
      %s236 = sphi 0, %s235
      %s250 = sphi 0, %s236
      %s254 = sphi 0, %s254
      %s256 = sphi 0, %s254
      %s257 = sphi 0, %s256
      %s271 = sphi 0, %s257
      %s275 = sphi 0, %s275
      %s277 = sphi 0, %s275
      %s278 = sphi 0, %s277
      %s292 = sphi 0, %s278
      %s296 = sphi 0, %s296
      %s298 = sphi 0, %s296
      %s299 = sphi 0, %s298
      %s313 = sphi 0, %s299
      %s319 = sphi 0, %s321
      %s322 = sphi 0, %s319
      %s323 = sphi 0, %s322
      %s339 = sphi 0, %s323
      %s345 = sphi 0, %s347
      %s348 = sphi 0, %s345
      %s349 = sphi 0, %s348
      %s365 = sphi 0, %s349
      %s369 = sphi 0, %s369
      %s371 = sphi 0, %s369
      %s372 = sphi 0, %s371
      %s386 = sphi 0, %s372
      %s390 = sphi 0, %s390
      %s392 = sphi 0, %s390
      %s393 = sphi 0, %s392
      %s407 = sphi 0, %s393
      %s411 = sphi 0, %s411
      %s413 = sphi 0, %s411
      %s414 = sphi 0, %s413
      %s428 = sphi 0, %s414
      %s432 = sphi 0, %s432
      %s434 = sphi 0, %s432
      %s435 = sphi 0, %s434
      %s449 = sphi 0, %s435
    $region4: #{encoder_2d_attn_forward.1} parent=1 // loop_header_branch
      %39 = sbr.rel (%p37) target = $region8
    $region5: #{encoder_2d_attn_forward.1} parent=1 // loop_body
      %s41 = ssub.s32 %s36, 1
      %s42 = ssub.s32 %s36, 2
      %s43 = sadd.s32 %s36, 1
      %s45 = sadd.s32 %s44, 1
      %p48 = scmp.eq.s32.totalorder %s36, 1
      %p49 = scmp.ne.s32.totalorder %s44, %s46
      %p50 = scmp.eq.s32.totalorder %s36, 0
      %p51 = por %p49, %p50
      %p52 = scmp.ne.s32.totalorder %s44, %s46
      %p53 = scmp.eq.s32.totalorder %s41, 1
      %p54 = por %p52, %p53
      %p55 = scmp.ne.s32.totalorder %s46, %s47
      %p56 = scmp.eq.s32.totalorder %s41, 0
      %p57 = por %p55, %p56
      %p58 = scmp.ne.s32.totalorder %s46, %s47
      %p59 = scmp.eq.s32.totalorder %s42, 1
      %p60 = por %p58, %p59
      %p62 = scmp.ne.s32.totalorder %s47, %s61
      %p63 = scmp.eq.s32.totalorder %s42, 0
      %p64 = por %p62, %p63
      %s66 = sadd.s32 %s65, 1
      %p69 = scmp.eq.s32.totalorder %s36, 1
      %p70 = scmp.ne.s32.totalorder %s65, %s67
      %p71 = scmp.eq.s32.totalorder %s36, 0
      %p72 = por %p70, %p71
      %p73 = scmp.ne.s32.totalorder %s65, %s67
      %p74 = scmp.eq.s32.totalorder %s41, 1
      %p75 = por %p73, %p74
      %p76 = scmp.ne.s32.totalorder %s67, %s68
      %p77 = scmp.eq.s32.totalorder %s41, 0
      %p78 = por %p76, %p77
      %p79 = scmp.ne.s32.totalorder %s67, %s68
      %p80 = scmp.eq.s32.totalorder %s42, 1
      %p81 = por %p79, %p80
      %p83 = scmp.ne.s32.totalorder %s68, %s82
      %p84 = scmp.eq.s32.totalorder %s42, 0
      %p85 = por %p83, %p84
      %s87 = sadd.s32 %s86, 1
      %p90 = scmp.eq.s32.totalorder %s36, 1
      %p91 = scmp.ne.s32.totalorder %s86, %s88
      %p92 = scmp.eq.s32.totalorder %s36, 0
      %p93 = por %p91, %p92
      %p94 = scmp.ne.s32.totalorder %s86, %s88
      %p95 = scmp.eq.s32.totalorder %s41, 1
      %p96 = por %p94, %p95
      %p97 = scmp.ne.s32.totalorder %s88, %s89
      %p98 = scmp.eq.s32.totalorder %s41, 0
      %p99 = por %p97, %p98
      %p100 = scmp.ne.s32.totalorder %s88, %s89
      %p101 = scmp.eq.s32.totalorder %s42, 1
      %p102 = por %p100, %p101
      %p104 = scmp.ne.s32.totalorder %s89, %s103
      %p105 = scmp.eq.s32.totalorder %s42, 0
      %p106 = por %p104, %p105
      %s108 = sadd.s32 %s107, 1
      %p111 = scmp.eq.s32.totalorder %s36, 1
      %p112 = scmp.ne.s32.totalorder %s107, %s109
      %p113 = scmp.eq.s32.totalorder %s36, 0
      %p114 = por %p112, %p113
      %p115 = scmp.ne.s32.totalorder %s107, %s109
      %p116 = scmp.eq.s32.totalorder %s41, 1
      %p117 = por %p115, %p116
      %p118 = scmp.ne.s32.totalorder %s109, %s110
      %p119 = scmp.eq.s32.totalorder %s41, 0
      %p120 = por %p118, %p119
      %p121 = scmp.ne.s32.totalorder %s109, %s110
      %p122 = scmp.eq.s32.totalorder %s42, 1
      %p123 = por %p121, %p122
      %p125 = scmp.ne.s32.totalorder %s110, %s124
      %p126 = scmp.eq.s32.totalorder %s42, 0
      %p127 = por %p125, %p126
      %s129 = sadd.s32 %s128, 1
      %p132 = scmp.eq.s32.totalorder %s36, 1
      %p133 = scmp.ne.s32.totalorder %s128, %s130
      %p134 = scmp.eq.s32.totalorder %s36, 0
      %p135 = por %p133, %p134
      %p136 = scmp.ne.s32.totalorder %s128, %s130
      %p137 = scmp.eq.s32.totalorder %s41, 1
      %p138 = por %p136, %p137
      %p139 = scmp.ne.s32.totalorder %s130, %s131
      %p140 = scmp.eq.s32.totalorder %s41, 0
      %p141 = por %p139, %p140
      %p142 = scmp.ne.s32.totalorder %s130, %s131
      %p143 = scmp.eq.s32.totalorder %s42, 1
      %p144 = por %p142, %p143
      %p146 = scmp.ne.s32.totalorder %s131, %s145
      %p147 = scmp.eq.s32.totalorder %s42, 0
      %p148 = por %p146, %p147
      %s150 = sadd.s32 %s149, 1
      %p153 = scmp.eq.s32.totalorder %s36, 1
      %p154 = scmp.ne.s32.totalorder %s149, %s151
      %p155 = scmp.eq.s32.totalorder %s36, 0
      %p156 = por %p154, %p155
      %p157 = scmp.ne.s32.totalorder %s149, %s151
      %p158 = scmp.eq.s32.totalorder %s41, 1
      %p159 = por %p157, %p158
      %p160 = scmp.ne.s32.totalorder %s151, %s152
      %p161 = scmp.eq.s32.totalorder %s41, 0
      %p162 = por %p160, %p161
      %p163 = scmp.ne.s32.totalorder %s151, %s152
      %p164 = scmp.eq.s32.totalorder %s42, 1
      %p165 = por %p163, %p164
      %p167 = scmp.ne.s32.totalorder %s152, %s166
      %p168 = scmp.eq.s32.totalorder %s42, 0
      %p169 = por %p167, %p168
      %s171 = sadd.s32 %s170, 1
      %p174 = scmp.eq.s32.totalorder %s36, 1
      %p175 = scmp.ne.s32.totalorder %s170, %s172
      %p176 = scmp.eq.s32.totalorder %s36, 0
      %p177 = por %p175, %p176
      %p178 = scmp.ne.s32.totalorder %s170, %s172
      %p179 = scmp.eq.s32.totalorder %s41, 1
      %p180 = por %p178, %p179
      %p181 = scmp.ne.s32.totalorder %s172, %s173
      %p182 = scmp.eq.s32.totalorder %s41, 0
      %p183 = por %p181, %p182
      %p184 = scmp.ne.s32.totalorder %s172, %s173
      %p185 = scmp.eq.s32.totalorder %s42, 1
      %p186 = por %p184, %p185
      %p188 = scmp.ne.s32.totalorder %s173, %s187
      %p189 = scmp.eq.s32.totalorder %s42, 0
      %p190 = por %p188, %p189
      %s192 = sadd.s32 %s191, 1
      %p195 = scmp.eq.s32.totalorder %s36, 1
      %p196 = scmp.ne.s32.totalorder %s191, %s193
      %p197 = scmp.eq.s32.totalorder %s36, 0
      %p198 = por %p196, %p197
      %p199 = scmp.ne.s32.totalorder %s191, %s193
      %p200 = scmp.eq.s32.totalorder %s41, 1
      %p201 = por %p199, %p200
      %p202 = scmp.ne.s32.totalorder %s193, %s194
      %p203 = scmp.eq.s32.totalorder %s41, 0
      %p204 = por %p202, %p203
      %p205 = scmp.ne.s32.totalorder %s193, %s194
      %p206 = scmp.eq.s32.totalorder %s42, 1
      %p207 = por %p205, %p206
      %p209 = scmp.ne.s32.totalorder %s194, %s208
      %p210 = scmp.eq.s32.totalorder %s42, 0
      %p211 = por %p209, %p210
      %s213 = sadd.s32 %s212, 1
      %p216 = scmp.eq.s32.totalorder %s36, 1
      %p217 = scmp.ne.s32.totalorder %s212, %s214
      %p218 = scmp.eq.s32.totalorder %s36, 0
      %p219 = por %p217, %p218
      %p220 = scmp.ne.s32.totalorder %s212, %s214
      %p221 = scmp.eq.s32.totalorder %s41, 1
      %p222 = por %p220, %p221
      %p223 = scmp.ne.s32.totalorder %s214, %s215
      %p224 = scmp.eq.s32.totalorder %s41, 0
      %p225 = por %p223, %p224
      %p226 = scmp.ne.s32.totalorder %s214, %s215
      %p227 = scmp.eq.s32.totalorder %s42, 1
      %p228 = por %p226, %p227
      %p230 = scmp.ne.s32.totalorder %s215, %s229
      %p231 = scmp.eq.s32.totalorder %s42, 0
      %p232 = por %p230, %p231
      %s234 = sadd.s32 %s233, 1
      %p237 = scmp.eq.s32.totalorder %s36, 1
      %p238 = scmp.ne.s32.totalorder %s233, %s235
      %p239 = scmp.eq.s32.totalorder %s36, 0
      %p240 = por %p238, %p239
      %p241 = scmp.ne.s32.totalorder %s233, %s235
      %p242 = scmp.eq.s32.totalorder %s41, 1
      %p243 = por %p241, %p242
      %p244 = scmp.ne.s32.totalorder %s235, %s236
      %p245 = scmp.eq.s32.totalorder %s41, 0
      %p246 = por %p244, %p245
      %p247 = scmp.ne.s32.totalorder %s235, %s236
      %p248 = scmp.eq.s32.totalorder %s42, 1
      %p249 = por %p247, %p248
      %p251 = scmp.ne.s32.totalorder %s236, %s250
      %p252 = scmp.eq.s32.totalorder %s42, 0
      %p253 = por %p251, %p252
      %s255 = sadd.s32 %s254, 1
      %p258 = scmp.eq.s32.totalorder %s36, 1
      %p259 = scmp.ne.s32.totalorder %s254, %s256
      %p260 = scmp.eq.s32.totalorder %s36, 0
      %p261 = por %p259, %p260
      %p262 = scmp.ne.s32.totalorder %s254, %s256
      %p263 = scmp.eq.s32.totalorder %s41, 1
      %p264 = por %p262, %p263
      %p265 = scmp.ne.s32.totalorder %s256, %s257
      %p266 = scmp.eq.s32.totalorder %s41, 0
      %p267 = por %p265, %p266
      %p268 = scmp.ne.s32.totalorder %s256, %s257
      %p269 = scmp.eq.s32.totalorder %s42, 1
      %p270 = por %p268, %p269
      %p272 = scmp.ne.s32.totalorder %s257, %s271
      %p273 = scmp.eq.s32.totalorder %s42, 0
      %p274 = por %p272, %p273
      %s276 = sadd.s32 %s275, 1
      %p279 = scmp.eq.s32.totalorder %s36, 1
      %p280 = scmp.ne.s32.totalorder %s275, %s277
      %p281 = scmp.eq.s32.totalorder %s36, 0
      %p282 = por %p280, %p281
      %p283 = scmp.ne.s32.totalorder %s275, %s277
      %p284 = scmp.eq.s32.totalorder %s41, 1
      %p285 = por %p283, %p284
      %p286 = scmp.ne.s32.totalorder %s277, %s278
      %p287 = scmp.eq.s32.totalorder %s41, 0
      %p288 = por %p286, %p287
      %p289 = scmp.ne.s32.totalorder %s277, %s278
      %p290 = scmp.eq.s32.totalorder %s42, 1
      %p291 = por %p289, %p290
      %p293 = scmp.ne.s32.totalorder %s278, %s292
      %p294 = scmp.eq.s32.totalorder %s42, 0
      %p295 = por %p293, %p294
      %s297 = sadd.s32 %s296, 1
      %p300 = scmp.eq.s32.totalorder %s36, 1
      %p301 = scmp.ne.s32.totalorder %s296, %s298
      %p302 = scmp.eq.s32.totalorder %s36, 0
      %p303 = por %p301, %p302
      %p304 = scmp.ne.s32.totalorder %s296, %s298
      %p305 = scmp.eq.s32.totalorder %s41, 1
      %p306 = por %p304, %p305
      %p307 = scmp.ne.s32.totalorder %s298, %s299
      %p308 = scmp.eq.s32.totalorder %s41, 0
      %p309 = por %p307, %p308
      %p310 = scmp.ne.s32.totalorder %s298, %s299
      %p311 = scmp.eq.s32.totalorder %s42, 1
      %p312 = por %p310, %p311
      %p314 = scmp.ne.s32.totalorder %s299, %s313
      %p315 = scmp.eq.s32.totalorder %s42, 0
      %p316 = por %p314, %p315
      %s317 = ssub.s32 %s36, %s43
      %p318 = scmp.eq.s32.totalorder %s317, 0
      %s320 = sadd.s32 %s319, 1
      %s321 = scalar_select %p318, %s319, %s320
      %p324 = pneg %p318
      %p325 = scmp.eq.s32.totalorder %s36, 1
      %p326 = por %p324, %p325
      %p327 = scmp.ne.s32.totalorder %s319, %s322
      %p328 = scmp.eq.s32.totalorder %s36, 0
      %p329 = por %p327, %p328
      %p330 = scmp.ne.s32.totalorder %s319, %s322
      %p331 = scmp.eq.s32.totalorder %s41, 1
      %p332 = por %p330, %p331
      %p333 = scmp.ne.s32.totalorder %s322, %s323
      %p334 = scmp.eq.s32.totalorder %s41, 0
      %p335 = por %p333, %p334
      %p336 = scmp.ne.s32.totalorder %s322, %s323
      %p337 = scmp.eq.s32.totalorder %s42, 1
      %p338 = por %p336, %p337
      %p340 = scmp.ne.s32.totalorder %s323, %s339
      %p341 = scmp.eq.s32.totalorder %s42, 0
      %p342 = por %p340, %p341
      %s343 = ssub.s32 %s36, %s43
      %p344 = scmp.eq.s32.totalorder %s343, 0
      %s346 = sadd.s32 %s345, 1
      %s347 = scalar_select %p344, %s345, %s346
      %p350 = pneg %p344
      %p351 = scmp.eq.s32.totalorder %s36, 1
      %p352 = por %p350, %p351
      %p353 = scmp.ne.s32.totalorder %s345, %s348
      %p354 = scmp.eq.s32.totalorder %s36, 0
      %p355 = por %p353, %p354
      %p356 = scmp.ne.s32.totalorder %s345, %s348
      %p357 = scmp.eq.s32.totalorder %s41, 1
      %p358 = por %p356, %p357
      %p359 = scmp.ne.s32.totalorder %s348, %s349
      %p360 = scmp.eq.s32.totalorder %s41, 0
      %p361 = por %p359, %p360
      %p362 = scmp.ne.s32.totalorder %s348, %s349
      %p363 = scmp.eq.s32.totalorder %s42, 1
      %p364 = por %p362, %p363
      %p366 = scmp.ne.s32.totalorder %s349, %s365
      %p367 = scmp.eq.s32.totalorder %s42, 0
      %p368 = por %p366, %p367
      %s370 = sadd.s32 %s369, 1
      %p373 = scmp.eq.s32.totalorder %s36, 1
      %p374 = scmp.ne.s32.totalorder %s369, %s371
      %p375 = scmp.eq.s32.totalorder %s36, 0
      %p376 = por %p374, %p375
      %p377 = scmp.ne.s32.totalorder %s369, %s371
      %p378 = scmp.eq.s32.totalorder %s41, 1
      %p379 = por %p377, %p378
      %p380 = scmp.ne.s32.totalorder %s371, %s372
      %p381 = scmp.eq.s32.totalorder %s41, 0
      %p382 = por %p380, %p381
      %p383 = scmp.ne.s32.totalorder %s371, %s372
      %p384 = scmp.eq.s32.totalorder %s42, 1
      %p385 = por %p383, %p384
      %p387 = scmp.ne.s32.totalorder %s372, %s386
      %p388 = scmp.eq.s32.totalorder %s42, 0
      %p389 = por %p387, %p388
      %s391 = sadd.s32 %s390, 1
      %p394 = scmp.eq.s32.totalorder %s36, 1
      %p395 = scmp.ne.s32.totalorder %s390, %s392
      %p396 = scmp.eq.s32.totalorder %s36, 0
      %p397 = por %p395, %p396
      %p398 = scmp.ne.s32.totalorder %s390, %s392
      %p399 = scmp.eq.s32.totalorder %s41, 1
      %p400 = por %p398, %p399
      %p401 = scmp.ne.s32.totalorder %s392, %s393
      %p402 = scmp.eq.s32.totalorder %s41, 0
      %p403 = por %p401, %p402
      %p404 = scmp.ne.s32.totalorder %s392, %s393
      %p405 = scmp.eq.s32.totalorder %s42, 1
      %p406 = por %p404, %p405
      %p408 = scmp.ne.s32.totalorder %s393, %s407
      %p409 = scmp.eq.s32.totalorder %s42, 0
      %p410 = por %p408, %p409
      %s412 = sadd.s32 %s411, 1
      %p415 = scmp.eq.s32.totalorder %s36, 1
      %p416 = scmp.ne.s32.totalorder %s411, %s413
      %p417 = scmp.eq.s32.totalorder %s36, 0
      %p418 = por %p416, %p417
      %p419 = scmp.ne.s32.totalorder %s411, %s413
      %p420 = scmp.eq.s32.totalorder %s41, 1
      %p421 = por %p419, %p420
      %p422 = scmp.ne.s32.totalorder %s413, %s414
      %p423 = scmp.eq.s32.totalorder %s41, 0
      %p424 = por %p422, %p423
      %p425 = scmp.ne.s32.totalorder %s413, %s414
      %p426 = scmp.eq.s32.totalorder %s42, 1
      %p427 = por %p425, %p426
      %p429 = scmp.ne.s32.totalorder %s414, %s428
      %p430 = scmp.eq.s32.totalorder %s42, 0
      %p431 = por %p429, %p430
      %s433 = sadd.s32 %s432, 1
      %p436 = scmp.eq.s32.totalorder %s36, 1
      %p437 = scmp.ne.s32.totalorder %s432, %s434
      %p438 = scmp.eq.s32.totalorder %s36, 0
      %p439 = por %p437, %p438
      %p440 = scmp.ne.s32.totalorder %s432, %s434
      %p441 = scmp.eq.s32.totalorder %s41, 1
      %p442 = por %p440, %p441
      %p443 = scmp.ne.s32.totalorder %s434, %s435
      %p444 = scmp.eq.s32.totalorder %s41, 0
      %p445 = por %p443, %p444
      %p446 = scmp.ne.s32.totalorder %s434, %s435
      %p447 = scmp.eq.s32.totalorder %s42, 1
      %p448 = por %p446, %p447
      %p450 = scmp.ne.s32.totalorder %s435, %s449
      %p451 = scmp.eq.s32.totalorder %s42, 0
      %p452 = por %p450, %p451
      %p453 = scmp.le.s32.totalorder 1, %s36
      %p454 = scmp.lt.s32.totalorder %s36, 3
      %p455 = pnand %p453, %p454
      %p456 = pneg %p455
      // Predicated region
      $region9: #{encoder_2d_attn_forward.1} parent=5 // pred_check
        _
      $region10: #{encoder_2d_attn_forward.1} parent=5 // pred_check_branch
        %458 = sbr.rel (%p455) target = $region12
      $region11: #{encoder_2d_attn_forward.1} parent=5 // pred_region
        %s459 = ssub.s32 %s36, 1
        // Predicated region
        $region13: #{encoder_2d_attn_forward.1} parent=11 // pred_check
          %p460 = pneg %p57
        $region14: #{encoder_2d_attn_forward.1} parent=11 // pred_check_branch
          %462 = sbr.rel (%p460) target = $region16
        $region15: #{encoder_2d_attn_forward.1} parent=11 // pred_region
          _
        $region16: #{encoder_2d_attn_forward.1} parent=11 // pred_fallthru
          _
        // Predicated region
        $region17: #{encoder_2d_attn_forward.1} parent=11 // pred_check
          %p463 = pneg %p78
        $region18: #{encoder_2d_attn_forward.1} parent=11 // pred_check_branch
          %465 = sbr.rel (%p463) target = $region20
        $region19: #{encoder_2d_attn_forward.1} parent=11 // pred_region
          _
        $region20: #{encoder_2d_attn_forward.1} parent=11 // pred_fallthru
          _
        // Predicated region
        $region21: #{encoder_2d_attn_forward.1} parent=11 // pred_check
          %p466 = pneg %p99
        $region22: #{encoder_2d_attn_forward.1} parent=11 // pred_check_branch
          %468 = sbr.rel (%p466) target = $region24
        $region23: #{encoder_2d_attn_forward.1} parent=11 // pred_region
          _
        $region24: #{encoder_2d_attn_forward.1} parent=11 // pred_fallthru
          _
        // Predicated region
        $region25: #{encoder_2d_attn_forward.1} parent=11 // pred_check
          %p469 = pneg %p120
        $region26: #{encoder_2d_attn_forward.1} parent=11 // pred_check_branch
          %471 = sbr.rel (%p469) target = $region28
        $region27: #{encoder_2d_attn_forward.1} parent=11 // pred_region
          _
        $region28: #{encoder_2d_attn_forward.1} parent=11 // pred_fallthru
          _
        // Predicated region
        $region29: #{encoder_2d_attn_forward.1} parent=11 // pred_check
          %p472 = pneg %p141
        $region30: #{encoder_2d_attn_forward.1} parent=11 // pred_check_branch
          %474 = sbr.rel (%p472) target = $region32
        $region31: #{encoder_2d_attn_forward.1} parent=11 // pred_region
          %s476 = ssub.s32 512, 512
          %477 = vsyncadd [#allocation5], %s476
          %s478 = sshll.u32 [#allocation4], 4
          %s479 = int_to_ptr.vmem [resolvable:$true] %s478
          %484 = dma.hbm_to_vmem [thread:$0]  %s4, 512, %s479, [#allocation5], 128, 128, 8
        $region32: #{encoder_2d_attn_forward.1} parent=11 // pred_fallthru
          _
        // Predicated region
        $region33: #{encoder_2d_attn_forward.1} parent=11 // pred_check
          %p485 = pneg %p162
        $region34: #{encoder_2d_attn_forward.1} parent=11 // pred_check_branch
          %487 = sbr.rel (%p485) target = $region36
        $region35: #{encoder_2d_attn_forward.1} parent=11 // pred_region
          %s489 = ssub.s32 512, 512
          %490 = vsyncadd [#allocation8], %s489
          %s491 = sshll.u32 [#allocation7], 4
          %s492 = int_to_ptr.vmem [resolvable:$true] %s491
          %497 = dma.hbm_to_vmem [thread:$0]  %s5, 512, %s492, [#allocation8], 128, 128, 8
        $region36: #{encoder_2d_attn_forward.1} parent=11 // pred_fallthru
          _
        // Predicated region
        $region37: #{encoder_2d_attn_forward.1} parent=11 // pred_check
          %p498 = pneg %p183
        $region38: #{encoder_2d_attn_forward.1} parent=11 // pred_check_branch
          %500 = sbr.rel (%p498) target = $region40
        $region39: #{encoder_2d_attn_forward.1} parent=11 // pred_region
          %s502 = ssub.s32 16, 16
          %503 = vsyncadd [#allocation8], %s502
          %s505 = sshll.u32 [#allocation9], 4
          %s506 = int_to_ptr.vmem [resolvable:$true] %s505
          %508 = dma.hbm_to_vmem [thread:$0]  %s6, 16, %s506, [#allocation8]
        $region40: #{encoder_2d_attn_forward.1} parent=11 // pred_fallthru
          _
        // Predicated region
        $region41: #{encoder_2d_attn_forward.1} parent=11 // pred_check
          %p509 = pneg %p204
        $region42: #{encoder_2d_attn_forward.1} parent=11 // pred_check_branch
          %511 = sbr.rel (%p509) target = $region44
        $region43: #{encoder_2d_attn_forward.1} parent=11 // pred_region
          %s513 = ssub.s32 512, 512
          %514 = vsyncadd [#allocation11], %s513
          %s515 = sshll.u32 [#allocation10], 4
          %s516 = int_to_ptr.vmem [resolvable:$true] %s515
          %521 = dma.hbm_to_vmem [thread:$0]  %s7, 512, %s516, [#allocation11], 128, 128, 8
        $region44: #{encoder_2d_attn_forward.1} parent=11 // pred_fallthru
          _
        // Predicated region
        $region45: #{encoder_2d_attn_forward.1} parent=11 // pred_check
          %p522 = pneg %p225
        $region46: #{encoder_2d_attn_forward.1} parent=11 // pred_check_branch
          %524 = sbr.rel (%p522) target = $region48
        $region47: #{encoder_2d_attn_forward.1} parent=11 // pred_region
          %s526 = ssub.s32 16, 16
          %527 = vsyncadd [#allocation11], %s526
          %s529 = sshll.u32 [#allocation12], 4
          %s530 = int_to_ptr.vmem [resolvable:$true] %s529
          %532 = dma.hbm_to_vmem [thread:$0]  %s8, 16, %s530, [#allocation11]
        $region48: #{encoder_2d_attn_forward.1} parent=11 // pred_fallthru
          _
        // Predicated region
        $region49: #{encoder_2d_attn_forward.1} parent=11 // pred_check
          %p533 = pneg %p246
        $region50: #{encoder_2d_attn_forward.1} parent=11 // pred_check_branch
          %535 = sbr.rel (%p533) target = $region52
        $region51: #{encoder_2d_attn_forward.1} parent=11 // pred_region
          %s537 = ssub.s32 896, 896
          %538 = vsyncadd [#allocation14], %s537
          %s539 = sshll.u32 [#allocation13], 4
          %s540 = int_to_ptr.vmem [resolvable:$true] %s539
          %545 = dma.hbm_to_vmem [thread:$0]  %s9, 896, %s540, [#allocation14], 128, 128, 8
        $region52: #{encoder_2d_attn_forward.1} parent=11 // pred_fallthru
          _
        // Predicated region
        $region53: #{encoder_2d_attn_forward.1} parent=11 // pred_check
          %p546 = pneg %p267
        $region54: #{encoder_2d_attn_forward.1} parent=11 // pred_check_branch
          %548 = sbr.rel (%p546) target = $region56
        $region55: #{encoder_2d_attn_forward.1} parent=11 // pred_region
          %s550 = ssub.s32 16, 16
          %551 = vsyncadd [#allocation14], %s550
          %s553 = sshll.u32 [#allocation15], 4
          %s554 = int_to_ptr.vmem [resolvable:$true] %s553
          %556 = dma.hbm_to_vmem [thread:$0]  %s10, 16, %s554, [#allocation14]
        $region56: #{encoder_2d_attn_forward.1} parent=11 // pred_fallthru
          _
        // Predicated region
        $region57: #{encoder_2d_attn_forward.1} parent=11 // pred_check
          %p557 = pneg %p288
        $region58: #{encoder_2d_attn_forward.1} parent=11 // pred_check_branch
          %559 = sbr.rel (%p557) target = $region60
        $region59: #{encoder_2d_attn_forward.1} parent=11 // pred_region
          %s561 = ssub.s32 112, 112
          %562 = vsyncadd [#allocation17], %s561
          %s564 = sshll.u32 [#allocation16], 4
          %s565 = int_to_ptr.vmem [resolvable:$true] %s564
          %567 = dma.hbm_to_vmem [thread:$0]  %s11, 112, %s565, [#allocation17]
        $region60: #{encoder_2d_attn_forward.1} parent=11 // pred_fallthru
          _
        // Predicated region
        $region61: #{encoder_2d_attn_forward.1} parent=11 // pred_check
          %p568 = pneg %p309
        $region62: #{encoder_2d_attn_forward.1} parent=11 // pred_check_branch
          %570 = sbr.rel (%p568) target = $region64
        $region63: #{encoder_2d_attn_forward.1} parent=11 // pred_region
          %s572 = ssub.s32 112, 112
          %573 = vsyncadd [#allocation17], %s572
          %s575 = sshll.u32 [#allocation18], 4
          %s576 = int_to_ptr.vmem [resolvable:$true] %s575
          %578 = dma.hbm_to_vmem [thread:$0]  %s12, 112, %s576, [#allocation17]
        $region64: #{encoder_2d_attn_forward.1} parent=11 // pred_fallthru
          _
        // Predicated region
        $region65: #{encoder_2d_attn_forward.1} parent=11 // pred_check
          %p579 = pneg %p382
        $region66: #{encoder_2d_attn_forward.1} parent=11 // pred_check_branch
          %581 = sbr.rel (%p579) target = $region68
        $region67: #{encoder_2d_attn_forward.1} parent=11 // pred_region
          _
        $region68: #{encoder_2d_attn_forward.1} parent=11 // pred_fallthru
          _
        // Predicated region
        $region69: #{encoder_2d_attn_forward.1} parent=11 // pred_check
          %p582 = pneg %p403
        $region70: #{encoder_2d_attn_forward.1} parent=11 // pred_check_branch
          %584 = sbr.rel (%p582) target = $region72
        $region71: #{encoder_2d_attn_forward.1} parent=11 // pred_region
          %s586 = ssub.s32 16, 16
          %587 = vsyncadd [#allocation23], %s586
          %s589 = sshll.u32 [#allocation22], 4
          %s590 = int_to_ptr.vmem [resolvable:$true] %s589
          %592 = dma.hbm_to_vmem [thread:$0]  %s16, 16, %s590, [#allocation23]
        $region72: #{encoder_2d_attn_forward.1} parent=11 // pred_fallthru
          _
      $region12: #{encoder_2d_attn_forward.1} parent=5 // pred_fallthru
        _
      %p593 = scmp.lt.s32.totalorder %s36, 2
      // Predicated region
      $region73: #{encoder_2d_attn_forward.1} parent=5 // pred_check
        %p594 = pneg %p593
      $region74: #{encoder_2d_attn_forward.1} parent=5 // pred_check_branch
        %596 = sbr.rel (%p594) target = $region76
      $region75: #{encoder_2d_attn_forward.1} parent=5 // pred_region
        // Predicated region
        $region77: #{encoder_2d_attn_forward.1} parent=75 // pred_check
          %p597 = pneg %p329
        $region78: #{encoder_2d_attn_forward.1} parent=75 // pred_check_branch
          %599 = sbr.rel (%p597) target = $region80
        $region79: #{encoder_2d_attn_forward.1} parent=75 // pred_region
          %s600 = sand.u32 %s36, 1
          %s601 = scalar_lea.sflag [#allocation20], %s600
          %s602 = sand.u32 %s319, 1
          %s603 = smul.addr %s602, 4080
          %s604 = scalar_lea.vmem [#allocation19], %s603
          %s605 = smul.u32 10, %s36
          %s607 = ssub.s32 65280, 65280
          %608 = vsyncadd %s601, %s607
          %s609 = smul.addr %s605, 64
          %s610 = scalar_lea.hbm %s13, %s609
          %s611 = sshll.u32 %s604, 4
          %s612 = int_to_ptr.vmem [resolvable:$true] %s611
          %617 = dma.hbm_to_vmem [thread:$0]  %s610, 65280, %s612, %s601, 1280, 640, 40
        $region80: #{encoder_2d_attn_forward.1} parent=75 // pred_fallthru
          _
        // Predicated region
        $region81: #{encoder_2d_attn_forward.1} parent=75 // pred_check
          %p618 = pneg %p355
        $region82: #{encoder_2d_attn_forward.1} parent=75 // pred_check_branch
          %620 = sbr.rel (%p618) target = $region84
        $region83: #{encoder_2d_attn_forward.1} parent=75 // pred_region
          %s621 = sand.u32 %s36, 1
          %s622 = scalar_lea.sflag [#allocation20], %s621
          %s623 = sand.u32 %s345, 1
          %s624 = smul.addr %s623, 10
          %s625 = scalar_lea.vmem [#allocation21], %s624
          %s626 = smul.u32 10, %s36
          %s628 = ssub.s32 160, 160
          %629 = vsyncadd %s622, %s628
          %s630 = smul.addr %s626, 16
          %s631 = scalar_lea.hbm %s14, %s630
          %s633 = sshll.u32 %s625, 4
          %s634 = int_to_ptr.vmem [resolvable:$true] %s633
          %636 = dma.hbm_to_vmem [thread:$0]  %s631, 160, %s634, %s622
        $region84: #{encoder_2d_attn_forward.1} parent=75 // pred_fallthru
          _
      $region76: #{encoder_2d_attn_forward.1} parent=5 // pred_fallthru
        _
      %p637 = scmp.le.s32.totalorder 1, %s36
      %p638 = scmp.lt.s32.totalorder %s36, 3
      %p639 = pnand %p637, %p638
      %p640 = pneg %p639
      // Predicated region
      $region85: #{encoder_2d_attn_forward.1} parent=5 // pred_check
        _
      $region86: #{encoder_2d_attn_forward.1} parent=5 // pred_check_branch
        %642 = sbr.rel (%p639) target = $region88
      $region87: #{encoder_2d_attn_forward.1} parent=5 // pred_region
        %s643 = ssub.s32 %s36, 1
        // Predicated region
        $region89: #{encoder_2d_attn_forward.1} parent=87 // pred_check
          %p644 = pneg %p141
        $region90: #{encoder_2d_attn_forward.1} parent=87 // pred_check_branch
          %646 = sbr.rel (%p644) target = $region92
        $region91: #{encoder_2d_attn_forward.1} parent=87 // pred_region
          %647 = dma.done [#allocation5], 512
        $region92: #{encoder_2d_attn_forward.1} parent=87 // pred_fallthru
          _
        // Predicated region
        $region93: #{encoder_2d_attn_forward.1} parent=87 // pred_check
          %p648 = pneg %p162
        $region94: #{encoder_2d_attn_forward.1} parent=87 // pred_check_branch
          %650 = sbr.rel (%p648) target = $region96
        $region95: #{encoder_2d_attn_forward.1} parent=87 // pred_region
          %651 = dma.done [#allocation8], 512
        $region96: #{encoder_2d_attn_forward.1} parent=87 // pred_fallthru
          _
        // Predicated region
        $region97: #{encoder_2d_attn_forward.1} parent=87 // pred_check
          %p652 = pneg %p183
        $region98: #{encoder_2d_attn_forward.1} parent=87 // pred_check_branch
          %654 = sbr.rel (%p652) target = $region100
        $region99: #{encoder_2d_attn_forward.1} parent=87 // pred_region
          %655 = dma.done [#allocation8], 16
        $region100: #{encoder_2d_attn_forward.1} parent=87 // pred_fallthru
          _
        // Predicated region
        $region101: #{encoder_2d_attn_forward.1} parent=87 // pred_check
          %p656 = pneg %p204
        $region102: #{encoder_2d_attn_forward.1} parent=87 // pred_check_branch
          %658 = sbr.rel (%p656) target = $region104
        $region103: #{encoder_2d_attn_forward.1} parent=87 // pred_region
          %659 = dma.done [#allocation11], 512
        $region104: #{encoder_2d_attn_forward.1} parent=87 // pred_fallthru
          _
        // Predicated region
        $region105: #{encoder_2d_attn_forward.1} parent=87 // pred_check
          %p660 = pneg %p225
        $region106: #{encoder_2d_attn_forward.1} parent=87 // pred_check_branch
          %662 = sbr.rel (%p660) target = $region108
        $region107: #{encoder_2d_attn_forward.1} parent=87 // pred_region
          %663 = dma.done [#allocation11], 16
        $region108: #{encoder_2d_attn_forward.1} parent=87 // pred_fallthru
          _
        // Predicated region
        $region109: #{encoder_2d_attn_forward.1} parent=87 // pred_check
          %p664 = pneg %p246
        $region110: #{encoder_2d_attn_forward.1} parent=87 // pred_check_branch
          %666 = sbr.rel (%p664) target = $region112
        $region111: #{encoder_2d_attn_forward.1} parent=87 // pred_region
          %667 = dma.done [#allocation14], 896
        $region112: #{encoder_2d_attn_forward.1} parent=87 // pred_fallthru
          _
        // Predicated region
        $region113: #{encoder_2d_attn_forward.1} parent=87 // pred_check
          %p668 = pneg %p267
        $region114: #{encoder_2d_attn_forward.1} parent=87 // pred_check_branch
          %670 = sbr.rel (%p668) target = $region116
        $region115: #{encoder_2d_attn_forward.1} parent=87 // pred_region
          %671 = dma.done [#allocation14], 16
        $region116: #{encoder_2d_attn_forward.1} parent=87 // pred_fallthru
          _
        // Predicated region
        $region117: #{encoder_2d_attn_forward.1} parent=87 // pred_check
          %p672 = pneg %p288
        $region118: #{encoder_2d_attn_forward.1} parent=87 // pred_check_branch
          %674 = sbr.rel (%p672) target = $region120
        $region119: #{encoder_2d_attn_forward.1} parent=87 // pred_region
          %675 = dma.done [#allocation17], 112
        $region120: #{encoder_2d_attn_forward.1} parent=87 // pred_fallthru
          _
        // Predicated region
        $region121: #{encoder_2d_attn_forward.1} parent=87 // pred_check
          %p676 = pneg %p309
        $region122: #{encoder_2d_attn_forward.1} parent=87 // pred_check_branch
          %678 = sbr.rel (%p676) target = $region124
        $region123: #{encoder_2d_attn_forward.1} parent=87 // pred_region
          %679 = dma.done [#allocation17], 112
        $region124: #{encoder_2d_attn_forward.1} parent=87 // pred_fallthru
          _
        %s680 = sand.u32 %s41, 1
        %s681 = scalar_lea.sflag [#allocation20], %s680
        %s682 = sand.u32 %s322, 1
        %s683 = smul.addr %s682, 4080
        %s684 = scalar_lea.vmem [#allocation19], %s683
        // Predicated region
        $region125: #{encoder_2d_attn_forward.1} parent=87 // pred_check
          %p685 = pneg %p335
        $region126: #{encoder_2d_attn_forward.1} parent=87 // pred_check_branch
          %687 = sbr.rel (%p685) target = $region128
        $region127: #{encoder_2d_attn_forward.1} parent=87 // pred_region
          %688 = dma.done %s681, 65280
        $region128: #{encoder_2d_attn_forward.1} parent=87 // pred_fallthru
          _
        %s689 = sand.u32 %s41, 1
        %s690 = scalar_lea.sflag [#allocation20], %s689
        %s691 = sand.u32 %s348, 1
        %s692 = smul.addr %s691, 10
        %s693 = scalar_lea.vmem [#allocation21], %s692
        // Predicated region
        $region129: #{encoder_2d_attn_forward.1} parent=87 // pred_check
          %p694 = pneg %p361
        $region130: #{encoder_2d_attn_forward.1} parent=87 // pred_check_branch
          %696 = sbr.rel (%p694) target = $region132
        $region131: #{encoder_2d_attn_forward.1} parent=87 // pred_region
          %697 = dma.done %s690, 160
        $region132: #{encoder_2d_attn_forward.1} parent=87 // pred_fallthru
          _
        // Predicated region
        $region133: #{encoder_2d_attn_forward.1} parent=87 // pred_check
          %p698 = pneg %p403
        $region134: #{encoder_2d_attn_forward.1} parent=87 // pred_check_branch
          %700 = sbr.rel (%p698) target = $region136
        $region135: #{encoder_2d_attn_forward.1} parent=87 // pred_region
          %701 = dma.done [#allocation23], 16
        $region136: #{encoder_2d_attn_forward.1} parent=87 // pred_fallthru
          _
        %p702 = pneg %p57
        %p703 = pneg %p54
        %p704 = pneg %p78
        %p705 = pneg %p75
        %p706 = pneg %p99
        %p707 = pneg %p96
        %p708 = pneg %p120
        %p709 = pneg %p117
        %p710 = pneg %p141
        %p711 = pneg %p138
        %p712 = pneg %p162
        %p713 = pneg %p159
        %p714 = pneg %p183
        %p715 = pneg %p180
        %p716 = pneg %p204
        %p717 = pneg %p201
        %p718 = pneg %p225
        %p719 = pneg %p222
        %p720 = pneg %p246
        %p721 = pneg %p243
        %p722 = pneg %p267
        %p723 = pneg %p264
        %p724 = pneg %p288
        %p725 = pneg %p285
        %p726 = pneg %p309
        %p727 = pneg %p306
        %s728 = sand.u32 %s41, 1
        %s729 = scalar_lea.sflag [#allocation20], %s728
        %s730 = sand.u32 %s322, 1
        %s731 = smul.addr %s730, 4080
        %s732 = scalar_lea.vmem [#allocation19], %s731
        %p733 = pneg %p335
        %p734 = pneg %p332
        %s735 = sand.u32 %s41, 1
        %s736 = scalar_lea.sflag [#allocation20], %s735
        %s737 = sand.u32 %s348, 1
        %s738 = smul.addr %s737, 10
        %s739 = scalar_lea.vmem [#allocation21], %s738
        %p740 = pneg %p361
        %p741 = pneg %p358
        %p742 = pneg %p382
        %p743 = pneg %p379
        %p744 = pneg %p403
        %p745 = pneg %p400
        %p746 = pneg %p424
        %p747 = pneg %p421
        %p748 = pneg %p445
        %p749 = pneg %p442
        %s750 = smul.u32 10, %s41
        %s751 = smul.u32 10, %s41
        %p753 = scmp.eq.s32.totalorder %s41, 0
        // Predicated region
        $region137: #{encoder_2d_attn_forward.1} parent=87 // pred_check
          %p754 = pneg %p753
        $region138: #{encoder_2d_attn_forward.1} parent=87 // pred_check_branch
          %756 = sbr.rel (%p754) target = $region140
        $region139: #{encoder_2d_attn_forward.1} parent=87 // pred_region
          %v757 = vld [vmem:[%s1] sm:$0xff]
          %v758 = vld [vmem:[%s1 + $0x8] sm:$0xff]
          %v759 = vld [vmem:[#allocation4] sm:$0xff]
          %v760 = vld [vmem:[#allocation4 + $0x8] sm:$0xff]
          %v761 = vld [vmem:[#allocation4 + $0x10] sm:$0xff]
          %v762 = vld [vmem:[#allocation4 + $0x18] sm:$0xff]
          %v763 = vld [vmem:[#allocation9] sm:$0x1]
          %v765 = vlaneseq
          %v766 = vshrl.u32 %v765, 7
          %v767 = vsub.s32 0, %v766
          %v768 = vrot.slane %v763, %v767
          %vm770 = vcmask 261120
          %v772 = vsel %vm770, %v757, 0
          %v775 = vsel %vm770, %v758, 0
          %777 = vmatprep.subr.mxu0 0.0
          %778 = vmatpush1.msra.mxu0 %v759
          %779 = vmatprep.subr.mxu0 0.0
          %780 = vmatpush1.msra.mxu0 %v760
          %781 = vmatprep.subr.mxu0 0.0
          %782 = vmatpush1.msra.mxu0 %v761
          %783 = vmatprep.subr.mxu0 0.0
          %784 = vmatpush1.msra.mxu0 %v762
          %785 = vmatprep.subr.mxu0 0.0
          %786 = vmatpush1.msra.mxu0 0.0
          %787 = vmatprep.subr.mxu0 0.0
          %788 = vmatpush1.msra.mxu0 0.0
          %789 = vmatprep.subr.mxu0 0.0
          %790 = vmatpush1.msra.mxu0 0.0
          %791 = vmatprep.subr.mxu0 0.0
          %792 = vmatpush1.msra.mxu0 0.0
          %793 = vmatprep.subr.mxu0 0.0
          %794 = vmatpush1.msra.mxu0 0.0
          %795 = vmatprep.subr.mxu0 0.0
          %796 = vmatpush1.msra.mxu0 0.0
          %797 = vmatprep.subr.mxu0 0.0
          %798 = vmatpush1.msra.mxu0 0.0
          %799 = vmatprep.subr.mxu0 0.0
          %800 = vmatpush1.msra.mxu0 0.0
          %801 = vmatprep.subr.mxu0 0.0
          %802 = vmatpush1.msra.mxu0 0.0
          %803 = vmatprep.subr.mxu0 0.0
          %804 = vmatpush1.msra.mxu0 0.0
          %805 = vmatprep.subr.mxu0 0.0
          %806 = vmatpush1.msra.mxu0 0.0
          %807 = vmatprep.subr.mxu0 0.0
          %808 = vmatpush1.msra.mxu0 0.0
          %809 = vmatprep.subr.mxu0 0.0
          %810 = vmatpush1.msra.mxu0 0.0
          %811 = vmatprep.subr.mxu0 0.0
          %812 = vmatpush1.msra.mxu0 0.0
          %813 = vmatprep.subr.mxu0 0.0
          %814 = vmatpush1.msra.mxu0 0.0
          %815 = vmatprep.subr.mxu0 0.0
          %816 = vmatpush1.msra.mxu0 0.0
          %817 = vmatprep.subr.mxu0 0.0
          %818 = vmatpush1.msra.mxu0 0.0
          %819 = vmatprep.subr.mxu0 0.0
          %820 = vmatpush1.msra.mxu0 0.0
          %821 = vmatprep.subr.mxu0 0.0
          %822 = vmatpush1.msra.mxu0 0.0
          %823 = vmatprep.subr.mxu0 0.0
          %824 = vmatpush1.msra.mxu0 0.0
          %825 = vmatprep.subr.mxu0 0.0
          %826 = vmatpush1.msra.mxu0 0.0
          %827 = vmatprep.subr.mxu0 0.0
          %828 = vmatpush1.msra.mxu0 0.0
          %829 = vmatprep.subr.mxu0 0.0
          %830 = vmatpush1.msra.mxu0 0.0
          %831 = vmatprep.subr.mxu0 0.0
          %832 = vmatpush1.msra.mxu0 0.0
          %833 = vmatprep.subr.mxu0 0.0
          %834 = vmatpush1.msra.mxu0 0.0
          %835 = vmatprep.subr.mxu0 0.0
          %836 = vmatpush1.msra.mxu0 0.0
          %837 = vmatprep.subr.mxu0 0.0
          %838 = vmatpush1.msra.mxu0 0.0
          %839 = vmatprep.subr.mxu0 0.0
          %840 = vmatpush1.msra.mxu0 0.0
          %841 = vmatprep.mubr.f32.mxu0 0.0
          %842 = vmatmul.mubr.f32.gmra.mrb[0].mxu0 %v772
          %v843 = vpop.f32.mrb[0].mxu0
          %v844 = vadd.f32 %v768, %v843
          %v845 = vpop.f32.mrb[0].mxu0
          %846 = vmatprep.mubr.f32.mxu0 0.0
          %847 = vmatmul.mubr.f32.gmra.mrb[0].mxu0 %v775
          %v848 = vpop.f32.mrb[0].mxu0
          %v849 = vadd.f32 %v768, %v848
          %v850 = vpop.f32.mrb[0].mxu0
          %851 = vdwg.mxu0
          %v852 = vld [vmem:[#allocation7] sm:$0xff]
          %v853 = vld [vmem:[#allocation7 + $0x8] sm:$0xff]
          %v854 = vld [vmem:[#allocation7 + $0x10] sm:$0xff]
          %v855 = vld [vmem:[#allocation7 + $0x18] sm:$0xff]
          %v857 = vsel %vm770, 0.0, 0
          %859 = vmatprep.subr.mxu0 0.0
          %860 = vmatpush1.msra.mxu0 %v852
          %861 = vmatprep.subr.mxu0 0.0
          %862 = vmatpush1.msra.mxu0 %v853
          %863 = vmatprep.subr.mxu0 0.0
          %864 = vmatpush1.msra.mxu0 %v854
          %865 = vmatprep.subr.mxu0 0.0
          %866 = vmatpush1.msra.mxu0 %v855
          %867 = vmatprep.subr.mxu0 0.0
          %868 = vmatpush1.msra.mxu0 0.0
          %869 = vmatprep.subr.mxu0 0.0
          %870 = vmatpush1.msra.mxu0 0.0
          %871 = vmatprep.subr.mxu0 0.0
          %872 = vmatpush1.msra.mxu0 0.0
          %873 = vmatprep.subr.mxu0 0.0
          %874 = vmatpush1.msra.mxu0 0.0
          %875 = vmatprep.subr.mxu0 0.0
          %876 = vmatpush1.msra.mxu0 0.0
          %877 = vmatprep.subr.mxu0 0.0
          %878 = vmatpush1.msra.mxu0 0.0
          %879 = vmatprep.subr.mxu0 0.0
          %880 = vmatpush1.msra.mxu0 0.0
          %881 = vmatprep.subr.mxu0 0.0
          %882 = vmatpush1.msra.mxu0 0.0
          %883 = vmatprep.subr.mxu0 0.0
          %884 = vmatpush1.msra.mxu0 0.0
          %885 = vmatprep.subr.mxu0 0.0
          %886 = vmatpush1.msra.mxu0 0.0
          %887 = vmatprep.subr.mxu0 0.0
          %888 = vmatpush1.msra.mxu0 0.0
          %889 = vmatprep.subr.mxu0 0.0
          %890 = vmatpush1.msra.mxu0 0.0
          %891 = vmatprep.subr.mxu0 0.0
          %892 = vmatpush1.msra.mxu0 0.0
          %893 = vmatprep.subr.mxu0 0.0
          %894 = vmatpush1.msra.mxu0 0.0
          %895 = vmatprep.subr.mxu0 0.0
          %896 = vmatpush1.msra.mxu0 0.0
          %897 = vmatprep.subr.mxu0 0.0
          %898 = vmatpush1.msra.mxu0 0.0
          %899 = vmatprep.subr.mxu0 0.0
          %900 = vmatpush1.msra.mxu0 0.0
          %901 = vmatprep.subr.mxu0 0.0
          %902 = vmatpush1.msra.mxu0 0.0
          %903 = vmatprep.subr.mxu0 0.0
          %904 = vmatpush1.msra.mxu0 0.0
          %905 = vmatprep.subr.mxu0 0.0
          %906 = vmatpush1.msra.mxu0 0.0
          %907 = vmatprep.subr.mxu0 0.0
          %908 = vmatpush1.msra.mxu0 0.0
          %909 = vmatprep.subr.mxu0 0.0
          %910 = vmatpush1.msra.mxu0 0.0
          %911 = vmatprep.subr.mxu0 0.0
          %912 = vmatpush1.msra.mxu0 0.0
          %913 = vmatprep.subr.mxu0 0.0
          %914 = vmatpush1.msra.mxu0 0.0
          %915 = vmatprep.subr.mxu0 0.0
          %916 = vmatpush1.msra.mxu0 0.0
          %917 = vmatprep.subr.mxu0 0.0
          %918 = vmatpush1.msra.mxu0 0.0
          %919 = vmatprep.subr.mxu0 0.0
          %920 = vmatpush1.msra.mxu0 0.0
          %921 = vmatprep.subr.mxu0 0.0
          %922 = vmatpush1.msra.mxu0 0.0
          %923 = vmatprep.mubr.f32.mxu0 0.0
          %924 = vmatmul.mubr.f32.gmra.mrb[0].mxu0 %v857
          %v925 = vpop.f32.mrb[0].mxu0
          %v926 = vadd.f32 0.0, %v925
          %v927 = vpop.f32.mrb[0].mxu0
          %928 = vdwg.mxu0
          %v929 = vadd.f32 %v844, %v926
          %v930 = vxor.u32 %v929, 2147483648
          %v931 = vmul.f32 %v930, 1.442695
          %v932 = vpow.pop %v931
          %v933 = vadd.f32 %v932, 1.0
          %v934 = vrcp.pop %v933
          %v935 = vmul.f32 1.0, %v934
          %v936 = vtanh.pop %v929
          %v937 = vmul.f32 %v935, 0.0
          %939 = vrot.lane.b32.xlu0 %v936, 64
          %v940 = vpop.permute.xlu0 %939
          %v942 = vmul.f32 %v935, %v940
          %944 = vrot.lane.b32.xlu0 %v942, 32
          %v945 = vpop.permute.xlu0 %944
          %v947 = vadd.f32 %v937, %v945
          %v948 = vtanh.pop %v947
          %950 = vrot.lane.b32.xlu0 %v948, 64
          %v951 = vpop.permute.xlu0 %950
          %v953 = vmul.f32 %v935, %v951
          %955 = vrot.lane.b32.xlu0 %v953, 32
          %v956 = vpop.permute.xlu0 %955
          %v957 = vsel %vm770, %v956, 0
          %959 = vmatprep.subr.mxu0 0.0
          %960 = vmatpush1.msra.mxu0 %v852
          %961 = vmatprep.subr.mxu0 0.0
          %962 = vmatpush1.msra.mxu0 %v853
          %963 = vmatprep.subr.mxu0 0.0
          %964 = vmatpush1.msra.mxu0 %v854
          %965 = vmatprep.subr.mxu0 0.0
          %966 = vmatpush1.msra.mxu0 %v855
          %967 = vmatprep.subr.mxu0 0.0
          %968 = vmatpush1.msra.mxu0 0.0
          %969 = vmatprep.subr.mxu0 0.0
          %970 = vmatpush1.msra.mxu0 0.0
          %971 = vmatprep.subr.mxu0 0.0
          %972 = vmatpush1.msra.mxu0 0.0
          %973 = vmatprep.subr.mxu0 0.0
          %974 = vmatpush1.msra.mxu0 0.0
          %975 = vmatprep.subr.mxu0 0.0
          %976 = vmatpush1.msra.mxu0 0.0
          %977 = vmatprep.subr.mxu0 0.0
          %978 = vmatpush1.msra.mxu0 0.0
          %979 = vmatprep.subr.mxu0 0.0
          %980 = vmatpush1.msra.mxu0 0.0
          %981 = vmatprep.subr.mxu0 0.0
          %982 = vmatpush1.msra.mxu0 0.0
          %983 = vmatprep.subr.mxu0 0.0
          %984 = vmatpush1.msra.mxu0 0.0
          %985 = vmatprep.subr.mxu0 0.0
          %986 = vmatpush1.msra.mxu0 0.0
          %987 = vmatprep.subr.mxu0 0.0
          %988 = vmatpush1.msra.mxu0 0.0
          %989 = vmatprep.subr.mxu0 0.0
          %990 = vmatpush1.msra.mxu0 0.0
          %991 = vmatprep.subr.mxu0 0.0
          %992 = vmatpush1.msra.mxu0 0.0
          %993 = vmatprep.subr.mxu0 0.0
          %994 = vmatpush1.msra.mxu0 0.0
          %995 = vmatprep.subr.mxu0 0.0
          %996 = vmatpush1.msra.mxu0 0.0
          %997 = vmatprep.subr.mxu0 0.0
          %998 = vmatpush1.msra.mxu0 0.0
          %999 = vmatprep.subr.mxu0 0.0
          %1000 = vmatpush1.msra.mxu0 0.0
          %1001 = vmatprep.subr.mxu0 0.0
          %1002 = vmatpush1.msra.mxu0 0.0
          %1003 = vmatprep.subr.mxu0 0.0
          %1004 = vmatpush1.msra.mxu0 0.0
          %1005 = vmatprep.subr.mxu0 0.0
          %1006 = vmatpush1.msra.mxu0 0.0
          %1007 = vmatprep.subr.mxu0 0.0
          %1008 = vmatpush1.msra.mxu0 0.0
          %1009 = vmatprep.subr.mxu0 0.0
          %1010 = vmatpush1.msra.mxu0 0.0
          %1011 = vmatprep.subr.mxu0 0.0
          %1012 = vmatpush1.msra.mxu0 0.0
          %1013 = vmatprep.subr.mxu0 0.0
          %1014 = vmatpush1.msra.mxu0 0.0
          %1015 = vmatprep.subr.mxu0 0.0
          %1016 = vmatpush1.msra.mxu0 0.0
          %1017 = vmatprep.subr.mxu0 0.0
          %1018 = vmatpush1.msra.mxu0 0.0
          %1019 = vmatprep.subr.mxu0 0.0
          %1020 = vmatpush1.msra.mxu0 0.0
          %1021 = vmatprep.subr.mxu0 0.0
          %1022 = vmatpush1.msra.mxu0 0.0
          %1023 = vmatprep.mubr.f32.mxu0 0.0
          %1024 = vmatmul.mubr.f32.gmra.mrb[0].mxu0 %v957
          %v1025 = vpop.f32.mrb[0].mxu0
          %v1026 = vadd.f32 0.0, %v1025
          %v1027 = vpop.f32.mrb[0].mxu0
          %1028 = vdwg.mxu0
          %v1030 = vrot.slane %v1026, 6
          %v1032 = vadd.f32 %v844, %v1030
          %v1033 = vxor.u32 %v1032, 2147483648
          %v1034 = vmul.f32 %v1033, 1.442695
          %v1035 = vpow.pop %v1034
          %v1036 = vadd.f32 %v1035, 1.0
          %v1037 = vrcp.pop %v1036
          %v1038 = vmul.f32 1.0, %v1037
          %v1039 = vtanh.pop %v1032
          %v1041 = vrot.slane %v947, 6
          %v1043 = vmul.f32 %v1038, %v1041
          %1045 = vrot.lane.b32.xlu0 %v1039, 64
          %v1046 = vpop.permute.xlu0 %1045
          %v1048 = vmul.f32 %v1038, %v1046
          %1050 = vrot.lane.b32.xlu0 %v1048, 32
          %v1051 = vpop.permute.xlu0 %1050
          %v1053 = vadd.f32 %v1043, %v1051
          %v1054 = vtanh.pop %v1053
          %1056 = vrot.lane.b32.xlu0 %v1054, 64
          %v1057 = vpop.permute.xlu0 %1056
          %v1059 = vmul.f32 %v1038, %v1057
          %v1061 = vrot.slane %v1059, 2
          %1062 = vrot.lane.b32.xlu0 %v1061, 32
          %v1063 = vpop.permute.xlu0 %1062
          %v1064 = vsel %vm770, %v1063, 0
          %1066 = vmatprep.subr.mxu0 0.0
          %1067 = vmatpush1.msra.mxu0 %v852
          %1068 = vmatprep.subr.mxu0 0.0
          %1069 = vmatpush1.msra.mxu0 %v853
          %1070 = vmatprep.subr.mxu0 0.0
          %1071 = vmatpush1.msra.mxu0 %v854
          %1072 = vmatprep.subr.mxu0 0.0
          %1073 = vmatpush1.msra.mxu0 %v855
          %1074 = vmatprep.subr.mxu0 0.0
          %1075 = vmatpush1.msra.mxu0 0.0
          %1076 = vmatprep.subr.mxu0 0.0
          %1077 = vmatpush1.msra.mxu0 0.0
          %1078 = vmatprep.subr.mxu0 0.0
          %1079 = vmatpush1.msra.mxu0 0.0
          %1080 = vmatprep.subr.mxu0 0.0
          %1081 = vmatpush1.msra.mxu0 0.0
          %1082 = vmatprep.subr.mxu0 0.0
          %1083 = vmatpush1.msra.mxu0 0.0
          %1084 = vmatprep.subr.mxu0 0.0
          %1085 = vmatpush1.msra.mxu0 0.0
          %1086 = vmatprep.subr.mxu0 0.0
          %1087 = vmatpush1.msra.mxu0 0.0
          %1088 = vmatprep.subr.mxu0 0.0
          %1089 = vmatpush1.msra.mxu0 0.0
          %1090 = vmatprep.subr.mxu0 0.0
          %1091 = vmatpush1.msra.mxu0 0.0
          %1092 = vmatprep.subr.mxu0 0.0
          %1093 = vmatpush1.msra.mxu0 0.0
          %1094 = vmatprep.subr.mxu0 0.0
          %1095 = vmatpush1.msra.mxu0 0.0
          %1096 = vmatprep.subr.mxu0 0.0
          %1097 = vmatpush1.msra.mxu0 0.0
          %1098 = vmatprep.subr.mxu0 0.0
          %1099 = vmatpush1.msra.mxu0 0.0
          %1100 = vmatprep.subr.mxu0 0.0
          %1101 = vmatpush1.msra.mxu0 0.0
          %1102 = vmatprep.subr.mxu0 0.0
          %1103 = vmatpush1.msra.mxu0 0.0
          %1104 = vmatprep.subr.mxu0 0.0
          %1105 = vmatpush1.msra.mxu0 0.0
          %1106 = vmatprep.subr.mxu0 0.0
          %1107 = vmatpush1.msra.mxu0 0.0
          %1108 = vmatprep.subr.mxu0 0.0
          %1109 = vmatpush1.msra.mxu0 0.0
          %1110 = vmatprep.subr.mxu0 0.0
          %1111 = vmatpush1.msra.mxu0 0.0
          %1112 = vmatprep.subr.mxu0 0.0
          %1113 = vmatpush1.msra.mxu0 0.0
          %1114 = vmatprep.subr.mxu0 0.0
          %1115 = vmatpush1.msra.mxu0 0.0
          %1116 = vmatprep.subr.mxu0 0.0
          %1117 = vmatpush1.msra.mxu0 0.0
          %1118 = vmatprep.subr.mxu0 0.0
          %1119 = vmatpush1.msra.mxu0 0.0
          %1120 = vmatprep.subr.mxu0 0.0
          %1121 = vmatpush1.msra.mxu0 0.0
          %1122 = vmatprep.subr.mxu0 0.0
          %1123 = vmatpush1.msra.mxu0 0.0
          %1124 = vmatprep.subr.mxu0 0.0
          %1125 = vmatpush1.msra.mxu0 0.0
          %1126 = vmatprep.subr.mxu0 0.0
          %1127 = vmatpush1.msra.mxu0 0.0
          %1128 = vmatprep.subr.mxu0 0.0
          %1129 = vmatpush1.msra.mxu0 0.0
          %1130 = vmatprep.mubr.f32.mxu0 0.0
          %1131 = vmatmul.mubr.f32.gmra.mrb[0].mxu0 %v1064
          %v1132 = vpop.f32.mrb[0].mxu0
          %v1133 = vadd.f32 0.0, %v1132
          %v1134 = vpop.f32.mrb[0].mxu0
          %1135 = vdwg.mxu0
          %v1137 = vrot.slane %v1133, 4
          %v1139 = vadd.f32 %v844, %v1137
          %v1140 = vxor.u32 %v1139, 2147483648
          %v1141 = vmul.f32 %v1140, 1.442695
          %v1142 = vpow.pop %v1141
          %v1143 = vadd.f32 %v1142, 1.0
          %v1144 = vrcp.pop %v1143
          %v1145 = vmul.f32 1.0, %v1144
          %v1146 = vtanh.pop %v1139
          %v1148 = vrot.slane %v1053, 6
          %v1150 = vmul.f32 %v1145, %v1148
          %1152 = vrot.lane.b32.xlu0 %v1146, 64
          %v1153 = vpop.permute.xlu0 %1152
          %v1155 = vmul.f32 %v1145, %v1153
          %1157 = vrot.lane.b32.xlu0 %v1155, 32
          %v1158 = vpop.permute.xlu0 %1157
          %v1160 = vadd.f32 %v1150, %v1158
          %v1161 = vtanh.pop %v1160
          %1163 = vrot.lane.b32.xlu0 %v1161, 64
          %v1164 = vpop.permute.xlu0 %1163
          %v1166 = vmul.f32 %v1145, %v1164
          %v1168 = vrot.slane %v1166, 4
          %1169 = vrot.lane.b32.xlu0 %v1168, 32
          %v1170 = vpop.permute.xlu0 %1169
          %v1171 = vsel %vm770, %v1170, 0
          %1173 = vmatprep.subr.mxu0 0.0
          %1174 = vmatpush1.msra.mxu0 %v852
          %1175 = vmatprep.subr.mxu0 0.0
          %1176 = vmatpush1.msra.mxu0 %v853
          %1177 = vmatprep.subr.mxu0 0.0
          %1178 = vmatpush1.msra.mxu0 %v854
          %1179 = vmatprep.subr.mxu0 0.0
          %1180 = vmatpush1.msra.mxu0 %v855
          %1181 = vmatprep.subr.mxu0 0.0
          %1182 = vmatpush1.msra.mxu0 0.0
          %1183 = vmatprep.subr.mxu0 0.0
          %1184 = vmatpush1.msra.mxu0 0.0
          %1185 = vmatprep.subr.mxu0 0.0
          %1186 = vmatpush1.msra.mxu0 0.0
          %1187 = vmatprep.subr.mxu0 0.0
          %1188 = vmatpush1.msra.mxu0 0.0
          %1189 = vmatprep.subr.mxu0 0.0
          %1190 = vmatpush1.msra.mxu0 0.0
          %1191 = vmatprep.subr.mxu0 0.0
          %1192 = vmatpush1.msra.mxu0 0.0
          %1193 = vmatprep.subr.mxu0 0.0
          %1194 = vmatpush1.msra.mxu0 0.0
          %1195 = vmatprep.subr.mxu0 0.0
          %1196 = vmatpush1.msra.mxu0 0.0
          %1197 = vmatprep.subr.mxu0 0.0
          %1198 = vmatpush1.msra.mxu0 0.0
          %1199 = vmatprep.subr.mxu0 0.0
          %1200 = vmatpush1.msra.mxu0 0.0
          %1201 = vmatprep.subr.mxu0 0.0
          %1202 = vmatpush1.msra.mxu0 0.0
          %1203 = vmatprep.subr.mxu0 0.0
          %1204 = vmatpush1.msra.mxu0 0.0
          %1205 = vmatprep.subr.mxu0 0.0
          %1206 = vmatpush1.msra.mxu0 0.0
          %1207 = vmatprep.subr.mxu0 0.0
          %1208 = vmatpush1.msra.mxu0 0.0
          %1209 = vmatprep.subr.mxu0 0.0
          %1210 = vmatpush1.msra.mxu0 0.0
          %1211 = vmatprep.subr.mxu0 0.0
          %1212 = vmatpush1.msra.mxu0 0.0
          %1213 = vmatprep.subr.mxu0 0.0
          %1214 = vmatpush1.msra.mxu0 0.0
          %1215 = vmatprep.subr.mxu0 0.0
          %1216 = vmatpush1.msra.mxu0 0.0
          %1217 = vmatprep.subr.mxu0 0.0
          %1218 = vmatpush1.msra.mxu0 0.0
          %1219 = vmatprep.subr.mxu0 0.0
          %1220 = vmatpush1.msra.mxu0 0.0
          %1221 = vmatprep.subr.mxu0 0.0
          %1222 = vmatpush1.msra.mxu0 0.0
          %1223 = vmatprep.subr.mxu0 0.0
          %1224 = vmatpush1.msra.mxu0 0.0
          %1225 = vmatprep.subr.mxu0 0.0
          %1226 = vmatpush1.msra.mxu0 0.0
          %1227 = vmatprep.subr.mxu0 0.0
          %1228 = vmatpush1.msra.mxu0 0.0
          %1229 = vmatprep.subr.mxu0 0.0
          %1230 = vmatpush1.msra.mxu0 0.0
          %1231 = vmatprep.subr.mxu0 0.0
          %1232 = vmatpush1.msra.mxu0 0.0
          %1233 = vmatprep.subr.mxu0 0.0
          %1234 = vmatpush1.msra.mxu0 0.0
          %1235 = vmatprep.subr.mxu0 0.0
          %1236 = vmatpush1.msra.mxu0 0.0
          %1237 = vmatprep.mubr.f32.mxu0 0.0
          %1238 = vmatmul.mubr.f32.gmra.mrb[0].mxu0 %v1171
          %v1239 = vpop.f32.mrb[0].mxu0
          %v1240 = vadd.f32 0.0, %v1239
          %v1241 = vpop.f32.mrb[0].mxu0
          %1242 = vdwg.mxu0
          %v1244 = vrot.slane %v1240, 2
          %v1246 = vadd.f32 %v844, %v1244
          %v1247 = vxor.u32 %v1246, 2147483648
          %v1248 = vmul.f32 %v1247, 1.442695
          %v1249 = vpow.pop %v1248
          %v1250 = vadd.f32 %v1249, 1.0
          %v1251 = vrcp.pop %v1250
          %v1252 = vmul.f32 1.0, %v1251
          %v1253 = vtanh.pop %v1246
          %v1255 = vrot.slane %v1160, 6
          %v1257 = vmul.f32 %v1252, %v1255
          %1259 = vrot.lane.b32.xlu0 %v1253, 64
          %v1260 = vpop.permute.xlu0 %1259
          %v1262 = vmul.f32 %v1252, %v1260
          %1264 = vrot.lane.b32.xlu0 %v1262, 32
          %v1265 = vpop.permute.xlu0 %1264
          %v1267 = vadd.f32 %v1257, %v1265
          %v1268 = vtanh.pop %v1267
          %1270 = vrot.lane.b32.xlu0 %v1268, 64
          %v1271 = vpop.permute.xlu0 %1270
          %v1273 = vmul.f32 %v1252, %v1271
          %v1275 = vrot.slane %v1273, 6
          %1276 = vrot.lane.b32.xlu0 %v1275, 32
          %v1277 = vpop.permute.xlu0 %1276
          %v1278 = vsel %vm770, %v1277, 0
          %1280 = vmatprep.subr.mxu0 0.0
          %1281 = vmatpush1.msra.mxu0 %v852
          %1282 = vmatprep.subr.mxu0 0.0
          %1283 = vmatpush1.msra.mxu0 %v853
          %1284 = vmatprep.subr.mxu0 0.0
          %1285 = vmatpush1.msra.mxu0 %v854
          %1286 = vmatprep.subr.mxu0 0.0
          %1287 = vmatpush1.msra.mxu0 %v855
          %1288 = vmatprep.subr.mxu0 0.0
          %1289 = vmatpush1.msra.mxu0 0.0
          %1290 = vmatprep.subr.mxu0 0.0
          %1291 = vmatpush1.msra.mxu0 0.0
          %1292 = vmatprep.subr.mxu0 0.0
          %1293 = vmatpush1.msra.mxu0 0.0
          %1294 = vmatprep.subr.mxu0 0.0
          %1295 = vmatpush1.msra.mxu0 0.0
          %1296 = vmatprep.subr.mxu0 0.0
          %1297 = vmatpush1.msra.mxu0 0.0
          %1298 = vmatprep.subr.mxu0 0.0
          %1299 = vmatpush1.msra.mxu0 0.0
          %1300 = vmatprep.subr.mxu0 0.0
          %1301 = vmatpush1.msra.mxu0 0.0
          %1302 = vmatprep.subr.mxu0 0.0
          %1303 = vmatpush1.msra.mxu0 0.0
          %1304 = vmatprep.subr.mxu0 0.0
          %1305 = vmatpush1.msra.mxu0 0.0
          %1306 = vmatprep.subr.mxu0 0.0
          %1307 = vmatpush1.msra.mxu0 0.0
          %1308 = vmatprep.subr.mxu0 0.0
          %1309 = vmatpush1.msra.mxu0 0.0
          %1310 = vmatprep.subr.mxu0 0.0
          %1311 = vmatpush1.msra.mxu0 0.0
          %1312 = vmatprep.subr.mxu0 0.0
          %1313 = vmatpush1.msra.mxu0 0.0
          %1314 = vmatprep.subr.mxu0 0.0
          %1315 = vmatpush1.msra.mxu0 0.0
          %1316 = vmatprep.subr.mxu0 0.0
          %1317 = vmatpush1.msra.mxu0 0.0
          %1318 = vmatprep.subr.mxu0 0.0
          %1319 = vmatpush1.msra.mxu0 0.0
          %1320 = vmatprep.subr.mxu0 0.0
          %1321 = vmatpush1.msra.mxu0 0.0
          %1322 = vmatprep.subr.mxu0 0.0
          %1323 = vmatpush1.msra.mxu0 0.0
          %1324 = vmatprep.subr.mxu0 0.0
          %1325 = vmatpush1.msra.mxu0 0.0
          %1326 = vmatprep.subr.mxu0 0.0
          %1327 = vmatpush1.msra.mxu0 0.0
          %1328 = vmatprep.subr.mxu0 0.0
          %1329 = vmatpush1.msra.mxu0 0.0
          %1330 = vmatprep.subr.mxu0 0.0
          %1331 = vmatpush1.msra.mxu0 0.0
          %1332 = vmatprep.subr.mxu0 0.0
          %1333 = vmatpush1.msra.mxu0 0.0
          %1334 = vmatprep.subr.mxu0 0.0
          %1335 = vmatpush1.msra.mxu0 0.0
          %1336 = vmatprep.subr.mxu0 0.0
          %1337 = vmatpush1.msra.mxu0 0.0
          %1338 = vmatprep.subr.mxu0 0.0
          %1339 = vmatpush1.msra.mxu0 0.0
          %1340 = vmatprep.subr.mxu0 0.0
          %1341 = vmatpush1.msra.mxu0 0.0
          %1342 = vmatprep.subr.mxu0 0.0
          %1343 = vmatpush1.msra.mxu0 0.0
          %1344 = vmatprep.mubr.f32.mxu0 0.0
          %1345 = vmatmul.mubr.f32.gmra.mrb[0].mxu0 %v1278
          %v1346 = vpop.f32.mrb[0].mxu0
          %v1347 = vadd.f32 0.0, %v1346
          %v1348 = vpop.f32.mrb[0].mxu0
          %1349 = vdwg.mxu0
          %v1350 = vadd.f32 %v849, %v1347
          %v1351 = vxor.u32 %v1350, 2147483648
          %v1352 = vmul.f32 %v1351, 1.442695
          %v1353 = vpow.pop %v1352
          %v1354 = vadd.f32 %v1353, 1.0
          %v1355 = vrcp.pop %v1354
          %v1356 = vmul.f32 1.0, %v1355
          %v1357 = vtanh.pop %v1350
          %v1359 = vrot.slane %v1267, 6
          %v1361 = vmul.f32 %v1356, %v1359
          %1363 = vrot.lane.b32.xlu0 %v1357, 64
          %v1364 = vpop.permute.xlu0 %1363
          %v1366 = vmul.f32 %v1356, %v1364
          %1368 = vrot.lane.b32.xlu0 %v1366, 32
          %v1369 = vpop.permute.xlu0 %1368
          %v1371 = vadd.f32 %v1361, %v1369
          %v1372 = vtanh.pop %v1371
          %1374 = vrot.lane.b32.xlu0 %v1372, 64
          %v1375 = vpop.permute.xlu0 %1374
          %v1377 = vmul.f32 %v1356, %v1375
          %1379 = vrot.lane.b32.xlu0 %v1377, 32
          %v1380 = vpop.permute.xlu0 %1379
          %v1381 = vsel %vm770, %v1380, 0
          %1383 = vmatprep.subr.mxu0 0.0
          %1384 = vmatpush1.msra.mxu0 %v852
          %1385 = vmatprep.subr.mxu0 0.0
          %1386 = vmatpush1.msra.mxu0 %v853
          %1387 = vmatprep.subr.mxu0 0.0
          %1388 = vmatpush1.msra.mxu0 %v854
          %1389 = vmatprep.subr.mxu0 0.0
          %1390 = vmatpush1.msra.mxu0 %v855
          %1391 = vmatprep.subr.mxu0 0.0
          %1392 = vmatpush1.msra.mxu0 0.0
          %1393 = vmatprep.subr.mxu0 0.0
          %1394 = vmatpush1.msra.mxu0 0.0
          %1395 = vmatprep.subr.mxu0 0.0
          %1396 = vmatpush1.msra.mxu0 0.0
          %1397 = vmatprep.subr.mxu0 0.0
          %1398 = vmatpush1.msra.mxu0 0.0
          %1399 = vmatprep.subr.mxu0 0.0
          %1400 = vmatpush1.msra.mxu0 0.0
          %1401 = vmatprep.subr.mxu0 0.0
          %1402 = vmatpush1.msra.mxu0 0.0
          %1403 = vmatprep.subr.mxu0 0.0
          %1404 = vmatpush1.msra.mxu0 0.0
          %1405 = vmatprep.subr.mxu0 0.0
          %1406 = vmatpush1.msra.mxu0 0.0
          %1407 = vmatprep.subr.mxu0 0.0
          %1408 = vmatpush1.msra.mxu0 0.0
          %1409 = vmatprep.subr.mxu0 0.0
          %1410 = vmatpush1.msra.mxu0 0.0
          %1411 = vmatprep.subr.mxu0 0.0
          %1412 = vmatpush1.msra.mxu0 0.0
          %1413 = vmatprep.subr.mxu0 0.0
          %1414 = vmatpush1.msra.mxu0 0.0
          %1415 = vmatprep.subr.mxu0 0.0
          %1416 = vmatpush1.msra.mxu0 0.0
          %1417 = vmatprep.subr.mxu0 0.0
          %1418 = vmatpush1.msra.mxu0 0.0
          %1419 = vmatprep.subr.mxu0 0.0
          %1420 = vmatpush1.msra.mxu0 0.0
          %1421 = vmatprep.subr.mxu0 0.0
          %1422 = vmatpush1.msra.mxu0 0.0
          %1423 = vmatprep.subr.mxu0 0.0
          %1424 = vmatpush1.msra.mxu0 0.0
          %1425 = vmatprep.subr.mxu0 0.0
          %1426 = vmatpush1.msra.mxu0 0.0
          %1427 = vmatprep.subr.mxu0 0.0
          %1428 = vmatpush1.msra.mxu0 0.0
          %1429 = vmatprep.subr.mxu0 0.0
          %1430 = vmatpush1.msra.mxu0 0.0
          %1431 = vmatprep.subr.mxu0 0.0
          %1432 = vmatpush1.msra.mxu0 0.0
          %1433 = vmatprep.subr.mxu0 0.0
          %1434 = vmatpush1.msra.mxu0 0.0
          %1435 = vmatprep.subr.mxu0 0.0
          %1436 = vmatpush1.msra.mxu0 0.0
          %1437 = vmatprep.subr.mxu0 0.0
          %1438 = vmatpush1.msra.mxu0 0.0
          %1439 = vmatprep.subr.mxu0 0.0
          %1440 = vmatpush1.msra.mxu0 0.0
          %1441 = vmatprep.subr.mxu0 0.0
          %1442 = vmatpush1.msra.mxu0 0.0
          %1443 = vmatprep.subr.mxu0 0.0
          %1444 = vmatpush1.msra.mxu0 0.0
          %1445 = vmatprep.subr.mxu0 0.0
          %1446 = vmatpush1.msra.mxu0 0.0
          %1447 = vmatprep.mubr.f32.mxu0 0.0
          %1448 = vmatmul.mubr.f32.gmra.mrb[0].mxu0 %v1381
          %v1449 = vpop.f32.mrb[0].mxu0
          %v1450 = vadd.f32 0.0, %v1449
          %v1451 = vpop.f32.mrb[0].mxu0
          %1452 = vdwg.mxu0
          %v1454 = vrot.slane %v1450, 6
          %v1456 = vadd.f32 %v849, %v1454
          %v1457 = vxor.u32 %v1456, 2147483648
          %v1458 = vmul.f32 %v1457, 1.442695
          %v1459 = vpow.pop %v1458
          %v1460 = vadd.f32 %v1459, 1.0
          %v1461 = vrcp.pop %v1460
          %v1462 = vmul.f32 1.0, %v1461
          %v1463 = vtanh.pop %v1456
          %v1465 = vrot.slane %v1371, 6
          %v1467 = vmul.f32 %v1462, %v1465
          %1469 = vrot.lane.b32.xlu0 %v1463, 64
          %v1470 = vpop.permute.xlu0 %1469
          %v1472 = vmul.f32 %v1462, %v1470
          %1474 = vrot.lane.b32.xlu0 %v1472, 32
          %v1475 = vpop.permute.xlu0 %1474
          %v1477 = vadd.f32 %v1467, %v1475
          %v1478 = vtanh.pop %v1477
          %1480 = vrot.lane.b32.xlu0 %v1478, 64
          %v1481 = vpop.permute.xlu0 %1480
          %v1483 = vmul.f32 %v1462, %v1481
          %v1485 = vrot.slane %v1483, 2
          %1486 = vrot.lane.b32.xlu0 %v1485, 32
          %v1487 = vpop.permute.xlu0 %1486
          %v1488 = vsel %vm770, %v1487, 0
          %1490 = vmatprep.subr.mxu0 0.0
          %1491 = vmatpush1.msra.mxu0 %v852
          %1492 = vmatprep.subr.mxu0 0.0
          %1493 = vmatpush1.msra.mxu0 %v853
          %1494 = vmatprep.subr.mxu0 0.0
          %1495 = vmatpush1.msra.mxu0 %v854
          %1496 = vmatprep.subr.mxu0 0.0
          %1497 = vmatpush1.msra.mxu0 %v855
          %1498 = vmatprep.subr.mxu0 0.0
          %1499 = vmatpush1.msra.mxu0 0.0
          %1500 = vmatprep.subr.mxu0 0.0
          %1501 = vmatpush1.msra.mxu0 0.0
          %1502 = vmatprep.subr.mxu0 0.0
          %1503 = vmatpush1.msra.mxu0 0.0
          %1504 = vmatprep.subr.mxu0 0.0
          %1505 = vmatpush1.msra.mxu0 0.0
          %1506 = vmatprep.subr.mxu0 0.0
          %1507 = vmatpush1.msra.mxu0 0.0
          %1508 = vmatprep.subr.mxu0 0.0
          %1509 = vmatpush1.msra.mxu0 0.0
          %1510 = vmatprep.subr.mxu0 0.0
          %1511 = vmatpush1.msra.mxu0 0.0
          %1512 = vmatprep.subr.mxu0 0.0
          %1513 = vmatpush1.msra.mxu0 0.0
          %1514 = vmatprep.subr.mxu0 0.0
          %1515 = vmatpush1.msra.mxu0 0.0
          %1516 = vmatprep.subr.mxu0 0.0
          %1517 = vmatpush1.msra.mxu0 0.0
          %1518 = vmatprep.subr.mxu0 0.0
          %1519 = vmatpush1.msra.mxu0 0.0
          %1520 = vmatprep.subr.mxu0 0.0
          %1521 = vmatpush1.msra.mxu0 0.0
          %1522 = vmatprep.subr.mxu0 0.0
          %1523 = vmatpush1.msra.mxu0 0.0
          %1524 = vmatprep.subr.mxu0 0.0
          %1525 = vmatpush1.msra.mxu0 0.0
          %1526 = vmatprep.subr.mxu0 0.0
          %1527 = vmatpush1.msra.mxu0 0.0
          %1528 = vmatprep.subr.mxu0 0.0
          %1529 = vmatpush1.msra.mxu0 0.0
          %1530 = vmatprep.subr.mxu0 0.0
          %1531 = vmatpush1.msra.mxu0 0.0
          %1532 = vmatprep.subr.mxu0 0.0
          %1533 = vmatpush1.msra.mxu0 0.0
          %1534 = vmatprep.subr.mxu0 0.0
          %1535 = vmatpush1.msra.mxu0 0.0
          %1536 = vmatprep.subr.mxu0 0.0
          %1537 = vmatpush1.msra.mxu0 0.0
          %1538 = vmatprep.subr.mxu0 0.0
          %1539 = vmatpush1.msra.mxu0 0.0
          %1540 = vmatprep.subr.mxu0 0.0
          %1541 = vmatpush1.msra.mxu0 0.0
          %1542 = vmatprep.subr.mxu0 0.0
          %1543 = vmatpush1.msra.mxu0 0.0
          %1544 = vmatprep.subr.mxu0 0.0
          %1545 = vmatpush1.msra.mxu0 0.0
          %1546 = vmatprep.subr.mxu0 0.0
          %1547 = vmatpush1.msra.mxu0 0.0
          %1548 = vmatprep.subr.mxu0 0.0
          %1549 = vmatpush1.msra.mxu0 0.0
          %1550 = vmatprep.subr.mxu0 0.0
          %1551 = vmatpush1.msra.mxu0 0.0
          %1552 = vmatprep.subr.mxu0 0.0
          %1553 = vmatpush1.msra.mxu0 0.0
          %1554 = vmatprep.mubr.f32.mxu0 0.0
          %1555 = vmatmul.mubr.f32.gmra.mrb[0].mxu0 %v1488
          %v1556 = vpop.f32.mrb[0].mxu0
          %v1557 = vadd.f32 0.0, %v1556
          %v1558 = vpop.f32.mrb[0].mxu0
          %1559 = vdwg.mxu0
          %v1561 = vrot.slane %v1557, 4
          %v1563 = vadd.f32 %v849, %v1561
          %v1564 = vxor.u32 %v1563, 2147483648
          %v1565 = vmul.f32 %v1564, 1.442695
          %v1566 = vpow.pop %v1565
          %v1567 = vadd.f32 %v1566, 1.0
          %v1568 = vrcp.pop %v1567
          %v1569 = vmul.f32 1.0, %v1568
          %v1570 = vtanh.pop %v1563
          %v1572 = vrot.slane %v1477, 6
          %v1574 = vmul.f32 %v1569, %v1572
          %1576 = vrot.lane.b32.xlu0 %v1570, 64
          %v1577 = vpop.permute.xlu0 %1576
          %v1579 = vmul.f32 %v1569, %v1577
          %1581 = vrot.lane.b32.xlu0 %v1579, 32
          %v1582 = vpop.permute.xlu0 %1581
          %v1584 = vadd.f32 %v1574, %v1582
          %v1585 = vtanh.pop %v1584
          %1587 = vrot.lane.b32.xlu0 %v1585, 64
          %v1588 = vpop.permute.xlu0 %1587
          %v1590 = vmul.f32 %v1569, %v1588
          %v1592 = vrot.slane %v1590, 4
          %1593 = vrot.lane.b32.xlu0 %v1592, 32
          %v1594 = vpop.permute.xlu0 %1593
          %v1595 = vsel %vm770, %v1594, 0
          %1597 = vmatprep.subr.mxu0 0.0
          %1598 = vmatpush1.msra.mxu0 %v852
          %1599 = vmatprep.subr.mxu0 0.0
          %1600 = vmatpush1.msra.mxu0 %v853
          %1601 = vmatprep.subr.mxu0 0.0
          %1602 = vmatpush1.msra.mxu0 %v854
          %1603 = vmatprep.subr.mxu0 0.0
          %1604 = vmatpush1.msra.mxu0 %v855
          %1605 = vmatprep.subr.mxu0 0.0
          %1606 = vmatpush1.msra.mxu0 0.0
          %1607 = vmatprep.subr.mxu0 0.0
          %1608 = vmatpush1.msra.mxu0 0.0
          %1609 = vmatprep.subr.mxu0 0.0
          %1610 = vmatpush1.msra.mxu0 0.0
          %1611 = vmatprep.subr.mxu0 0.0
          %1612 = vmatpush1.msra.mxu0 0.0
          %1613 = vmatprep.subr.mxu0 0.0
          %1614 = vmatpush1.msra.mxu0 0.0
          %1615 = vmatprep.subr.mxu0 0.0
          %1616 = vmatpush1.msra.mxu0 0.0
          %1617 = vmatprep.subr.mxu0 0.0
          %1618 = vmatpush1.msra.mxu0 0.0
          %1619 = vmatprep.subr.mxu0 0.0
          %1620 = vmatpush1.msra.mxu0 0.0
          %1621 = vmatprep.subr.mxu0 0.0
          %1622 = vmatpush1.msra.mxu0 0.0
          %1623 = vmatprep.subr.mxu0 0.0
          %1624 = vmatpush1.msra.mxu0 0.0
          %1625 = vmatprep.subr.mxu0 0.0
          %1626 = vmatpush1.msra.mxu0 0.0
          %1627 = vmatprep.subr.mxu0 0.0
          %1628 = vmatpush1.msra.mxu0 0.0
          %1629 = vmatprep.subr.mxu0 0.0
          %1630 = vmatpush1.msra.mxu0 0.0
          %1631 = vmatprep.subr.mxu0 0.0
          %1632 = vmatpush1.msra.mxu0 0.0
          %1633 = vmatprep.subr.mxu0 0.0
          %1634 = vmatpush1.msra.mxu0 0.0
          %1635 = vmatprep.subr.mxu0 0.0
          %1636 = vmatpush1.msra.mxu0 0.0
          %1637 = vmatprep.subr.mxu0 0.0
          %1638 = vmatpush1.msra.mxu0 0.0
          %1639 = vmatprep.subr.mxu0 0.0
          %1640 = vmatpush1.msra.mxu0 0.0
          %1641 = vmatprep.subr.mxu0 0.0
          %1642 = vmatpush1.msra.mxu0 0.0
          %1643 = vmatprep.subr.mxu0 0.0
          %1644 = vmatpush1.msra.mxu0 0.0
          %1645 = vmatprep.subr.mxu0 0.0
          %1646 = vmatpush1.msra.mxu0 0.0
          %1647 = vmatprep.subr.mxu0 0.0
          %1648 = vmatpush1.msra.mxu0 0.0
          %1649 = vmatprep.subr.mxu0 0.0
          %1650 = vmatpush1.msra.mxu0 0.0
          %1651 = vmatprep.subr.mxu0 0.0
          %1652 = vmatpush1.msra.mxu0 0.0
          %1653 = vmatprep.subr.mxu0 0.0
          %1654 = vmatpush1.msra.mxu0 0.0
          %1655 = vmatprep.subr.mxu0 0.0
          %1656 = vmatpush1.msra.mxu0 0.0
          %1657 = vmatprep.subr.mxu0 0.0
          %1658 = vmatpush1.msra.mxu0 0.0
          %1659 = vmatprep.subr.mxu0 0.0
          %1660 = vmatpush1.msra.mxu0 0.0
          %1661 = vmatprep.mubr.f32.mxu0 0.0
          %1662 = vmatmul.mubr.f32.gmra.mrb[0].mxu0 %v1595
          %v1663 = vpop.f32.mrb[0].mxu0
          %v1664 = vadd.f32 0.0, %v1663
          %v1665 = vpop.f32.mrb[0].mxu0
          %1666 = vdwg.mxu0
          %v1668 = vrot.slane %v1664, 2
          %v1670 = vadd.f32 %v849, %v1668
          %v1671 = vxor.u32 %v1670, 2147483648
          %v1672 = vmul.f32 %v1671, 1.442695
          %v1673 = vpow.pop %v1672
          %v1674 = vadd.f32 %v1673, 1.0
          %v1675 = vrcp.pop %v1674
          %v1676 = vmul.f32 1.0, %v1675
          %v1677 = vtanh.pop %v1670
          %v1679 = vrot.slane %v1584, 6
          %v1681 = vmul.f32 %v1676, %v1679
          %1683 = vrot.lane.b32.xlu0 %v1677, 64
          %v1684 = vpop.permute.xlu0 %1683
          %v1686 = vmul.f32 %v1676, %v1684
          %1688 = vrot.lane.b32.xlu0 %v1686, 32
          %v1689 = vpop.permute.xlu0 %1688
          %v1691 = vadd.f32 %v1681, %v1689
          %v1692 = vtanh.pop %v1691
          %1694 = vrot.lane.b32.xlu0 %v1692, 64
          %v1695 = vpop.permute.xlu0 %1694
          %v1697 = vmul.f32 %v1676, %v1695
          %v1698 = vld [vmem:[%s2] sm:$0xff]
          %v1699 = vld [vmem:[%s2 + $0x8] sm:$0xff]
          %v1700 = vld [vmem:[%s3] sm:$0xff]
          %v1701 = vld [vmem:[%s3 + $0x8] sm:$0xff]
          %v1702 = vld [vmem:[%s0] sm:$0xff]
          %v1703 = vld [vmem:[%s0 + $0x8] sm:$0xff]
          %v1704 = vld [vmem:[%s0 + $0x10] sm:$0xff]
          %v1705 = vld [vmem:[%s0 + $0x18] sm:$0xff]
          %v1706 = vld [vmem:[%s0 + $0x20] sm:$0xff]
          %v1707 = vld [vmem:[%s0 + $0x28] sm:$0xff]
          %1709 = vset.pattern.permute.xlu0 0
          %1710 = vperm.xlu0 %1709, %v1700
          %v1711 = vpop.permute.xlu0 %1710
          %1714 = vset.pattern.permute.xlu0 0
          %1715 = vperm.xlu0 %1714, %v1701
          %v1716 = vpop.permute.xlu0 %1715
          %vm1718 = vcmask 392192
          %v1720 = vsel %vm1718, %v1698, 0
          %v1723 = vsel %vm1718, %v1699, 0
          %1725 = vmatprep.subr.mxu0 0.0
          %1726 = vmatpush1.msra.mxu0 %v1702
          %1727 = vmatprep.subr.mxu0 0.0
          %1728 = vmatpush1.msra.mxu0 %v1703
          %1729 = vmatprep.subr.mxu0 0.0
          %1730 = vmatpush1.msra.mxu0 %v1704
          %1731 = vmatprep.subr.mxu0 0.0
          %1732 = vmatpush1.msra.mxu0 %v1705
          %1733 = vmatprep.subr.mxu0 0.0
          %1734 = vmatpush1.msra.mxu0 %v1706
          %1735 = vmatprep.subr.mxu0 0.0
          %1736 = vmatpush1.msra.mxu0 %v1707
          %1737 = vmatprep.subr.mxu0 0.0
          %1738 = vmatpush1.msra.mxu0 0.0
          %1739 = vmatprep.subr.mxu0 0.0
          %1740 = vmatpush1.msra.mxu0 0.0
          %1741 = vmatprep.subr.mxu0 0.0
          %1742 = vmatpush1.msra.mxu0 0.0
          %1743 = vmatprep.subr.mxu0 0.0
          %1744 = vmatpush1.msra.mxu0 0.0
          %1745 = vmatprep.subr.mxu0 0.0
          %1746 = vmatpush1.msra.mxu0 0.0
          %1747 = vmatprep.subr.mxu0 0.0
          %1748 = vmatpush1.msra.mxu0 0.0
          %1749 = vmatprep.subr.mxu0 0.0
          %1750 = vmatpush1.msra.mxu0 0.0
          %1751 = vmatprep.subr.mxu0 0.0
          %1752 = vmatpush1.msra.mxu0 0.0
          %1753 = vmatprep.subr.mxu0 0.0
          %1754 = vmatpush1.msra.mxu0 0.0
          %1755 = vmatprep.subr.mxu0 0.0
          %1756 = vmatpush1.msra.mxu0 0.0
          %1757 = vmatprep.subr.mxu0 0.0
          %1758 = vmatpush1.msra.mxu0 0.0
          %1759 = vmatprep.subr.mxu0 0.0
          %1760 = vmatpush1.msra.mxu0 0.0
          %1761 = vmatprep.subr.mxu0 0.0
          %1762 = vmatpush1.msra.mxu0 0.0
          %1763 = vmatprep.subr.mxu0 0.0
          %1764 = vmatpush1.msra.mxu0 0.0
          %1765 = vmatprep.subr.mxu0 0.0
          %1766 = vmatpush1.msra.mxu0 0.0
          %1767 = vmatprep.subr.mxu0 0.0
          %1768 = vmatpush1.msra.mxu0 0.0
          %1769 = vmatprep.subr.mxu0 0.0
          %1770 = vmatpush1.msra.mxu0 0.0
          %1771 = vmatprep.subr.mxu0 0.0
          %1772 = vmatpush1.msra.mxu0 0.0
          %1773 = vmatprep.subr.mxu0 0.0
          %1774 = vmatpush1.msra.mxu0 0.0
          %1775 = vmatprep.subr.mxu0 0.0
          %1776 = vmatpush1.msra.mxu0 0.0
          %1777 = vmatprep.subr.mxu0 0.0
          %1778 = vmatpush1.msra.mxu0 0.0
          %1779 = vmatprep.subr.mxu0 0.0
          %1780 = vmatpush1.msra.mxu0 0.0
          %1781 = vmatprep.subr.mxu0 0.0
          %1782 = vmatpush1.msra.mxu0 0.0
          %1783 = vmatprep.subr.mxu0 0.0
          %1784 = vmatpush1.msra.mxu0 0.0
          %1785 = vmatprep.subr.mxu0 0.0
          %1786 = vmatpush1.msra.mxu0 0.0
          %1787 = vmatprep.subr.mxu0 0.0
          %1788 = vmatpush1.msra.mxu0 0.0
          %1789 = vmatprep.mubr.f32.mxu0 0.0
          %1790 = vmatmul.mubr.f32.gmra.mrb[0].mxu0 %v1720
          %v1791 = vpop.f32.mrb[0].mxu0
          %v1792 = vadd.f32 %v1711, %v1791
          %v1793 = vpop.f32.mrb[0].mxu0
          %1794 = vmatprep.mubr.f32.mxu0 0.0
          %1795 = vmatmul.mubr.f32.gmra.mrb[0].mxu0 %v1723
          %v1796 = vpop.f32.mrb[0].mxu0
          %v1797 = vadd.f32 %v1716, %v1796
          %v1798 = vpop.f32.mrb[0].mxu0
          %1799 = vdwg.mxu0
          %v1800 = vmax.f32 %v1792, 0.0
          %v1801 = vmax.f32 %v1797, 0.0
          %vm1802 = vcmask 393216
          %1803 = vst.msk [vmem:[#allocation2] sm:$0x1] %vm1802, %v1800
          %v1806 = vunpack.c.l.s4 1983009808
          %v1807 = vunpack.c.0.s8 %v1806
          %v1808 = vlaneseq
          %v1809 = vshrl.u32 %v1808, 7
          %v1810 = vsub.s32 %v1807, %v1809
          %v1811 = vrot.slane %v1800, %v1810
          %v1812 = vrot.slane %v1811, 7
          %v1813 = vrot.slane %v1812, 2
          %1814 = vrot.lane.b32.xlu0 %v1813, 49
          %v1815 = vpop.permute.xlu0 %1814
          %vm1817 = vcmask 795016
          %1818 = vst.msk [vmem:[#allocation2] sm:$0x1] %vm1817, %v1815
          %v1819 = vcombine.high %v1811, %v1811
          %1820 = vrot.lane.b32.xlu0 %v1819, 98
          %v1821 = vpop.permute.xlu0 %1820
          %v1822 = vrot.slane %v1821, 6
          %vm1823 = vcmask 801792
          %v1824 = vsel %vm1823, %v1822, %v1821
          %vm1826 = vcmask 1041168
          %vm1827 = vcmask 149506
          %vm1828 = vmor %vm1827, %vm1826
          %1829 = vst.msk [vmem:[#allocation2] sm:$0x5] %vm1828, %v1824
          %v1830 = vrot.slane %v1819, 7
          %v1831 = vrot.slane %v1830, 2
          %1832 = vrot.lane.b32.xlu0 %v1831, 19
          %v1833 = vpop.permute.xlu0 %1832
          %vm1835 = vcmask 549016
          %1836 = vst.msk [vmem:[#allocation2 + $0x2] sm:$0x1] %vm1835, %v1833
          %v1837 = vcombine.high %v1800, %v1800
          %v1839 = vunpack.c.l.s4 1983009808
          %v1840 = vunpack.c.0.s8 %v1839
          %v1841 = vlaneseq
          %v1842 = vshrl.u32 %v1841, 7
          %v1843 = vsub.s32 %v1840, %v1842
          %v1844 = vrot.slane %v1837, %v1843
          %1845 = vrot.lane.b32.xlu0 %v1844, 68
          %v1846 = vpop.permute.xlu0 %1845
          %vm1848 = vcmask 950816
          %1849 = vst.msk [vmem:[#allocation2 + $0x2] sm:$0x1] %vm1848, %v1846
          %v1850 = vrot.slane %v1844, 7
          %v1851 = vrot.slane %v1850, 2
          %1852 = vrot.lane.b32.xlu0 %v1851, 117
          %v1853 = vpop.permute.xlu0 %1852
          %v1854 = vrot.slane %v1853, 6
          %vm1855 = vcmask 957440
          %v1856 = vsel %vm1855, %v1854, %v1853
          %vm1858 = vcmask 1041320
          %vm1859 = vcmask 305154
          %vm1860 = vmor %vm1859, %vm1858
          %1861 = vst.msk [vmem:[#allocation2 + $0x2] sm:$0x5] %vm1860, %v1856
          %v1862 = vcombine.high %v1844, %v1844
          %1863 = vrot.lane.b32.xlu0 %v1862, 38
          %v1864 = vpop.permute.xlu0 %1863
          %vm1866 = vcmask 704816
          %1867 = vst.msk [vmem:[#allocation2 + $0x4] sm:$0x1] %vm1866, %v1864
          %v1868 = vrot.slane %v1862, 7
          %v1869 = vrot.slane %v1868, 2
          %1870 = vrot.lane.b32.xlu0 %v1869, 87
          %v1871 = vpop.permute.xlu0 %1870
          %v1872 = vrot.slane %v1871, 6
          %vm1873 = vcmask 711680
          %v1874 = vsel %vm1873, %v1872, %v1871
          %vm1876 = vcmask 1041080
          %vm1877 = vcmask 59394
          %vm1878 = vmor %vm1877, %vm1876
          %1879 = vst.msk [vmem:[#allocation2 + $0x4] sm:$0x5] %vm1878, %v1874
          %v1882 = vunpack.c.l.s4 1983009808
          %v1883 = vunpack.c.0.s8 %v1882
          %v1884 = vlaneseq
          %v1885 = vshrl.u32 %v1884, 7
          %v1886 = vsub.s32 %v1883, %v1885
          %v1887 = vrot.slane %v1801, %v1886
          %1888 = vrot.lane.b32.xlu0 %v1887, 8
          %v1889 = vpop.permute.xlu0 %1888
          %vm1891 = vcmask 458816
          %1892 = vst.msk [vmem:[#allocation2 + $0x6] sm:$0x1] %vm1891, %v1889
          %v1893 = vrot.slane %v1887, 7
          %v1894 = vrot.slane %v1893, 2
          %1895 = vrot.lane.b32.xlu0 %v1894, 57
          %v1896 = vpop.permute.xlu0 %1895
          %vm1898 = vcmask 860616
          %1899 = vst.msk [vmem:[#allocation2 + $0x6] sm:$0x1] %vm1898, %v1896
          %v1900 = vcombine.high %v1887, %v1887
          %1901 = vrot.lane.b32.xlu0 %v1900, 106
          %v1902 = vpop.permute.xlu0 %1901
          %v1903 = vrot.slane %v1902, 6
          %vm1904 = vcmask 867328
          %v1905 = vsel %vm1904, %v1903, %v1902
          %vm1907 = vcmask 1041232
          %vm1908 = vcmask 215042
          %vm1909 = vmor %vm1908, %vm1907
          %1910 = vst.msk [vmem:[#allocation2 + $0x6] sm:$0x5] %vm1909, %v1905
          %v1911 = vrot.slane %v1900, 7
          %v1912 = vrot.slane %v1911, 2
          %1913 = vrot.lane.b32.xlu0 %v1912, 27
          %v1914 = vpop.permute.xlu0 %1913
          %vm1916 = vcmask 614616
          %1917 = vst.msk [vmem:[#allocation2 + $0x8] sm:$0x1] %vm1916, %v1914
          %v1918 = vcombine.high %v1801, %v1801
          %v1920 = vunpack.c.l.s4 1983009808
          %v1921 = vunpack.c.0.s8 %v1920
          %v1922 = vlaneseq
          %v1923 = vshrl.u32 %v1922, 7
          %v1924 = vsub.s32 %v1921, %v1923
          %v1925 = vrot.slane %v1918, %v1924
          %1926 = vrot.lane.b32.xlu0 %v1925, 76
          %v1927 = vpop.permute.xlu0 %1926
          %vm1929 = vcmask 1016416
          %1930 = vst.msk [vmem:[#allocation2 + $0x8] sm:$0x1] %vm1929, %v1927
          %v1931 = vrot.slane %v1925, 7
          %v1932 = vrot.slane %v1931, 2
          %1933 = vrot.lane.b32.xlu0 %v1932, 125
          %v1934 = vpop.permute.xlu0 %1933
          %v1935 = vrot.slane %v1934, 6
          %vm1936 = vcmask 1022976
          %v1937 = vsel %vm1936, %v1935, %v1934
          %vm1939 = vcmask 1041384
          %vm1940 = vcmask 370690
          %vm1941 = vmor %vm1940, %vm1939
          %1942 = vst.msk [vmem:[#allocation2 + $0x8] sm:$0x5] %vm1941, %v1937
          %v1943 = vcombine.high %v1925, %v1925
          %1944 = vrot.lane.b32.xlu0 %v1943, 46
          %v1945 = vpop.permute.xlu0 %1944
          %vm1947 = vcmask 770416
          %1948 = vst.msk [vmem:[#allocation2 + $0xa] sm:$0x1] %vm1947, %v1945
          %v1949 = vrot.slane %v1943, 7
          %v1950 = vrot.slane %v1949, 2
          %1951 = vrot.lane.b32.xlu0 %v1950, 95
          %v1952 = vpop.permute.xlu0 %1951
          %v1953 = vrot.slane %v1952, 6
          %vm1954 = vcmask 777216
          %v1955 = vsel %vm1954, %v1953, %v1952
          %vm1957 = vcmask 1041144
          %vm1958 = vcmask 124930
          %vm1959 = vmor %vm1958, %vm1957
          %1960 = vst.msk [vmem:[#allocation2 + $0xa] sm:$0x5] %vm1959, %v1955
          %s1961 = scalar_lea.vmem %s0, 48
          %v1962 = vld [vmem:[%s1961] sm:$0xff]
          %v1963 = vld [vmem:[%s1961 + $0x8] sm:$0xff]
          %v1964 = vld [vmem:[%s1961 + $0x10] sm:$0xff]
          %v1965 = vld [vmem:[%s1961 + $0x18] sm:$0xff]
          %v1966 = vld [vmem:[%s1961 + $0x20] sm:$0xff]
          %v1967 = vld [vmem:[%s1961 + $0x28] sm:$0xff]
          %1968 = vmatprep.subr.mxu0 0.0
          %1969 = vmatpush1.msra.mxu0 %v1962
          %1970 = vmatprep.subr.mxu0 0.0
          %1971 = vmatpush1.msra.mxu0 %v1963
          %1972 = vmatprep.subr.mxu0 0.0
          %1973 = vmatpush1.msra.mxu0 %v1964
          %1974 = vmatprep.subr.mxu0 0.0
          %1975 = vmatpush1.msra.mxu0 %v1965
          %1976 = vmatprep.subr.mxu0 0.0
          %1977 = vmatpush1.msra.mxu0 %v1966
          %1978 = vmatprep.subr.mxu0 0.0
          %1979 = vmatpush1.msra.mxu0 %v1967
          %1980 = vmatprep.subr.mxu0 0.0
          %1981 = vmatpush1.msra.mxu0 0.0
          %1982 = vmatprep.subr.mxu0 0.0
          %1983 = vmatpush1.msra.mxu0 0.0
          %1984 = vmatprep.subr.mxu0 0.0
          %1985 = vmatpush1.msra.mxu0 0.0
          %1986 = vmatprep.subr.mxu0 0.0
          %1987 = vmatpush1.msra.mxu0 0.0
          %1988 = vmatprep.subr.mxu0 0.0
          %1989 = vmatpush1.msra.mxu0 0.0
          %1990 = vmatprep.subr.mxu0 0.0
          %1991 = vmatpush1.msra.mxu0 0.0
          %1992 = vmatprep.subr.mxu0 0.0
          %1993 = vmatpush1.msra.mxu0 0.0
          %1994 = vmatprep.subr.mxu0 0.0
          %1995 = vmatpush1.msra.mxu0 0.0
          %1996 = vmatprep.subr.mxu0 0.0
          %1997 = vmatpush1.msra.mxu0 0.0
          %1998 = vmatprep.subr.mxu0 0.0
          %1999 = vmatpush1.msra.mxu0 0.0
          %2000 = vmatprep.subr.mxu0 0.0
          %2001 = vmatpush1.msra.mxu0 0.0
          %2002 = vmatprep.subr.mxu0 0.0
          %2003 = vmatpush1.msra.mxu0 0.0
          %2004 = vmatprep.subr.mxu0 0.0
          %2005 = vmatpush1.msra.mxu0 0.0
          %2006 = vmatprep.subr.mxu0 0.0
          %2007 = vmatpush1.msra.mxu0 0.0
          %2008 = vmatprep.subr.mxu0 0.0
          %2009 = vmatpush1.msra.mxu0 0.0
          %2010 = vmatprep.subr.mxu0 0.0
          %2011 = vmatpush1.msra.mxu0 0.0
          %2012 = vmatprep.subr.mxu0 0.0
          %2013 = vmatpush1.msra.mxu0 0.0
          %2014 = vmatprep.subr.mxu0 0.0
          %2015 = vmatpush1.msra.mxu0 0.0
          %2016 = vmatprep.subr.mxu0 0.0
          %2017 = vmatpush1.msra.mxu0 0.0
          %2018 = vmatprep.subr.mxu0 0.0
          %2019 = vmatpush1.msra.mxu0 0.0
          %2020 = vmatprep.subr.mxu0 0.0
          %2021 = vmatpush1.msra.mxu0 0.0
          %2022 = vmatprep.subr.mxu0 0.0
          %2023 = vmatpush1.msra.mxu0 0.0
          %2024 = vmatprep.subr.mxu0 0.0
          %2025 = vmatpush1.msra.mxu0 0.0
          %2026 = vmatprep.subr.mxu0 0.0
          %2027 = vmatpush1.msra.mxu0 0.0
          %2028 = vmatprep.subr.mxu0 0.0
          %2029 = vmatpush1.msra.mxu0 0.0
          %2030 = vmatprep.subr.mxu0 0.0
          %2031 = vmatpush1.msra.mxu0 0.0
          %2032 = vmatprep.mubr.f32.mxu0 0.0
          %2033 = vmatmul.mubr.f32.gmra.mrb[0].mxu0 %v1720
          %v2034 = vpop.f32.mrb[0].mxu0
          %v2035 = vadd.f32 %v1711, %v2034
          %v2036 = vpop.f32.mrb[0].mxu0
          %2037 = vmatprep.mubr.f32.mxu0 0.0
          %2038 = vmatmul.mubr.f32.gmra.mrb[0].mxu0 %v1723
          %v2039 = vpop.f32.mrb[0].mxu0
          %v2040 = vadd.f32 %v1716, %v2039
          %v2041 = vpop.f32.mrb[0].mxu0
          %2042 = vdwg.mxu0
          %v2043 = vmax.f32 %v2035, 0.0
          %v2044 = vmax.f32 %v2040, 0.0
          %2045 = vst.msk [vmem:[#allocation2 + $0x1] sm:$0x1] %vm1802, %v2043
          %v2048 = vunpack.c.l.s4 1983009808
          %v2049 = vunpack.c.0.s8 %v2048
          %v2050 = vlaneseq
          %v2051 = vshrl.u32 %v2050, 7
          %v2052 = vsub.s32 %v2049, %v2051
          %v2053 = vrot.slane %v2043, %v2052
          %v2054 = vrot.slane %v2053, 7
          %v2055 = vrot.slane %v2054, 2
          %2056 = vrot.lane.b32.xlu0 %v2055, 49
          %v2057 = vpop.permute.xlu0 %2056
          %2059 = vst.msk [vmem:[#allocation2 + $0x1] sm:$0x1] %vm1817, %v2057
          %v2060 = vcombine.high %v2053, %v2053
          %2061 = vrot.lane.b32.xlu0 %v2060, 98
          %v2062 = vpop.permute.xlu0 %2061
          %v2063 = vrot.slane %v2062, 6
          %v2064 = vsel %vm1823, %v2063, %v2062
          %2066 = vst.msk [vmem:[#allocation2 + $0x1] sm:$0x5] %vm1828, %v2064
          %v2067 = vrot.slane %v2060, 7
          %v2068 = vrot.slane %v2067, 2
          %2069 = vrot.lane.b32.xlu0 %v2068, 19
          %v2070 = vpop.permute.xlu0 %2069
          %2072 = vst.msk [vmem:[#allocation2 + $0x3] sm:$0x1] %vm1835, %v2070
          %v2073 = vcombine.high %v2043, %v2043
          %v2075 = vunpack.c.l.s4 1983009808
          %v2076 = vunpack.c.0.s8 %v2075
          %v2077 = vlaneseq
          %v2078 = vshrl.u32 %v2077, 7
          %v2079 = vsub.s32 %v2076, %v2078
          %v2080 = vrot.slane %v2073, %v2079
          %2081 = vrot.lane.b32.xlu0 %v2080, 68
          %v2082 = vpop.permute.xlu0 %2081
          %2084 = vst.msk [vmem:[#allocation2 + $0x3] sm:$0x1] %vm1848, %v2082
          %v2085 = vrot.slane %v2080, 7
          %v2086 = vrot.slane %v2085, 2
          %2087 = vrot.lane.b32.xlu0 %v2086, 117
          %v2088 = vpop.permute.xlu0 %2087
          %v2089 = vrot.slane %v2088, 6
          %v2090 = vsel %vm1855, %v2089, %v2088
          %2092 = vst.msk [vmem:[#allocation2 + $0x3] sm:$0x5] %vm1860, %v2090
          %v2093 = vcombine.high %v2080, %v2080
          %2094 = vrot.lane.b32.xlu0 %v2093, 38
          %v2095 = vpop.permute.xlu0 %2094
          %2097 = vst.msk [vmem:[#allocation2 + $0x5] sm:$0x1] %vm1866, %v2095
          %v2098 = vrot.slane %v2093, 7
          %v2099 = vrot.slane %v2098, 2
          %2100 = vrot.lane.b32.xlu0 %v2099, 87
          %v2101 = vpop.permute.xlu0 %2100
          %v2102 = vrot.slane %v2101, 6
          %v2103 = vsel %vm1873, %v2102, %v2101
          %2105 = vst.msk [vmem:[#allocation2 + $0x5] sm:$0x5] %vm1878, %v2103
          %v2108 = vunpack.c.l.s4 1983009808
          %v2109 = vunpack.c.0.s8 %v2108
          %v2110 = vlaneseq
          %v2111 = vshrl.u32 %v2110, 7
          %v2112 = vsub.s32 %v2109, %v2111
          %v2113 = vrot.slane %v2044, %v2112
          %2114 = vrot.lane.b32.xlu0 %v2113, 8
          %v2115 = vpop.permute.xlu0 %2114
          %2117 = vst.msk [vmem:[#allocation2 + $0x7] sm:$0x1] %vm1891, %v2115
          %v2118 = vrot.slane %v2113, 7
          %v2119 = vrot.slane %v2118, 2
          %2120 = vrot.lane.b32.xlu0 %v2119, 57
          %v2121 = vpop.permute.xlu0 %2120
          %2123 = vst.msk [vmem:[#allocation2 + $0x7] sm:$0x1] %vm1898, %v2121
          %v2124 = vcombine.high %v2113, %v2113
          %2125 = vrot.lane.b32.xlu0 %v2124, 106
          %v2126 = vpop.permute.xlu0 %2125
          %v2127 = vrot.slane %v2126, 6
          %v2128 = vsel %vm1904, %v2127, %v2126
          %2130 = vst.msk [vmem:[#allocation2 + $0x7] sm:$0x5] %vm1909, %v2128
          %v2131 = vrot.slane %v2124, 7
          %v2132 = vrot.slane %v2131, 2
          %2133 = vrot.lane.b32.xlu0 %v2132, 27
          %v2134 = vpop.permute.xlu0 %2133
          %2136 = vst.msk [vmem:[#allocation2 + $0x9] sm:$0x1] %vm1916, %v2134
          %v2137 = vcombine.high %v2044, %v2044
          %v2139 = vunpack.c.l.s4 1983009808
          %v2140 = vunpack.c.0.s8 %v2139
          %v2141 = vlaneseq
          %v2142 = vshrl.u32 %v2141, 7
          %v2143 = vsub.s32 %v2140, %v2142
          %v2144 = vrot.slane %v2137, %v2143
          %2145 = vrot.lane.b32.xlu0 %v2144, 76
          %v2146 = vpop.permute.xlu0 %2145
          %2148 = vst.msk [vmem:[#allocation2 + $0x9] sm:$0x1] %vm1929, %v2146
          %v2149 = vrot.slane %v2144, 7
          %v2150 = vrot.slane %v2149, 2
          %2151 = vrot.lane.b32.xlu0 %v2150, 125
          %v2152 = vpop.permute.xlu0 %2151
          %v2153 = vrot.slane %v2152, 6
          %v2154 = vsel %vm1936, %v2153, %v2152
          %2156 = vst.msk [vmem:[#allocation2 + $0x9] sm:$0x5] %vm1941, %v2154
          %v2157 = vcombine.high %v2144, %v2144
          %2158 = vrot.lane.b32.xlu0 %v2157, 46
          %v2159 = vpop.permute.xlu0 %2158
          %2161 = vst.msk [vmem:[#allocation2 + $0xb] sm:$0x1] %vm1947, %v2159
          %v2162 = vrot.slane %v2157, 7
          %v2163 = vrot.slane %v2162, 2
          %2164 = vrot.lane.b32.xlu0 %v2163, 95
          %v2165 = vpop.permute.xlu0 %2164
          %v2166 = vrot.slane %v2165, 6
          %v2167 = vsel %vm1954, %v2166, %v2165
          %2169 = vst.msk [vmem:[#allocation2 + $0xb] sm:$0x5] %vm1959, %v2167
          %v2171 = vcombine.high %v1697, %v1697
          %v2173 = vunpack.c.l.s4 1983009808
          %v2174 = vunpack.c.0.s8 %v2173
          %v2175 = vlaneseq
          %v2176 = vshrl.u32 %v2175, 7
          %v2177 = vsub.s32 %v2174, %v2176
          %v2178 = vrot.slane %v2171, %v2177
          %v2179 = vcombine.high %v2178, %v2178
          %2180 = vrot.lane.b32.xlu0 %v2179, 48
          %v2181 = vpop.permute.xlu0 %2180
          %vm2183 = vcmask 386176
          %2184 = vst.msk [vmem:[#allocation2 + $0xc] sm:$0x3] %vm2183, %v2181
          %v2185 = vld [vmem:[#allocation2] sm:$0xff]
          %v2186 = vld [vmem:[#allocation2 + $0x8] sm:$0x3f]
          %v2187 = vld [vmem:[#allocation16] sm:$0x7f]
          %v2189 = vlaneseq
          %v2190 = vshrl.u32 %v2189, 7
          %v2191 = vsub.s32 0, %v2190
          %v2192 = vrot.slane %v2187, %v2191
          %v2193 = vlaneseq
          %v2194 = vshrl.u32 %v2193, 7
          %v2195 = vsub.s32 1, %v2194
          %v2196 = vrot.slane %v2187, %v2195
          %v2197 = vlaneseq
          %v2198 = vshrl.u32 %v2197, 7
          %v2199 = vsub.s32 2, %v2198
          %v2200 = vrot.slane %v2187, %v2199
          %v2201 = vlaneseq
          %v2202 = vshrl.u32 %v2201, 7
          %v2203 = vsub.s32 3, %v2202
          %v2204 = vrot.slane %v2187, %v2203
          %v2205 = vlaneseq
          %v2206 = vshrl.u32 %v2205, 7
          %v2207 = vsub.s32 4, %v2206
          %v2208 = vrot.slane %v2187, %v2207
          %v2209 = vlaneseq
          %v2210 = vshrl.u32 %v2209, 7
          %v2211 = vsub.s32 5, %v2210
          %v2212 = vrot.slane %v2187, %v2211
          %v2213 = vlaneseq
          %v2214 = vshrl.u32 %v2213, 7
          %v2215 = vsub.s32 6, %v2214
          %v2216 = vrot.slane %v2187, %v2215
          %v2217 = vcombine.low %v2192, %v2196
          %v2218 = vcombine.low %v2200, %v2204
          %v2220 = vunpack.c.l.s4 1983009808
          %v2221 = vunpack.c.0.s8 %v2220
          %v2222 = vlaneseq
          %v2223 = vshrl.u32 %v2222, 7
          %v2224 = vsub.s32 %v2221, %v2223
          %v2225 = vrot.slane %v2217, %v2224
          %v2227 = vunpack.c.l.s4 1983009808
          %v2228 = vunpack.c.0.s8 %v2227
          %v2229 = vlaneseq
          %v2230 = vshrl.u32 %v2229, 7
          %v2231 = vsub.s32 %v2228, %v2230
          %v2232 = vrot.slane %v2218, %v2231
          %v2233 = vcombine.low %v2225, %v2232
          %v2234 = vcombine.low %v2208, %v2212
          %v2236 = vunpack.c.l.s4 1983009808
          %v2237 = vunpack.c.0.s8 %v2236
          %v2238 = vlaneseq
          %v2239 = vshrl.u32 %v2238, 7
          %v2240 = vsub.s32 %v2237, %v2239
          %v2241 = vrot.slane %v2234, %v2240
          %v2243 = vunpack.c.l.s4 1983009808
          %v2244 = vunpack.c.0.s8 %v2243
          %v2245 = vlaneseq
          %v2246 = vshrl.u32 %v2245, 7
          %v2247 = vsub.s32 %v2244, %v2246
          %v2248 = vrot.slane %v2216, %v2247
          %v2249 = vcombine.low %v2241, %v2248
          %v2252 = vmul.f32 %v2185, %v2233
          %v2253 = vmul.f32 %v2186, %v2249
          %v2254 = vld [vmem:[#allocation18] sm:$0x7f]
          %v2256 = vlaneseq
          %v2257 = vshrl.u32 %v2256, 7
          %v2258 = vsub.s32 0, %v2257
          %v2259 = vrot.slane %v2254, %v2258
          %v2260 = vlaneseq
          %v2261 = vshrl.u32 %v2260, 7
          %v2262 = vsub.s32 1, %v2261
          %v2263 = vrot.slane %v2254, %v2262
          %v2264 = vlaneseq
          %v2265 = vshrl.u32 %v2264, 7
          %v2266 = vsub.s32 2, %v2265
          %v2267 = vrot.slane %v2254, %v2266
          %v2268 = vlaneseq
          %v2269 = vshrl.u32 %v2268, 7
          %v2270 = vsub.s32 3, %v2269
          %v2271 = vrot.slane %v2254, %v2270
          %v2272 = vlaneseq
          %v2273 = vshrl.u32 %v2272, 7
          %v2274 = vsub.s32 4, %v2273
          %v2275 = vrot.slane %v2254, %v2274
          %v2276 = vlaneseq
          %v2277 = vshrl.u32 %v2276, 7
          %v2278 = vsub.s32 5, %v2277
          %v2279 = vrot.slane %v2254, %v2278
          %v2280 = vlaneseq
          %v2281 = vshrl.u32 %v2280, 7
          %v2282 = vsub.s32 6, %v2281
          %v2283 = vrot.slane %v2254, %v2282
          %v2284 = vcombine.low %v2259, %v2263
          %v2285 = vcombine.low %v2267, %v2271
          %v2287 = vunpack.c.l.s4 1983009808
          %v2288 = vunpack.c.0.s8 %v2287
          %v2289 = vlaneseq
          %v2290 = vshrl.u32 %v2289, 7
          %v2291 = vsub.s32 %v2288, %v2290
          %v2292 = vrot.slane %v2284, %v2291
          %v2294 = vunpack.c.l.s4 1983009808
          %v2295 = vunpack.c.0.s8 %v2294
          %v2296 = vlaneseq
          %v2297 = vshrl.u32 %v2296, 7
          %v2298 = vsub.s32 %v2295, %v2297
          %v2299 = vrot.slane %v2285, %v2298
          %v2300 = vcombine.low %v2292, %v2299
          %v2301 = vcombine.low %v2275, %v2279
          %v2303 = vunpack.c.l.s4 1983009808
          %v2304 = vunpack.c.0.s8 %v2303
          %v2305 = vlaneseq
          %v2306 = vshrl.u32 %v2305, 7
          %v2307 = vsub.s32 %v2304, %v2306
          %v2308 = vrot.slane %v2301, %v2307
          %v2310 = vunpack.c.l.s4 1983009808
          %v2311 = vunpack.c.0.s8 %v2310
          %v2312 = vlaneseq
          %v2313 = vshrl.u32 %v2312, 7
          %v2314 = vsub.s32 %v2311, %v2313
          %v2315 = vrot.slane %v2283, %v2314
          %v2316 = vcombine.low %v2308, %v2315
          %v2319 = vadd.f32 %v2252, %v2300
          %v2320 = vadd.f32 %v2253, %v2316
          %vm2321 = vcmp.gt.f32.partialorder %v2319, 0.0
          %vm2322 = vcmp.gt.f32.partialorder %v2320, 0.0
          %v2323 = vmul.f32 %v2319, 0.01
          %v2324 = vmul.f32 %v2320, 0.01
          %v2325 = vsel %vm2321, %v2319, %v2323
          %v2326 = vsel %vm2322, %v2320, %v2324
          %2327 = vst [vmem:[#allocation2] sm:$0xff] %v2325
          %vm2328 = vcmask 1041408
          %vm2329 = vcmask 1043458
          %vm2330 = vmor %vm2329, %vm2328
          %vm2331 = vcmask 390148
          %vm2332 = vmor %vm2331, %vm2330
          %2333 = vst.msk [vmem:[#allocation2 + $0x8] sm:$0x3f] %vm2332, %v2326
          %v2334 = vld [vmem:[#allocation10] sm:$0xff]
          %v2335 = vld [vmem:[#allocation10 + $0x8] sm:$0xff]
          %v2336 = vld [vmem:[#allocation10 + $0x10] sm:$0xff]
          %v2337 = vld [vmem:[#allocation10 + $0x18] sm:$0xff]
          %v2338 = vld [vmem:[#allocation12] sm:$0x1]
          %v2340 = vlaneseq
          %v2341 = vshrl.u32 %v2340, 7
          %v2342 = vsub.s32 0, %v2341
          %v2343 = vrot.slane %v2338, %v2342
          %v2345 = vrot.slane %v1697, 6
          %2346 = vrot.lane.b32.xlu0 %v2345, 32
          %v2347 = vpop.permute.xlu0 %2346
          %v2348 = vsel %vm770, %v2347, 0
          %2350 = vmatprep.subr.mxu0 0.0
          %2351 = vmatpush1.msra.mxu0 %v2334
          %2352 = vmatprep.subr.mxu0 0.0
          %2353 = vmatpush1.msra.mxu0 %v2335
          %2354 = vmatprep.subr.mxu0 0.0
          %2355 = vmatpush1.msra.mxu0 %v2336
          %2356 = vmatprep.subr.mxu0 0.0
          %2357 = vmatpush1.msra.mxu0 %v2337
          %2358 = vmatprep.subr.mxu0 0.0
          %2359 = vmatpush1.msra.mxu0 0.0
          %2360 = vmatprep.subr.mxu0 0.0
          %2361 = vmatpush1.msra.mxu0 0.0
          %2362 = vmatprep.subr.mxu0 0.0
          %2363 = vmatpush1.msra.mxu0 0.0
          %2364 = vmatprep.subr.mxu0 0.0
          %2365 = vmatpush1.msra.mxu0 0.0
          %2366 = vmatprep.subr.mxu0 0.0
          %2367 = vmatpush1.msra.mxu0 0.0
          %2368 = vmatprep.subr.mxu0 0.0
          %2369 = vmatpush1.msra.mxu0 0.0
          %2370 = vmatprep.subr.mxu0 0.0
          %2371 = vmatpush1.msra.mxu0 0.0
          %2372 = vmatprep.subr.mxu0 0.0
          %2373 = vmatpush1.msra.mxu0 0.0
          %2374 = vmatprep.subr.mxu0 0.0
          %2375 = vmatpush1.msra.mxu0 0.0
          %2376 = vmatprep.subr.mxu0 0.0
          %2377 = vmatpush1.msra.mxu0 0.0
          %2378 = vmatprep.subr.mxu0 0.0
          %2379 = vmatpush1.msra.mxu0 0.0
          %2380 = vmatprep.subr.mxu0 0.0
          %2381 = vmatpush1.msra.mxu0 0.0
          %2382 = vmatprep.subr.mxu0 0.0
          %2383 = vmatpush1.msra.mxu0 0.0
          %2384 = vmatprep.subr.mxu0 0.0
          %2385 = vmatpush1.msra.mxu0 0.0
          %2386 = vmatprep.subr.mxu0 0.0
          %2387 = vmatpush1.msra.mxu0 0.0
          %2388 = vmatprep.subr.mxu0 0.0
          %2389 = vmatpush1.msra.mxu0 0.0
          %2390 = vmatprep.subr.mxu0 0.0
          %2391 = vmatpush1.msra.mxu0 0.0
          %2392 = vmatprep.subr.mxu0 0.0
          %2393 = vmatpush1.msra.mxu0 0.0
          %2394 = vmatprep.subr.mxu0 0.0
          %2395 = vmatpush1.msra.mxu0 0.0
          %2396 = vmatprep.subr.mxu0 0.0
          %2397 = vmatpush1.msra.mxu0 0.0
          %2398 = vmatprep.subr.mxu0 0.0
          %2399 = vmatpush1.msra.mxu0 0.0
          %2400 = vmatprep.subr.mxu0 0.0
          %2401 = vmatpush1.msra.mxu0 0.0
          %2402 = vmatprep.subr.mxu0 0.0
          %2403 = vmatpush1.msra.mxu0 0.0
          %2404 = vmatprep.subr.mxu0 0.0
          %2405 = vmatpush1.msra.mxu0 0.0
          %2406 = vmatprep.subr.mxu0 0.0
          %2407 = vmatpush1.msra.mxu0 0.0
          %2408 = vmatprep.subr.mxu0 0.0
          %2409 = vmatpush1.msra.mxu0 0.0
          %2410 = vmatprep.subr.mxu0 0.0
          %2411 = vmatpush1.msra.mxu0 0.0
          %2412 = vmatprep.subr.mxu0 0.0
          %2413 = vmatpush1.msra.mxu0 0.0
          %2414 = vmatprep.mubr.f32.mxu0 0.0
          %2415 = vmatmul.mubr.f32.gmra.mrb[0].mxu0 %v2348
          %v2416 = vpop.f32.mrb[0].mxu0
          %v2417 = vadd.f32 %v2343, %v2416
          %v2418 = vpop.f32.mrb[0].mxu0
          %2419 = vdwg.mxu0
          %v2421 = vrot.slane %v2417, 6
          %v2423 = vrot.slane %v2417, 4
          %v2425 = vrot.slane %v2417, 2
          %v2427 = vsel %vm2328, %v2417, %v2421
          %vm2428 = vcmask 1043456
          %v2429 = vsel %vm2428, %v2427, %v2423
          %vm2430 = vcmask 1045504
          %v2431 = vsel %vm2430, %v2429, %v2425
          %v2432 = vmul.f32 %v1800, %v2431
          %v2433 = vmul.f32 %v1801, %v2431
          %v2434 = vmul.f32 %v2043, %v2431
          %v2435 = vmul.f32 %v2044, %v2431
          %v2436 = vld [vmem:[#allocation13] sm:$0xff]
          %v2437 = vld [vmem:[#allocation13 + $0x8] sm:$0xff]
          %v2438 = vld [vmem:[#allocation13 + $0x10] sm:$0xff]
          %v2439 = vld [vmem:[#allocation13 + $0x18] sm:$0xff]
          %v2440 = vld [vmem:[#allocation13 + $0x20] sm:$0xff]
          %v2441 = vld [vmem:[#allocation13 + $0x28] sm:$0xff]
          %v2442 = vld [vmem:[#allocation13 + $0x30] sm:$0x1]
          %v2443 = vld [vmem:[#allocation15] sm:$0x1]
          %v2445 = vlaneseq
          %v2446 = vshrl.u32 %v2445, 7
          %v2447 = vsub.s32 0, %v2446
          %v2448 = vrot.slane %v2443, %v2447
          %vm2450 = vcmask 400384
          %v2452 = vsel %vm2450, %v2432, 0
          %v2455 = vsel %vm2450, %v2433, 0
          %v2458 = vsel %vm2450, %v2434, 0
          %v2461 = vsel %vm2450, %v2435, 0
          %vm2463 = vcmask 1040384
          %v2465 = vsel %vm2463, %v2442, 0
          %2467 = vmatprep.subr.mxu0 0.0
          %2468 = vmatpush1.msra.mxu0 %v2436
          %2469 = vmatprep.subr.mxu0 0.0
          %2470 = vmatpush1.msra.mxu0 %v2437
          %2471 = vmatprep.subr.mxu0 0.0
          %2472 = vmatpush1.msra.mxu0 %v2438
          %2473 = vmatprep.subr.mxu0 0.0
          %2474 = vmatpush1.msra.mxu0 %v2439
          %2475 = vmatprep.subr.mxu0 0.0
          %2476 = vmatpush1.msra.mxu0 %v2440
          %2477 = vmatprep.subr.mxu0 0.0
          %2478 = vmatpush1.msra.mxu0 %v2441
          %2479 = vmatprep.subr.mxu0 0.0
          %2480 = vmatpush1.msra.mxu0 %v2465
          %2481 = vmatprep.subr.mxu0 0.0
          %2482 = vmatpush1.msra.mxu0 0.0
          %2483 = vmatprep.subr.mxu0 0.0
          %2484 = vmatpush1.msra.mxu0 0.0
          %2485 = vmatprep.subr.mxu0 0.0
          %2486 = vmatpush1.msra.mxu0 0.0
          %2487 = vmatprep.subr.mxu0 0.0
          %2488 = vmatpush1.msra.mxu0 0.0
          %2489 = vmatprep.subr.mxu0 0.0
          %2490 = vmatpush1.msra.mxu0 0.0
          %2491 = vmatprep.subr.mxu0 0.0
          %2492 = vmatpush1.msra.mxu0 0.0
          %2493 = vmatprep.subr.mxu0 0.0
          %2494 = vmatpush1.msra.mxu0 0.0
          %2495 = vmatprep.subr.mxu0 0.0
          %2496 = vmatpush1.msra.mxu0 0.0
          %2497 = vmatprep.subr.mxu0 0.0
          %2498 = vmatpush1.msra.mxu0 0.0
          %2499 = vmatprep.subr.mxu0 0.0
          %2500 = vmatpush1.msra.mxu0 0.0
          %2501 = vmatprep.subr.mxu0 0.0
          %2502 = vmatpush1.msra.mxu0 0.0
          %2503 = vmatprep.subr.mxu0 0.0
          %2504 = vmatpush1.msra.mxu0 0.0
          %2505 = vmatprep.subr.mxu0 0.0
          %2506 = vmatpush1.msra.mxu0 0.0
          %2507 = vmatprep.subr.mxu0 0.0
          %2508 = vmatpush1.msra.mxu0 0.0
          %2509 = vmatprep.subr.mxu0 0.0
          %2510 = vmatpush1.msra.mxu0 0.0
          %2511 = vmatprep.subr.mxu0 0.0
          %2512 = vmatpush1.msra.mxu0 0.0
          %2513 = vmatprep.subr.mxu0 0.0
          %2514 = vmatpush1.msra.mxu0 0.0
          %2515 = vmatprep.subr.mxu0 0.0
          %2516 = vmatpush1.msra.mxu0 0.0
          %2517 = vmatprep.subr.mxu0 0.0
          %2518 = vmatpush1.msra.mxu0 0.0
          %2519 = vmatprep.subr.mxu0 0.0
          %2520 = vmatpush1.msra.mxu0 0.0
          %2521 = vmatprep.subr.mxu0 0.0
          %2522 = vmatpush1.msra.mxu0 0.0
          %2523 = vmatprep.subr.mxu0 0.0
          %2524 = vmatpush1.msra.mxu0 0.0
          %2525 = vmatprep.subr.mxu0 0.0
          %2526 = vmatpush1.msra.mxu0 0.0
          %2527 = vmatprep.subr.mxu0 0.0
          %2528 = vmatpush1.msra.mxu0 0.0
          %2529 = vmatprep.subr.mxu0 0.0
          %2530 = vmatpush1.msra.mxu0 0.0
          %2531 = vmatprep.mubr.f32.mxu0 0.0
          %2532 = vmatmul.mubr.f32.gmra.mrb[0].mxu0 %v2452
          %v2533 = vpop.f32.mrb[0].mxu0
          %v2534 = vadd.f32 %v2448, %v2533
          %v2535 = vpop.f32.mrb[0].mxu0
          %2536 = vmatprep.mubr.f32.mxu0 0.0
          %2537 = vmatmul.mubr.f32.gmra.mrb[0].mxu0 %v2455
          %v2538 = vpop.f32.mrb[0].mxu0
          %v2539 = vadd.f32 %v2448, %v2538
          %v2540 = vpop.f32.mrb[0].mxu0
          %2541 = vmatprep.mubr.f32.mxu0 0.0
          %2542 = vmatmul.mubr.f32.gmra.mrb[0].mxu0 %v2458
          %v2543 = vpop.f32.mrb[0].mxu0
          %v2544 = vadd.f32 %v2448, %v2543
          %v2545 = vpop.f32.mrb[0].mxu0
          %2546 = vmatprep.mubr.f32.mxu0 0.0
          %2547 = vmatmul.mubr.f32.gmra.mrb[0].mxu0 %v2461
          %v2548 = vpop.f32.mrb[0].mxu0
          %v2549 = vadd.f32 %v2448, %v2548
          %v2550 = vpop.f32.mrb[0].mxu0
          %2551 = vdwg.mxu0
          %v2552 = vxor.u32 %v2534, 2147483648
          %v2553 = vxor.u32 %v2539, 2147483648
          %v2554 = vxor.u32 %v2544, 2147483648
          %v2555 = vxor.u32 %v2549, 2147483648
          %v2556 = vmul.f32 %v2552, 1.442695
          %v2557 = vpow.pop %v2556
          %v2558 = vmul.f32 %v2553, 1.442695
          %v2559 = vpow.pop %v2558
          %v2560 = vmul.f32 %v2554, 1.442695
          %v2561 = vpow.pop %v2560
          %v2562 = vmul.f32 %v2555, 1.442695
          %v2563 = vpow.pop %v2562
          %v2564 = vadd.f32 %v2557, 1.0
          %v2565 = vadd.f32 %v2559, 1.0
          %v2566 = vadd.f32 %v2561, 1.0
          %v2567 = vadd.f32 %v2563, 1.0
          %v2568 = vrcp.pop %v2564
          %v2569 = vmul.f32 1.0, %v2568
          %v2570 = vrcp.pop %v2565
          %v2571 = vmul.f32 1.0, %v2570
          %v2572 = vrcp.pop %v2566
          %v2573 = vmul.f32 1.0, %v2572
          %v2574 = vrcp.pop %v2567
          %v2575 = vmul.f32 1.0, %v2574
          %2576 = vst.msk [vmem:[#allocation25] sm:$0xff] %vm2450, %v2569
          %2577 = vst.msk [vmem:[#allocation25 + $0x8] sm:$0xff] %vm2450, %v2571
          %2578 = vst.msk [vmem:[#allocation25 + $0x10] sm:$0xff] %vm2450, %v2573
          %2579 = vst.msk [vmem:[#allocation25 + $0x18] sm:$0xff] %vm2450, %v2575
          %vm2580 = vcmask 254976
          %2581 = vst.msk [vmem:[#allocation3] sm:$0x3] %vm2580, 0.0
        $region140: #{encoder_2d_attn_forward.1} parent=87 // pred_fallthru
          _
        %v2582 = vld [vmem:[#allocation2] sm:$0xff]
        %v2583 = vld [vmem:[#allocation2 + $0x8] sm:$0x3f]
        %v2586 = vcombine.high %v2582, %v2582
        %v2588 = vunpack.c.l.s4 1983009808
        %v2589 = vunpack.c.0.s8 %v2588
        %v2590 = vlaneseq
        %v2591 = vshrl.u32 %v2590, 7
        %v2592 = vsub.s32 %v2589, %v2591
        %v2593 = vrot.slane %v2582, %v2592
        %v2595 = vunpack.c.l.s4 1983009808
        %v2596 = vunpack.c.0.s8 %v2595
        %v2597 = vlaneseq
        %v2598 = vshrl.u32 %v2597, 7
        %v2599 = vsub.s32 %v2596, %v2598
        %v2600 = vrot.slane %v2586, %v2599
        %v2601 = vcombine.high %v2593, %v2593
        %v2602 = vcombine.high %v2600, %v2600
        %v2603 = vcombine.high %v2583, %v2583
        %v2605 = vunpack.c.l.s4 1983009808
        %v2606 = vunpack.c.0.s8 %v2605
        %v2607 = vlaneseq
        %v2608 = vshrl.u32 %v2607, 7
        %v2609 = vsub.s32 %v2606, %v2608
        %v2610 = vrot.slane %v2583, %v2609
        %v2612 = vunpack.c.l.s4 1983009808
        %v2613 = vunpack.c.0.s8 %v2612
        %v2614 = vlaneseq
        %v2615 = vshrl.u32 %v2614, 7
        %v2616 = vsub.s32 %v2613, %v2615
        %v2617 = vrot.slane %v2603, %v2616
        %v2618 = vcombine.high %v2610, %v2610
        %v2626 = vpack.c.bf16 %v2593, %v2593
        %v2627 = vpack.c.bf16 %v2601, %v2601
        %v2628 = vpack.c.bf16 %v2600, %v2600
        %v2629 = vpack.c.bf16 %v2602, %v2602
        %v2630 = vpack.c.bf16 %v2610, %v2610
        %v2631 = vpack.c.bf16 %v2618, %v2618
        %v2632 = vpack.c.bf16 %v2617, %v2617
        %v2633 = vld [vmem:[%s684] sm:$0xff]
        %v2634 = vld [vmem:[%s684 + $0x8] sm:$0xff]
        %v2635 = vld [vmem:[%s684 + $0x10] sm:$0xff]
        %v2636 = vld [vmem:[%s684 + $0x18] sm:$0xff]
        %v2637 = vld [vmem:[%s684 + $0x20] sm:$0xff]
        %v2638 = vld [vmem:[%s684 + $0x28] sm:$0xff]
        %v2639 = vld [vmem:[%s684 + $0x30] sm:$0xff]
        %v2640 = vld [vmem:[%s684 + $0x38] sm:$0xff]
        %v2641 = vld [vmem:[%s684 + $0x40] sm:$0xff]
        %v2642 = vld [vmem:[%s684 + $0x48] sm:$0xff]
        %v2643 = vld [vmem:[%s684 + $0x50] sm:$0xff]
        %v2644 = vld [vmem:[%s684 + $0x58] sm:$0xff]
        %v2645 = vld [vmem:[%s684 + $0x60] sm:$0xff]
        %v2646 = vld [vmem:[%s684 + $0x68] sm:$0xff]
        %v2647 = vld [vmem:[%s684 + $0x70] sm:$0xff]
        %v2648 = vld [vmem:[%s684 + $0x78] sm:$0xff]
        %v2649 = vld [vmem:[%s684 + $0x80] sm:$0xff]
        %v2650 = vld [vmem:[%s684 + $0x88] sm:$0xff]
        %v2651 = vld [vmem:[%s684 + $0x90] sm:$0xff]
        %v2652 = vld [vmem:[%s684 + $0x98] sm:$0xff]
        %v2653 = vld [vmem:[%s684 + $0xa0] sm:$0xff]
        %v2654 = vld [vmem:[%s684 + $0xa8] sm:$0xff]
        %v2655 = vld [vmem:[%s684 + $0xb0] sm:$0xff]
        %v2656 = vld [vmem:[%s684 + $0xb8] sm:$0xff]
        %v2657 = vld [vmem:[%s684 + $0xc0] sm:$0xff]
        %v2658 = vld [vmem:[%s684 + $0xc8] sm:$0xff]
        %v2659 = vld [vmem:[%s684 + $0xd0] sm:$0xff]
        %v2660 = vld [vmem:[%s684 + $0xd8] sm:$0xff]
        %v2661 = vld [vmem:[%s684 + $0xe0] sm:$0xff]
        %v2662 = vld [vmem:[%s684 + $0xe8] sm:$0xff]
        %v2663 = vld [vmem:[%s684 + $0xf0] sm:$0xff]
        %v2664 = vld [vmem:[%s684 + $0xf8] sm:$0xff]
        %v2665 = vld [vmem:[%s684 + $0x100] sm:$0xff]
        %v2666 = vld [vmem:[%s684 + $0x108] sm:$0xff]
        %v2667 = vld [vmem:[%s684 + $0x110] sm:$0xff]
        %v2668 = vld [vmem:[%s684 + $0x118] sm:$0xff]
        %v2669 = vld [vmem:[%s684 + $0x120] sm:$0xff]
        %v2670 = vld [vmem:[%s684 + $0x128] sm:$0xff]
        %v2671 = vld [vmem:[%s684 + $0x130] sm:$0xff]
        %v2672 = vld [vmem:[%s684 + $0x138] sm:$0xff]
        %v2673 = vld [vmem:[%s684 + $0x140] sm:$0xff]
        %v2674 = vld [vmem:[%s684 + $0x148] sm:$0xff]
        %v2675 = vld [vmem:[%s684 + $0x150] sm:$0xff]
        %v2676 = vld [vmem:[%s684 + $0x158] sm:$0xff]
        %v2677 = vld [vmem:[%s684 + $0x160] sm:$0xff]
        %v2678 = vld [vmem:[%s684 + $0x168] sm:$0xff]
        %v2679 = vld [vmem:[%s684 + $0x170] sm:$0xff]
        %v2680 = vld [vmem:[%s684 + $0x178] sm:$0xff]
        %v2681 = vld [vmem:[%s684 + $0x180] sm:$0xff]
        %v2682 = vld [vmem:[%s684 + $0x188] sm:$0xff]
        %v2683 = vld [vmem:[%s684 + $0x190] sm:$0xff]
        %v2684 = vld [vmem:[%s684 + $0x198] sm:$0xff]
        %v2685 = vld [vmem:[%s684 + $0x1a0] sm:$0xff]
        %v2686 = vld [vmem:[%s684 + $0x1a8] sm:$0xff]
        %v2687 = vld [vmem:[%s684 + $0x1b0] sm:$0xff]
        %v2688 = vld [vmem:[%s684 + $0x1b8] sm:$0xff]
        %v2689 = vld [vmem:[%s684 + $0x1c0] sm:$0xff]
        %v2690 = vld [vmem:[%s684 + $0x1c8] sm:$0xff]
        %v2691 = vld [vmem:[%s684 + $0x1d0] sm:$0xff]
        %v2692 = vld [vmem:[%s684 + $0x1d8] sm:$0xff]
        %v2693 = vld [vmem:[%s684 + $0x1e0] sm:$0xff]
        %v2694 = vld [vmem:[%s684 + $0x1e8] sm:$0xff]
        %v2695 = vld [vmem:[%s684 + $0x1f0] sm:$0xff]
        %v2696 = vld [vmem:[%s684 + $0x1f8] sm:$0xff]
        %v2697 = vld [vmem:[%s684 + $0x200] sm:$0xff]
        %v2698 = vld [vmem:[%s684 + $0x208] sm:$0xff]
        %v2699 = vld [vmem:[%s684 + $0x210] sm:$0xff]
        %v2700 = vld [vmem:[%s684 + $0x218] sm:$0xff]
        %v2701 = vld [vmem:[%s684 + $0x220] sm:$0xff]
        %v2702 = vld [vmem:[%s684 + $0x228] sm:$0xff]
        %v2703 = vld [vmem:[%s684 + $0x230] sm:$0xff]
        %v2704 = vld [vmem:[%s684 + $0x238] sm:$0xff]
        %v2705 = vld [vmem:[%s684 + $0x240] sm:$0xff]
        %v2706 = vld [vmem:[%s684 + $0x248] sm:$0xff]
        %v2707 = vld [vmem:[%s684 + $0x250] sm:$0xff]
        %v2708 = vld [vmem:[%s684 + $0x258] sm:$0xff]
        %v2709 = vld [vmem:[%s684 + $0x260] sm:$0xff]
        %v2710 = vld [vmem:[%s684 + $0x268] sm:$0xff]
        %v2711 = vld [vmem:[%s684 + $0x270] sm:$0xff]
        %v2712 = vld [vmem:[%s684 + $0x278] sm:$0xff]
        %v2713 = vld [vmem:[%s684 + $0x280] sm:$0xff]
        %v2714 = vld [vmem:[%s684 + $0x288] sm:$0xff]
        %v2715 = vld [vmem:[%s684 + $0x290] sm:$0xff]
        %v2716 = vld [vmem:[%s684 + $0x298] sm:$0xff]
        %v2717 = vld [vmem:[%s684 + $0x2a0] sm:$0xff]
        %v2718 = vld [vmem:[%s684 + $0x2a8] sm:$0xff]
        %v2719 = vld [vmem:[%s684 + $0x2b0] sm:$0xff]
        %v2720 = vld [vmem:[%s684 + $0x2b8] sm:$0xff]
        %v2721 = vld [vmem:[%s684 + $0x2c0] sm:$0xff]
        %v2722 = vld [vmem:[%s684 + $0x2c8] sm:$0xff]
        %v2723 = vld [vmem:[%s684 + $0x2d0] sm:$0xff]
        %v2724 = vld [vmem:[%s684 + $0x2d8] sm:$0xff]
        %v2725 = vld [vmem:[%s684 + $0x2e0] sm:$0xff]
        %v2726 = vld [vmem:[%s684 + $0x2e8] sm:$0xff]
        %v2727 = vld [vmem:[%s684 + $0x2f0] sm:$0xff]
        %v2728 = vld [vmem:[%s684 + $0x2f8] sm:$0xff]
        %v2729 = vld [vmem:[%s684 + $0x300] sm:$0xff]
        %v2730 = vld [vmem:[%s684 + $0x308] sm:$0xff]
        %v2731 = vld [vmem:[%s684 + $0x310] sm:$0xff]
        %v2732 = vld [vmem:[%s684 + $0x318] sm:$0xff]
        %v2733 = vld [vmem:[%s684 + $0x320] sm:$0xff]
        %v2734 = vld [vmem:[%s684 + $0x328] sm:$0xff]
        %v2735 = vld [vmem:[%s684 + $0x330] sm:$0xff]
        %v2736 = vld [vmem:[%s684 + $0x338] sm:$0xff]
        %v2737 = vld [vmem:[%s684 + $0x340] sm:$0xff]
        %v2738 = vld [vmem:[%s684 + $0x348] sm:$0xff]
        %v2739 = vld [vmem:[%s684 + $0x350] sm:$0xff]
        %v2740 = vld [vmem:[%s684 + $0x358] sm:$0xff]
        %v2741 = vld [vmem:[%s684 + $0x360] sm:$0xff]
        %v2742 = vld [vmem:[%s684 + $0x368] sm:$0xff]
        %v2743 = vld [vmem:[%s684 + $0x370] sm:$0xff]
        %v2744 = vld [vmem:[%s684 + $0x378] sm:$0xff]
        %v2745 = vld [vmem:[%s684 + $0x380] sm:$0xff]
        %v2746 = vld [vmem:[%s684 + $0x388] sm:$0xff]
        %v2747 = vld [vmem:[%s684 + $0x390] sm:$0xff]
        %v2748 = vld [vmem:[%s684 + $0x398] sm:$0xff]
        %v2749 = vld [vmem:[%s684 + $0x3a0] sm:$0xff]
        %v2750 = vld [vmem:[%s684 + $0x3a8] sm:$0xff]
        %v2751 = vld [vmem:[%s684 + $0x3b0] sm:$0xff]
        %v2752 = vld [vmem:[%s684 + $0x3b8] sm:$0xff]
        %v2753 = vld [vmem:[%s684 + $0x3c0] sm:$0xff]
        %v2754 = vld [vmem:[%s684 + $0x3c8] sm:$0xff]
        %v2755 = vld [vmem:[%s684 + $0x3d0] sm:$0xff]
        %v2756 = vld [vmem:[%s684 + $0x3d8] sm:$0xff]
        %v2757 = vld [vmem:[%s684 + $0x3e0] sm:$0xff]
        %v2758 = vld [vmem:[%s684 + $0x3e8] sm:$0xff]
        %v2759 = vld [vmem:[%s684 + $0x3f0] sm:$0xff]
        %v2760 = vld [vmem:[%s684 + $0x3f8] sm:$0xff]
        %v2761 = vld [vmem:[%s684 + $0x400] sm:$0xff]
        %v2762 = vld [vmem:[%s684 + $0x408] sm:$0xff]
        %v2763 = vld [vmem:[%s684 + $0x410] sm:$0xff]
        %v2764 = vld [vmem:[%s684 + $0x418] sm:$0xff]
        %v2765 = vld [vmem:[%s684 + $0x420] sm:$0xff]
        %v2766 = vld [vmem:[%s684 + $0x428] sm:$0xff]
        %v2767 = vld [vmem:[%s684 + $0x430] sm:$0xff]
        %v2768 = vld [vmem:[%s684 + $0x438] sm:$0xff]
        %v2769 = vld [vmem:[%s684 + $0x440] sm:$0xff]
        %v2770 = vld [vmem:[%s684 + $0x448] sm:$0xff]
        %v2771 = vld [vmem:[%s684 + $0x450] sm:$0xff]
        %v2772 = vld [vmem:[%s684 + $0x458] sm:$0xff]
        %v2773 = vld [vmem:[%s684 + $0x460] sm:$0xff]
        %v2774 = vld [vmem:[%s684 + $0x468] sm:$0xff]
        %v2775 = vld [vmem:[%s684 + $0x470] sm:$0xff]
        %v2776 = vld [vmem:[%s684 + $0x478] sm:$0xff]
        %v2777 = vld [vmem:[%s684 + $0x480] sm:$0xff]
        %v2778 = vld [vmem:[%s684 + $0x488] sm:$0xff]
        %v2779 = vld [vmem:[%s684 + $0x490] sm:$0xff]
        %v2780 = vld [vmem:[%s684 + $0x498] sm:$0xff]
        %v2781 = vld [vmem:[%s684 + $0x4a0] sm:$0xff]
        %v2782 = vld [vmem:[%s684 + $0x4a8] sm:$0xff]
        %v2783 = vld [vmem:[%s684 + $0x4b0] sm:$0xff]
        %v2784 = vld [vmem:[%s684 + $0x4b8] sm:$0xff]
        %v2785 = vld [vmem:[%s684 + $0x4c0] sm:$0xff]
        %v2786 = vld [vmem:[%s684 + $0x4c8] sm:$0xff]
        %v2787 = vld [vmem:[%s684 + $0x4d0] sm:$0xff]
        %v2788 = vld [vmem:[%s684 + $0x4d8] sm:$0xff]
        %v2789 = vld [vmem:[%s684 + $0x4e0] sm:$0xff]
        %v2790 = vld [vmem:[%s684 + $0x4e8] sm:$0xff]
        %v2791 = vld [vmem:[%s684 + $0x4f0] sm:$0xff]
        %v2792 = vld [vmem:[%s684 + $0x4f8] sm:$0xff]
        %v2793 = vld [vmem:[%s684 + $0x500] sm:$0xff]
        %v2794 = vld [vmem:[%s684 + $0x508] sm:$0xff]
        %v2795 = vld [vmem:[%s684 + $0x510] sm:$0xff]
        %v2796 = vld [vmem:[%s684 + $0x518] sm:$0xff]
        %v2797 = vld [vmem:[%s684 + $0x520] sm:$0xff]
        %v2798 = vld [vmem:[%s684 + $0x528] sm:$0xff]
        %v2799 = vld [vmem:[%s684 + $0x530] sm:$0xff]
        %v2800 = vld [vmem:[%s684 + $0x538] sm:$0xff]
        %v2801 = vld [vmem:[%s684 + $0x540] sm:$0xff]
        %v2802 = vld [vmem:[%s684 + $0x548] sm:$0xff]
        %v2803 = vld [vmem:[%s684 + $0x550] sm:$0xff]
        %v2804 = vld [vmem:[%s684 + $0x558] sm:$0xff]
        %v2805 = vld [vmem:[%s684 + $0x560] sm:$0xff]
        %v2806 = vld [vmem:[%s684 + $0x568] sm:$0xff]
        %v2807 = vld [vmem:[%s684 + $0x570] sm:$0xff]
        %v2808 = vld [vmem:[%s684 + $0x578] sm:$0xff]
        %v2809 = vld [vmem:[%s684 + $0x580] sm:$0xff]
        %v2810 = vld [vmem:[%s684 + $0x588] sm:$0xff]
        %v2811 = vld [vmem:[%s684 + $0x590] sm:$0xff]
        %v2812 = vld [vmem:[%s684 + $0x598] sm:$0xff]
        %v2813 = vld [vmem:[%s684 + $0x5a0] sm:$0xff]
        %v2814 = vld [vmem:[%s684 + $0x5a8] sm:$0xff]
        %v2815 = vld [vmem:[%s684 + $0x5b0] sm:$0xff]
        %v2816 = vld [vmem:[%s684 + $0x5b8] sm:$0xff]
        %v2817 = vld [vmem:[%s684 + $0x5c0] sm:$0xff]
        %v2818 = vld [vmem:[%s684 + $0x5c8] sm:$0xff]
        %v2819 = vld [vmem:[%s684 + $0x5d0] sm:$0xff]
        %v2820 = vld [vmem:[%s684 + $0x5d8] sm:$0xff]
        %v2821 = vld [vmem:[%s684 + $0x5e0] sm:$0xff]
        %v2822 = vld [vmem:[%s684 + $0x5e8] sm:$0xff]
        %v2823 = vld [vmem:[%s684 + $0x5f0] sm:$0xff]
        %v2824 = vld [vmem:[%s684 + $0x5f8] sm:$0xff]
        %v2825 = vld [vmem:[%s684 + $0x600] sm:$0xff]
        %v2826 = vld [vmem:[%s684 + $0x608] sm:$0xff]
        %v2827 = vld [vmem:[%s684 + $0x610] sm:$0xff]
        %v2828 = vld [vmem:[%s684 + $0x618] sm:$0xff]
        %v2829 = vld [vmem:[%s684 + $0x620] sm:$0xff]
        %v2830 = vld [vmem:[%s684 + $0x628] sm:$0xff]
        %v2831 = vld [vmem:[%s684 + $0x630] sm:$0xff]
        %v2832 = vld [vmem:[%s684 + $0x638] sm:$0xff]
        %v2833 = vld [vmem:[%s684 + $0x640] sm:$0xff]
        %v2834 = vld [vmem:[%s684 + $0x648] sm:$0xff]
        %v2835 = vld [vmem:[%s684 + $0x650] sm:$0xff]
        %v2836 = vld [vmem:[%s684 + $0x658] sm:$0xff]
        %v2837 = vld [vmem:[%s684 + $0x660] sm:$0xff]
        %v2838 = vld [vmem:[%s684 + $0x668] sm:$0xff]
        %v2839 = vld [vmem:[%s684 + $0x670] sm:$0xff]
        %v2840 = vld [vmem:[%s684 + $0x678] sm:$0xff]
        %v2841 = vld [vmem:[%s684 + $0x680] sm:$0xff]
        %v2842 = vld [vmem:[%s684 + $0x688] sm:$0xff]
        %v2843 = vld [vmem:[%s684 + $0x690] sm:$0xff]
        %v2844 = vld [vmem:[%s684 + $0x698] sm:$0xff]
        %v2845 = vld [vmem:[%s684 + $0x6a0] sm:$0xff]
        %v2846 = vld [vmem:[%s684 + $0x6a8] sm:$0xff]
        %v2847 = vld [vmem:[%s684 + $0x6b0] sm:$0xff]
        %v2848 = vld [vmem:[%s684 + $0x6b8] sm:$0xff]
        %v2849 = vld [vmem:[%s684 + $0x6c0] sm:$0xff]
        %v2850 = vld [vmem:[%s684 + $0x6c8] sm:$0xff]
        %v2851 = vld [vmem:[%s684 + $0x6d0] sm:$0xff]
        %v2852 = vld [vmem:[%s684 + $0x6d8] sm:$0xff]
        %v2853 = vld [vmem:[%s684 + $0x6e0] sm:$0xff]
        %v2854 = vld [vmem:[%s684 + $0x6e8] sm:$0xff]
        %v2855 = vld [vmem:[%s684 + $0x6f0] sm:$0xff]
        %v2856 = vld [vmem:[%s684 + $0x6f8] sm:$0xff]
        %v2857 = vld [vmem:[%s684 + $0x700] sm:$0xff]
        %v2858 = vld [vmem:[%s684 + $0x708] sm:$0xff]
        %v2859 = vld [vmem:[%s684 + $0x710] sm:$0xff]
        %v2860 = vld [vmem:[%s684 + $0x718] sm:$0xff]
        %v2861 = vld [vmem:[%s684 + $0x720] sm:$0xff]
        %v2862 = vld [vmem:[%s684 + $0x728] sm:$0xff]
        %v2863 = vld [vmem:[%s684 + $0x730] sm:$0xff]
        %v2864 = vld [vmem:[%s684 + $0x738] sm:$0xff]
        %v2865 = vld [vmem:[%s684 + $0x740] sm:$0xff]
        %v2866 = vld [vmem:[%s684 + $0x748] sm:$0xff]
        %v2867 = vld [vmem:[%s684 + $0x750] sm:$0xff]
        %v2868 = vld [vmem:[%s684 + $0x758] sm:$0xff]
        %v2869 = vld [vmem:[%s684 + $0x760] sm:$0xff]
        %v2870 = vld [vmem:[%s684 + $0x768] sm:$0xff]
        %v2871 = vld [vmem:[%s684 + $0x770] sm:$0xff]
        %v2872 = vld [vmem:[%s684 + $0x778] sm:$0xff]
        %v2873 = vld [vmem:[%s684 + $0x780] sm:$0xff]
        %v2874 = vld [vmem:[%s684 + $0x788] sm:$0xff]
        %v2875 = vld [vmem:[%s684 + $0x790] sm:$0xff]
        %v2876 = vld [vmem:[%s684 + $0x798] sm:$0xff]
        %v2877 = vld [vmem:[%s684 + $0x7a0] sm:$0xff]
        %v2878 = vld [vmem:[%s684 + $0x7a8] sm:$0xff]
        %v2879 = vld [vmem:[%s684 + $0x7b0] sm:$0xff]
        %v2880 = vld [vmem:[%s684 + $0x7b8] sm:$0xff]
        %v2881 = vld [vmem:[%s684 + $0x7c0] sm:$0xff]
        %v2882 = vld [vmem:[%s684 + $0x7c8] sm:$0xff]
        %v2883 = vld [vmem:[%s684 + $0x7d0] sm:$0xff]
        %v2884 = vld [vmem:[%s684 + $0x7d8] sm:$0xff]
        %v2885 = vld [vmem:[%s684 + $0x7e0] sm:$0xff]
        %v2886 = vld [vmem:[%s684 + $0x7e8] sm:$0xff]
        %v2887 = vld [vmem:[%s684 + $0x7f0] sm:$0xff]
        %v2888 = vld [vmem:[%s684 + $0x7f8] sm:$0xff]
        %v2889 = vld [vmem:[%s684 + $0x800] sm:$0xff]
        %v2890 = vld [vmem:[%s684 + $0x808] sm:$0xff]
        %v2891 = vld [vmem:[%s684 + $0x810] sm:$0xff]
        %v2892 = vld [vmem:[%s684 + $0x818] sm:$0xff]
        %v2893 = vld [vmem:[%s684 + $0x820] sm:$0xff]
        %v2894 = vld [vmem:[%s684 + $0x828] sm:$0xff]
        %v2895 = vld [vmem:[%s684 + $0x830] sm:$0xff]
        %v2896 = vld [vmem:[%s684 + $0x838] sm:$0xff]
        %v2897 = vld [vmem:[%s684 + $0x840] sm:$0xff]
        %v2898 = vld [vmem:[%s684 + $0x848] sm:$0xff]
        %v2899 = vld [vmem:[%s684 + $0x850] sm:$0xff]
        %v2900 = vld [vmem:[%s684 + $0x858] sm:$0xff]
        %v2901 = vld [vmem:[%s684 + $0x860] sm:$0xff]
        %v2902 = vld [vmem:[%s684 + $0x868] sm:$0xff]
        %v2903 = vld [vmem:[%s684 + $0x870] sm:$0xff]
        %v2904 = vld [vmem:[%s684 + $0x878] sm:$0xff]
        %v2905 = vld [vmem:[%s684 + $0x880] sm:$0xff]
        %v2906 = vld [vmem:[%s684 + $0x888] sm:$0xff]
        %v2907 = vld [vmem:[%s684 + $0x890] sm:$0xff]
        %v2908 = vld [vmem:[%s684 + $0x898] sm:$0xff]
        %v2909 = vld [vmem:[%s684 + $0x8a0] sm:$0xff]
        %v2910 = vld [vmem:[%s684 + $0x8a8] sm:$0xff]
        %v2911 = vld [vmem:[%s684 + $0x8b0] sm:$0xff]
        %v2912 = vld [vmem:[%s684 + $0x8b8] sm:$0xff]
        %v2913 = vld [vmem:[%s684 + $0x8c0] sm:$0xff]
        %v2914 = vld [vmem:[%s684 + $0x8c8] sm:$0xff]
        %v2915 = vld [vmem:[%s684 + $0x8d0] sm:$0xff]
        %v2916 = vld [vmem:[%s684 + $0x8d8] sm:$0xff]
        %v2917 = vld [vmem:[%s684 + $0x8e0] sm:$0xff]
        %v2918 = vld [vmem:[%s684 + $0x8e8] sm:$0xff]
        %v2919 = vld [vmem:[%s684 + $0x8f0] sm:$0xff]
        %v2920 = vld [vmem:[%s684 + $0x8f8] sm:$0xff]
        %v2921 = vld [vmem:[%s684 + $0x900] sm:$0xff]
        %v2922 = vld [vmem:[%s684 + $0x908] sm:$0xff]
        %v2923 = vld [vmem:[%s684 + $0x910] sm:$0xff]
        %v2924 = vld [vmem:[%s684 + $0x918] sm:$0xff]
        %v2925 = vld [vmem:[%s684 + $0x920] sm:$0xff]
        %v2926 = vld [vmem:[%s684 + $0x928] sm:$0xff]
        %v2927 = vld [vmem:[%s684 + $0x930] sm:$0xff]
        %v2928 = vld [vmem:[%s684 + $0x938] sm:$0xff]
        %v2929 = vld [vmem:[%s684 + $0x940] sm:$0xff]
        %v2930 = vld [vmem:[%s684 + $0x948] sm:$0xff]
        %v2931 = vld [vmem:[%s684 + $0x950] sm:$0xff]
        %v2932 = vld [vmem:[%s684 + $0x958] sm:$0xff]
        %v2933 = vld [vmem:[%s684 + $0x960] sm:$0xff]
        %v2934 = vld [vmem:[%s684 + $0x968] sm:$0xff]
        %v2935 = vld [vmem:[%s684 + $0x970] sm:$0xff]
        %v2936 = vld [vmem:[%s684 + $0x978] sm:$0xff]
        %v2937 = vld [vmem:[%s684 + $0x980] sm:$0xff]
        %v2938 = vld [vmem:[%s684 + $0x988] sm:$0xff]
        %v2939 = vld [vmem:[%s684 + $0x990] sm:$0xff]
        %v2940 = vld [vmem:[%s684 + $0x998] sm:$0xff]
        %v2941 = vld [vmem:[%s684 + $0x9a0] sm:$0xff]
        %v2942 = vld [vmem:[%s684 + $0x9a8] sm:$0xff]
        %v2943 = vld [vmem:[%s684 + $0x9b0] sm:$0xff]
        %v2944 = vld [vmem:[%s684 + $0x9b8] sm:$0xff]
        %v2945 = vld [vmem:[%s684 + $0x9c0] sm:$0xff]
        %v2946 = vld [vmem:[%s684 + $0x9c8] sm:$0xff]
        %v2947 = vld [vmem:[%s684 + $0x9d0] sm:$0xff]
        %v2948 = vld [vmem:[%s684 + $0x9d8] sm:$0xff]
        %v2949 = vld [vmem:[%s684 + $0x9e0] sm:$0xff]
        %v2950 = vld [vmem:[%s684 + $0x9e8] sm:$0xff]
        %v2951 = vld [vmem:[%s684 + $0x9f0] sm:$0xff]
        %v2952 = vld [vmem:[%s684 + $0x9f8] sm:$0xff]
        %v2953 = vld [vmem:[%s684 + $0xa00] sm:$0xff]
        %v2954 = vld [vmem:[%s684 + $0xa08] sm:$0xff]
        %v2955 = vld [vmem:[%s684 + $0xa10] sm:$0xff]
        %v2956 = vld [vmem:[%s684 + $0xa18] sm:$0xff]
        %v2957 = vld [vmem:[%s684 + $0xa20] sm:$0xff]
        %v2958 = vld [vmem:[%s684 + $0xa28] sm:$0xff]
        %v2959 = vld [vmem:[%s684 + $0xa30] sm:$0xff]
        %v2960 = vld [vmem:[%s684 + $0xa38] sm:$0xff]
        %v2961 = vld [vmem:[%s684 + $0xa40] sm:$0xff]
        %v2962 = vld [vmem:[%s684 + $0xa48] sm:$0xff]
        %v2963 = vld [vmem:[%s684 + $0xa50] sm:$0xff]
        %v2964 = vld [vmem:[%s684 + $0xa58] sm:$0xff]
        %v2965 = vld [vmem:[%s684 + $0xa60] sm:$0xff]
        %v2966 = vld [vmem:[%s684 + $0xa68] sm:$0xff]
        %v2967 = vld [vmem:[%s684 + $0xa70] sm:$0xff]
        %v2968 = vld [vmem:[%s684 + $0xa78] sm:$0xff]
        %v2969 = vld [vmem:[%s684 + $0xa80] sm:$0xff]
        %v2970 = vld [vmem:[%s684 + $0xa88] sm:$0xff]
        %v2971 = vld [vmem:[%s684 + $0xa90] sm:$0xff]
        %v2972 = vld [vmem:[%s684 + $0xa98] sm:$0xff]
        %v2973 = vld [vmem:[%s684 + $0xaa0] sm:$0xff]
        %v2974 = vld [vmem:[%s684 + $0xaa8] sm:$0xff]
        %v2975 = vld [vmem:[%s684 + $0xab0] sm:$0xff]
        %v2976 = vld [vmem:[%s684 + $0xab8] sm:$0xff]
        %v2977 = vld [vmem:[%s684 + $0xac0] sm:$0xff]
        %v2978 = vld [vmem:[%s684 + $0xac8] sm:$0xff]
        %v2979 = vld [vmem:[%s684 + $0xad0] sm:$0xff]
        %v2980 = vld [vmem:[%s684 + $0xad8] sm:$0xff]
        %v2981 = vld [vmem:[%s684 + $0xae0] sm:$0xff]
        %v2982 = vld [vmem:[%s684 + $0xae8] sm:$0xff]
        %v2983 = vld [vmem:[%s684 + $0xaf0] sm:$0xff]
        %v2984 = vld [vmem:[%s684 + $0xaf8] sm:$0xff]
        %v2985 = vld [vmem:[%s684 + $0xb00] sm:$0xff]
        %v2986 = vld [vmem:[%s684 + $0xb08] sm:$0xff]
        %v2987 = vld [vmem:[%s684 + $0xb10] sm:$0xff]
        %v2988 = vld [vmem:[%s684 + $0xb18] sm:$0xff]
        %v2989 = vld [vmem:[%s684 + $0xb20] sm:$0xff]
        %v2990 = vld [vmem:[%s684 + $0xb28] sm:$0xff]
        %v2991 = vld [vmem:[%s684 + $0xb30] sm:$0xff]
        %v2992 = vld [vmem:[%s684 + $0xb38] sm:$0xff]
        %v2993 = vld [vmem:[%s684 + $0xb40] sm:$0xff]
        %v2994 = vld [vmem:[%s684 + $0xb48] sm:$0xff]
        %v2995 = vld [vmem:[%s684 + $0xb50] sm:$0xff]
        %v2996 = vld [vmem:[%s684 + $0xb58] sm:$0xff]
        %v2997 = vld [vmem:[%s684 + $0xb60] sm:$0xff]
        %v2998 = vld [vmem:[%s684 + $0xb68] sm:$0xff]
        %v2999 = vld [vmem:[%s684 + $0xb70] sm:$0xff]
        %v3000 = vld [vmem:[%s684 + $0xb78] sm:$0xff]
        %v3001 = vld [vmem:[%s684 + $0xb80] sm:$0xff]
        %v3002 = vld [vmem:[%s684 + $0xb88] sm:$0xff]
        %v3003 = vld [vmem:[%s684 + $0xb90] sm:$0xff]
        %v3004 = vld [vmem:[%s684 + $0xb98] sm:$0xff]
        %v3005 = vld [vmem:[%s684 + $0xba0] sm:$0xff]
        %v3006 = vld [vmem:[%s684 + $0xba8] sm:$0xff]
        %v3007 = vld [vmem:[%s684 + $0xbb0] sm:$0xff]
        %v3008 = vld [vmem:[%s684 + $0xbb8] sm:$0xff]
        %v3009 = vld [vmem:[%s684 + $0xbc0] sm:$0xff]
        %v3010 = vld [vmem:[%s684 + $0xbc8] sm:$0xff]
        %v3011 = vld [vmem:[%s684 + $0xbd0] sm:$0xff]
        %v3012 = vld [vmem:[%s684 + $0xbd8] sm:$0xff]
        %v3013 = vld [vmem:[%s684 + $0xbe0] sm:$0xff]
        %v3014 = vld [vmem:[%s684 + $0xbe8] sm:$0xff]
        %v3015 = vld [vmem:[%s684 + $0xbf0] sm:$0xff]
        %v3016 = vld [vmem:[%s684 + $0xbf8] sm:$0xff]
        %v3017 = vld [vmem:[%s684 + $0xc00] sm:$0xff]
        %v3018 = vld [vmem:[%s684 + $0xc08] sm:$0xff]
        %v3019 = vld [vmem:[%s684 + $0xc10] sm:$0xff]
        %v3020 = vld [vmem:[%s684 + $0xc18] sm:$0xff]
        %v3021 = vld [vmem:[%s684 + $0xc20] sm:$0xff]
        %v3022 = vld [vmem:[%s684 + $0xc28] sm:$0xff]
        %v3023 = vld [vmem:[%s684 + $0xc30] sm:$0xff]
        %v3024 = vld [vmem:[%s684 + $0xc38] sm:$0xff]
        %v3025 = vld [vmem:[%s684 + $0xc40] sm:$0xff]
        %v3026 = vld [vmem:[%s684 + $0xc48] sm:$0xff]
        %v3027 = vld [vmem:[%s684 + $0xc50] sm:$0xff]
        %v3028 = vld [vmem:[%s684 + $0xc58] sm:$0xff]
        %v3029 = vld [vmem:[%s684 + $0xc60] sm:$0xff]
        %v3030 = vld [vmem:[%s684 + $0xc68] sm:$0xff]
        %v3031 = vld [vmem:[%s684 + $0xc70] sm:$0xff]
        %v3032 = vld [vmem:[%s684 + $0xc78] sm:$0xff]
        %v3033 = vld [vmem:[%s684 + $0xc80] sm:$0xff]
        %v3034 = vld [vmem:[%s684 + $0xc88] sm:$0xff]
        %v3035 = vld [vmem:[%s684 + $0xc90] sm:$0xff]
        %v3036 = vld [vmem:[%s684 + $0xc98] sm:$0xff]
        %v3037 = vld [vmem:[%s684 + $0xca0] sm:$0xff]
        %v3038 = vld [vmem:[%s684 + $0xca8] sm:$0xff]
        %v3039 = vld [vmem:[%s684 + $0xcb0] sm:$0xff]
        %v3040 = vld [vmem:[%s684 + $0xcb8] sm:$0xff]
        %v3041 = vld [vmem:[%s684 + $0xcc0] sm:$0xff]
        %v3042 = vld [vmem:[%s684 + $0xcc8] sm:$0xff]
        %v3043 = vld [vmem:[%s684 + $0xcd0] sm:$0xff]
        %v3044 = vld [vmem:[%s684 + $0xcd8] sm:$0xff]
        %v3045 = vld [vmem:[%s684 + $0xce0] sm:$0xff]
        %v3046 = vld [vmem:[%s684 + $0xce8] sm:$0xff]
        %v3047 = vld [vmem:[%s684 + $0xcf0] sm:$0xff]
        %v3048 = vld [vmem:[%s684 + $0xcf8] sm:$0xff]
        %v3049 = vld [vmem:[%s684 + $0xd00] sm:$0xff]
        %v3050 = vld [vmem:[%s684 + $0xd08] sm:$0xff]
        %v3051 = vld [vmem:[%s684 + $0xd10] sm:$0xff]
        %v3052 = vld [vmem:[%s684 + $0xd18] sm:$0xff]
        %v3053 = vld [vmem:[%s684 + $0xd20] sm:$0xff]
        %v3054 = vld [vmem:[%s684 + $0xd28] sm:$0xff]
        %v3055 = vld [vmem:[%s684 + $0xd30] sm:$0xff]
        %v3056 = vld [vmem:[%s684 + $0xd38] sm:$0xff]
        %v3057 = vld [vmem:[%s684 + $0xd40] sm:$0xff]
        %v3058 = vld [vmem:[%s684 + $0xd48] sm:$0xff]
        %v3059 = vld [vmem:[%s684 + $0xd50] sm:$0xff]
        %v3060 = vld [vmem:[%s684 + $0xd58] sm:$0xff]
        %v3061 = vld [vmem:[%s684 + $0xd60] sm:$0xff]
        %v3062 = vld [vmem:[%s684 + $0xd68] sm:$0xff]
        %v3063 = vld [vmem:[%s684 + $0xd70] sm:$0xff]
        %v3064 = vld [vmem:[%s684 + $0xd78] sm:$0xff]
        %v3065 = vld [vmem:[%s684 + $0xd80] sm:$0xff]
        %v3066 = vld [vmem:[%s684 + $0xd88] sm:$0xff]
        %v3067 = vld [vmem:[%s684 + $0xd90] sm:$0xff]
        %v3068 = vld [vmem:[%s684 + $0xd98] sm:$0xff]
        %v3069 = vld [vmem:[%s684 + $0xda0] sm:$0xff]
        %v3070 = vld [vmem:[%s684 + $0xda8] sm:$0xff]
        %v3071 = vld [vmem:[%s684 + $0xdb0] sm:$0xff]
        %v3072 = vld [vmem:[%s684 + $0xdb8] sm:$0xff]
        %v3073 = vld [vmem:[%s684 + $0xdc0] sm:$0xff]
        %v3074 = vld [vmem:[%s684 + $0xdc8] sm:$0xff]
        %v3075 = vld [vmem:[%s684 + $0xdd0] sm:$0xff]
        %v3076 = vld [vmem:[%s684 + $0xdd8] sm:$0xff]
        %v3077 = vld [vmem:[%s684 + $0xde0] sm:$0xff]
        %v3078 = vld [vmem:[%s684 + $0xde8] sm:$0xff]
        %v3079 = vld [vmem:[%s684 + $0xdf0] sm:$0xff]
        %v3080 = vld [vmem:[%s684 + $0xdf8] sm:$0xff]
        %v3081 = vld [vmem:[%s684 + $0xe00] sm:$0xff]
        %v3082 = vld [vmem:[%s684 + $0xe08] sm:$0xff]
        %v3083 = vld [vmem:[%s684 + $0xe10] sm:$0xff]
        %v3084 = vld [vmem:[%s684 + $0xe18] sm:$0xff]
        %v3085 = vld [vmem:[%s684 + $0xe20] sm:$0xff]
        %v3086 = vld [vmem:[%s684 + $0xe28] sm:$0xff]
        %v3087 = vld [vmem:[%s684 + $0xe30] sm:$0xff]
        %v3088 = vld [vmem:[%s684 + $0xe38] sm:$0xff]
        %v3089 = vld [vmem:[%s684 + $0xe40] sm:$0xff]
        %v3090 = vld [vmem:[%s684 + $0xe48] sm:$0xff]
        %v3091 = vld [vmem:[%s684 + $0xe50] sm:$0xff]
        %v3092 = vld [vmem:[%s684 + $0xe58] sm:$0xff]
        %v3093 = vld [vmem:[%s684 + $0xe60] sm:$0xff]
        %v3094 = vld [vmem:[%s684 + $0xe68] sm:$0xff]
        %v3095 = vld [vmem:[%s684 + $0xe70] sm:$0xff]
        %v3096 = vld [vmem:[%s684 + $0xe78] sm:$0xff]
        %v3097 = vld [vmem:[%s684 + $0xe80] sm:$0xff]
        %v3098 = vld [vmem:[%s684 + $0xe88] sm:$0xff]
        %v3099 = vld [vmem:[%s684 + $0xe90] sm:$0xff]
        %v3100 = vld [vmem:[%s684 + $0xe98] sm:$0xff]
        %v3101 = vld [vmem:[%s684 + $0xea0] sm:$0xff]
        %v3102 = vld [vmem:[%s684 + $0xea8] sm:$0xff]
        %v3103 = vld [vmem:[%s684 + $0xeb0] sm:$0xff]
        %v3104 = vld [vmem:[%s684 + $0xeb8] sm:$0xff]
        %v3105 = vld [vmem:[%s684 + $0xec0] sm:$0xff]
        %v3106 = vld [vmem:[%s684 + $0xec8] sm:$0xff]
        %v3107 = vld [vmem:[%s684 + $0xed0] sm:$0xff]
        %v3108 = vld [vmem:[%s684 + $0xed8] sm:$0xff]
        %v3109 = vld [vmem:[%s684 + $0xee0] sm:$0xff]
        %v3110 = vld [vmem:[%s684 + $0xee8] sm:$0xff]
        %v3111 = vld [vmem:[%s684 + $0xef0] sm:$0xff]
        %v3112 = vld [vmem:[%s684 + $0xef8] sm:$0xff]
        %v3113 = vld [vmem:[%s684 + $0xf00] sm:$0xff]
        %v3114 = vld [vmem:[%s684 + $0xf08] sm:$0xff]
        %v3115 = vld [vmem:[%s684 + $0xf10] sm:$0xff]
        %v3116 = vld [vmem:[%s684 + $0xf18] sm:$0xff]
        %v3117 = vld [vmem:[%s684 + $0xf20] sm:$0xff]
        %v3118 = vld [vmem:[%s684 + $0xf28] sm:$0xff]
        %v3119 = vld [vmem:[%s684 + $0xf30] sm:$0xff]
        %v3120 = vld [vmem:[%s684 + $0xf38] sm:$0xff]
        %v3121 = vld [vmem:[%s684 + $0xf40] sm:$0xff]
        %v3122 = vld [vmem:[%s684 + $0xf48] sm:$0xff]
        %v3123 = vld [vmem:[%s684 + $0xf50] sm:$0xff]
        %v3124 = vld [vmem:[%s684 + $0xf58] sm:$0xff]
        %v3125 = vld [vmem:[%s684 + $0xf60] sm:$0xff]
        %v3126 = vld [vmem:[%s684 + $0xf68] sm:$0xff]
        %v3127 = vld [vmem:[%s684 + $0xf70] sm:$0xff]
        %v3128 = vld [vmem:[%s684 + $0xf78] sm:$0xff]
        %v3129 = vld [vmem:[%s684 + $0xf80] sm:$0xff]
        %v3130 = vld [vmem:[%s684 + $0xf88] sm:$0xff]
        %v3131 = vld [vmem:[%s684 + $0xf90] sm:$0xff]
        %v3132 = vld [vmem:[%s684 + $0xf98] sm:$0xff]
        %v3133 = vld [vmem:[%s684 + $0xfa0] sm:$0xff]
        %v3134 = vld [vmem:[%s684 + $0xfa8] sm:$0xff]
        %v3135 = vld [vmem:[%s684 + $0xfb0] sm:$0xff]
        %v3136 = vld [vmem:[%s684 + $0xfb8] sm:$0xff]
        %v3137 = vld [vmem:[%s684 + $0xfc0] sm:$0xff]
        %v3138 = vld [vmem:[%s684 + $0xfc8] sm:$0xff]
        %v3139 = vld [vmem:[%s684 + $0xfd0] sm:$0xff]
        %v3140 = vld [vmem:[%s684 + $0xfd8] sm:$0xff]
        %v3141 = vld [vmem:[%s684 + $0xfe0] sm:$0xff]
        %v3142 = vld [vmem:[%s684 + $0xfe8] sm:$0xff]
        %v3143 = vld [vmem:[%s693] sm:$0xff]
        %v3144 = vld [vmem:[%s693 + $0x8] sm:$0x3]
        %v3147 = vlaneseq
        %v3148 = vshrl.u32 %v3147, 7
        %v3149 = vsub.s32 0, %v3148
        %v3150 = vrot.slane %v3143, %v3149
        %v3151 = vlaneseq
        %v3152 = vshrl.u32 %v3151, 7
        %v3153 = vsub.s32 1, %v3152
        %v3154 = vrot.slane %v3143, %v3153
        %v3155 = vlaneseq
        %v3156 = vshrl.u32 %v3155, 7
        %v3157 = vsub.s32 2, %v3156
        %v3158 = vrot.slane %v3143, %v3157
        %v3159 = vlaneseq
        %v3160 = vshrl.u32 %v3159, 7
        %v3161 = vsub.s32 3, %v3160
        %v3162 = vrot.slane %v3143, %v3161
        %v3163 = vlaneseq
        %v3164 = vshrl.u32 %v3163, 7
        %v3165 = vsub.s32 4, %v3164
        %v3166 = vrot.slane %v3143, %v3165
        %v3167 = vlaneseq
        %v3168 = vshrl.u32 %v3167, 7
        %v3169 = vsub.s32 5, %v3168
        %v3170 = vrot.slane %v3143, %v3169
        %v3171 = vlaneseq
        %v3172 = vshrl.u32 %v3171, 7
        %v3173 = vsub.s32 6, %v3172
        %v3174 = vrot.slane %v3143, %v3173
        %v3175 = vlaneseq
        %v3176 = vshrl.u32 %v3175, 7
        %v3177 = vsub.s32 7, %v3176
        %v3178 = vrot.slane %v3143, %v3177
        %v3179 = vlaneseq
        %v3180 = vshrl.u32 %v3179, 7
        %v3181 = vsub.s32 0, %v3180
        %v3182 = vrot.slane %v3144, %v3181
        %v3183 = vlaneseq
        %v3184 = vshrl.u32 %v3183, 7
        %v3185 = vsub.s32 1, %v3184
        %v3186 = vrot.slane %v3144, %v3185
        %v3707 = vunpack.c.l.b16 %v2633
        %v3708 = vunpack.c.h.b16 %v2633
        %v3709 = vunpack.c.l.b16 %v2634
        %v3710 = vunpack.c.h.b16 %v2634
        %v3711 = vunpack.c.l.b16 %v2635
        %v3712 = vunpack.c.h.b16 %v2635
        %v3713 = vunpack.c.l.b16 %v2636
        %v3714 = vunpack.c.h.b16 %v2636
        %v3715 = vunpack.c.l.b16 %v2637
        %v3716 = vunpack.c.h.b16 %v2637
        %v3717 = vunpack.c.l.b16 %v2638
        %v3718 = vunpack.c.h.b16 %v2638
        %v3719 = vunpack.c.l.b16 %v2639
        %v3720 = vunpack.c.h.b16 %v2639
        %v3721 = vunpack.c.l.b16 %v2640
        %v3722 = vunpack.c.h.b16 %v2640
        %v3723 = vunpack.c.l.b16 %v2641
        %v3724 = vunpack.c.h.b16 %v2641
        %v3725 = vunpack.c.l.b16 %v2642
        %v3726 = vunpack.c.h.b16 %v2642
        %v3727 = vunpack.c.l.b16 %v2643
        %v3728 = vunpack.c.h.b16 %v2643
        %v3729 = vunpack.c.l.b16 %v2644
        %v3730 = vunpack.c.h.b16 %v2644
        %v3731 = vunpack.c.l.b16 %v2645
        %v3732 = vunpack.c.h.b16 %v2645
        %v3733 = vunpack.c.l.b16 %v2646
        %v3734 = vunpack.c.h.b16 %v2646
        %v3735 = vunpack.c.l.b16 %v2647
        %v3736 = vunpack.c.h.b16 %v2647
        %v3737 = vunpack.c.l.b16 %v2648
        %v3738 = vunpack.c.h.b16 %v2648
        %v3739 = vunpack.c.l.b16 %v2649
        %v3740 = vunpack.c.h.b16 %v2649
        %v3741 = vunpack.c.l.b16 %v2650
        %v3742 = vunpack.c.h.b16 %v2650
        %v3743 = vunpack.c.l.b16 %v2651
        %v3744 = vunpack.c.h.b16 %v2651
        %v3745 = vunpack.c.l.b16 %v2652
        %v3746 = vunpack.c.h.b16 %v2652
        %v3747 = vunpack.c.l.b16 %v2653
        %v3748 = vunpack.c.h.b16 %v2653
        %v3749 = vunpack.c.l.b16 %v2654
        %v3750 = vunpack.c.h.b16 %v2654
        %v3751 = vunpack.c.l.b16 %v2655
        %v3752 = vunpack.c.h.b16 %v2655
        %v3753 = vunpack.c.l.b16 %v2656
        %v3754 = vunpack.c.h.b16 %v2656
        %v3755 = vunpack.c.l.b16 %v2657
        %v3756 = vunpack.c.h.b16 %v2657
        %v3757 = vunpack.c.l.b16 %v2658
        %v3758 = vunpack.c.h.b16 %v2658
        %v3759 = vunpack.c.l.b16 %v2659
        %v3760 = vunpack.c.h.b16 %v2659
        %v3761 = vunpack.c.l.b16 %v2660
        %v3762 = vunpack.c.h.b16 %v2660
        %v3763 = vunpack.c.l.b16 %v2661
        %v3764 = vunpack.c.h.b16 %v2661
        %v3765 = vunpack.c.l.b16 %v2662
        %v3766 = vunpack.c.h.b16 %v2662
        %v3767 = vunpack.c.l.b16 %v2663
        %v3768 = vunpack.c.h.b16 %v2663
        %v3769 = vunpack.c.l.b16 %v2664
        %v3770 = vunpack.c.h.b16 %v2664
        %v3771 = vunpack.c.l.b16 %v2665
        %v3772 = vunpack.c.h.b16 %v2665
        %v3773 = vunpack.c.l.b16 %v2666
        %v3774 = vunpack.c.h.b16 %v2666
        %v3775 = vunpack.c.l.b16 %v2667
        %v3776 = vunpack.c.h.b16 %v2667
        %v3777 = vunpack.c.l.b16 %v2668
        %v3778 = vunpack.c.h.b16 %v2668
        %v3779 = vunpack.c.l.b16 %v2669
        %v3780 = vunpack.c.h.b16 %v2669
        %v3781 = vunpack.c.l.b16 %v2670
        %v3782 = vunpack.c.h.b16 %v2670
        %v3783 = vunpack.c.l.b16 %v2671
        %v3784 = vunpack.c.h.b16 %v2671
        %v3785 = vunpack.c.l.b16 %v2672
        %v3786 = vunpack.c.h.b16 %v2672
        %v3787 = vunpack.c.l.b16 %v2673
        %v3788 = vunpack.c.h.b16 %v2673
        %v3789 = vunpack.c.l.b16 %v2674
        %v3790 = vunpack.c.h.b16 %v2674
        %v3791 = vunpack.c.l.b16 %v2675
        %v3792 = vunpack.c.h.b16 %v2675
        %v3793 = vunpack.c.l.b16 %v2676
        %v3794 = vunpack.c.h.b16 %v2676
        %v3795 = vunpack.c.l.b16 %v2677
        %v3796 = vunpack.c.h.b16 %v2677
        %v3797 = vunpack.c.l.b16 %v2678
        %v3798 = vunpack.c.h.b16 %v2678
        %v3799 = vunpack.c.l.b16 %v2679
        %v3800 = vunpack.c.h.b16 %v2679
        %v3801 = vunpack.c.l.b16 %v2680
        %v3802 = vunpack.c.h.b16 %v2680
        %v3803 = vunpack.c.l.b16 %v2681
        %v3804 = vunpack.c.h.b16 %v2681
        %v3805 = vunpack.c.l.b16 %v2682
        %v3806 = vunpack.c.h.b16 %v2682
        %v3807 = vunpack.c.l.b16 %v2683
        %v3808 = vunpack.c.h.b16 %v2683
        %v3809 = vunpack.c.l.b16 %v2684
        %v3810 = vunpack.c.h.b16 %v2684
        %v3811 = vunpack.c.l.b16 %v2685
        %v3812 = vunpack.c.h.b16 %v2685
        %v3813 = vunpack.c.l.b16 %v2686
        %v3814 = vunpack.c.h.b16 %v2686
        %v3815 = vunpack.c.l.b16 %v2687
        %v3816 = vunpack.c.h.b16 %v2687
        %v3817 = vunpack.c.l.b16 %v2688
        %v3818 = vunpack.c.h.b16 %v2688
        %v3819 = vunpack.c.l.b16 %v2689
        %v3820 = vunpack.c.h.b16 %v2689
        %v3821 = vunpack.c.l.b16 %v2690
        %v3822 = vunpack.c.h.b16 %v2690
        %v3823 = vunpack.c.l.b16 %v2691
        %v3824 = vunpack.c.h.b16 %v2691
        %v3825 = vunpack.c.l.b16 %v2692
        %v3826 = vunpack.c.h.b16 %v2692
        %v3827 = vunpack.c.l.b16 %v2693
        %v3828 = vunpack.c.h.b16 %v2693
        %v3829 = vunpack.c.l.b16 %v2694
        %v3830 = vunpack.c.h.b16 %v2694
        %v3831 = vunpack.c.l.b16 %v2695
        %v3832 = vunpack.c.h.b16 %v2695
        %v3833 = vunpack.c.l.b16 %v2696
        %v3834 = vunpack.c.h.b16 %v2696
        %v3835 = vunpack.c.l.b16 %v2697
        %v3836 = vunpack.c.h.b16 %v2697
        %v3837 = vunpack.c.l.b16 %v2698
        %v3838 = vunpack.c.h.b16 %v2698
        %v3839 = vunpack.c.l.b16 %v2699
        %v3840 = vunpack.c.h.b16 %v2699
        %v3841 = vunpack.c.l.b16 %v2700
        %v3842 = vunpack.c.h.b16 %v2700
        %v3843 = vunpack.c.l.b16 %v2701
        %v3844 = vunpack.c.h.b16 %v2701
        %v3845 = vunpack.c.l.b16 %v2702
        %v3846 = vunpack.c.h.b16 %v2702
        %v3847 = vunpack.c.l.b16 %v2703
        %v3848 = vunpack.c.h.b16 %v2703
        %v3849 = vunpack.c.l.b16 %v2704
        %v3850 = vunpack.c.h.b16 %v2704
        %v3851 = vunpack.c.l.b16 %v2705
        %v3852 = vunpack.c.h.b16 %v2705
        %v3853 = vunpack.c.l.b16 %v2706
        %v3854 = vunpack.c.h.b16 %v2706
        %v3855 = vunpack.c.l.b16 %v2707
        %v3856 = vunpack.c.h.b16 %v2707
        %v3857 = vunpack.c.l.b16 %v2708
        %v3858 = vunpack.c.h.b16 %v2708
        %v3859 = vunpack.c.l.b16 %v2709
        %v3860 = vunpack.c.h.b16 %v2709
        %v3861 = vunpack.c.l.b16 %v2710
        %v3862 = vunpack.c.h.b16 %v2710
        %v3863 = vunpack.c.l.b16 %v2711
        %v3864 = vunpack.c.h.b16 %v2711
        %v3865 = vunpack.c.l.b16 %v2712
        %v3866 = vunpack.c.h.b16 %v2712
        %v3867 = vunpack.c.l.b16 %v2713
        %v3868 = vunpack.c.h.b16 %v2713
        %v3869 = vunpack.c.l.b16 %v2714
        %v3870 = vunpack.c.h.b16 %v2714
        %v3871 = vunpack.c.l.b16 %v2715
        %v3872 = vunpack.c.h.b16 %v2715
        %v3873 = vunpack.c.l.b16 %v2716
        %v3874 = vunpack.c.h.b16 %v2716
        %v3875 = vunpack.c.l.b16 %v2717
        %v3876 = vunpack.c.h.b16 %v2717
        %v3877 = vunpack.c.l.b16 %v2718
        %v3878 = vunpack.c.h.b16 %v2718
        %v3879 = vunpack.c.l.b16 %v2719
        %v3880 = vunpack.c.h.b16 %v2719
        %v3881 = vunpack.c.l.b16 %v2720
        %v3882 = vunpack.c.h.b16 %v2720
        %v3883 = vunpack.c.l.b16 %v2721
        %v3884 = vunpack.c.h.b16 %v2721
        %v3885 = vunpack.c.l.b16 %v2722
        %v3886 = vunpack.c.h.b16 %v2722
        %v3887 = vunpack.c.l.b16 %v2723
        %v3888 = vunpack.c.h.b16 %v2723
        %v3889 = vunpack.c.l.b16 %v2724
        %v3890 = vunpack.c.h.b16 %v2724
        %v3891 = vunpack.c.l.b16 %v2725
        %v3892 = vunpack.c.h.b16 %v2725
        %v3893 = vunpack.c.l.b16 %v2726
        %v3894 = vunpack.c.h.b16 %v2726
        %v3895 = vunpack.c.l.b16 %v2727
        %v3896 = vunpack.c.h.b16 %v2727
        %v3897 = vunpack.c.l.b16 %v2728
        %v3898 = vunpack.c.h.b16 %v2728
        %v3899 = vunpack.c.l.b16 %v2729
        %v3900 = vunpack.c.h.b16 %v2729
        %v3901 = vunpack.c.l.b16 %v2730
        %v3902 = vunpack.c.h.b16 %v2730
        %v3903 = vunpack.c.l.b16 %v2731
        %v3904 = vunpack.c.h.b16 %v2731
        %v3905 = vunpack.c.l.b16 %v2732
        %v3906 = vunpack.c.h.b16 %v2732
        %v3907 = vunpack.c.l.b16 %v2733
        %v3908 = vunpack.c.h.b16 %v2733
        %v3909 = vunpack.c.l.b16 %v2734
        %v3910 = vunpack.c.h.b16 %v2734
        %v3911 = vunpack.c.l.b16 %v2735
        %v3912 = vunpack.c.h.b16 %v2735
        %v3913 = vunpack.c.l.b16 %v2736
        %v3914 = vunpack.c.h.b16 %v2736
        %v3915 = vunpack.c.l.b16 %v2737
        %v3916 = vunpack.c.h.b16 %v2737
        %v3917 = vunpack.c.l.b16 %v2738
        %v3918 = vunpack.c.h.b16 %v2738
        %v3919 = vunpack.c.l.b16 %v2739
        %v3920 = vunpack.c.h.b16 %v2739
        %v3921 = vunpack.c.l.b16 %v2740
        %v3922 = vunpack.c.h.b16 %v2740
        %v3923 = vunpack.c.l.b16 %v2741
        %v3924 = vunpack.c.h.b16 %v2741
        %v3925 = vunpack.c.l.b16 %v2742
        %v3926 = vunpack.c.h.b16 %v2742
        %v3927 = vunpack.c.l.b16 %v2743
        %v3928 = vunpack.c.h.b16 %v2743
        %v3929 = vunpack.c.l.b16 %v2744
        %v3930 = vunpack.c.h.b16 %v2744
        %v3931 = vunpack.c.l.b16 %v2745
        %v3932 = vunpack.c.h.b16 %v2745
        %v3933 = vunpack.c.l.b16 %v2746
        %v3934 = vunpack.c.h.b16 %v2746
        %v3935 = vunpack.c.l.b16 %v2747
        %v3936 = vunpack.c.h.b16 %v2747
        %v3937 = vunpack.c.l.b16 %v2748
        %v3938 = vunpack.c.h.b16 %v2748
        %v3939 = vunpack.c.l.b16 %v2749
        %v3940 = vunpack.c.h.b16 %v2749
        %v3941 = vunpack.c.l.b16 %v2750
        %v3942 = vunpack.c.h.b16 %v2750
        %v3943 = vunpack.c.l.b16 %v2751
        %v3944 = vunpack.c.h.b16 %v2751
        %v3945 = vunpack.c.l.b16 %v2752
        %v3946 = vunpack.c.h.b16 %v2752
        %v3947 = vunpack.c.l.b16 %v2753
        %v3948 = vunpack.c.h.b16 %v2753
        %v3949 = vunpack.c.l.b16 %v2754
        %v3950 = vunpack.c.h.b16 %v2754
        %v3951 = vunpack.c.l.b16 %v2755
        %v3952 = vunpack.c.h.b16 %v2755
        %v3953 = vunpack.c.l.b16 %v2756
        %v3954 = vunpack.c.h.b16 %v2756
        %v3955 = vunpack.c.l.b16 %v2757
        %v3956 = vunpack.c.h.b16 %v2757
        %v3957 = vunpack.c.l.b16 %v2758
        %v3958 = vunpack.c.h.b16 %v2758
        %v3959 = vunpack.c.l.b16 %v2759
        %v3960 = vunpack.c.h.b16 %v2759
        %v3961 = vunpack.c.l.b16 %v2760
        %v3962 = vunpack.c.h.b16 %v2760
        %v3963 = vunpack.c.l.b16 %v2761
        %v3964 = vunpack.c.h.b16 %v2761
        %v3965 = vunpack.c.l.b16 %v2762
        %v3966 = vunpack.c.h.b16 %v2762
        %v3967 = vunpack.c.l.b16 %v2763
        %v3968 = vunpack.c.h.b16 %v2763
        %v3969 = vunpack.c.l.b16 %v2764
        %v3970 = vunpack.c.h.b16 %v2764
        %v3971 = vunpack.c.l.b16 %v2765
        %v3972 = vunpack.c.h.b16 %v2765
        %v3973 = vunpack.c.l.b16 %v2766
        %v3974 = vunpack.c.h.b16 %v2766
        %v3975 = vunpack.c.l.b16 %v2767
        %v3976 = vunpack.c.h.b16 %v2767
        %v3977 = vunpack.c.l.b16 %v2768
        %v3978 = vunpack.c.h.b16 %v2768
        %v3979 = vunpack.c.l.b16 %v2769
        %v3980 = vunpack.c.h.b16 %v2769
        %v3981 = vunpack.c.l.b16 %v2770
        %v3982 = vunpack.c.h.b16 %v2770
        %v3983 = vunpack.c.l.b16 %v2771
        %v3984 = vunpack.c.h.b16 %v2771
        %v3985 = vunpack.c.l.b16 %v2772
        %v3986 = vunpack.c.h.b16 %v2772
        %v3987 = vunpack.c.l.b16 %v2773
        %v3988 = vunpack.c.h.b16 %v2773
        %v3989 = vunpack.c.l.b16 %v2774
        %v3990 = vunpack.c.h.b16 %v2774
        %v3991 = vunpack.c.l.b16 %v2775
        %v3992 = vunpack.c.h.b16 %v2775
        %v3993 = vunpack.c.l.b16 %v2776
        %v3994 = vunpack.c.h.b16 %v2776
        %v3995 = vunpack.c.l.b16 %v2777
        %v3996 = vunpack.c.h.b16 %v2777
        %v3997 = vunpack.c.l.b16 %v2778
        %v3998 = vunpack.c.h.b16 %v2778
        %v3999 = vunpack.c.l.b16 %v2779
        %v4000 = vunpack.c.h.b16 %v2779
        %v4001 = vunpack.c.l.b16 %v2780
        %v4002 = vunpack.c.h.b16 %v2780
        %v4003 = vunpack.c.l.b16 %v2781
        %v4004 = vunpack.c.h.b16 %v2781
        %v4005 = vunpack.c.l.b16 %v2782
        %v4006 = vunpack.c.h.b16 %v2782
        %v4007 = vunpack.c.l.b16 %v2783
        %v4008 = vunpack.c.h.b16 %v2783
        %v4009 = vunpack.c.l.b16 %v2784
        %v4010 = vunpack.c.h.b16 %v2784
        %v4011 = vunpack.c.l.b16 %v2785
        %v4012 = vunpack.c.h.b16 %v2785
        %v4013 = vunpack.c.l.b16 %v2786
        %v4014 = vunpack.c.h.b16 %v2786
        %v4015 = vunpack.c.l.b16 %v2787
        %v4016 = vunpack.c.h.b16 %v2787
        %v4017 = vunpack.c.l.b16 %v2788
        %v4018 = vunpack.c.h.b16 %v2788
        %v4019 = vunpack.c.l.b16 %v2789
        %v4020 = vunpack.c.h.b16 %v2789
        %v4021 = vunpack.c.l.b16 %v2790
        %v4022 = vunpack.c.h.b16 %v2790
        %v4023 = vunpack.c.l.b16 %v2791
        %v4024 = vunpack.c.h.b16 %v2791
        %v4025 = vunpack.c.l.b16 %v2792
        %v4026 = vunpack.c.h.b16 %v2792
        %v4027 = vunpack.c.l.b16 %v2793
        %v4028 = vunpack.c.h.b16 %v2793
        %v4029 = vunpack.c.l.b16 %v2794
        %v4030 = vunpack.c.h.b16 %v2794
        %v4031 = vunpack.c.l.b16 %v2795
        %v4032 = vunpack.c.h.b16 %v2795
        %v4033 = vunpack.c.l.b16 %v2796
        %v4034 = vunpack.c.h.b16 %v2796
        %v4035 = vunpack.c.l.b16 %v2797
        %v4036 = vunpack.c.h.b16 %v2797
        %v4037 = vunpack.c.l.b16 %v2798
        %v4038 = vunpack.c.h.b16 %v2798
        %v4039 = vunpack.c.l.b16 %v2799
        %v4040 = vunpack.c.h.b16 %v2799
        %v4041 = vunpack.c.l.b16 %v2800
        %v4042 = vunpack.c.h.b16 %v2800
        %v4043 = vunpack.c.l.b16 %v2801
        %v4044 = vunpack.c.h.b16 %v2801
        %v4045 = vunpack.c.l.b16 %v2802
        %v4046 = vunpack.c.h.b16 %v2802
        %v4047 = vunpack.c.l.b16 %v2803
        %v4048 = vunpack.c.h.b16 %v2803
        %v4049 = vunpack.c.l.b16 %v2804
        %v4050 = vunpack.c.h.b16 %v2804
        %v4051 = vunpack.c.l.b16 %v2805
        %v4052 = vunpack.c.h.b16 %v2805
        %v4053 = vunpack.c.l.b16 %v2806
        %v4054 = vunpack.c.h.b16 %v2806
        %v4055 = vunpack.c.l.b16 %v2807
        %v4056 = vunpack.c.h.b16 %v2807
        %v4057 = vunpack.c.l.b16 %v2808
        %v4058 = vunpack.c.h.b16 %v2808
        %v4059 = vunpack.c.l.b16 %v2809
        %v4060 = vunpack.c.h.b16 %v2809
        %v4061 = vunpack.c.l.b16 %v2810
        %v4062 = vunpack.c.h.b16 %v2810
        %v4063 = vunpack.c.l.b16 %v2811
        %v4064 = vunpack.c.h.b16 %v2811
        %v4065 = vunpack.c.l.b16 %v2812
        %v4066 = vunpack.c.h.b16 %v2812
        %v4067 = vunpack.c.l.b16 %v2813
        %v4068 = vunpack.c.h.b16 %v2813
        %v4069 = vunpack.c.l.b16 %v2814
        %v4070 = vunpack.c.h.b16 %v2814
        %v4071 = vunpack.c.l.b16 %v2815
        %v4072 = vunpack.c.h.b16 %v2815
        %v4073 = vunpack.c.l.b16 %v2816
        %v4074 = vunpack.c.h.b16 %v2816
        %v4075 = vunpack.c.l.b16 %v2817
        %v4076 = vunpack.c.h.b16 %v2817
        %v4077 = vunpack.c.l.b16 %v2818
        %v4078 = vunpack.c.h.b16 %v2818
        %v4079 = vunpack.c.l.b16 %v2819
        %v4080 = vunpack.c.h.b16 %v2819
        %v4081 = vunpack.c.l.b16 %v2820
        %v4082 = vunpack.c.h.b16 %v2820
        %v4083 = vunpack.c.l.b16 %v2821
        %v4084 = vunpack.c.h.b16 %v2821
        %v4085 = vunpack.c.l.b16 %v2822
        %v4086 = vunpack.c.h.b16 %v2822
        %v4087 = vunpack.c.l.b16 %v2823
        %v4088 = vunpack.c.h.b16 %v2823
        %v4089 = vunpack.c.l.b16 %v2824
        %v4090 = vunpack.c.h.b16 %v2824
        %v4091 = vunpack.c.l.b16 %v2825
        %v4092 = vunpack.c.h.b16 %v2825
        %v4093 = vunpack.c.l.b16 %v2826
        %v4094 = vunpack.c.h.b16 %v2826
        %v4095 = vunpack.c.l.b16 %v2827
        %v4096 = vunpack.c.h.b16 %v2827
        %v4097 = vunpack.c.l.b16 %v2828
        %v4098 = vunpack.c.h.b16 %v2828
        %v4099 = vunpack.c.l.b16 %v2829
        %v4100 = vunpack.c.h.b16 %v2829
        %v4101 = vunpack.c.l.b16 %v2830
        %v4102 = vunpack.c.h.b16 %v2830
        %v4103 = vunpack.c.l.b16 %v2831
        %v4104 = vunpack.c.h.b16 %v2831
        %v4105 = vunpack.c.l.b16 %v2832
        %v4106 = vunpack.c.h.b16 %v2832
        %v4107 = vunpack.c.l.b16 %v2833
        %v4108 = vunpack.c.h.b16 %v2833
        %v4109 = vunpack.c.l.b16 %v2834
        %v4110 = vunpack.c.h.b16 %v2834
        %v4111 = vunpack.c.l.b16 %v2835
        %v4112 = vunpack.c.h.b16 %v2835
        %v4113 = vunpack.c.l.b16 %v2836
        %v4114 = vunpack.c.h.b16 %v2836
        %v4115 = vunpack.c.l.b16 %v2837
        %v4116 = vunpack.c.h.b16 %v2837
        %v4117 = vunpack.c.l.b16 %v2838
        %v4118 = vunpack.c.h.b16 %v2838
        %v4119 = vunpack.c.l.b16 %v2839
        %v4120 = vunpack.c.h.b16 %v2839
        %v4121 = vunpack.c.l.b16 %v2840
        %v4122 = vunpack.c.h.b16 %v2840
        %v4123 = vunpack.c.l.b16 %v2841
        %v4124 = vunpack.c.h.b16 %v2841
        %v4125 = vunpack.c.l.b16 %v2842
        %v4126 = vunpack.c.h.b16 %v2842
        %v4127 = vunpack.c.l.b16 %v2843
        %v4128 = vunpack.c.h.b16 %v2843
        %v4129 = vunpack.c.l.b16 %v2844
        %v4130 = vunpack.c.h.b16 %v2844
        %v4131 = vunpack.c.l.b16 %v2845
        %v4132 = vunpack.c.h.b16 %v2845
        %v4133 = vunpack.c.l.b16 %v2846
        %v4134 = vunpack.c.h.b16 %v2846
        %v4135 = vunpack.c.l.b16 %v2847
        %v4136 = vunpack.c.h.b16 %v2847
        %v4137 = vunpack.c.l.b16 %v2848
        %v4138 = vunpack.c.h.b16 %v2848
        %v4139 = vunpack.c.l.b16 %v2849
        %v4140 = vunpack.c.h.b16 %v2849
        %v4141 = vunpack.c.l.b16 %v2850
        %v4142 = vunpack.c.h.b16 %v2850
        %v4143 = vunpack.c.l.b16 %v2851
        %v4144 = vunpack.c.h.b16 %v2851
        %v4145 = vunpack.c.l.b16 %v2852
        %v4146 = vunpack.c.h.b16 %v2852
        %v4147 = vunpack.c.l.b16 %v2853
        %v4148 = vunpack.c.h.b16 %v2853
        %v4149 = vunpack.c.l.b16 %v2854
        %v4150 = vunpack.c.h.b16 %v2854
        %v4151 = vunpack.c.l.b16 %v2855
        %v4152 = vunpack.c.h.b16 %v2855
        %v4153 = vunpack.c.l.b16 %v2856
        %v4154 = vunpack.c.h.b16 %v2856
        %v4155 = vunpack.c.l.b16 %v2857
        %v4156 = vunpack.c.h.b16 %v2857
        %v4157 = vunpack.c.l.b16 %v2858
        %v4158 = vunpack.c.h.b16 %v2858
        %v4159 = vunpack.c.l.b16 %v2859
        %v4160 = vunpack.c.h.b16 %v2859
        %v4161 = vunpack.c.l.b16 %v2860
        %v4162 = vunpack.c.h.b16 %v2860
        %v4163 = vunpack.c.l.b16 %v2861
        %v4164 = vunpack.c.h.b16 %v2861
        %v4165 = vunpack.c.l.b16 %v2862
        %v4166 = vunpack.c.h.b16 %v2862
        %v4167 = vunpack.c.l.b16 %v2863
        %v4168 = vunpack.c.h.b16 %v2863
        %v4169 = vunpack.c.l.b16 %v2864
        %v4170 = vunpack.c.h.b16 %v2864
        %v4171 = vunpack.c.l.b16 %v2865
        %v4172 = vunpack.c.h.b16 %v2865
        %v4173 = vunpack.c.l.b16 %v2866
        %v4174 = vunpack.c.h.b16 %v2866
        %v4175 = vunpack.c.l.b16 %v2867
        %v4176 = vunpack.c.h.b16 %v2867
        %v4177 = vunpack.c.l.b16 %v2868
        %v4178 = vunpack.c.h.b16 %v2868
        %v4179 = vunpack.c.l.b16 %v2869
        %v4180 = vunpack.c.h.b16 %v2869
        %v4181 = vunpack.c.l.b16 %v2870
        %v4182 = vunpack.c.h.b16 %v2870
        %v4183 = vunpack.c.l.b16 %v2871
        %v4184 = vunpack.c.h.b16 %v2871
        %v4185 = vunpack.c.l.b16 %v2872
        %v4186 = vunpack.c.h.b16 %v2872
        %v4187 = vunpack.c.l.b16 %v2873
        %v4188 = vunpack.c.h.b16 %v2873
        %v4189 = vunpack.c.l.b16 %v2874
        %v4190 = vunpack.c.h.b16 %v2874
        %v4191 = vunpack.c.l.b16 %v2875
        %v4192 = vunpack.c.h.b16 %v2875
        %v4193 = vunpack.c.l.b16 %v2876
        %v4194 = vunpack.c.h.b16 %v2876
        %v4195 = vunpack.c.l.b16 %v2877
        %v4196 = vunpack.c.h.b16 %v2877
        %v4197 = vunpack.c.l.b16 %v2878
        %v4198 = vunpack.c.h.b16 %v2878
        %v4199 = vunpack.c.l.b16 %v2879
        %v4200 = vunpack.c.h.b16 %v2879
        %v4201 = vunpack.c.l.b16 %v2880
        %v4202 = vunpack.c.h.b16 %v2880
        %v4203 = vunpack.c.l.b16 %v2881
        %v4204 = vunpack.c.h.b16 %v2881
        %v4205 = vunpack.c.l.b16 %v2882
        %v4206 = vunpack.c.h.b16 %v2882
        %v4207 = vunpack.c.l.b16 %v2883
        %v4208 = vunpack.c.h.b16 %v2883
        %v4209 = vunpack.c.l.b16 %v2884
        %v4210 = vunpack.c.h.b16 %v2884
        %v4211 = vunpack.c.l.b16 %v2885
        %v4212 = vunpack.c.h.b16 %v2885
        %v4213 = vunpack.c.l.b16 %v2886
        %v4214 = vunpack.c.h.b16 %v2886
        %v4215 = vunpack.c.l.b16 %v2887
        %v4216 = vunpack.c.h.b16 %v2887
        %v4217 = vunpack.c.l.b16 %v2888
        %v4218 = vunpack.c.h.b16 %v2888
        %v4219 = vunpack.c.l.b16 %v2889
        %v4220 = vunpack.c.h.b16 %v2889
        %v4221 = vunpack.c.l.b16 %v2890
        %v4222 = vunpack.c.h.b16 %v2890
        %v4223 = vunpack.c.l.b16 %v2891
        %v4224 = vunpack.c.h.b16 %v2891
        %v4225 = vunpack.c.l.b16 %v2892
        %v4226 = vunpack.c.h.b16 %v2892
        %v4227 = vunpack.c.l.b16 %v2893
        %v4228 = vunpack.c.h.b16 %v2893
        %v4229 = vunpack.c.l.b16 %v2894
        %v4230 = vunpack.c.h.b16 %v2894
        %v4231 = vunpack.c.l.b16 %v2895
        %v4232 = vunpack.c.h.b16 %v2895
        %v4233 = vunpack.c.l.b16 %v2896
        %v4234 = vunpack.c.h.b16 %v2896
        %v4235 = vunpack.c.l.b16 %v2897
        %v4236 = vunpack.c.h.b16 %v2897
        %v4237 = vunpack.c.l.b16 %v2898
        %v4238 = vunpack.c.h.b16 %v2898
        %v4239 = vunpack.c.l.b16 %v2899
        %v4240 = vunpack.c.h.b16 %v2899
        %v4241 = vunpack.c.l.b16 %v2900
        %v4242 = vunpack.c.h.b16 %v2900
        %v4243 = vunpack.c.l.b16 %v2901
        %v4244 = vunpack.c.h.b16 %v2901
        %v4245 = vunpack.c.l.b16 %v2902
        %v4246 = vunpack.c.h.b16 %v2902
        %v4247 = vunpack.c.l.b16 %v2903
        %v4248 = vunpack.c.h.b16 %v2903
        %v4249 = vunpack.c.l.b16 %v2904
        %v4250 = vunpack.c.h.b16 %v2904
        %v4251 = vunpack.c.l.b16 %v2905
        %v4252 = vunpack.c.h.b16 %v2905
        %v4253 = vunpack.c.l.b16 %v2906
        %v4254 = vunpack.c.h.b16 %v2906
        %v4255 = vunpack.c.l.b16 %v2907
        %v4256 = vunpack.c.h.b16 %v2907
        %v4257 = vunpack.c.l.b16 %v2908
        %v4258 = vunpack.c.h.b16 %v2908
        %v4259 = vunpack.c.l.b16 %v2909
        %v4260 = vunpack.c.h.b16 %v2909
        %v4261 = vunpack.c.l.b16 %v2910
        %v4262 = vunpack.c.h.b16 %v2910
        %v4263 = vunpack.c.l.b16 %v2911
        %v4264 = vunpack.c.h.b16 %v2911
        %v4265 = vunpack.c.l.b16 %v2912
        %v4266 = vunpack.c.h.b16 %v2912
        %v4267 = vunpack.c.l.b16 %v2913
        %v4268 = vunpack.c.h.b16 %v2913
        %v4269 = vunpack.c.l.b16 %v2914
        %v4270 = vunpack.c.h.b16 %v2914
        %v4271 = vunpack.c.l.b16 %v2915
        %v4272 = vunpack.c.h.b16 %v2915
        %v4273 = vunpack.c.l.b16 %v2916
        %v4274 = vunpack.c.h.b16 %v2916
        %v4275 = vunpack.c.l.b16 %v2917
        %v4276 = vunpack.c.h.b16 %v2917
        %v4277 = vunpack.c.l.b16 %v2918
        %v4278 = vunpack.c.h.b16 %v2918
        %v4279 = vunpack.c.l.b16 %v2919
        %v4280 = vunpack.c.h.b16 %v2919
        %v4281 = vunpack.c.l.b16 %v2920
        %v4282 = vunpack.c.h.b16 %v2920
        %v4283 = vunpack.c.l.b16 %v2921
        %v4284 = vunpack.c.h.b16 %v2921
        %v4285 = vunpack.c.l.b16 %v2922
        %v4286 = vunpack.c.h.b16 %v2922
        %v4287 = vunpack.c.l.b16 %v2923
        %v4288 = vunpack.c.h.b16 %v2923
        %v4289 = vunpack.c.l.b16 %v2924
        %v4290 = vunpack.c.h.b16 %v2924
        %v4291 = vunpack.c.l.b16 %v2925
        %v4292 = vunpack.c.h.b16 %v2925
        %v4293 = vunpack.c.l.b16 %v2926
        %v4294 = vunpack.c.h.b16 %v2926
        %v4295 = vunpack.c.l.b16 %v2927
        %v4296 = vunpack.c.h.b16 %v2927
        %v4297 = vunpack.c.l.b16 %v2928
        %v4298 = vunpack.c.h.b16 %v2928
        %v4299 = vunpack.c.l.b16 %v2929
        %v4300 = vunpack.c.h.b16 %v2929
        %v4301 = vunpack.c.l.b16 %v2930
        %v4302 = vunpack.c.h.b16 %v2930
        %v4303 = vunpack.c.l.b16 %v2931
        %v4304 = vunpack.c.h.b16 %v2931
        %v4305 = vunpack.c.l.b16 %v2932
        %v4306 = vunpack.c.h.b16 %v2932
        %v4307 = vunpack.c.l.b16 %v2933
        %v4308 = vunpack.c.h.b16 %v2933
        %v4309 = vunpack.c.l.b16 %v2934
        %v4310 = vunpack.c.h.b16 %v2934
        %v4311 = vunpack.c.l.b16 %v2935
        %v4312 = vunpack.c.h.b16 %v2935
        %v4313 = vunpack.c.l.b16 %v2936
        %v4314 = vunpack.c.h.b16 %v2936
        %v4315 = vunpack.c.l.b16 %v2937
        %v4316 = vunpack.c.h.b16 %v2937
        %v4317 = vunpack.c.l.b16 %v2938
        %v4318 = vunpack.c.h.b16 %v2938
        %v4319 = vunpack.c.l.b16 %v2939
        %v4320 = vunpack.c.h.b16 %v2939
        %v4321 = vunpack.c.l.b16 %v2940
        %v4322 = vunpack.c.h.b16 %v2940
        %v4323 = vunpack.c.l.b16 %v2941
        %v4324 = vunpack.c.h.b16 %v2941
        %v4325 = vunpack.c.l.b16 %v2942
        %v4326 = vunpack.c.h.b16 %v2942
        %v4327 = vunpack.c.l.b16 %v2943
        %v4328 = vunpack.c.h.b16 %v2943
        %v4329 = vunpack.c.l.b16 %v2944
        %v4330 = vunpack.c.h.b16 %v2944
        %v4331 = vunpack.c.l.b16 %v2945
        %v4332 = vunpack.c.h.b16 %v2945
        %v4333 = vunpack.c.l.b16 %v2946
        %v4334 = vunpack.c.h.b16 %v2946
        %v4335 = vunpack.c.l.b16 %v2947
        %v4336 = vunpack.c.h.b16 %v2947
        %v4337 = vunpack.c.l.b16 %v2948
        %v4338 = vunpack.c.h.b16 %v2948
        %v4339 = vunpack.c.l.b16 %v2949
        %v4340 = vunpack.c.h.b16 %v2949
        %v4341 = vunpack.c.l.b16 %v2950
        %v4342 = vunpack.c.h.b16 %v2950
        %v4343 = vunpack.c.l.b16 %v2951
        %v4344 = vunpack.c.h.b16 %v2951
        %v4345 = vunpack.c.l.b16 %v2952
        %v4346 = vunpack.c.h.b16 %v2952
        %v4347 = vunpack.c.l.b16 %v2953
        %v4348 = vunpack.c.h.b16 %v2953
        %v4349 = vunpack.c.l.b16 %v2954
        %v4350 = vunpack.c.h.b16 %v2954
        %v4351 = vunpack.c.l.b16 %v2955
        %v4352 = vunpack.c.h.b16 %v2955
        %v4353 = vunpack.c.l.b16 %v2956
        %v4354 = vunpack.c.h.b16 %v2956
        %v4355 = vunpack.c.l.b16 %v2957
        %v4356 = vunpack.c.h.b16 %v2957
        %v4357 = vunpack.c.l.b16 %v2958
        %v4358 = vunpack.c.h.b16 %v2958
        %v4359 = vunpack.c.l.b16 %v2959
        %v4360 = vunpack.c.h.b16 %v2959
        %v4361 = vunpack.c.l.b16 %v2960
        %v4362 = vunpack.c.h.b16 %v2960
        %v4363 = vunpack.c.l.b16 %v2961
        %v4364 = vunpack.c.h.b16 %v2961
        %v4365 = vunpack.c.l.b16 %v2962
        %v4366 = vunpack.c.h.b16 %v2962
        %v4367 = vunpack.c.l.b16 %v2963
        %v4368 = vunpack.c.h.b16 %v2963
        %v4369 = vunpack.c.l.b16 %v2964
        %v4370 = vunpack.c.h.b16 %v2964
        %v4371 = vunpack.c.l.b16 %v2965
        %v4372 = vunpack.c.h.b16 %v2965
        %v4373 = vunpack.c.l.b16 %v2966
        %v4374 = vunpack.c.h.b16 %v2966
        %v4375 = vunpack.c.l.b16 %v2967
        %v4376 = vunpack.c.h.b16 %v2967
        %v4377 = vunpack.c.l.b16 %v2968
        %v4378 = vunpack.c.h.b16 %v2968
        %v4379 = vunpack.c.l.b16 %v2969
        %v4380 = vunpack.c.h.b16 %v2969
        %v4381 = vunpack.c.l.b16 %v2970
        %v4382 = vunpack.c.h.b16 %v2970
        %v4383 = vunpack.c.l.b16 %v2971
        %v4384 = vunpack.c.h.b16 %v2971
        %v4385 = vunpack.c.l.b16 %v2972
        %v4386 = vunpack.c.h.b16 %v2972
        %v4387 = vunpack.c.l.b16 %v2973
        %v4388 = vunpack.c.h.b16 %v2973
        %v4389 = vunpack.c.l.b16 %v2974
        %v4390 = vunpack.c.h.b16 %v2974
        %v4391 = vunpack.c.l.b16 %v2975
        %v4392 = vunpack.c.h.b16 %v2975
        %v4393 = vunpack.c.l.b16 %v2976
        %v4394 = vunpack.c.h.b16 %v2976
        %v4395 = vunpack.c.l.b16 %v2977
        %v4396 = vunpack.c.h.b16 %v2977
        %v4397 = vunpack.c.l.b16 %v2978
        %v4398 = vunpack.c.h.b16 %v2978
        %v4399 = vunpack.c.l.b16 %v2979
        %v4400 = vunpack.c.h.b16 %v2979
        %v4401 = vunpack.c.l.b16 %v2980
        %v4402 = vunpack.c.h.b16 %v2980
        %v4403 = vunpack.c.l.b16 %v2981
        %v4404 = vunpack.c.h.b16 %v2981
        %v4405 = vunpack.c.l.b16 %v2982
        %v4406 = vunpack.c.h.b16 %v2982
        %v4407 = vunpack.c.l.b16 %v2983
        %v4408 = vunpack.c.h.b16 %v2983
        %v4409 = vunpack.c.l.b16 %v2984
        %v4410 = vunpack.c.h.b16 %v2984
        %v4411 = vunpack.c.l.b16 %v2985
        %v4412 = vunpack.c.h.b16 %v2985
        %v4413 = vunpack.c.l.b16 %v2986
        %v4414 = vunpack.c.h.b16 %v2986
        %v4415 = vunpack.c.l.b16 %v2987
        %v4416 = vunpack.c.h.b16 %v2987
        %v4417 = vunpack.c.l.b16 %v2988
        %v4418 = vunpack.c.h.b16 %v2988
        %v4419 = vunpack.c.l.b16 %v2989
        %v4420 = vunpack.c.h.b16 %v2989
        %v4421 = vunpack.c.l.b16 %v2990
        %v4422 = vunpack.c.h.b16 %v2990
        %v4423 = vunpack.c.l.b16 %v2991
        %v4424 = vunpack.c.h.b16 %v2991
        %v4425 = vunpack.c.l.b16 %v2992
        %v4426 = vunpack.c.h.b16 %v2992
        %v4427 = vunpack.c.l.b16 %v2993
        %v4428 = vunpack.c.h.b16 %v2993
        %v4429 = vunpack.c.l.b16 %v2994
        %v4430 = vunpack.c.h.b16 %v2994
        %v4431 = vunpack.c.l.b16 %v2995
        %v4432 = vunpack.c.h.b16 %v2995
        %v4433 = vunpack.c.l.b16 %v2996
        %v4434 = vunpack.c.h.b16 %v2996
        %v4435 = vunpack.c.l.b16 %v2997
        %v4436 = vunpack.c.h.b16 %v2997
        %v4437 = vunpack.c.l.b16 %v2998
        %v4438 = vunpack.c.h.b16 %v2998
        %v4439 = vunpack.c.l.b16 %v2999
        %v4440 = vunpack.c.h.b16 %v2999
        %v4441 = vunpack.c.l.b16 %v3000
        %v4442 = vunpack.c.h.b16 %v3000
        %v4443 = vunpack.c.l.b16 %v3001
        %v4444 = vunpack.c.h.b16 %v3001
        %v4445 = vunpack.c.l.b16 %v3002
        %v4446 = vunpack.c.h.b16 %v3002
        %v4447 = vunpack.c.l.b16 %v3003
        %v4448 = vunpack.c.h.b16 %v3003
        %v4449 = vunpack.c.l.b16 %v3004
        %v4450 = vunpack.c.h.b16 %v3004
        %v4451 = vunpack.c.l.b16 %v3005
        %v4452 = vunpack.c.h.b16 %v3005
        %v4453 = vunpack.c.l.b16 %v3006
        %v4454 = vunpack.c.h.b16 %v3006
        %v4455 = vunpack.c.l.b16 %v3007
        %v4456 = vunpack.c.h.b16 %v3007
        %v4457 = vunpack.c.l.b16 %v3008
        %v4458 = vunpack.c.h.b16 %v3008
        %v4459 = vunpack.c.l.b16 %v3009
        %v4460 = vunpack.c.h.b16 %v3009
        %v4461 = vunpack.c.l.b16 %v3010
        %v4462 = vunpack.c.h.b16 %v3010
        %v4463 = vunpack.c.l.b16 %v3011
        %v4464 = vunpack.c.h.b16 %v3011
        %v4465 = vunpack.c.l.b16 %v3012
        %v4466 = vunpack.c.h.b16 %v3012
        %v4467 = vunpack.c.l.b16 %v3013
        %v4468 = vunpack.c.h.b16 %v3013
        %v4469 = vunpack.c.l.b16 %v3014
        %v4470 = vunpack.c.h.b16 %v3014
        %v4471 = vunpack.c.l.b16 %v3015
        %v4472 = vunpack.c.h.b16 %v3015
        %v4473 = vunpack.c.l.b16 %v3016
        %v4474 = vunpack.c.h.b16 %v3016
        %v4475 = vunpack.c.l.b16 %v3017
        %v4476 = vunpack.c.h.b16 %v3017
        %v4477 = vunpack.c.l.b16 %v3018
        %v4478 = vunpack.c.h.b16 %v3018
        %v4479 = vunpack.c.l.b16 %v3019
        %v4480 = vunpack.c.h.b16 %v3019
        %v4481 = vunpack.c.l.b16 %v3020
        %v4482 = vunpack.c.h.b16 %v3020
        %v4483 = vunpack.c.l.b16 %v3021
        %v4484 = vunpack.c.h.b16 %v3021
        %v4485 = vunpack.c.l.b16 %v3022
        %v4486 = vunpack.c.h.b16 %v3022
        %v4487 = vunpack.c.l.b16 %v3023
        %v4488 = vunpack.c.h.b16 %v3023
        %v4489 = vunpack.c.l.b16 %v3024
        %v4490 = vunpack.c.h.b16 %v3024
        %v4491 = vunpack.c.l.b16 %v3025
        %v4492 = vunpack.c.h.b16 %v3025
        %v4493 = vunpack.c.l.b16 %v3026
        %v4494 = vunpack.c.h.b16 %v3026
        %v4495 = vunpack.c.l.b16 %v3027
        %v4496 = vunpack.c.h.b16 %v3027
        %v4497 = vunpack.c.l.b16 %v3028
        %v4498 = vunpack.c.h.b16 %v3028
        %v4499 = vunpack.c.l.b16 %v3029
        %v4500 = vunpack.c.h.b16 %v3029
        %v4501 = vunpack.c.l.b16 %v3030
        %v4502 = vunpack.c.h.b16 %v3030
        %v4503 = vunpack.c.l.b16 %v3031
        %v4504 = vunpack.c.h.b16 %v3031
        %v4505 = vunpack.c.l.b16 %v3032
        %v4506 = vunpack.c.h.b16 %v3032
        %v4507 = vunpack.c.l.b16 %v3033
        %v4508 = vunpack.c.h.b16 %v3033
        %v4509 = vunpack.c.l.b16 %v3034
        %v4510 = vunpack.c.h.b16 %v3034
        %v4511 = vunpack.c.l.b16 %v3035
        %v4512 = vunpack.c.h.b16 %v3035
        %v4513 = vunpack.c.l.b16 %v3036
        %v4514 = vunpack.c.h.b16 %v3036
        %v4515 = vunpack.c.l.b16 %v3037
        %v4516 = vunpack.c.h.b16 %v3037
        %v4517 = vunpack.c.l.b16 %v3038
        %v4518 = vunpack.c.h.b16 %v3038
        %v4519 = vunpack.c.l.b16 %v3039
        %v4520 = vunpack.c.h.b16 %v3039
        %v4521 = vunpack.c.l.b16 %v3040
        %v4522 = vunpack.c.h.b16 %v3040
        %v4523 = vunpack.c.l.b16 %v3041
        %v4524 = vunpack.c.h.b16 %v3041
        %v4525 = vunpack.c.l.b16 %v3042
        %v4526 = vunpack.c.h.b16 %v3042
        %v4527 = vunpack.c.l.b16 %v3043
        %v4528 = vunpack.c.h.b16 %v3043
        %v4529 = vunpack.c.l.b16 %v3044
        %v4530 = vunpack.c.h.b16 %v3044
        %v4531 = vunpack.c.l.b16 %v3045
        %v4532 = vunpack.c.h.b16 %v3045
        %v4533 = vunpack.c.l.b16 %v3046
        %v4534 = vunpack.c.h.b16 %v3046
        %v4535 = vunpack.c.l.b16 %v3047
        %v4536 = vunpack.c.h.b16 %v3047
        %v4537 = vunpack.c.l.b16 %v3048
        %v4538 = vunpack.c.h.b16 %v3048
        %v4539 = vunpack.c.l.b16 %v3049
        %v4540 = vunpack.c.h.b16 %v3049
        %v4541 = vunpack.c.l.b16 %v3050
        %v4542 = vunpack.c.h.b16 %v3050
        %v4543 = vunpack.c.l.b16 %v3051
        %v4544 = vunpack.c.h.b16 %v3051
        %v4545 = vunpack.c.l.b16 %v3052
        %v4546 = vunpack.c.h.b16 %v3052
        %v4547 = vunpack.c.l.b16 %v3053
        %v4548 = vunpack.c.h.b16 %v3053
        %v4549 = vunpack.c.l.b16 %v3054
        %v4550 = vunpack.c.h.b16 %v3054
        %v4551 = vunpack.c.l.b16 %v3055
        %v4552 = vunpack.c.h.b16 %v3055
        %v4553 = vunpack.c.l.b16 %v3056
        %v4554 = vunpack.c.h.b16 %v3056
        %v4555 = vunpack.c.l.b16 %v3057
        %v4556 = vunpack.c.h.b16 %v3057
        %v4557 = vunpack.c.l.b16 %v3058
        %v4558 = vunpack.c.h.b16 %v3058
        %v4559 = vunpack.c.l.b16 %v3059
        %v4560 = vunpack.c.h.b16 %v3059
        %v4561 = vunpack.c.l.b16 %v3060
        %v4562 = vunpack.c.h.b16 %v3060
        %v4563 = vunpack.c.l.b16 %v3061
        %v4564 = vunpack.c.h.b16 %v3061
        %v4565 = vunpack.c.l.b16 %v3062
        %v4566 = vunpack.c.h.b16 %v3062
        %v4567 = vunpack.c.l.b16 %v3063
        %v4568 = vunpack.c.h.b16 %v3063
        %v4569 = vunpack.c.l.b16 %v3064
        %v4570 = vunpack.c.h.b16 %v3064
        %v4571 = vunpack.c.l.b16 %v3065
        %v4572 = vunpack.c.h.b16 %v3065
        %v4573 = vunpack.c.l.b16 %v3066
        %v4574 = vunpack.c.h.b16 %v3066
        %v4575 = vunpack.c.l.b16 %v3067
        %v4576 = vunpack.c.h.b16 %v3067
        %v4577 = vunpack.c.l.b16 %v3068
        %v4578 = vunpack.c.h.b16 %v3068
        %v4579 = vunpack.c.l.b16 %v3069
        %v4580 = vunpack.c.h.b16 %v3069
        %v4581 = vunpack.c.l.b16 %v3070
        %v4582 = vunpack.c.h.b16 %v3070
        %v4583 = vunpack.c.l.b16 %v3071
        %v4584 = vunpack.c.h.b16 %v3071
        %v4585 = vunpack.c.l.b16 %v3072
        %v4586 = vunpack.c.h.b16 %v3072
        %v4587 = vunpack.c.l.b16 %v3073
        %v4588 = vunpack.c.h.b16 %v3073
        %v4589 = vunpack.c.l.b16 %v3074
        %v4590 = vunpack.c.h.b16 %v3074
        %v4591 = vunpack.c.l.b16 %v3075
        %v4592 = vunpack.c.h.b16 %v3075
        %v4593 = vunpack.c.l.b16 %v3076
        %v4594 = vunpack.c.h.b16 %v3076
        %v4595 = vunpack.c.l.b16 %v3077
        %v4596 = vunpack.c.h.b16 %v3077
        %v4597 = vunpack.c.l.b16 %v3078
        %v4598 = vunpack.c.h.b16 %v3078
        %v4599 = vunpack.c.l.b16 %v3079
        %v4600 = vunpack.c.h.b16 %v3079
        %v4601 = vunpack.c.l.b16 %v3080
        %v4602 = vunpack.c.h.b16 %v3080
        %v4603 = vunpack.c.l.b16 %v3081
        %v4604 = vunpack.c.h.b16 %v3081
        %v4605 = vunpack.c.l.b16 %v3082
        %v4606 = vunpack.c.h.b16 %v3082
        %v4607 = vunpack.c.l.b16 %v3083
        %v4608 = vunpack.c.h.b16 %v3083
        %v4609 = vunpack.c.l.b16 %v3084
        %v4610 = vunpack.c.h.b16 %v3084
        %v4611 = vunpack.c.l.b16 %v3085
        %v4612 = vunpack.c.h.b16 %v3085
        %v4613 = vunpack.c.l.b16 %v3086
        %v4614 = vunpack.c.h.b16 %v3086
        %v4615 = vunpack.c.l.b16 %v3087
        %v4616 = vunpack.c.h.b16 %v3087
        %v4617 = vunpack.c.l.b16 %v3088
        %v4618 = vunpack.c.h.b16 %v3088
        %v4619 = vunpack.c.l.b16 %v3089
        %v4620 = vunpack.c.h.b16 %v3089
        %v4621 = vunpack.c.l.b16 %v3090
        %v4622 = vunpack.c.h.b16 %v3090
        %v4623 = vunpack.c.l.b16 %v3091
        %v4624 = vunpack.c.h.b16 %v3091
        %v4625 = vunpack.c.l.b16 %v3092
        %v4626 = vunpack.c.h.b16 %v3092
        %v4627 = vunpack.c.l.b16 %v3093
        %v4628 = vunpack.c.h.b16 %v3093
        %v4629 = vunpack.c.l.b16 %v3094
        %v4630 = vunpack.c.h.b16 %v3094
        %v4631 = vunpack.c.l.b16 %v3095
        %v4632 = vunpack.c.h.b16 %v3095
        %v4633 = vunpack.c.l.b16 %v3096
        %v4634 = vunpack.c.h.b16 %v3096
        %v4635 = vunpack.c.l.b16 %v3097
        %v4636 = vunpack.c.h.b16 %v3097
        %v4637 = vunpack.c.l.b16 %v3098
        %v4638 = vunpack.c.h.b16 %v3098
        %v4639 = vunpack.c.l.b16 %v3099
        %v4640 = vunpack.c.h.b16 %v3099
        %v4641 = vunpack.c.l.b16 %v3100
        %v4642 = vunpack.c.h.b16 %v3100
        %v4643 = vunpack.c.l.b16 %v3101
        %v4644 = vunpack.c.h.b16 %v3101
        %v4645 = vunpack.c.l.b16 %v3102
        %v4646 = vunpack.c.h.b16 %v3102
        %v4647 = vunpack.c.l.b16 %v3103
        %v4648 = vunpack.c.h.b16 %v3103
        %v4649 = vunpack.c.l.b16 %v3104
        %v4650 = vunpack.c.h.b16 %v3104
        %v4651 = vunpack.c.l.b16 %v3105
        %v4652 = vunpack.c.h.b16 %v3105
        %v4653 = vunpack.c.l.b16 %v3106
        %v4654 = vunpack.c.h.b16 %v3106
        %v4655 = vunpack.c.l.b16 %v3107
        %v4656 = vunpack.c.h.b16 %v3107
        %v4657 = vunpack.c.l.b16 %v3108
        %v4658 = vunpack.c.h.b16 %v3108
        %v4659 = vunpack.c.l.b16 %v3109
        %v4660 = vunpack.c.h.b16 %v3109
        %v4661 = vunpack.c.l.b16 %v3110
        %v4662 = vunpack.c.h.b16 %v3110
        %v4663 = vunpack.c.l.b16 %v3111
        %v4664 = vunpack.c.h.b16 %v3111
        %v4665 = vunpack.c.l.b16 %v3112
        %v4666 = vunpack.c.h.b16 %v3112
        %v4667 = vunpack.c.l.b16 %v3113
        %v4668 = vunpack.c.h.b16 %v3113
        %v4669 = vunpack.c.l.b16 %v3114
        %v4670 = vunpack.c.h.b16 %v3114
        %v4671 = vunpack.c.l.b16 %v3115
        %v4672 = vunpack.c.h.b16 %v3115
        %v4673 = vunpack.c.l.b16 %v3116
        %v4674 = vunpack.c.h.b16 %v3116
        %v4675 = vunpack.c.l.b16 %v3117
        %v4676 = vunpack.c.h.b16 %v3117
        %v4677 = vunpack.c.l.b16 %v3118
        %v4678 = vunpack.c.h.b16 %v3118
        %v4679 = vunpack.c.l.b16 %v3119
        %v4680 = vunpack.c.h.b16 %v3119
        %v4681 = vunpack.c.l.b16 %v3120
        %v4682 = vunpack.c.h.b16 %v3120
        %v4683 = vunpack.c.l.b16 %v3121
        %v4684 = vunpack.c.h.b16 %v3121
        %v4685 = vunpack.c.l.b16 %v3122
        %v4686 = vunpack.c.h.b16 %v3122
        %v4687 = vunpack.c.l.b16 %v3123
        %v4688 = vunpack.c.h.b16 %v3123
        %v4689 = vunpack.c.l.b16 %v3124
        %v4690 = vunpack.c.h.b16 %v3124
        %v4691 = vunpack.c.l.b16 %v3125
        %v4692 = vunpack.c.h.b16 %v3125
        %v4693 = vunpack.c.l.b16 %v3126
        %v4694 = vunpack.c.h.b16 %v3126
        %v4695 = vunpack.c.l.b16 %v3127
        %v4696 = vunpack.c.h.b16 %v3127
        %v4697 = vunpack.c.l.b16 %v3128
        %v4698 = vunpack.c.h.b16 %v3128
        %v4699 = vunpack.c.l.b16 %v3129
        %v4700 = vunpack.c.h.b16 %v3129
        %v4701 = vunpack.c.l.b16 %v3130
        %v4702 = vunpack.c.h.b16 %v3130
        %v4703 = vunpack.c.l.b16 %v3131
        %v4704 = vunpack.c.h.b16 %v3131
        %v4705 = vunpack.c.l.b16 %v3132
        %v4706 = vunpack.c.h.b16 %v3132
        %v4707 = vunpack.c.l.b16 %v3133
        %v4708 = vunpack.c.h.b16 %v3133
        %v4709 = vunpack.c.l.b16 %v3134
        %v4710 = vunpack.c.h.b16 %v3134
        %v4711 = vunpack.c.l.b16 %v3135
        %v4712 = vunpack.c.h.b16 %v3135
        %v4713 = vunpack.c.l.b16 %v3136
        %v4714 = vunpack.c.h.b16 %v3136
        %v4715 = vunpack.c.l.b16 %v3137
        %v4716 = vunpack.c.h.b16 %v3137
        %v4717 = vunpack.c.l.b16 %v3138
        %v4718 = vunpack.c.h.b16 %v3138
        %v4719 = vunpack.c.l.b16 %v3139
        %v4720 = vunpack.c.h.b16 %v3139
        %v4721 = vunpack.c.l.b16 %v3140
        %v4722 = vunpack.c.h.b16 %v3140
        %v4723 = vunpack.c.l.b16 %v3141
        %v4724 = vunpack.c.h.b16 %v3141
        %v4725 = vunpack.c.l.b16 %v3142
        %v4726 = vunpack.c.h.b16 %v3142
        %v4727 = vpack.c.b16 %v3717, %v3707
        %v4728 = vpack.c.b16 %v3718, %v3708
        %v4729 = vpack.c.b16 %v3719, %v3709
        %v4730 = vpack.c.b16 %v3720, %v3710
        %v4731 = vpack.c.b16 %v3721, %v3711
        %v4732 = vpack.c.b16 %v3722, %v3712
        %v4733 = vpack.c.b16 %v3723, %v3713
        %v4734 = vpack.c.b16 %v3724, %v3714
        %v4735 = vpack.c.b16 %v3725, %v3715
        %v4736 = vpack.c.b16 %v3726, %v3716
        %v4737 = vpack.c.b16 %v3737, %v3727
        %v4738 = vpack.c.b16 %v3738, %v3728
        %v4739 = vpack.c.b16 %v3739, %v3729
        %v4740 = vpack.c.b16 %v3740, %v3730
        %v4741 = vpack.c.b16 %v3741, %v3731
        %v4742 = vpack.c.b16 %v3742, %v3732
        %v4743 = vpack.c.b16 %v3743, %v3733
        %v4744 = vpack.c.b16 %v3744, %v3734
        %v4745 = vpack.c.b16 %v3745, %v3735
        %v4746 = vpack.c.b16 %v3746, %v3736
        %v4747 = vpack.c.b16 %v3757, %v3747
        %v4748 = vpack.c.b16 %v3758, %v3748
        %v4749 = vpack.c.b16 %v3759, %v3749
        %v4750 = vpack.c.b16 %v3760, %v3750
        %v4751 = vpack.c.b16 %v3761, %v3751
        %v4752 = vpack.c.b16 %v3762, %v3752
        %v4753 = vpack.c.b16 %v3763, %v3753
        %v4754 = vpack.c.b16 %v3764, %v3754
        %v4755 = vpack.c.b16 %v3765, %v3755
        %v4756 = vpack.c.b16 %v3766, %v3756
        %v4757 = vpack.c.b16 %v3777, %v3767
        %v4758 = vpack.c.b16 %v3778, %v3768
        %v4759 = vpack.c.b16 %v3779, %v3769
        %v4760 = vpack.c.b16 %v3780, %v3770
        %v4761 = vpack.c.b16 %v3781, %v3771
        %v4762 = vpack.c.b16 %v3782, %v3772
        %v4763 = vpack.c.b16 %v3783, %v3773
        %v4764 = vpack.c.b16 %v3784, %v3774
        %v4765 = vpack.c.b16 %v3785, %v3775
        %v4766 = vpack.c.b16 %v3786, %v3776
        %v4767 = vpack.c.b16 %v3797, %v3787
        %v4768 = vpack.c.b16 %v3798, %v3788
        %v4769 = vpack.c.b16 %v3799, %v3789
        %v4770 = vpack.c.b16 %v3800, %v3790
        %v4771 = vpack.c.b16 %v3801, %v3791
        %v4772 = vpack.c.b16 %v3802, %v3792
        %v4773 = vpack.c.b16 %v3803, %v3793
        %v4774 = vpack.c.b16 %v3804, %v3794
        %v4775 = vpack.c.b16 %v3805, %v3795
        %v4776 = vpack.c.b16 %v3806, %v3796
        %v4777 = vpack.c.b16 %v3817, %v3807
        %v4778 = vpack.c.b16 %v3818, %v3808
        %v4779 = vpack.c.b16 %v3819, %v3809
        %v4780 = vpack.c.b16 %v3820, %v3810
        %v4781 = vpack.c.b16 %v3821, %v3811
        %v4782 = vpack.c.b16 %v3822, %v3812
        %v4783 = vpack.c.b16 %v3823, %v3813
        %v4784 = vpack.c.b16 %v3824, %v3814
        %v4785 = vpack.c.b16 %v3825, %v3815
        %v4786 = vpack.c.b16 %v3826, %v3816
        %v4787 = vpack.c.b16 %v3837, %v3827
        %v4788 = vpack.c.b16 %v3838, %v3828
        %v4789 = vpack.c.b16 %v3839, %v3829
        %v4790 = vpack.c.b16 %v3840, %v3830
        %v4791 = vpack.c.b16 %v3841, %v3831
        %v4792 = vpack.c.b16 %v3842, %v3832
        %v4793 = vpack.c.b16 %v3843, %v3833
        %v4794 = vpack.c.b16 %v3844, %v3834
        %v4795 = vpack.c.b16 %v3845, %v3835
        %v4796 = vpack.c.b16 %v3846, %v3836
        %v4797 = vpack.c.b16 %v3857, %v3847
        %v4798 = vpack.c.b16 %v3858, %v3848
        %v4799 = vpack.c.b16 %v3859, %v3849
        %v4800 = vpack.c.b16 %v3860, %v3850
        %v4801 = vpack.c.b16 %v3861, %v3851
        %v4802 = vpack.c.b16 %v3862, %v3852
        %v4803 = vpack.c.b16 %v3863, %v3853
        %v4804 = vpack.c.b16 %v3864, %v3854
        %v4805 = vpack.c.b16 %v3865, %v3855
        %v4806 = vpack.c.b16 %v3866, %v3856
        %v4807 = vpack.c.b16 %v3877, %v3867
        %v4808 = vpack.c.b16 %v3878, %v3868
        %v4809 = vpack.c.b16 %v3879, %v3869
        %v4810 = vpack.c.b16 %v3880, %v3870
        %v4811 = vpack.c.b16 %v3881, %v3871
        %v4812 = vpack.c.b16 %v3882, %v3872
        %v4813 = vpack.c.b16 %v3883, %v3873
        %v4814 = vpack.c.b16 %v3884, %v3874
        %v4815 = vpack.c.b16 %v3885, %v3875
        %v4816 = vpack.c.b16 %v3886, %v3876
        %v4817 = vpack.c.b16 %v3897, %v3887
        %v4818 = vpack.c.b16 %v3898, %v3888
        %v4819 = vpack.c.b16 %v3899, %v3889
        %v4820 = vpack.c.b16 %v3900, %v3890
        %v4821 = vpack.c.b16 %v3901, %v3891
        %v4822 = vpack.c.b16 %v3902, %v3892
        %v4823 = vpack.c.b16 %v3903, %v3893
        %v4824 = vpack.c.b16 %v3904, %v3894
        %v4825 = vpack.c.b16 %v3905, %v3895
        %v4826 = vpack.c.b16 %v3906, %v3896
        %v4827 = vpack.c.b16 %v3917, %v3907
        %v4828 = vpack.c.b16 %v3918, %v3908
        %v4829 = vpack.c.b16 %v3919, %v3909
        %v4830 = vpack.c.b16 %v3920, %v3910
        %v4831 = vpack.c.b16 %v3921, %v3911
        %v4832 = vpack.c.b16 %v3922, %v3912
        %v4833 = vpack.c.b16 %v3923, %v3913
        %v4834 = vpack.c.b16 %v3924, %v3914
        %v4835 = vpack.c.b16 %v3925, %v3915
        %v4836 = vpack.c.b16 %v3926, %v3916
        %v4837 = vpack.c.b16 %v3937, %v3927
        %v4838 = vpack.c.b16 %v3938, %v3928
        %v4839 = vpack.c.b16 %v3939, %v3929
        %v4840 = vpack.c.b16 %v3940, %v3930
        %v4841 = vpack.c.b16 %v3941, %v3931
        %v4842 = vpack.c.b16 %v3942, %v3932
        %v4843 = vpack.c.b16 %v3943, %v3933
        %v4844 = vpack.c.b16 %v3944, %v3934
        %v4845 = vpack.c.b16 %v3945, %v3935
        %v4846 = vpack.c.b16 %v3946, %v3936
        %v4847 = vpack.c.b16 %v3957, %v3947
        %v4848 = vpack.c.b16 %v3958, %v3948
        %v4849 = vpack.c.b16 %v3959, %v3949
        %v4850 = vpack.c.b16 %v3960, %v3950
        %v4851 = vpack.c.b16 %v3961, %v3951
        %v4852 = vpack.c.b16 %v3962, %v3952
        %v4853 = vpack.c.b16 %v3963, %v3953
        %v4854 = vpack.c.b16 %v3964, %v3954
        %v4855 = vpack.c.b16 %v3965, %v3955
        %v4856 = vpack.c.b16 %v3966, %v3956
        %v4857 = vpack.c.b16 %v3977, %v3967
        %v4858 = vpack.c.b16 %v3978, %v3968
        %v4859 = vpack.c.b16 %v3979, %v3969
        %v4860 = vpack.c.b16 %v3980, %v3970
        %v4861 = vpack.c.b16 %v3981, %v3971
        %v4862 = vpack.c.b16 %v3982, %v3972
        %v4863 = vpack.c.b16 %v3983, %v3973
        %v4864 = vpack.c.b16 %v3984, %v3974
        %v4865 = vpack.c.b16 %v3985, %v3975
        %v4866 = vpack.c.b16 %v3986, %v3976
        %v4867 = vpack.c.b16 %v3997, %v3987
        %v4868 = vpack.c.b16 %v3998, %v3988
        %v4869 = vpack.c.b16 %v3999, %v3989
        %v4870 = vpack.c.b16 %v4000, %v3990
        %v4871 = vpack.c.b16 %v4001, %v3991
        %v4872 = vpack.c.b16 %v4002, %v3992
        %v4873 = vpack.c.b16 %v4003, %v3993
        %v4874 = vpack.c.b16 %v4004, %v3994
        %v4875 = vpack.c.b16 %v4005, %v3995
        %v4876 = vpack.c.b16 %v4006, %v3996
        %v4877 = vpack.c.b16 %v4017, %v4007
        %v4878 = vpack.c.b16 %v4018, %v4008
        %v4879 = vpack.c.b16 %v4019, %v4009
        %v4880 = vpack.c.b16 %v4020, %v4010
        %v4881 = vpack.c.b16 %v4021, %v4011
        %v4882 = vpack.c.b16 %v4022, %v4012
        %v4883 = vpack.c.b16 %v4023, %v4013
        %v4884 = vpack.c.b16 %v4024, %v4014
        %v4885 = vpack.c.b16 %v4025, %v4015
        %v4886 = vpack.c.b16 %v4026, %v4016
        %v4887 = vpack.c.b16 %v4037, %v4027
        %v4888 = vpack.c.b16 %v4038, %v4028
        %v4889 = vpack.c.b16 %v4039, %v4029
        %v4890 = vpack.c.b16 %v4040, %v4030
        %v4891 = vpack.c.b16 %v4041, %v4031
        %v4892 = vpack.c.b16 %v4042, %v4032
        %v4893 = vpack.c.b16 %v4043, %v4033
        %v4894 = vpack.c.b16 %v4044, %v4034
        %v4895 = vpack.c.b16 %v4045, %v4035
        %v4896 = vpack.c.b16 %v4046, %v4036
        %v4897 = vpack.c.b16 %v4057, %v4047
        %v4898 = vpack.c.b16 %v4058, %v4048
        %v4899 = vpack.c.b16 %v4059, %v4049
        %v4900 = vpack.c.b16 %v4060, %v4050
        %v4901 = vpack.c.b16 %v4061, %v4051
        %v4902 = vpack.c.b16 %v4062, %v4052
        %v4903 = vpack.c.b16 %v4063, %v4053
        %v4904 = vpack.c.b16 %v4064, %v4054
        %v4905 = vpack.c.b16 %v4065, %v4055
        %v4906 = vpack.c.b16 %v4066, %v4056
        %v4907 = vpack.c.b16 %v4077, %v4067
        %v4908 = vpack.c.b16 %v4078, %v4068
        %v4909 = vpack.c.b16 %v4079, %v4069
        %v4910 = vpack.c.b16 %v4080, %v4070
        %v4911 = vpack.c.b16 %v4081, %v4071
        %v4912 = vpack.c.b16 %v4082, %v4072
        %v4913 = vpack.c.b16 %v4083, %v4073
        %v4914 = vpack.c.b16 %v4084, %v4074
        %v4915 = vpack.c.b16 %v4085, %v4075
        %v4916 = vpack.c.b16 %v4086, %v4076
        %v4917 = vpack.c.b16 %v4097, %v4087
        %v4918 = vpack.c.b16 %v4098, %v4088
        %v4919 = vpack.c.b16 %v4099, %v4089
        %v4920 = vpack.c.b16 %v4100, %v4090
        %v4921 = vpack.c.b16 %v4101, %v4091
        %v4922 = vpack.c.b16 %v4102, %v4092
        %v4923 = vpack.c.b16 %v4103, %v4093
        %v4924 = vpack.c.b16 %v4104, %v4094
        %v4925 = vpack.c.b16 %v4105, %v4095
        %v4926 = vpack.c.b16 %v4106, %v4096
        %v4927 = vpack.c.b16 %v4117, %v4107
        %v4928 = vpack.c.b16 %v4118, %v4108
        %v4929 = vpack.c.b16 %v4119, %v4109
        %v4930 = vpack.c.b16 %v4120, %v4110
        %v4931 = vpack.c.b16 %v4121, %v4111
        %v4932 = vpack.c.b16 %v4122, %v4112
        %v4933 = vpack.c.b16 %v4123, %v4113
        %v4934 = vpack.c.b16 %v4124, %v4114
        %v4935 = vpack.c.b16 %v4125, %v4115
        %v4936 = vpack.c.b16 %v4126, %v4116
        %v4937 = vpack.c.b16 %v4137, %v4127
        %v4938 = vpack.c.b16 %v4138, %v4128
        %v4939 = vpack.c.b16 %v4139, %v4129
        %v4940 = vpack.c.b16 %v4140, %v4130
        %v4941 = vpack.c.b16 %v4141, %v4131
        %v4942 = vpack.c.b16 %v4142, %v4132
        %v4943 = vpack.c.b16 %v4143, %v4133
        %v4944 = vpack.c.b16 %v4144, %v4134
        %v4945 = vpack.c.b16 %v4145, %v4135
        %v4946 = vpack.c.b16 %v4146, %v4136
        %v4947 = vpack.c.b16 %v4157, %v4147
        %v4948 = vpack.c.b16 %v4158, %v4148
        %v4949 = vpack.c.b16 %v4159, %v4149
        %v4950 = vpack.c.b16 %v4160, %v4150
        %v4951 = vpack.c.b16 %v4161, %v4151
        %v4952 = vpack.c.b16 %v4162, %v4152
        %v4953 = vpack.c.b16 %v4163, %v4153
        %v4954 = vpack.c.b16 %v4164, %v4154
        %v4955 = vpack.c.b16 %v4165, %v4155
        %v4956 = vpack.c.b16 %v4166, %v4156
        %v4957 = vpack.c.b16 %v4177, %v4167
        %v4958 = vpack.c.b16 %v4178, %v4168
        %v4959 = vpack.c.b16 %v4179, %v4169
        %v4960 = vpack.c.b16 %v4180, %v4170
        %v4961 = vpack.c.b16 %v4181, %v4171
        %v4962 = vpack.c.b16 %v4182, %v4172
        %v4963 = vpack.c.b16 %v4183, %v4173
        %v4964 = vpack.c.b16 %v4184, %v4174
        %v4965 = vpack.c.b16 %v4185, %v4175
        %v4966 = vpack.c.b16 %v4186, %v4176
        %v4967 = vpack.c.b16 %v4197, %v4187
        %v4968 = vpack.c.b16 %v4198, %v4188
        %v4969 = vpack.c.b16 %v4199, %v4189
        %v4970 = vpack.c.b16 %v4200, %v4190
        %v4971 = vpack.c.b16 %v4201, %v4191
        %v4972 = vpack.c.b16 %v4202, %v4192
        %v4973 = vpack.c.b16 %v4203, %v4193
        %v4974 = vpack.c.b16 %v4204, %v4194
        %v4975 = vpack.c.b16 %v4205, %v4195
        %v4976 = vpack.c.b16 %v4206, %v4196
        %v4977 = vpack.c.b16 %v4217, %v4207
        %v4978 = vpack.c.b16 %v4218, %v4208
        %v4979 = vpack.c.b16 %v4219, %v4209
        %v4980 = vpack.c.b16 %v4220, %v4210
        %v4981 = vpack.c.b16 %v4221, %v4211
        %v4982 = vpack.c.b16 %v4222, %v4212
        %v4983 = vpack.c.b16 %v4223, %v4213
        %v4984 = vpack.c.b16 %v4224, %v4214
        %v4985 = vpack.c.b16 %v4225, %v4215
        %v4986 = vpack.c.b16 %v4226, %v4216
        %v4987 = vpack.c.b16 %v4237, %v4227
        %v4988 = vpack.c.b16 %v4238, %v4228
        %v4989 = vpack.c.b16 %v4239, %v4229
        %v4990 = vpack.c.b16 %v4240, %v4230
        %v4991 = vpack.c.b16 %v4241, %v4231
        %v4992 = vpack.c.b16 %v4242, %v4232
        %v4993 = vpack.c.b16 %v4243, %v4233
        %v4994 = vpack.c.b16 %v4244, %v4234
        %v4995 = vpack.c.b16 %v4245, %v4235
        %v4996 = vpack.c.b16 %v4246, %v4236
        %v4997 = vpack.c.b16 %v4257, %v4247
        %v4998 = vpack.c.b16 %v4258, %v4248
        %v4999 = vpack.c.b16 %v4259, %v4249
        %v5000 = vpack.c.b16 %v4260, %v4250
        %v5001 = vpack.c.b16 %v4261, %v4251
        %v5002 = vpack.c.b16 %v4262, %v4252
        %v5003 = vpack.c.b16 %v4263, %v4253
        %v5004 = vpack.c.b16 %v4264, %v4254
        %v5005 = vpack.c.b16 %v4265, %v4255
        %v5006 = vpack.c.b16 %v4266, %v4256
        %v5007 = vpack.c.b16 %v4277, %v4267
        %v5008 = vpack.c.b16 %v4278, %v4268
        %v5009 = vpack.c.b16 %v4279, %v4269
        %v5010 = vpack.c.b16 %v4280, %v4270
        %v5011 = vpack.c.b16 %v4281, %v4271
        %v5012 = vpack.c.b16 %v4282, %v4272
        %v5013 = vpack.c.b16 %v4283, %v4273
        %v5014 = vpack.c.b16 %v4284, %v4274
        %v5015 = vpack.c.b16 %v4285, %v4275
        %v5016 = vpack.c.b16 %v4286, %v4276
        %v5017 = vpack.c.b16 %v4297, %v4287
        %v5018 = vpack.c.b16 %v4298, %v4288
        %v5019 = vpack.c.b16 %v4299, %v4289
        %v5020 = vpack.c.b16 %v4300, %v4290
        %v5021 = vpack.c.b16 %v4301, %v4291
        %v5022 = vpack.c.b16 %v4302, %v4292
        %v5023 = vpack.c.b16 %v4303, %v4293
        %v5024 = vpack.c.b16 %v4304, %v4294
        %v5025 = vpack.c.b16 %v4305, %v4295
        %v5026 = vpack.c.b16 %v4306, %v4296
        %v5027 = vpack.c.b16 %v4317, %v4307
        %v5028 = vpack.c.b16 %v4318, %v4308
        %v5029 = vpack.c.b16 %v4319, %v4309
        %v5030 = vpack.c.b16 %v4320, %v4310
        %v5031 = vpack.c.b16 %v4321, %v4311
        %v5032 = vpack.c.b16 %v4322, %v4312
        %v5033 = vpack.c.b16 %v4323, %v4313
        %v5034 = vpack.c.b16 %v4324, %v4314
        %v5035 = vpack.c.b16 %v4325, %v4315
        %v5036 = vpack.c.b16 %v4326, %v4316
        %v5037 = vpack.c.b16 %v4337, %v4327
        %v5038 = vpack.c.b16 %v4338, %v4328
        %v5039 = vpack.c.b16 %v4339, %v4329
        %v5040 = vpack.c.b16 %v4340, %v4330
        %v5041 = vpack.c.b16 %v4341, %v4331
        %v5042 = vpack.c.b16 %v4342, %v4332
        %v5043 = vpack.c.b16 %v4343, %v4333
        %v5044 = vpack.c.b16 %v4344, %v4334
        %v5045 = vpack.c.b16 %v4345, %v4335
        %v5046 = vpack.c.b16 %v4346, %v4336
        %v5047 = vpack.c.b16 %v4357, %v4347
        %v5048 = vpack.c.b16 %v4358, %v4348
        %v5049 = vpack.c.b16 %v4359, %v4349
        %v5050 = vpack.c.b16 %v4360, %v4350
        %v5051 = vpack.c.b16 %v4361, %v4351
        %v5052 = vpack.c.b16 %v4362, %v4352
        %v5053 = vpack.c.b16 %v4363, %v4353
        %v5054 = vpack.c.b16 %v4364, %v4354
        %v5055 = vpack.c.b16 %v4365, %v4355
        %v5056 = vpack.c.b16 %v4366, %v4356
        %v5057 = vpack.c.b16 %v4377, %v4367
        %v5058 = vpack.c.b16 %v4378, %v4368
        %v5059 = vpack.c.b16 %v4379, %v4369
        %v5060 = vpack.c.b16 %v4380, %v4370
        %v5061 = vpack.c.b16 %v4381, %v4371
        %v5062 = vpack.c.b16 %v4382, %v4372
        %v5063 = vpack.c.b16 %v4383, %v4373
        %v5064 = vpack.c.b16 %v4384, %v4374
        %v5065 = vpack.c.b16 %v4385, %v4375
        %v5066 = vpack.c.b16 %v4386, %v4376
        %v5067 = vpack.c.b16 %v4397, %v4387
        %v5068 = vpack.c.b16 %v4398, %v4388
        %v5069 = vpack.c.b16 %v4399, %v4389
        %v5070 = vpack.c.b16 %v4400, %v4390
        %v5071 = vpack.c.b16 %v4401, %v4391
        %v5072 = vpack.c.b16 %v4402, %v4392
        %v5073 = vpack.c.b16 %v4403, %v4393
        %v5074 = vpack.c.b16 %v4404, %v4394
        %v5075 = vpack.c.b16 %v4405, %v4395
        %v5076 = vpack.c.b16 %v4406, %v4396
        %v5077 = vpack.c.b16 %v4417, %v4407
        %v5078 = vpack.c.b16 %v4418, %v4408
        %v5079 = vpack.c.b16 %v4419, %v4409
        %v5080 = vpack.c.b16 %v4420, %v4410
        %v5081 = vpack.c.b16 %v4421, %v4411
        %v5082 = vpack.c.b16 %v4422, %v4412
        %v5083 = vpack.c.b16 %v4423, %v4413
        %v5084 = vpack.c.b16 %v4424, %v4414
        %v5085 = vpack.c.b16 %v4425, %v4415
        %v5086 = vpack.c.b16 %v4426, %v4416
        %v5087 = vpack.c.b16 %v4437, %v4427
        %v5088 = vpack.c.b16 %v4438, %v4428
        %v5089 = vpack.c.b16 %v4439, %v4429
        %v5090 = vpack.c.b16 %v4440, %v4430
        %v5091 = vpack.c.b16 %v4441, %v4431
        %v5092 = vpack.c.b16 %v4442, %v4432
        %v5093 = vpack.c.b16 %v4443, %v4433
        %v5094 = vpack.c.b16 %v4444, %v4434
        %v5095 = vpack.c.b16 %v4445, %v4435
        %v5096 = vpack.c.b16 %v4446, %v4436
        %v5097 = vpack.c.b16 %v4457, %v4447
        %v5098 = vpack.c.b16 %v4458, %v4448
        %v5099 = vpack.c.b16 %v4459, %v4449
        %v5100 = vpack.c.b16 %v4460, %v4450
        %v5101 = vpack.c.b16 %v4461, %v4451
        %v5102 = vpack.c.b16 %v4462, %v4452
        %v5103 = vpack.c.b16 %v4463, %v4453
        %v5104 = vpack.c.b16 %v4464, %v4454
        %v5105 = vpack.c.b16 %v4465, %v4455
        %v5106 = vpack.c.b16 %v4466, %v4456
        %v5107 = vpack.c.b16 %v4477, %v4467
        %v5108 = vpack.c.b16 %v4478, %v4468
        %v5109 = vpack.c.b16 %v4479, %v4469
        %v5110 = vpack.c.b16 %v4480, %v4470
        %v5111 = vpack.c.b16 %v4481, %v4471
        %v5112 = vpack.c.b16 %v4482, %v4472
        %v5113 = vpack.c.b16 %v4483, %v4473
        %v5114 = vpack.c.b16 %v4484, %v4474
        %v5115 = vpack.c.b16 %v4485, %v4475
        %v5116 = vpack.c.b16 %v4486, %v4476
        %v5117 = vpack.c.b16 %v4497, %v4487
        %v5118 = vpack.c.b16 %v4498, %v4488
        %v5119 = vpack.c.b16 %v4499, %v4489
        %v5120 = vpack.c.b16 %v4500, %v4490
        %v5121 = vpack.c.b16 %v4501, %v4491
        %v5122 = vpack.c.b16 %v4502, %v4492
        %v5123 = vpack.c.b16 %v4503, %v4493
        %v5124 = vpack.c.b16 %v4504, %v4494
        %v5125 = vpack.c.b16 %v4505, %v4495
        %v5126 = vpack.c.b16 %v4506, %v4496
        %v5127 = vpack.c.b16 %v4517, %v4507
        %v5128 = vpack.c.b16 %v4518, %v4508
        %v5129 = vpack.c.b16 %v4519, %v4509
        %v5130 = vpack.c.b16 %v4520, %v4510
        %v5131 = vpack.c.b16 %v4521, %v4511
        %v5132 = vpack.c.b16 %v4522, %v4512
        %v5133 = vpack.c.b16 %v4523, %v4513
        %v5134 = vpack.c.b16 %v4524, %v4514
        %v5135 = vpack.c.b16 %v4525, %v4515
        %v5136 = vpack.c.b16 %v4526, %v4516
        %v5137 = vpack.c.b16 %v4537, %v4527
        %v5138 = vpack.c.b16 %v4538, %v4528
        %v5139 = vpack.c.b16 %v4539, %v4529
        %v5140 = vpack.c.b16 %v4540, %v4530
        %v5141 = vpack.c.b16 %v4541, %v4531
        %v5142 = vpack.c.b16 %v4542, %v4532
        %v5143 = vpack.c.b16 %v4543, %v4533
        %v5144 = vpack.c.b16 %v4544, %v4534
        %v5145 = vpack.c.b16 %v4545, %v4535
        %v5146 = vpack.c.b16 %v4546, %v4536
        %v5147 = vpack.c.b16 %v4557, %v4547
        %v5148 = vpack.c.b16 %v4558, %v4548
        %v5149 = vpack.c.b16 %v4559, %v4549
        %v5150 = vpack.c.b16 %v4560, %v4550
        %v5151 = vpack.c.b16 %v4561, %v4551
        %v5152 = vpack.c.b16 %v4562, %v4552
        %v5153 = vpack.c.b16 %v4563, %v4553
        %v5154 = vpack.c.b16 %v4564, %v4554
        %v5155 = vpack.c.b16 %v4565, %v4555
        %v5156 = vpack.c.b16 %v4566, %v4556
        %v5157 = vpack.c.b16 %v4577, %v4567
        %v5158 = vpack.c.b16 %v4578, %v4568
        %v5159 = vpack.c.b16 %v4579, %v4569
        %v5160 = vpack.c.b16 %v4580, %v4570
        %v5161 = vpack.c.b16 %v4581, %v4571
        %v5162 = vpack.c.b16 %v4582, %v4572
        %v5163 = vpack.c.b16 %v4583, %v4573
        %v5164 = vpack.c.b16 %v4584, %v4574
        %v5165 = vpack.c.b16 %v4585, %v4575
        %v5166 = vpack.c.b16 %v4586, %v4576
        %v5167 = vpack.c.b16 %v4597, %v4587
        %v5168 = vpack.c.b16 %v4598, %v4588
        %v5169 = vpack.c.b16 %v4599, %v4589
        %v5170 = vpack.c.b16 %v4600, %v4590
        %v5171 = vpack.c.b16 %v4601, %v4591
        %v5172 = vpack.c.b16 %v4602, %v4592
        %v5173 = vpack.c.b16 %v4603, %v4593
        %v5174 = vpack.c.b16 %v4604, %v4594
        %v5175 = vpack.c.b16 %v4605, %v4595
        %v5176 = vpack.c.b16 %v4606, %v4596
        %v5177 = vpack.c.b16 %v4617, %v4607
        %v5178 = vpack.c.b16 %v4618, %v4608
        %v5179 = vpack.c.b16 %v4619, %v4609
        %v5180 = vpack.c.b16 %v4620, %v4610
        %v5181 = vpack.c.b16 %v4621, %v4611
        %v5182 = vpack.c.b16 %v4622, %v4612
        %v5183 = vpack.c.b16 %v4623, %v4613
        %v5184 = vpack.c.b16 %v4624, %v4614
        %v5185 = vpack.c.b16 %v4625, %v4615
        %v5186 = vpack.c.b16 %v4626, %v4616
        %v5187 = vpack.c.b16 %v4637, %v4627
        %v5188 = vpack.c.b16 %v4638, %v4628
        %v5189 = vpack.c.b16 %v4639, %v4629
        %v5190 = vpack.c.b16 %v4640, %v4630
        %v5191 = vpack.c.b16 %v4641, %v4631
        %v5192 = vpack.c.b16 %v4642, %v4632
        %v5193 = vpack.c.b16 %v4643, %v4633
        %v5194 = vpack.c.b16 %v4644, %v4634
        %v5195 = vpack.c.b16 %v4645, %v4635
        %v5196 = vpack.c.b16 %v4646, %v4636
        %v5197 = vpack.c.b16 %v4657, %v4647
        %v5198 = vpack.c.b16 %v4658, %v4648
        %v5199 = vpack.c.b16 %v4659, %v4649
        %v5200 = vpack.c.b16 %v4660, %v4650
        %v5201 = vpack.c.b16 %v4661, %v4651
        %v5202 = vpack.c.b16 %v4662, %v4652
        %v5203 = vpack.c.b16 %v4663, %v4653
        %v5204 = vpack.c.b16 %v4664, %v4654
        %v5205 = vpack.c.b16 %v4665, %v4655
        %v5206 = vpack.c.b16 %v4666, %v4656
        %v5207 = vpack.c.b16 %v4677, %v4667
        %v5208 = vpack.c.b16 %v4678, %v4668
        %v5209 = vpack.c.b16 %v4679, %v4669
        %v5210 = vpack.c.b16 %v4680, %v4670
        %v5211 = vpack.c.b16 %v4681, %v4671
        %v5212 = vpack.c.b16 %v4682, %v4672
        %v5213 = vpack.c.b16 %v4683, %v4673
        %v5214 = vpack.c.b16 %v4684, %v4674
        %v5215 = vpack.c.b16 %v4685, %v4675
        %v5216 = vpack.c.b16 %v4686, %v4676
        %v5217 = vpack.c.b16 %v4697, %v4687
        %v5218 = vpack.c.b16 %v4698, %v4688
        %v5219 = vpack.c.b16 %v4699, %v4689
        %v5220 = vpack.c.b16 %v4700, %v4690
        %v5221 = vpack.c.b16 %v4701, %v4691
        %v5222 = vpack.c.b16 %v4702, %v4692
        %v5223 = vpack.c.b16 %v4703, %v4693
        %v5224 = vpack.c.b16 %v4704, %v4694
        %v5225 = vpack.c.b16 %v4705, %v4695
        %v5226 = vpack.c.b16 %v4706, %v4696
        %v5227 = vpack.c.b16 %v4717, %v4707
        %v5228 = vpack.c.b16 %v4718, %v4708
        %v5229 = vpack.c.b16 %v4719, %v4709
        %v5230 = vpack.c.b16 %v4720, %v4710
        %v5231 = vpack.c.b16 %v4721, %v4711
        %v5232 = vpack.c.b16 %v4722, %v4712
        %v5233 = vpack.c.b16 %v4723, %v4713
        %v5234 = vpack.c.b16 %v4724, %v4714
        %v5235 = vpack.c.b16 %v4725, %v4715
        %v5236 = vpack.c.b16 %v4726, %v4716
        %vm5747 = vcmask 392192
        %v5749 = vsel %vm5747, %v2632, 0
        %5751 = vmatprep.subr.bf16.mxu0 %v4728
        %5752 = vmatpush1.bf16.msra.mxu0 %v4727
        %5753 = vmatprep.subr.bf16.mxu0 %v4738
        %5754 = vmatpush1.bf16.msra.mxu0 %v4737
        %5755 = vmatprep.subr.bf16.mxu0 %v4748
        %5756 = vmatpush1.bf16.msra.mxu0 %v4747
        %5757 = vmatprep.subr.bf16.mxu0 %v4758
        %5758 = vmatpush1.bf16.msra.mxu0 %v4757
        %5759 = vmatprep.subr.bf16.mxu0 %v4768
        %5760 = vmatpush1.bf16.msra.mxu0 %v4767
        %5761 = vmatprep.subr.bf16.mxu0 %v4778
        %5762 = vmatpush1.bf16.msra.mxu0 %v4777
        %5763 = vmatprep.subr.bf16.mxu0 %v4788
        %5764 = vmatpush1.bf16.msra.mxu0 %v4787
        %5765 = vmatprep.subr.bf16.mxu0 %v4798
        %5766 = vmatpush1.bf16.msra.mxu0 %v4797
        %5767 = vmatprep.subr.bf16.mxu0 %v4808
        %5768 = vmatpush1.bf16.msra.mxu0 %v4807
        %5769 = vmatprep.subr.bf16.mxu0 %v4818
        %5770 = vmatpush1.bf16.msra.mxu0 %v4817
        %5771 = vmatprep.subr.bf16.mxu0 %v4828
        %5772 = vmatpush1.bf16.msra.mxu0 %v4827
        %5773 = vmatprep.subr.bf16.mxu0 %v4838
        %5774 = vmatpush1.bf16.msra.mxu0 %v4837
        %5775 = vmatprep.subr.bf16.mxu0 %v4848
        %5776 = vmatpush1.bf16.msra.mxu0 %v4847
        %5777 = vmatprep.subr.bf16.mxu0 %v4858
        %5778 = vmatpush1.bf16.msra.mxu0 %v4857
        %5779 = vmatprep.subr.bf16.mxu0 %v4868
        %5780 = vmatpush1.bf16.msra.mxu0 %v4867
        %5781 = vmatprep.subr.bf16.mxu0 %v4878
        %5782 = vmatpush1.bf16.msra.mxu0 %v4877
        %5783 = vmatprep.mubr.bf16.mxu0 %v2627
        %5784 = vmatmul.mubr.bf16.gmra.mrb[0].mxu0 %v2626
        %v5785 = vpop.f32.mrb[0].mxu0
        %v5786 = vadd.f32 %v3150, %v5785
        %v5787 = vpop.f32.mrb[0].mxu0
        %v5788 = vadd.f32 %v3154, %v5787
        %v5789 = vpop.f32.mrb[0].mxu0
        %v5790 = vpop.f32.mrb[0].mxu0
        %5791 = vdwg.mxu0
        %5792 = vmatprep.subr.bf16.mxu0 %v4888
        %5793 = vmatpush1.bf16.msra.mxu0 %v4887
        %5794 = vmatprep.subr.bf16.mxu0 %v4898
        %5795 = vmatpush1.bf16.msra.mxu0 %v4897
        %5796 = vmatprep.subr.bf16.mxu0 %v4908
        %5797 = vmatpush1.bf16.msra.mxu0 %v4907
        %5798 = vmatprep.subr.bf16.mxu0 %v4918
        %5799 = vmatpush1.bf16.msra.mxu0 %v4917
        %5800 = vmatprep.subr.bf16.mxu0 %v4928
        %5801 = vmatpush1.bf16.msra.mxu0 %v4927
        %5802 = vmatprep.subr.bf16.mxu0 %v4938
        %5803 = vmatpush1.bf16.msra.mxu0 %v4937
        %5804 = vmatprep.subr.bf16.mxu0 %v4948
        %5805 = vmatpush1.bf16.msra.mxu0 %v4947
        %5806 = vmatprep.subr.bf16.mxu0 %v4958
        %5807 = vmatpush1.bf16.msra.mxu0 %v4957
        %5808 = vmatprep.subr.bf16.mxu0 %v4968
        %5809 = vmatpush1.bf16.msra.mxu0 %v4967
        %5810 = vmatprep.subr.bf16.mxu0 %v4978
        %5811 = vmatpush1.bf16.msra.mxu0 %v4977
        %5812 = vmatprep.subr.bf16.mxu0 %v4988
        %5813 = vmatpush1.bf16.msra.mxu0 %v4987
        %5814 = vmatprep.subr.bf16.mxu0 %v4998
        %5815 = vmatpush1.bf16.msra.mxu0 %v4997
        %5816 = vmatprep.subr.bf16.mxu0 %v5008
        %5817 = vmatpush1.bf16.msra.mxu0 %v5007
        %5818 = vmatprep.subr.bf16.mxu0 %v5018
        %5819 = vmatpush1.bf16.msra.mxu0 %v5017
        %5820 = vmatprep.subr.bf16.mxu0 %v5028
        %5821 = vmatpush1.bf16.msra.mxu0 %v5027
        %5822 = vmatprep.subr.bf16.mxu0 %v5038
        %5823 = vmatpush1.bf16.msra.mxu0 %v5037
        %5824 = vmatprep.mubr.bf16.mxu0 %v2629
        %5825 = vmatmul.mubr.bf16.gmra.mrb[0].mxu0 %v2628
        %v5826 = vpop.f32.mrb[0].mxu0
        %v5827 = vadd.f32 %v5786, %v5826
        %v5828 = vpop.f32.mrb[0].mxu0
        %v5829 = vadd.f32 %v5788, %v5828
        %v5830 = vpop.f32.mrb[0].mxu0
        %v5831 = vpop.f32.mrb[0].mxu0
        %5832 = vdwg.mxu0
        %5833 = vmatprep.subr.bf16.mxu0 %v5048
        %5834 = vmatpush1.bf16.msra.mxu0 %v5047
        %5835 = vmatprep.subr.bf16.mxu0 %v5058
        %5836 = vmatpush1.bf16.msra.mxu0 %v5057
        %5837 = vmatprep.subr.bf16.mxu0 %v5068
        %5838 = vmatpush1.bf16.msra.mxu0 %v5067
        %5839 = vmatprep.subr.bf16.mxu0 %v5078
        %5840 = vmatpush1.bf16.msra.mxu0 %v5077
        %5841 = vmatprep.subr.bf16.mxu0 %v5088
        %5842 = vmatpush1.bf16.msra.mxu0 %v5087
        %5843 = vmatprep.subr.bf16.mxu0 %v5098
        %5844 = vmatpush1.bf16.msra.mxu0 %v5097
        %5845 = vmatprep.subr.bf16.mxu0 %v5108
        %5846 = vmatpush1.bf16.msra.mxu0 %v5107
        %5847 = vmatprep.subr.bf16.mxu0 %v5118
        %5848 = vmatpush1.bf16.msra.mxu0 %v5117
        %5849 = vmatprep.subr.bf16.mxu0 %v5128
        %5850 = vmatpush1.bf16.msra.mxu0 %v5127
        %5851 = vmatprep.subr.bf16.mxu0 %v5138
        %5852 = vmatpush1.bf16.msra.mxu0 %v5137
        %5853 = vmatprep.subr.bf16.mxu0 %v5148
        %5854 = vmatpush1.bf16.msra.mxu0 %v5147
        %5855 = vmatprep.subr.bf16.mxu0 %v5158
        %5856 = vmatpush1.bf16.msra.mxu0 %v5157
        %5857 = vmatprep.subr.bf16.mxu0 %v5168
        %5858 = vmatpush1.bf16.msra.mxu0 %v5167
        %5859 = vmatprep.subr.bf16.mxu0 %v5178
        %5860 = vmatpush1.bf16.msra.mxu0 %v5177
        %5861 = vmatprep.subr.bf16.mxu0 %v5188
        %5862 = vmatpush1.bf16.msra.mxu0 %v5187
        %5863 = vmatprep.subr.bf16.mxu0 %v5198
        %5864 = vmatpush1.bf16.msra.mxu0 %v5197
        %5865 = vmatprep.mubr.bf16.mxu0 %v2631
        %5866 = vmatmul.mubr.bf16.gmra.mrb[0].mxu0 %v2630
        %v5867 = vpop.f32.mrb[0].mxu0
        %v5868 = vadd.f32 %v5827, %v5867
        %v5869 = vpop.f32.mrb[0].mxu0
        %v5870 = vadd.f32 %v5829, %v5869
        %v5871 = vpop.f32.mrb[0].mxu0
        %v5872 = vpop.f32.mrb[0].mxu0
        %5873 = vdwg.mxu0
        %5874 = vmatprep.subr.bf16.mxu0 %v5208
        %5875 = vmatpush1.bf16.msra.mxu0 %v5207
        %5876 = vmatprep.subr.bf16.mxu0 %v5218
        %5877 = vmatpush1.bf16.msra.mxu0 %v5217
        %5878 = vmatprep.subr.bf16.mxu0 %v5228
        %5879 = vmatpush1.bf16.msra.mxu0 %v5227
        %5880 = vmatprep.subr.bf16.mxu0 0
        %5881 = vmatpush1.bf16.msra.mxu0 0
        %5882 = vmatprep.subr.bf16.mxu0 0
        %5883 = vmatpush1.bf16.msra.mxu0 0
        %5884 = vmatprep.subr.bf16.mxu0 0
        %5885 = vmatpush1.bf16.msra.mxu0 0
        %5886 = vmatprep.subr.bf16.mxu0 0
        %5887 = vmatpush1.bf16.msra.mxu0 0
        %5888 = vmatprep.subr.bf16.mxu0 0
        %5889 = vmatpush1.bf16.msra.mxu0 0
        %5890 = vmatprep.subr.bf16.mxu0 0
        %5891 = vmatpush1.bf16.msra.mxu0 0
        %5892 = vmatprep.subr.bf16.mxu0 0
        %5893 = vmatpush1.bf16.msra.mxu0 0
        %5894 = vmatprep.subr.bf16.mxu0 0
        %5895 = vmatpush1.bf16.msra.mxu0 0
        %5896 = vmatprep.subr.bf16.mxu0 0
        %5897 = vmatpush1.bf16.msra.mxu0 0
        %5898 = vmatprep.subr.bf16.mxu0 0
        %5899 = vmatpush1.bf16.msra.mxu0 0
        %5900 = vmatprep.subr.bf16.mxu0 0
        %5901 = vmatpush1.bf16.msra.mxu0 0
        %5902 = vmatprep.subr.bf16.mxu0 0
        %5903 = vmatpush1.bf16.msra.mxu0 0
        %5904 = vmatprep.subr.bf16.mxu0 0
        %5905 = vmatpush1.bf16.msra.mxu0 0
        %5906 = vmatprep.mubr.bf16.mxu0 0
        %5907 = vmatmul.mubr.bf16.gmra.mrb[0].mxu0 %v5749
        %v5908 = vpop.f32.mrb[0].mxu0
        %v5909 = vadd.f32 %v5868, %v5908
        %v5910 = vpop.f32.mrb[0].mxu0
        %v5911 = vadd.f32 %v5870, %v5910
        %v5912 = vpop.f32.mrb[0].mxu0
        %v5913 = vpop.f32.mrb[0].mxu0
        %5914 = vdwg.mxu0
        %5915 = vmatprep.subr.bf16.mxu0 %v4730
        %5916 = vmatpush1.bf16.msra.mxu0 %v4729
        %5917 = vmatprep.subr.bf16.mxu0 %v4740
        %5918 = vmatpush1.bf16.msra.mxu0 %v4739
        %5919 = vmatprep.subr.bf16.mxu0 %v4750
        %5920 = vmatpush1.bf16.msra.mxu0 %v4749
        %5921 = vmatprep.subr.bf16.mxu0 %v4760
        %5922 = vmatpush1.bf16.msra.mxu0 %v4759
        %5923 = vmatprep.subr.bf16.mxu0 %v4770
        %5924 = vmatpush1.bf16.msra.mxu0 %v4769
        %5925 = vmatprep.subr.bf16.mxu0 %v4780
        %5926 = vmatpush1.bf16.msra.mxu0 %v4779
        %5927 = vmatprep.subr.bf16.mxu0 %v4790
        %5928 = vmatpush1.bf16.msra.mxu0 %v4789
        %5929 = vmatprep.subr.bf16.mxu0 %v4800
        %5930 = vmatpush1.bf16.msra.mxu0 %v4799
        %5931 = vmatprep.subr.bf16.mxu0 %v4810
        %5932 = vmatpush1.bf16.msra.mxu0 %v4809
        %5933 = vmatprep.subr.bf16.mxu0 %v4820
        %5934 = vmatpush1.bf16.msra.mxu0 %v4819
        %5935 = vmatprep.subr.bf16.mxu0 %v4830
        %5936 = vmatpush1.bf16.msra.mxu0 %v4829
        %5937 = vmatprep.subr.bf16.mxu0 %v4840
        %5938 = vmatpush1.bf16.msra.mxu0 %v4839
        %5939 = vmatprep.subr.bf16.mxu0 %v4850
        %5940 = vmatpush1.bf16.msra.mxu0 %v4849
        %5941 = vmatprep.subr.bf16.mxu0 %v4860
        %5942 = vmatpush1.bf16.msra.mxu0 %v4859
        %5943 = vmatprep.subr.bf16.mxu0 %v4870
        %5944 = vmatpush1.bf16.msra.mxu0 %v4869
        %5945 = vmatprep.subr.bf16.mxu0 %v4880
        %5946 = vmatpush1.bf16.msra.mxu0 %v4879
        %5947 = vmatprep.mubr.bf16.mxu0 %v2627
        %5948 = vmatmul.mubr.bf16.gmra.mrb[0].mxu0 %v2626
        %v5949 = vpop.f32.mrb[0].mxu0
        %v5950 = vadd.f32 %v3158, %v5949
        %v5951 = vpop.f32.mrb[0].mxu0
        %v5952 = vadd.f32 %v3162, %v5951
        %v5953 = vpop.f32.mrb[0].mxu0
        %v5954 = vpop.f32.mrb[0].mxu0
        %5955 = vdwg.mxu0
        %5956 = vmatprep.subr.bf16.mxu0 %v4890
        %5957 = vmatpush1.bf16.msra.mxu0 %v4889
        %5958 = vmatprep.subr.bf16.mxu0 %v4900
        %5959 = vmatpush1.bf16.msra.mxu0 %v4899
        %5960 = vmatprep.subr.bf16.mxu0 %v4910
        %5961 = vmatpush1.bf16.msra.mxu0 %v4909
        %5962 = vmatprep.subr.bf16.mxu0 %v4920
        %5963 = vmatpush1.bf16.msra.mxu0 %v4919
        %5964 = vmatprep.subr.bf16.mxu0 %v4930
        %5965 = vmatpush1.bf16.msra.mxu0 %v4929
        %5966 = vmatprep.subr.bf16.mxu0 %v4940
        %5967 = vmatpush1.bf16.msra.mxu0 %v4939
        %5968 = vmatprep.subr.bf16.mxu0 %v4950
        %5969 = vmatpush1.bf16.msra.mxu0 %v4949
        %5970 = vmatprep.subr.bf16.mxu0 %v4960
        %5971 = vmatpush1.bf16.msra.mxu0 %v4959
        %5972 = vmatprep.subr.bf16.mxu0 %v4970
        %5973 = vmatpush1.bf16.msra.mxu0 %v4969
        %5974 = vmatprep.subr.bf16.mxu0 %v4980
        %5975 = vmatpush1.bf16.msra.mxu0 %v4979
        %5976 = vmatprep.subr.bf16.mxu0 %v4990
        %5977 = vmatpush1.bf16.msra.mxu0 %v4989
        %5978 = vmatprep.subr.bf16.mxu0 %v5000
        %5979 = vmatpush1.bf16.msra.mxu0 %v4999
        %5980 = vmatprep.subr.bf16.mxu0 %v5010
        %5981 = vmatpush1.bf16.msra.mxu0 %v5009
        %5982 = vmatprep.subr.bf16.mxu0 %v5020
        %5983 = vmatpush1.bf16.msra.mxu0 %v5019
        %5984 = vmatprep.subr.bf16.mxu0 %v5030
        %5985 = vmatpush1.bf16.msra.mxu0 %v5029
        %5986 = vmatprep.subr.bf16.mxu0 %v5040
        %5987 = vmatpush1.bf16.msra.mxu0 %v5039
        %5988 = vmatprep.mubr.bf16.mxu0 %v2629
        %5989 = vmatmul.mubr.bf16.gmra.mrb[0].mxu0 %v2628
        %v5990 = vpop.f32.mrb[0].mxu0
        %v5991 = vadd.f32 %v5950, %v5990
        %v5992 = vpop.f32.mrb[0].mxu0
        %v5993 = vadd.f32 %v5952, %v5992
        %v5994 = vpop.f32.mrb[0].mxu0
        %v5995 = vpop.f32.mrb[0].mxu0
        %5996 = vdwg.mxu0
        %5997 = vmatprep.subr.bf16.mxu0 %v5050
        %5998 = vmatpush1.bf16.msra.mxu0 %v5049
        %5999 = vmatprep.subr.bf16.mxu0 %v5060
        %6000 = vmatpush1.bf16.msra.mxu0 %v5059
        %6001 = vmatprep.subr.bf16.mxu0 %v5070
        %6002 = vmatpush1.bf16.msra.mxu0 %v5069
        %6003 = vmatprep.subr.bf16.mxu0 %v5080
        %6004 = vmatpush1.bf16.msra.mxu0 %v5079
        %6005 = vmatprep.subr.bf16.mxu0 %v5090
        %6006 = vmatpush1.bf16.msra.mxu0 %v5089
        %6007 = vmatprep.subr.bf16.mxu0 %v5100
        %6008 = vmatpush1.bf16.msra.mxu0 %v5099
        %6009 = vmatprep.subr.bf16.mxu0 %v5110
        %6010 = vmatpush1.bf16.msra.mxu0 %v5109
        %6011 = vmatprep.subr.bf16.mxu0 %v5120
        %6012 = vmatpush1.bf16.msra.mxu0 %v5119
        %6013 = vmatprep.subr.bf16.mxu0 %v5130
        %6014 = vmatpush1.bf16.msra.mxu0 %v5129
        %6015 = vmatprep.subr.bf16.mxu0 %v5140
        %6016 = vmatpush1.bf16.msra.mxu0 %v5139
        %6017 = vmatprep.subr.bf16.mxu0 %v5150
        %6018 = vmatpush1.bf16.msra.mxu0 %v5149
        %6019 = vmatprep.subr.bf16.mxu0 %v5160
        %6020 = vmatpush1.bf16.msra.mxu0 %v5159
        %6021 = vmatprep.subr.bf16.mxu0 %v5170
        %6022 = vmatpush1.bf16.msra.mxu0 %v5169
        %6023 = vmatprep.subr.bf16.mxu0 %v5180
        %6024 = vmatpush1.bf16.msra.mxu0 %v5179
        %6025 = vmatprep.subr.bf16.mxu0 %v5190
        %6026 = vmatpush1.bf16.msra.mxu0 %v5189
        %6027 = vmatprep.subr.bf16.mxu0 %v5200
        %6028 = vmatpush1.bf16.msra.mxu0 %v5199
        %6029 = vmatprep.mubr.bf16.mxu0 %v2631
        %6030 = vmatmul.mubr.bf16.gmra.mrb[0].mxu0 %v2630
        %v6031 = vpop.f32.mrb[0].mxu0
        %v6032 = vadd.f32 %v5991, %v6031
        %v6033 = vpop.f32.mrb[0].mxu0
        %v6034 = vadd.f32 %v5993, %v6033
        %v6035 = vpop.f32.mrb[0].mxu0
        %v6036 = vpop.f32.mrb[0].mxu0
        %6037 = vdwg.mxu0
        %6038 = vmatprep.subr.bf16.mxu0 %v5210
        %6039 = vmatpush1.bf16.msra.mxu0 %v5209
        %6040 = vmatprep.subr.bf16.mxu0 %v5220
        %6041 = vmatpush1.bf16.msra.mxu0 %v5219
        %6042 = vmatprep.subr.bf16.mxu0 %v5230
        %6043 = vmatpush1.bf16.msra.mxu0 %v5229
        %6044 = vmatprep.subr.bf16.mxu0 0
        %6045 = vmatpush1.bf16.msra.mxu0 0
        %6046 = vmatprep.subr.bf16.mxu0 0
        %6047 = vmatpush1.bf16.msra.mxu0 0
        %6048 = vmatprep.subr.bf16.mxu0 0
        %6049 = vmatpush1.bf16.msra.mxu0 0
        %6050 = vmatprep.subr.bf16.mxu0 0
        %6051 = vmatpush1.bf16.msra.mxu0 0
        %6052 = vmatprep.subr.bf16.mxu0 0
        %6053 = vmatpush1.bf16.msra.mxu0 0
        %6054 = vmatprep.subr.bf16.mxu0 0
        %6055 = vmatpush1.bf16.msra.mxu0 0
        %6056 = vmatprep.subr.bf16.mxu0 0
        %6057 = vmatpush1.bf16.msra.mxu0 0
        %6058 = vmatprep.subr.bf16.mxu0 0
        %6059 = vmatpush1.bf16.msra.mxu0 0
        %6060 = vmatprep.subr.bf16.mxu0 0
        %6061 = vmatpush1.bf16.msra.mxu0 0
        %6062 = vmatprep.subr.bf16.mxu0 0
        %6063 = vmatpush1.bf16.msra.mxu0 0
        %6064 = vmatprep.subr.bf16.mxu0 0
        %6065 = vmatpush1.bf16.msra.mxu0 0
        %6066 = vmatprep.subr.bf16.mxu0 0
        %6067 = vmatpush1.bf16.msra.mxu0 0
        %6068 = vmatprep.subr.bf16.mxu0 0
        %6069 = vmatpush1.bf16.msra.mxu0 0
        %6070 = vmatprep.mubr.bf16.mxu0 0
        %6071 = vmatmul.mubr.bf16.gmra.mrb[0].mxu0 %v5749
        %v6072 = vpop.f32.mrb[0].mxu0
        %v6073 = vadd.f32 %v6032, %v6072
        %v6074 = vpop.f32.mrb[0].mxu0
        %v6075 = vadd.f32 %v6034, %v6074
        %v6076 = vpop.f32.mrb[0].mxu0
        %v6077 = vpop.f32.mrb[0].mxu0
        %6078 = vdwg.mxu0
        %6079 = vmatprep.subr.bf16.mxu0 %v4732
        %6080 = vmatpush1.bf16.msra.mxu0 %v4731
        %6081 = vmatprep.subr.bf16.mxu0 %v4742
        %6082 = vmatpush1.bf16.msra.mxu0 %v4741
        %6083 = vmatprep.subr.bf16.mxu0 %v4752
        %6084 = vmatpush1.bf16.msra.mxu0 %v4751
        %6085 = vmatprep.subr.bf16.mxu0 %v4762
        %6086 = vmatpush1.bf16.msra.mxu0 %v4761
        %6087 = vmatprep.subr.bf16.mxu0 %v4772
        %6088 = vmatpush1.bf16.msra.mxu0 %v4771
        %6089 = vmatprep.subr.bf16.mxu0 %v4782
        %6090 = vmatpush1.bf16.msra.mxu0 %v4781
        %6091 = vmatprep.subr.bf16.mxu0 %v4792
        %6092 = vmatpush1.bf16.msra.mxu0 %v4791
        %6093 = vmatprep.subr.bf16.mxu0 %v4802
        %6094 = vmatpush1.bf16.msra.mxu0 %v4801
        %6095 = vmatprep.subr.bf16.mxu0 %v4812
        %6096 = vmatpush1.bf16.msra.mxu0 %v4811
        %6097 = vmatprep.subr.bf16.mxu0 %v4822
        %6098 = vmatpush1.bf16.msra.mxu0 %v4821
        %6099 = vmatprep.subr.bf16.mxu0 %v4832
        %6100 = vmatpush1.bf16.msra.mxu0 %v4831
        %6101 = vmatprep.subr.bf16.mxu0 %v4842
        %6102 = vmatpush1.bf16.msra.mxu0 %v4841
        %6103 = vmatprep.subr.bf16.mxu0 %v4852
        %6104 = vmatpush1.bf16.msra.mxu0 %v4851
        %6105 = vmatprep.subr.bf16.mxu0 %v4862
        %6106 = vmatpush1.bf16.msra.mxu0 %v4861
        %6107 = vmatprep.subr.bf16.mxu0 %v4872
        %6108 = vmatpush1.bf16.msra.mxu0 %v4871
        %6109 = vmatprep.subr.bf16.mxu0 %v4882
        %6110 = vmatpush1.bf16.msra.mxu0 %v4881
        %6111 = vmatprep.mubr.bf16.mxu0 %v2627
        %6112 = vmatmul.mubr.bf16.gmra.mrb[0].mxu0 %v2626
        %v6113 = vpop.f32.mrb[0].mxu0
        %v6114 = vadd.f32 %v3166, %v6113
        %v6115 = vpop.f32.mrb[0].mxu0
        %v6116 = vadd.f32 %v3170, %v6115
        %v6117 = vpop.f32.mrb[0].mxu0
        %v6118 = vpop.f32.mrb[0].mxu0
        %6119 = vdwg.mxu0
        %6120 = vmatprep.subr.bf16.mxu0 %v4892
        %6121 = vmatpush1.bf16.msra.mxu0 %v4891
        %6122 = vmatprep.subr.bf16.mxu0 %v4902
        %6123 = vmatpush1.bf16.msra.mxu0 %v4901
        %6124 = vmatprep.subr.bf16.mxu0 %v4912
        %6125 = vmatpush1.bf16.msra.mxu0 %v4911
        %6126 = vmatprep.subr.bf16.mxu0 %v4922
        %6127 = vmatpush1.bf16.msra.mxu0 %v4921
        %6128 = vmatprep.subr.bf16.mxu0 %v4932
        %6129 = vmatpush1.bf16.msra.mxu0 %v4931
        %6130 = vmatprep.subr.bf16.mxu0 %v4942
        %6131 = vmatpush1.bf16.msra.mxu0 %v4941
        %6132 = vmatprep.subr.bf16.mxu0 %v4952
        %6133 = vmatpush1.bf16.msra.mxu0 %v4951
        %6134 = vmatprep.subr.bf16.mxu0 %v4962
        %6135 = vmatpush1.bf16.msra.mxu0 %v4961
        %6136 = vmatprep.subr.bf16.mxu0 %v4972
        %6137 = vmatpush1.bf16.msra.mxu0 %v4971
        %6138 = vmatprep.subr.bf16.mxu0 %v4982
        %6139 = vmatpush1.bf16.msra.mxu0 %v4981
        %6140 = vmatprep.subr.bf16.mxu0 %v4992
        %6141 = vmatpush1.bf16.msra.mxu0 %v4991
        %6142 = vmatprep.subr.bf16.mxu0 %v5002
        %6143 = vmatpush1.bf16.msra.mxu0 %v5001
        %6144 = vmatprep.subr.bf16.mxu0 %v5012
        %6145 = vmatpush1.bf16.msra.mxu0 %v5011
        %6146 = vmatprep.subr.bf16.mxu0 %v5022
        %6147 = vmatpush1.bf16.msra.mxu0 %v5021
        %6148 = vmatprep.subr.bf16.mxu0 %v5032
        %6149 = vmatpush1.bf16.msra.mxu0 %v5031
        %6150 = vmatprep.subr.bf16.mxu0 %v5042
        %6151 = vmatpush1.bf16.msra.mxu0 %v5041
        %6152 = vmatprep.mubr.bf16.mxu0 %v2629
        %6153 = vmatmul.mubr.bf16.gmra.mrb[0].mxu0 %v2628
        %v6154 = vpop.f32.mrb[0].mxu0
        %v6155 = vadd.f32 %v6114, %v6154
        %v6156 = vpop.f32.mrb[0].mxu0
        %v6157 = vadd.f32 %v6116, %v6156
        %v6158 = vpop.f32.mrb[0].mxu0
        %v6159 = vpop.f32.mrb[0].mxu0
        %6160 = vdwg.mxu0
        %6161 = vmatprep.subr.bf16.mxu0 %v5052
        %6162 = vmatpush1.bf16.msra.mxu0 %v5051
        %6163 = vmatprep.subr.bf16.mxu0 %v5062
        %6164 = vmatpush1.bf16.msra.mxu0 %v5061
        %6165 = vmatprep.subr.bf16.mxu0 %v5072
        %6166 = vmatpush1.bf16.msra.mxu0 %v5071
        %6167 = vmatprep.subr.bf16.mxu0 %v5082
        %6168 = vmatpush1.bf16.msra.mxu0 %v5081
        %6169 = vmatprep.subr.bf16.mxu0 %v5092
        %6170 = vmatpush1.bf16.msra.mxu0 %v5091
        %6171 = vmatprep.subr.bf16.mxu0 %v5102
        %6172 = vmatpush1.bf16.msra.mxu0 %v5101
        %6173 = vmatprep.subr.bf16.mxu0 %v5112
        %6174 = vmatpush1.bf16.msra.mxu0 %v5111
        %6175 = vmatprep.subr.bf16.mxu0 %v5122
        %6176 = vmatpush1.bf16.msra.mxu0 %v5121
        %6177 = vmatprep.subr.bf16.mxu0 %v5132
        %6178 = vmatpush1.bf16.msra.mxu0 %v5131
        %6179 = vmatprep.subr.bf16.mxu0 %v5142
        %6180 = vmatpush1.bf16.msra.mxu0 %v5141
        %6181 = vmatprep.subr.bf16.mxu0 %v5152
        %6182 = vmatpush1.bf16.msra.mxu0 %v5151
        %6183 = vmatprep.subr.bf16.mxu0 %v5162
        %6184 = vmatpush1.bf16.msra.mxu0 %v5161
        %6185 = vmatprep.subr.bf16.mxu0 %v5172
        %6186 = vmatpush1.bf16.msra.mxu0 %v5171
        %6187 = vmatprep.subr.bf16.mxu0 %v5182
        %6188 = vmatpush1.bf16.msra.mxu0 %v5181
        %6189 = vmatprep.subr.bf16.mxu0 %v5192
        %6190 = vmatpush1.bf16.msra.mxu0 %v5191
        %6191 = vmatprep.subr.bf16.mxu0 %v5202
        %6192 = vmatpush1.bf16.msra.mxu0 %v5201
        %6193 = vmatprep.mubr.bf16.mxu0 %v2631
        %6194 = vmatmul.mubr.bf16.gmra.mrb[0].mxu0 %v2630
        %v6195 = vpop.f32.mrb[0].mxu0
        %v6196 = vadd.f32 %v6155, %v6195
        %v6197 = vpop.f32.mrb[0].mxu0
        %v6198 = vadd.f32 %v6157, %v6197
        %v6199 = vpop.f32.mrb[0].mxu0
        %v6200 = vpop.f32.mrb[0].mxu0
        %6201 = vdwg.mxu0
        %6202 = vmatprep.subr.bf16.mxu0 %v5212
        %6203 = vmatpush1.bf16.msra.mxu0 %v5211
        %6204 = vmatprep.subr.bf16.mxu0 %v5222
        %6205 = vmatpush1.bf16.msra.mxu0 %v5221
        %6206 = vmatprep.subr.bf16.mxu0 %v5232
        %6207 = vmatpush1.bf16.msra.mxu0 %v5231
        %6208 = vmatprep.subr.bf16.mxu0 0
        %6209 = vmatpush1.bf16.msra.mxu0 0
        %6210 = vmatprep.subr.bf16.mxu0 0
        %6211 = vmatpush1.bf16.msra.mxu0 0
        %6212 = vmatprep.subr.bf16.mxu0 0
        %6213 = vmatpush1.bf16.msra.mxu0 0
        %6214 = vmatprep.subr.bf16.mxu0 0
        %6215 = vmatpush1.bf16.msra.mxu0 0
        %6216 = vmatprep.subr.bf16.mxu0 0
        %6217 = vmatpush1.bf16.msra.mxu0 0
        %6218 = vmatprep.subr.bf16.mxu0 0
        %6219 = vmatpush1.bf16.msra.mxu0 0
        %6220 = vmatprep.subr.bf16.mxu0 0
        %6221 = vmatpush1.bf16.msra.mxu0 0
        %6222 = vmatprep.subr.bf16.mxu0 0
        %6223 = vmatpush1.bf16.msra.mxu0 0
        %6224 = vmatprep.subr.bf16.mxu0 0
        %6225 = vmatpush1.bf16.msra.mxu0 0
        %6226 = vmatprep.subr.bf16.mxu0 0
        %6227 = vmatpush1.bf16.msra.mxu0 0
        %6228 = vmatprep.subr.bf16.mxu0 0
        %6229 = vmatpush1.bf16.msra.mxu0 0
        %6230 = vmatprep.subr.bf16.mxu0 0
        %6231 = vmatpush1.bf16.msra.mxu0 0
        %6232 = vmatprep.subr.bf16.mxu0 0
        %6233 = vmatpush1.bf16.msra.mxu0 0
        %6234 = vmatprep.mubr.bf16.mxu0 0
        %6235 = vmatmul.mubr.bf16.gmra.mrb[0].mxu0 %v5749
        %v6236 = vpop.f32.mrb[0].mxu0
        %v6237 = vadd.f32 %v6196, %v6236
        %v6238 = vpop.f32.mrb[0].mxu0
        %v6239 = vadd.f32 %v6198, %v6238
        %v6240 = vpop.f32.mrb[0].mxu0
        %v6241 = vpop.f32.mrb[0].mxu0
        %6242 = vdwg.mxu0
        %6243 = vmatprep.subr.bf16.mxu0 %v4734
        %6244 = vmatpush1.bf16.msra.mxu0 %v4733
        %6245 = vmatprep.subr.bf16.mxu0 %v4744
        %6246 = vmatpush1.bf16.msra.mxu0 %v4743
        %6247 = vmatprep.subr.bf16.mxu0 %v4754
        %6248 = vmatpush1.bf16.msra.mxu0 %v4753
        %6249 = vmatprep.subr.bf16.mxu0 %v4764
        %6250 = vmatpush1.bf16.msra.mxu0 %v4763
        %6251 = vmatprep.subr.bf16.mxu0 %v4774
        %6252 = vmatpush1.bf16.msra.mxu0 %v4773
        %6253 = vmatprep.subr.bf16.mxu0 %v4784
        %6254 = vmatpush1.bf16.msra.mxu0 %v4783
        %6255 = vmatprep.subr.bf16.mxu0 %v4794
        %6256 = vmatpush1.bf16.msra.mxu0 %v4793
        %6257 = vmatprep.subr.bf16.mxu0 %v4804
        %6258 = vmatpush1.bf16.msra.mxu0 %v4803
        %6259 = vmatprep.subr.bf16.mxu0 %v4814
        %6260 = vmatpush1.bf16.msra.mxu0 %v4813
        %6261 = vmatprep.subr.bf16.mxu0 %v4824
        %6262 = vmatpush1.bf16.msra.mxu0 %v4823
        %6263 = vmatprep.subr.bf16.mxu0 %v4834
        %6264 = vmatpush1.bf16.msra.mxu0 %v4833
        %6265 = vmatprep.subr.bf16.mxu0 %v4844
        %6266 = vmatpush1.bf16.msra.mxu0 %v4843
        %6267 = vmatprep.subr.bf16.mxu0 %v4854
        %6268 = vmatpush1.bf16.msra.mxu0 %v4853
        %6269 = vmatprep.subr.bf16.mxu0 %v4864
        %6270 = vmatpush1.bf16.msra.mxu0 %v4863
        %6271 = vmatprep.subr.bf16.mxu0 %v4874
        %6272 = vmatpush1.bf16.msra.mxu0 %v4873
        %6273 = vmatprep.subr.bf16.mxu0 %v4884
        %6274 = vmatpush1.bf16.msra.mxu0 %v4883
        %6275 = vmatprep.mubr.bf16.mxu0 %v2627
        %6276 = vmatmul.mubr.bf16.gmra.mrb[0].mxu0 %v2626
        %v6277 = vpop.f32.mrb[0].mxu0
        %v6278 = vadd.f32 %v3174, %v6277
        %v6279 = vpop.f32.mrb[0].mxu0
        %v6280 = vadd.f32 %v3178, %v6279
        %v6281 = vpop.f32.mrb[0].mxu0
        %v6282 = vpop.f32.mrb[0].mxu0
        %6283 = vdwg.mxu0
        %6284 = vmatprep.subr.bf16.mxu0 %v4894
        %6285 = vmatpush1.bf16.msra.mxu0 %v4893
        %6286 = vmatprep.subr.bf16.mxu0 %v4904
        %6287 = vmatpush1.bf16.msra.mxu0 %v4903
        %6288 = vmatprep.subr.bf16.mxu0 %v4914
        %6289 = vmatpush1.bf16.msra.mxu0 %v4913
        %6290 = vmatprep.subr.bf16.mxu0 %v4924
        %6291 = vmatpush1.bf16.msra.mxu0 %v4923
        %6292 = vmatprep.subr.bf16.mxu0 %v4934
        %6293 = vmatpush1.bf16.msra.mxu0 %v4933
        %6294 = vmatprep.subr.bf16.mxu0 %v4944
        %6295 = vmatpush1.bf16.msra.mxu0 %v4943
        %6296 = vmatprep.subr.bf16.mxu0 %v4954
        %6297 = vmatpush1.bf16.msra.mxu0 %v4953
        %6298 = vmatprep.subr.bf16.mxu0 %v4964
        %6299 = vmatpush1.bf16.msra.mxu0 %v4963
        %6300 = vmatprep.subr.bf16.mxu0 %v4974
        %6301 = vmatpush1.bf16.msra.mxu0 %v4973
        %6302 = vmatprep.subr.bf16.mxu0 %v4984
        %6303 = vmatpush1.bf16.msra.mxu0 %v4983
        %6304 = vmatprep.subr.bf16.mxu0 %v4994
        %6305 = vmatpush1.bf16.msra.mxu0 %v4993
        %6306 = vmatprep.subr.bf16.mxu0 %v5004
        %6307 = vmatpush1.bf16.msra.mxu0 %v5003
        %6308 = vmatprep.subr.bf16.mxu0 %v5014
        %6309 = vmatpush1.bf16.msra.mxu0 %v5013
        %6310 = vmatprep.subr.bf16.mxu0 %v5024
        %6311 = vmatpush1.bf16.msra.mxu0 %v5023
        %6312 = vmatprep.subr.bf16.mxu0 %v5034
        %6313 = vmatpush1.bf16.msra.mxu0 %v5033
        %6314 = vmatprep.subr.bf16.mxu0 %v5044
        %6315 = vmatpush1.bf16.msra.mxu0 %v5043
        %6316 = vmatprep.mubr.bf16.mxu0 %v2629
        %6317 = vmatmul.mubr.bf16.gmra.mrb[0].mxu0 %v2628
        %v6318 = vpop.f32.mrb[0].mxu0
        %v6319 = vadd.f32 %v6278, %v6318
        %v6320 = vpop.f32.mrb[0].mxu0
        %v6321 = vadd.f32 %v6280, %v6320
        %v6322 = vpop.f32.mrb[0].mxu0
        %v6323 = vpop.f32.mrb[0].mxu0
        %6324 = vdwg.mxu0
        %6325 = vmatprep.subr.bf16.mxu0 %v5054
        %6326 = vmatpush1.bf16.msra.mxu0 %v5053
        %6327 = vmatprep.subr.bf16.mxu0 %v5064
        %6328 = vmatpush1.bf16.msra.mxu0 %v5063
        %6329 = vmatprep.subr.bf16.mxu0 %v5074
        %6330 = vmatpush1.bf16.msra.mxu0 %v5073
        %6331 = vmatprep.subr.bf16.mxu0 %v5084
        %6332 = vmatpush1.bf16.msra.mxu0 %v5083
        %6333 = vmatprep.subr.bf16.mxu0 %v5094
        %6334 = vmatpush1.bf16.msra.mxu0 %v5093
        %6335 = vmatprep.subr.bf16.mxu0 %v5104
        %6336 = vmatpush1.bf16.msra.mxu0 %v5103
        %6337 = vmatprep.subr.bf16.mxu0 %v5114
        %6338 = vmatpush1.bf16.msra.mxu0 %v5113
        %6339 = vmatprep.subr.bf16.mxu0 %v5124
        %6340 = vmatpush1.bf16.msra.mxu0 %v5123
        %6341 = vmatprep.subr.bf16.mxu0 %v5134
        %6342 = vmatpush1.bf16.msra.mxu0 %v5133
        %6343 = vmatprep.subr.bf16.mxu0 %v5144
        %6344 = vmatpush1.bf16.msra.mxu0 %v5143
        %6345 = vmatprep.subr.bf16.mxu0 %v5154
        %6346 = vmatpush1.bf16.msra.mxu0 %v5153
        %6347 = vmatprep.subr.bf16.mxu0 %v5164
        %6348 = vmatpush1.bf16.msra.mxu0 %v5163
        %6349 = vmatprep.subr.bf16.mxu0 %v5174
        %6350 = vmatpush1.bf16.msra.mxu0 %v5173
        %6351 = vmatprep.subr.bf16.mxu0 %v5184
        %6352 = vmatpush1.bf16.msra.mxu0 %v5183
        %6353 = vmatprep.subr.bf16.mxu0 %v5194
        %6354 = vmatpush1.bf16.msra.mxu0 %v5193
        %6355 = vmatprep.subr.bf16.mxu0 %v5204
        %6356 = vmatpush1.bf16.msra.mxu0 %v5203
        %6357 = vmatprep.mubr.bf16.mxu0 %v2631
        %6358 = vmatmul.mubr.bf16.gmra.mrb[0].mxu0 %v2630
        %v6359 = vpop.f32.mrb[0].mxu0
        %v6360 = vadd.f32 %v6319, %v6359
        %v6361 = vpop.f32.mrb[0].mxu0
        %v6362 = vadd.f32 %v6321, %v6361
        %v6363 = vpop.f32.mrb[0].mxu0
        %v6364 = vpop.f32.mrb[0].mxu0
        %6365 = vdwg.mxu0
        %6366 = vmatprep.subr.bf16.mxu0 %v5214
        %6367 = vmatpush1.bf16.msra.mxu0 %v5213
        %6368 = vmatprep.subr.bf16.mxu0 %v5224
        %6369 = vmatpush1.bf16.msra.mxu0 %v5223
        %6370 = vmatprep.subr.bf16.mxu0 %v5234
        %6371 = vmatpush1.bf16.msra.mxu0 %v5233
        %6372 = vmatprep.subr.bf16.mxu0 0
        %6373 = vmatpush1.bf16.msra.mxu0 0
        %6374 = vmatprep.subr.bf16.mxu0 0
        %6375 = vmatpush1.bf16.msra.mxu0 0
        %6376 = vmatprep.subr.bf16.mxu0 0
        %6377 = vmatpush1.bf16.msra.mxu0 0
        %6378 = vmatprep.subr.bf16.mxu0 0
        %6379 = vmatpush1.bf16.msra.mxu0 0
        %6380 = vmatprep.subr.bf16.mxu0 0
        %6381 = vmatpush1.bf16.msra.mxu0 0
        %6382 = vmatprep.subr.bf16.mxu0 0
        %6383 = vmatpush1.bf16.msra.mxu0 0
        %6384 = vmatprep.subr.bf16.mxu0 0
        %6385 = vmatpush1.bf16.msra.mxu0 0
        %6386 = vmatprep.subr.bf16.mxu0 0
        %6387 = vmatpush1.bf16.msra.mxu0 0
        %6388 = vmatprep.subr.bf16.mxu0 0
        %6389 = vmatpush1.bf16.msra.mxu0 0
        %6390 = vmatprep.subr.bf16.mxu0 0
        %6391 = vmatpush1.bf16.msra.mxu0 0
        %6392 = vmatprep.subr.bf16.mxu0 0
        %6393 = vmatpush1.bf16.msra.mxu0 0
        %6394 = vmatprep.subr.bf16.mxu0 0
        %6395 = vmatpush1.bf16.msra.mxu0 0
        %6396 = vmatprep.subr.bf16.mxu0 0
        %6397 = vmatpush1.bf16.msra.mxu0 0
        %6398 = vmatprep.mubr.bf16.mxu0 0
        %6399 = vmatmul.mubr.bf16.gmra.mrb[0].mxu0 %v5749
        %v6400 = vpop.f32.mrb[0].mxu0
        %v6401 = vadd.f32 %v6360, %v6400
        %v6402 = vpop.f32.mrb[0].mxu0
        %v6403 = vadd.f32 %v6362, %v6402
        %v6404 = vpop.f32.mrb[0].mxu0
        %v6405 = vpop.f32.mrb[0].mxu0
        %6406 = vdwg.mxu0
        %6407 = vmatprep.subr.bf16.mxu0 %v4736
        %6408 = vmatpush1.bf16.msra.mxu0 %v4735
        %6409 = vmatprep.subr.bf16.mxu0 %v4746
        %6410 = vmatpush1.bf16.msra.mxu0 %v4745
        %6411 = vmatprep.subr.bf16.mxu0 %v4756
        %6412 = vmatpush1.bf16.msra.mxu0 %v4755
        %6413 = vmatprep.subr.bf16.mxu0 %v4766
        %6414 = vmatpush1.bf16.msra.mxu0 %v4765
        %6415 = vmatprep.subr.bf16.mxu0 %v4776
        %6416 = vmatpush1.bf16.msra.mxu0 %v4775
        %6417 = vmatprep.subr.bf16.mxu0 %v4786
        %6418 = vmatpush1.bf16.msra.mxu0 %v4785
        %6419 = vmatprep.subr.bf16.mxu0 %v4796
        %6420 = vmatpush1.bf16.msra.mxu0 %v4795
        %6421 = vmatprep.subr.bf16.mxu0 %v4806
        %6422 = vmatpush1.bf16.msra.mxu0 %v4805
        %6423 = vmatprep.subr.bf16.mxu0 %v4816
        %6424 = vmatpush1.bf16.msra.mxu0 %v4815
        %6425 = vmatprep.subr.bf16.mxu0 %v4826
        %6426 = vmatpush1.bf16.msra.mxu0 %v4825
        %6427 = vmatprep.subr.bf16.mxu0 %v4836
        %6428 = vmatpush1.bf16.msra.mxu0 %v4835
        %6429 = vmatprep.subr.bf16.mxu0 %v4846
        %6430 = vmatpush1.bf16.msra.mxu0 %v4845
        %6431 = vmatprep.subr.bf16.mxu0 %v4856
        %6432 = vmatpush1.bf16.msra.mxu0 %v4855
        %6433 = vmatprep.subr.bf16.mxu0 %v4866
        %6434 = vmatpush1.bf16.msra.mxu0 %v4865
        %6435 = vmatprep.subr.bf16.mxu0 %v4876
        %6436 = vmatpush1.bf16.msra.mxu0 %v4875
        %6437 = vmatprep.subr.bf16.mxu0 %v4886
        %6438 = vmatpush1.bf16.msra.mxu0 %v4885
        %6439 = vmatprep.mubr.bf16.mxu0 %v2627
        %6440 = vmatmul.mubr.bf16.gmra.mrb[0].mxu0 %v2626
        %v6441 = vpop.f32.mrb[0].mxu0
        %v6442 = vadd.f32 %v3182, %v6441
        %v6443 = vpop.f32.mrb[0].mxu0
        %v6444 = vadd.f32 %v3186, %v6443
        %v6445 = vpop.f32.mrb[0].mxu0
        %v6446 = vpop.f32.mrb[0].mxu0
        %6447 = vdwg.mxu0
        %6448 = vmatprep.subr.bf16.mxu0 %v4896
        %6449 = vmatpush1.bf16.msra.mxu0 %v4895
        %6450 = vmatprep.subr.bf16.mxu0 %v4906
        %6451 = vmatpush1.bf16.msra.mxu0 %v4905
        %6452 = vmatprep.subr.bf16.mxu0 %v4916
        %6453 = vmatpush1.bf16.msra.mxu0 %v4915
        %6454 = vmatprep.subr.bf16.mxu0 %v4926
        %6455 = vmatpush1.bf16.msra.mxu0 %v4925
        %6456 = vmatprep.subr.bf16.mxu0 %v4936
        %6457 = vmatpush1.bf16.msra.mxu0 %v4935
        %6458 = vmatprep.subr.bf16.mxu0 %v4946
        %6459 = vmatpush1.bf16.msra.mxu0 %v4945
        %6460 = vmatprep.subr.bf16.mxu0 %v4956
        %6461 = vmatpush1.bf16.msra.mxu0 %v4955
        %6462 = vmatprep.subr.bf16.mxu0 %v4966
        %6463 = vmatpush1.bf16.msra.mxu0 %v4965
        %6464 = vmatprep.subr.bf16.mxu0 %v4976
        %6465 = vmatpush1.bf16.msra.mxu0 %v4975
        %6466 = vmatprep.subr.bf16.mxu0 %v4986
        %6467 = vmatpush1.bf16.msra.mxu0 %v4985
        %6468 = vmatprep.subr.bf16.mxu0 %v4996
        %6469 = vmatpush1.bf16.msra.mxu0 %v4995
        %6470 = vmatprep.subr.bf16.mxu0 %v5006
        %6471 = vmatpush1.bf16.msra.mxu0 %v5005
        %6472 = vmatprep.subr.bf16.mxu0 %v5016
        %6473 = vmatpush1.bf16.msra.mxu0 %v5015
        %6474 = vmatprep.subr.bf16.mxu0 %v5026
        %6475 = vmatpush1.bf16.msra.mxu0 %v5025
        %6476 = vmatprep.subr.bf16.mxu0 %v5036
        %6477 = vmatpush1.bf16.msra.mxu0 %v5035
        %6478 = vmatprep.subr.bf16.mxu0 %v5046
        %6479 = vmatpush1.bf16.msra.mxu0 %v5045
        %6480 = vmatprep.mubr.bf16.mxu0 %v2629
        %6481 = vmatmul.mubr.bf16.gmra.mrb[0].mxu0 %v2628
        %v6482 = vpop.f32.mrb[0].mxu0
        %v6483 = vadd.f32 %v6442, %v6482
        %v6484 = vpop.f32.mrb[0].mxu0
        %v6485 = vadd.f32 %v6444, %v6484
        %v6486 = vpop.f32.mrb[0].mxu0
        %v6487 = vpop.f32.mrb[0].mxu0
        %6488 = vdwg.mxu0
        %6489 = vmatprep.subr.bf16.mxu0 %v5056
        %6490 = vmatpush1.bf16.msra.mxu0 %v5055
        %6491 = vmatprep.subr.bf16.mxu0 %v5066
        %6492 = vmatpush1.bf16.msra.mxu0 %v5065
        %6493 = vmatprep.subr.bf16.mxu0 %v5076
        %6494 = vmatpush1.bf16.msra.mxu0 %v5075
        %6495 = vmatprep.subr.bf16.mxu0 %v5086
        %6496 = vmatpush1.bf16.msra.mxu0 %v5085
        %6497 = vmatprep.subr.bf16.mxu0 %v5096
        %6498 = vmatpush1.bf16.msra.mxu0 %v5095
        %6499 = vmatprep.subr.bf16.mxu0 %v5106
        %6500 = vmatpush1.bf16.msra.mxu0 %v5105
        %6501 = vmatprep.subr.bf16.mxu0 %v5116
        %6502 = vmatpush1.bf16.msra.mxu0 %v5115
        %6503 = vmatprep.subr.bf16.mxu0 %v5126
        %6504 = vmatpush1.bf16.msra.mxu0 %v5125
        %6505 = vmatprep.subr.bf16.mxu0 %v5136
        %6506 = vmatpush1.bf16.msra.mxu0 %v5135
        %6507 = vmatprep.subr.bf16.mxu0 %v5146
        %6508 = vmatpush1.bf16.msra.mxu0 %v5145
        %6509 = vmatprep.subr.bf16.mxu0 %v5156
        %6510 = vmatpush1.bf16.msra.mxu0 %v5155
        %6511 = vmatprep.subr.bf16.mxu0 %v5166
        %6512 = vmatpush1.bf16.msra.mxu0 %v5165
        %6513 = vmatprep.subr.bf16.mxu0 %v5176
        %6514 = vmatpush1.bf16.msra.mxu0 %v5175
        %6515 = vmatprep.subr.bf16.mxu0 %v5186
        %6516 = vmatpush1.bf16.msra.mxu0 %v5185
        %6517 = vmatprep.subr.bf16.mxu0 %v5196
        %6518 = vmatpush1.bf16.msra.mxu0 %v5195
        %6519 = vmatprep.subr.bf16.mxu0 %v5206
        %6520 = vmatpush1.bf16.msra.mxu0 %v5205
        %6521 = vmatprep.mubr.bf16.mxu0 %v2631
        %6522 = vmatmul.mubr.bf16.gmra.mrb[0].mxu0 %v2630
        %v6523 = vpop.f32.mrb[0].mxu0
        %v6524 = vadd.f32 %v6483, %v6523
        %v6525 = vpop.f32.mrb[0].mxu0
        %v6526 = vadd.f32 %v6485, %v6525
        %v6527 = vpop.f32.mrb[0].mxu0
        %v6528 = vpop.f32.mrb[0].mxu0
        %6529 = vdwg.mxu0
        %6530 = vmatprep.subr.bf16.mxu0 %v5216
        %6531 = vmatpush1.bf16.msra.mxu0 %v5215
        %6532 = vmatprep.subr.bf16.mxu0 %v5226
        %6533 = vmatpush1.bf16.msra.mxu0 %v5225
        %6534 = vmatprep.subr.bf16.mxu0 %v5236
        %6535 = vmatpush1.bf16.msra.mxu0 %v5235
        %6536 = vmatprep.subr.bf16.mxu0 0
        %6537 = vmatpush1.bf16.msra.mxu0 0
        %6538 = vmatprep.subr.bf16.mxu0 0
        %6539 = vmatpush1.bf16.msra.mxu0 0
        %6540 = vmatprep.subr.bf16.mxu0 0
        %6541 = vmatpush1.bf16.msra.mxu0 0
        %6542 = vmatprep.subr.bf16.mxu0 0
        %6543 = vmatpush1.bf16.msra.mxu0 0
        %6544 = vmatprep.subr.bf16.mxu0 0
        %6545 = vmatpush1.bf16.msra.mxu0 0
        %6546 = vmatprep.subr.bf16.mxu0 0
        %6547 = vmatpush1.bf16.msra.mxu0 0
        %6548 = vmatprep.subr.bf16.mxu0 0
        %6549 = vmatpush1.bf16.msra.mxu0 0
        %6550 = vmatprep.subr.bf16.mxu0 0
        %6551 = vmatpush1.bf16.msra.mxu0 0
        %6552 = vmatprep.subr.bf16.mxu0 0
        %6553 = vmatpush1.bf16.msra.mxu0 0
        %6554 = vmatprep.subr.bf16.mxu0 0
        %6555 = vmatpush1.bf16.msra.mxu0 0
        %6556 = vmatprep.subr.bf16.mxu0 0
        %6557 = vmatpush1.bf16.msra.mxu0 0
        %6558 = vmatprep.subr.bf16.mxu0 0
        %6559 = vmatpush1.bf16.msra.mxu0 0
        %6560 = vmatprep.subr.bf16.mxu0 0
        %6561 = vmatpush1.bf16.msra.mxu0 0
        %6562 = vmatprep.mubr.bf16.mxu0 0
        %6563 = vmatmul.mubr.bf16.gmra.mrb[0].mxu0 %v5749
        %v6564 = vpop.f32.mrb[0].mxu0
        %v6565 = vadd.f32 %v6524, %v6564
        %v6566 = vpop.f32.mrb[0].mxu0
        %v6567 = vadd.f32 %v6526, %v6566
        %v6568 = vpop.f32.mrb[0].mxu0
        %v6569 = vpop.f32.mrb[0].mxu0
        %6570 = vdwg.mxu0
        %s6571 = smul.u32 %s41, 1280
        %s6572 = sshra.s32 %s6571, 3
        %s6573 = sand.u32 %s6571, 7
        %s6574 = smul.addr %s6572, 4
        %s6575 = scalar_lea.vmem %s15, %s6574
        %v6576 = vld [vmem:[%s6575] sm:$0xf]
        %v6577 = vld [vmem:[%s6575 + $0x4] sm:$0xf]
        %v6578 = vld [vmem:[%s6575 + $0x8] sm:$0xf]
        %v6579 = vld [vmem:[%s6575 + $0xc] sm:$0xf]
        %v6580 = vld [vmem:[%s6575 + $0x10] sm:$0xf]
        %v6581 = vld [vmem:[%s6575 + $0x14] sm:$0xf]
        %v6582 = vld [vmem:[%s6575 + $0x18] sm:$0xf]
        %v6583 = vld [vmem:[%s6575 + $0x1c] sm:$0xf]
        %v6584 = vld [vmem:[%s6575 + $0x20] sm:$0xf]
        %v6585 = vld [vmem:[%s6575 + $0x24] sm:$0xf]
        %v6586 = vld [vmem:[%s6575 + $0x28] sm:$0xf]
        %v6587 = vld [vmem:[%s6575 + $0x2c] sm:$0xf]
        %v6588 = vld [vmem:[%s6575 + $0x30] sm:$0xf]
        %v6589 = vld [vmem:[%s6575 + $0x34] sm:$0xf]
        %v6590 = vld [vmem:[%s6575 + $0x38] sm:$0xf]
        %v6591 = vld [vmem:[%s6575 + $0x3c] sm:$0xf]
        %v6592 = vld [vmem:[%s6575 + $0x40] sm:$0xf]
        %v6593 = vld [vmem:[%s6575 + $0x44] sm:$0xf]
        %v6594 = vld [vmem:[%s6575 + $0x48] sm:$0xf]
        %v6595 = vld [vmem:[%s6575 + $0x4c] sm:$0xf]
        %v6596 = vld [vmem:[%s6575 + $0x50] sm:$0xf]
        %v6597 = vld [vmem:[%s6575 + $0x54] sm:$0xf]
        %v6598 = vld [vmem:[%s6575 + $0x58] sm:$0xf]
        %v6599 = vld [vmem:[%s6575 + $0x5c] sm:$0xf]
        %v6600 = vld [vmem:[%s6575 + $0x60] sm:$0xf]
        %v6601 = vld [vmem:[%s6575 + $0x64] sm:$0xf]
        %v6602 = vld [vmem:[%s6575 + $0x68] sm:$0xf]
        %v6603 = vld [vmem:[%s6575 + $0x6c] sm:$0xf]
        %v6604 = vld [vmem:[%s6575 + $0x70] sm:$0xf]
        %v6605 = vld [vmem:[%s6575 + $0x74] sm:$0xf]
        %v6606 = vld [vmem:[%s6575 + $0x78] sm:$0xf]
        %v6607 = vld [vmem:[%s6575 + $0x7c] sm:$0xf]
        %v6608 = vld [vmem:[%s6575 + $0x80] sm:$0xf]
        %v6609 = vld [vmem:[%s6575 + $0x84] sm:$0xf]
        %v6610 = vld [vmem:[%s6575 + $0x88] sm:$0xf]
        %v6611 = vld [vmem:[%s6575 + $0x8c] sm:$0xf]
        %v6612 = vld [vmem:[%s6575 + $0x90] sm:$0xf]
        %v6613 = vld [vmem:[%s6575 + $0x94] sm:$0xf]
        %v6614 = vld [vmem:[%s6575 + $0x98] sm:$0xf]
        %v6615 = vld [vmem:[%s6575 + $0x9c] sm:$0xf]
        %v6616 = vld [vmem:[%s6575 + $0xa0] sm:$0xf]
        %v6617 = vld [vmem:[%s6575 + $0xa4] sm:$0xf]
        %v6618 = vld [vmem:[%s6575 + $0xa8] sm:$0xf]
        %v6619 = vld [vmem:[%s6575 + $0xac] sm:$0xf]
        %v6620 = vld [vmem:[%s6575 + $0xb0] sm:$0xf]
        %v6621 = vld [vmem:[%s6575 + $0xb4] sm:$0xf]
        %v6622 = vld [vmem:[%s6575 + $0xb8] sm:$0xf]
        %v6623 = vld [vmem:[%s6575 + $0xbc] sm:$0xf]
        %v6624 = vld [vmem:[%s6575 + $0xc0] sm:$0xf]
        %v6625 = vld [vmem:[%s6575 + $0xc4] sm:$0xf]
        %v6626 = vld [vmem:[%s6575 + $0xc8] sm:$0xf]
        %v6627 = vld [vmem:[%s6575 + $0xcc] sm:$0xf]
        %v6628 = vld [vmem:[%s6575 + $0xd0] sm:$0xf]
        %v6629 = vld [vmem:[%s6575 + $0xd4] sm:$0xf]
        %v6630 = vld [vmem:[%s6575 + $0xd8] sm:$0xf]
        %v6631 = vld [vmem:[%s6575 + $0xdc] sm:$0xf]
        %v6632 = vld [vmem:[%s6575 + $0xe0] sm:$0xf]
        %v6633 = vld [vmem:[%s6575 + $0xe4] sm:$0xf]
        %v6634 = vld [vmem:[%s6575 + $0xe8] sm:$0xf]
        %v6635 = vld [vmem:[%s6575 + $0xec] sm:$0xf]
        %v6636 = vld [vmem:[%s6575 + $0xf0] sm:$0xf]
        %v6637 = vld [vmem:[%s6575 + $0xf4] sm:$0xf]
        %v6638 = vld [vmem:[%s6575 + $0xf8] sm:$0xf]
        %v6639 = vld [vmem:[%s6575 + $0xfc] sm:$0xf]
        %v6640 = vld [vmem:[%s6575 + $0x100] sm:$0xf]
        %v6641 = vld [vmem:[%s6575 + $0x104] sm:$0xf]
        %v6642 = vld [vmem:[%s6575 + $0x108] sm:$0xf]
        %v6643 = vld [vmem:[%s6575 + $0x10c] sm:$0xf]
        %v6644 = vld [vmem:[%s6575 + $0x110] sm:$0xf]
        %v6645 = vld [vmem:[%s6575 + $0x114] sm:$0xf]
        %v6646 = vld [vmem:[%s6575 + $0x118] sm:$0xf]
        %v6647 = vld [vmem:[%s6575 + $0x11c] sm:$0xf]
        %v6648 = vld [vmem:[%s6575 + $0x120] sm:$0xf]
        %v6649 = vld [vmem:[%s6575 + $0x124] sm:$0xf]
        %v6650 = vld [vmem:[%s6575 + $0x128] sm:$0xf]
        %v6651 = vld [vmem:[%s6575 + $0x12c] sm:$0xf]
        %v6652 = vld [vmem:[%s6575 + $0x130] sm:$0xf]
        %v6653 = vld [vmem:[%s6575 + $0x134] sm:$0xf]
        %v6654 = vld [vmem:[%s6575 + $0x138] sm:$0xf]
        %v6655 = vld [vmem:[%s6575 + $0x13c] sm:$0xf]
        %v6656 = vld [vmem:[%s6575 + $0x140] sm:$0xf]
        %v6657 = vld [vmem:[%s6575 + $0x144] sm:$0xf]
        %v6658 = vld [vmem:[%s6575 + $0x148] sm:$0xf]
        %v6659 = vld [vmem:[%s6575 + $0x14c] sm:$0xf]
        %v6660 = vld [vmem:[%s6575 + $0x150] sm:$0xf]
        %v6661 = vld [vmem:[%s6575 + $0x154] sm:$0xf]
        %v6662 = vld [vmem:[%s6575 + $0x158] sm:$0xf]
        %v6663 = vld [vmem:[%s6575 + $0x15c] sm:$0xf]
        %v6664 = vld [vmem:[%s6575 + $0x160] sm:$0xf]
        %v6665 = vld [vmem:[%s6575 + $0x164] sm:$0xf]
        %v6666 = vld [vmem:[%s6575 + $0x168] sm:$0xf]
        %v6667 = vld [vmem:[%s6575 + $0x16c] sm:$0xf]
        %v6668 = vld [vmem:[%s6575 + $0x170] sm:$0xf]
        %v6669 = vld [vmem:[%s6575 + $0x174] sm:$0xf]
        %v6670 = vld [vmem:[%s6575 + $0x178] sm:$0xf]
        %v6671 = vld [vmem:[%s6575 + $0x17c] sm:$0xf]
        %v6672 = vld [vmem:[%s6575 + $0x180] sm:$0xf]
        %v6673 = vld [vmem:[%s6575 + $0x184] sm:$0xf]
        %v6674 = vld [vmem:[%s6575 + $0x188] sm:$0xf]
        %v6675 = vld [vmem:[%s6575 + $0x18c] sm:$0xf]
        %v6676 = vld [vmem:[%s6575 + $0x190] sm:$0xf]
        %v6677 = vld [vmem:[%s6575 + $0x194] sm:$0xf]
        %v6678 = vld [vmem:[%s6575 + $0x198] sm:$0xf]
        %v6679 = vld [vmem:[%s6575 + $0x19c] sm:$0xf]
        %v6680 = vld [vmem:[%s6575 + $0x1a0] sm:$0xf]
        %v6681 = vld [vmem:[%s6575 + $0x1a4] sm:$0xf]
        %v6682 = vld [vmem:[%s6575 + $0x1a8] sm:$0xf]
        %v6683 = vld [vmem:[%s6575 + $0x1ac] sm:$0xf]
        %v6684 = vld [vmem:[%s6575 + $0x1b0] sm:$0xf]
        %v6685 = vld [vmem:[%s6575 + $0x1b4] sm:$0xf]
        %v6686 = vld [vmem:[%s6575 + $0x1b8] sm:$0xf]
        %v6687 = vld [vmem:[%s6575 + $0x1bc] sm:$0xf]
        %v6688 = vld [vmem:[%s6575 + $0x1c0] sm:$0xf]
        %v6689 = vld [vmem:[%s6575 + $0x1c4] sm:$0xf]
        %v6690 = vld [vmem:[%s6575 + $0x1c8] sm:$0xf]
        %v6691 = vld [vmem:[%s6575 + $0x1cc] sm:$0xf]
        %v6692 = vld [vmem:[%s6575 + $0x1d0] sm:$0xf]
        %v6693 = vld [vmem:[%s6575 + $0x1d4] sm:$0xf]
        %v6694 = vld [vmem:[%s6575 + $0x1d8] sm:$0xf]
        %v6695 = vld [vmem:[%s6575 + $0x1dc] sm:$0xf]
        %v6696 = vld [vmem:[%s6575 + $0x1e0] sm:$0xf]
        %v6697 = vld [vmem:[%s6575 + $0x1e4] sm:$0xf]
        %v6698 = vld [vmem:[%s6575 + $0x1e8] sm:$0xf]
        %v6699 = vld [vmem:[%s6575 + $0x1ec] sm:$0xf]
        %v6700 = vld [vmem:[%s6575 + $0x1f0] sm:$0xf]
        %v6701 = vld [vmem:[%s6575 + $0x1f4] sm:$0xf]
        %v6702 = vld [vmem:[%s6575 + $0x1f8] sm:$0xf]
        %v6703 = vld [vmem:[%s6575 + $0x1fc] sm:$0xf]
        %v6704 = vld [vmem:[%s6575 + $0x200] sm:$0xf]
        %v6705 = vld [vmem:[%s6575 + $0x204] sm:$0xf]
        %v6706 = vld [vmem:[%s6575 + $0x208] sm:$0xf]
        %v6707 = vld [vmem:[%s6575 + $0x20c] sm:$0xf]
        %v6708 = vld [vmem:[%s6575 + $0x210] sm:$0xf]
        %v6709 = vld [vmem:[%s6575 + $0x214] sm:$0xf]
        %v6710 = vld [vmem:[%s6575 + $0x218] sm:$0xf]
        %v6711 = vld [vmem:[%s6575 + $0x21c] sm:$0xf]
        %v6712 = vld [vmem:[%s6575 + $0x220] sm:$0xf]
        %v6713 = vld [vmem:[%s6575 + $0x224] sm:$0xf]
        %v6714 = vld [vmem:[%s6575 + $0x228] sm:$0xf]
        %v6715 = vld [vmem:[%s6575 + $0x22c] sm:$0xf]
        %v6716 = vld [vmem:[%s6575 + $0x230] sm:$0xf]
        %v6717 = vld [vmem:[%s6575 + $0x234] sm:$0xf]
        %v6718 = vld [vmem:[%s6575 + $0x238] sm:$0xf]
        %v6719 = vld [vmem:[%s6575 + $0x23c] sm:$0xf]
        %v6720 = vld [vmem:[%s6575 + $0x240] sm:$0xf]
        %v6721 = vld [vmem:[%s6575 + $0x244] sm:$0xf]
        %v6722 = vld [vmem:[%s6575 + $0x248] sm:$0xf]
        %v6723 = vld [vmem:[%s6575 + $0x24c] sm:$0xf]
        %v6724 = vld [vmem:[%s6575 + $0x250] sm:$0xf]
        %v6725 = vld [vmem:[%s6575 + $0x254] sm:$0xf]
        %v6726 = vld [vmem:[%s6575 + $0x258] sm:$0xf]
        %v6727 = vld [vmem:[%s6575 + $0x25c] sm:$0xf]
        %v6728 = vld [vmem:[%s6575 + $0x260] sm:$0xf]
        %v6729 = vld [vmem:[%s6575 + $0x264] sm:$0xf]
        %v6730 = vld [vmem:[%s6575 + $0x268] sm:$0xf]
        %v6731 = vld [vmem:[%s6575 + $0x26c] sm:$0xf]
        %v6732 = vld [vmem:[%s6575 + $0x270] sm:$0xf]
        %v6733 = vld [vmem:[%s6575 + $0x274] sm:$0xf]
        %v6734 = vld [vmem:[%s6575 + $0x278] sm:$0xf]
        %v6735 = vld [vmem:[%s6575 + $0x27c] sm:$0xf]
        %v6736 = vld [vmem:[#allocation3] sm:$0x3]
        %v6737 = vpack.c.bf16 %v5909, %v5909
        %v6738 = vpack.c.bf16 %v5911, %v5911
        %v6739 = vpack.c.bf16 %v6073, %v6073
        %v6740 = vpack.c.bf16 %v6075, %v6075
        %v6741 = vpack.c.bf16 %v6237, %v6237
        %v6742 = vpack.c.bf16 %v6239, %v6239
        %v6743 = vpack.c.bf16 %v6401, %v6401
        %v6744 = vpack.c.bf16 %v6403, %v6403
        %v6745 = vpack.c.bf16 %v6565, %v6565
        %v6746 = vpack.c.bf16 %v6567, %v6567
        %v6907 = vunpack.c.l.b16 %v6576
        %v6908 = vunpack.c.l.b16 %v6577
        %v6909 = vunpack.c.l.b16 %v6578
        %v6910 = vunpack.c.l.b16 %v6579
        %v6911 = vunpack.c.l.b16 %v6580
        %v6912 = vunpack.c.l.b16 %v6581
        %v6913 = vunpack.c.l.b16 %v6582
        %v6914 = vunpack.c.l.b16 %v6583
        %v6915 = vunpack.c.l.b16 %v6584
        %v6916 = vunpack.c.l.b16 %v6585
        %v6917 = vunpack.c.l.b16 %v6586
        %v6918 = vunpack.c.l.b16 %v6587
        %v6919 = vunpack.c.l.b16 %v6588
        %v6920 = vunpack.c.l.b16 %v6589
        %v6921 = vunpack.c.l.b16 %v6590
        %v6922 = vunpack.c.l.b16 %v6591
        %v6923 = vunpack.c.l.b16 %v6592
        %v6924 = vunpack.c.l.b16 %v6593
        %v6925 = vunpack.c.l.b16 %v6594
        %v6926 = vunpack.c.l.b16 %v6595
        %v6927 = vunpack.c.l.b16 %v6596
        %v6928 = vunpack.c.l.b16 %v6597
        %v6929 = vunpack.c.l.b16 %v6598
        %v6930 = vunpack.c.l.b16 %v6599
        %v6931 = vunpack.c.l.b16 %v6600
        %v6932 = vunpack.c.l.b16 %v6601
        %v6933 = vunpack.c.l.b16 %v6602
        %v6934 = vunpack.c.l.b16 %v6603
        %v6935 = vunpack.c.l.b16 %v6604
        %v6936 = vunpack.c.l.b16 %v6605
        %v6937 = vunpack.c.l.b16 %v6606
        %v6938 = vunpack.c.l.b16 %v6607
        %v6939 = vunpack.c.l.b16 %v6608
        %v6940 = vunpack.c.l.b16 %v6609
        %v6941 = vunpack.c.l.b16 %v6610
        %v6942 = vunpack.c.l.b16 %v6611
        %v6943 = vunpack.c.l.b16 %v6612
        %v6944 = vunpack.c.l.b16 %v6613
        %v6945 = vunpack.c.l.b16 %v6614
        %v6946 = vunpack.c.l.b16 %v6615
        %v6947 = vunpack.c.l.b16 %v6616
        %v6948 = vunpack.c.l.b16 %v6617
        %v6949 = vunpack.c.l.b16 %v6618
        %v6950 = vunpack.c.l.b16 %v6619
        %v6951 = vunpack.c.l.b16 %v6620
        %v6952 = vunpack.c.l.b16 %v6621
        %v6953 = vunpack.c.l.b16 %v6622
        %v6954 = vunpack.c.l.b16 %v6623
        %v6955 = vunpack.c.l.b16 %v6624
        %v6956 = vunpack.c.l.b16 %v6625
        %v6957 = vunpack.c.l.b16 %v6626
        %v6958 = vunpack.c.l.b16 %v6627
        %v6959 = vunpack.c.l.b16 %v6628
        %v6960 = vunpack.c.l.b16 %v6629
        %v6961 = vunpack.c.l.b16 %v6630
        %v6962 = vunpack.c.l.b16 %v6631
        %v6963 = vunpack.c.l.b16 %v6632
        %v6964 = vunpack.c.l.b16 %v6633
        %v6965 = vunpack.c.l.b16 %v6634
        %v6966 = vunpack.c.l.b16 %v6635
        %v6967 = vunpack.c.l.b16 %v6636
        %v6968 = vunpack.c.l.b16 %v6637
        %v6969 = vunpack.c.l.b16 %v6638
        %v6970 = vunpack.c.l.b16 %v6639
        %v6971 = vunpack.c.l.b16 %v6640
        %v6972 = vunpack.c.l.b16 %v6641
        %v6973 = vunpack.c.l.b16 %v6642
        %v6974 = vunpack.c.l.b16 %v6643
        %v6975 = vunpack.c.l.b16 %v6644
        %v6976 = vunpack.c.l.b16 %v6645
        %v6977 = vunpack.c.l.b16 %v6646
        %v6978 = vunpack.c.l.b16 %v6647
        %v6979 = vunpack.c.l.b16 %v6648
        %v6980 = vunpack.c.l.b16 %v6649
        %v6981 = vunpack.c.l.b16 %v6650
        %v6982 = vunpack.c.l.b16 %v6651
        %v6983 = vunpack.c.l.b16 %v6652
        %v6984 = vunpack.c.l.b16 %v6653
        %v6985 = vunpack.c.l.b16 %v6654
        %v6986 = vunpack.c.l.b16 %v6655
        %v6987 = vunpack.c.l.b16 %v6656
        %v6988 = vunpack.c.l.b16 %v6657
        %v6989 = vunpack.c.l.b16 %v6658
        %v6990 = vunpack.c.l.b16 %v6659
        %v6991 = vunpack.c.l.b16 %v6660
        %v6992 = vunpack.c.l.b16 %v6661
        %v6993 = vunpack.c.l.b16 %v6662
        %v6994 = vunpack.c.l.b16 %v6663
        %v6995 = vunpack.c.l.b16 %v6664
        %v6996 = vunpack.c.l.b16 %v6665
        %v6997 = vunpack.c.l.b16 %v6666
        %v6998 = vunpack.c.l.b16 %v6667
        %v6999 = vunpack.c.l.b16 %v6668
        %v7000 = vunpack.c.l.b16 %v6669
        %v7001 = vunpack.c.l.b16 %v6670
        %v7002 = vunpack.c.l.b16 %v6671
        %v7003 = vunpack.c.l.b16 %v6672
        %v7004 = vunpack.c.l.b16 %v6673
        %v7005 = vunpack.c.l.b16 %v6674
        %v7006 = vunpack.c.l.b16 %v6675
        %v7007 = vunpack.c.l.b16 %v6676
        %v7008 = vunpack.c.l.b16 %v6677
        %v7009 = vunpack.c.l.b16 %v6678
        %v7010 = vunpack.c.l.b16 %v6679
        %v7011 = vunpack.c.l.b16 %v6680
        %v7012 = vunpack.c.l.b16 %v6681
        %v7013 = vunpack.c.l.b16 %v6682
        %v7014 = vunpack.c.l.b16 %v6683
        %v7015 = vunpack.c.l.b16 %v6684
        %v7016 = vunpack.c.l.b16 %v6685
        %v7017 = vunpack.c.l.b16 %v6686
        %v7018 = vunpack.c.l.b16 %v6687
        %v7019 = vunpack.c.l.b16 %v6688
        %v7020 = vunpack.c.l.b16 %v6689
        %v7021 = vunpack.c.l.b16 %v6690
        %v7022 = vunpack.c.l.b16 %v6691
        %v7023 = vunpack.c.l.b16 %v6692
        %v7024 = vunpack.c.l.b16 %v6693
        %v7025 = vunpack.c.l.b16 %v6694
        %v7026 = vunpack.c.l.b16 %v6695
        %v7027 = vunpack.c.l.b16 %v6696
        %v7028 = vunpack.c.l.b16 %v6697
        %v7029 = vunpack.c.l.b16 %v6698
        %v7030 = vunpack.c.l.b16 %v6699
        %v7031 = vunpack.c.l.b16 %v6700
        %v7032 = vunpack.c.l.b16 %v6701
        %v7033 = vunpack.c.l.b16 %v6702
        %v7034 = vunpack.c.l.b16 %v6703
        %v7035 = vunpack.c.l.b16 %v6704
        %v7036 = vunpack.c.l.b16 %v6705
        %v7037 = vunpack.c.l.b16 %v6706
        %v7038 = vunpack.c.l.b16 %v6707
        %v7039 = vunpack.c.l.b16 %v6708
        %v7040 = vunpack.c.l.b16 %v6709
        %v7041 = vunpack.c.l.b16 %v6710
        %v7042 = vunpack.c.l.b16 %v6711
        %v7043 = vunpack.c.l.b16 %v6712
        %v7044 = vunpack.c.l.b16 %v6713
        %v7045 = vunpack.c.l.b16 %v6714
        %v7046 = vunpack.c.l.b16 %v6715
        %v7047 = vunpack.c.l.b16 %v6716
        %v7048 = vunpack.c.l.b16 %v6717
        %v7049 = vunpack.c.l.b16 %v6718
        %v7050 = vunpack.c.l.b16 %v6719
        %v7051 = vunpack.c.l.b16 %v6720
        %v7052 = vunpack.c.l.b16 %v6721
        %v7053 = vunpack.c.l.b16 %v6722
        %v7054 = vunpack.c.l.b16 %v6723
        %v7055 = vunpack.c.l.b16 %v6724
        %v7056 = vunpack.c.l.b16 %v6725
        %v7057 = vunpack.c.l.b16 %v6726
        %v7058 = vunpack.c.l.b16 %v6727
        %v7059 = vunpack.c.l.b16 %v6728
        %v7060 = vunpack.c.l.b16 %v6729
        %v7061 = vunpack.c.l.b16 %v6730
        %v7062 = vunpack.c.l.b16 %v6731
        %v7063 = vunpack.c.l.b16 %v6732
        %v7064 = vunpack.c.l.b16 %v6733
        %v7065 = vunpack.c.l.b16 %v6734
        %v7066 = vunpack.c.l.b16 %v6735
        %v7067 = vpack.c.b16 %v6908, %v6907
        %v7068 = vpack.c.b16 %v6910, %v6909
        %v7069 = vpack.c.b16 %v6912, %v6911
        %v7070 = vpack.c.b16 %v6914, %v6913
        %v7071 = vpack.c.b16 %v6916, %v6915
        %v7072 = vpack.c.b16 %v6918, %v6917
        %v7073 = vpack.c.b16 %v6920, %v6919
        %v7074 = vpack.c.b16 %v6922, %v6921
        %v7075 = vpack.c.b16 %v6924, %v6923
        %v7076 = vpack.c.b16 %v6926, %v6925
        %v7077 = vpack.c.b16 %v6928, %v6927
        %v7078 = vpack.c.b16 %v6930, %v6929
        %v7079 = vpack.c.b16 %v6932, %v6931
        %v7080 = vpack.c.b16 %v6934, %v6933
        %v7081 = vpack.c.b16 %v6936, %v6935
        %v7082 = vpack.c.b16 %v6938, %v6937
        %v7083 = vpack.c.b16 %v6940, %v6939
        %v7084 = vpack.c.b16 %v6942, %v6941
        %v7085 = vpack.c.b16 %v6944, %v6943
        %v7086 = vpack.c.b16 %v6946, %v6945
        %v7087 = vpack.c.b16 %v6948, %v6947
        %v7088 = vpack.c.b16 %v6950, %v6949
        %v7089 = vpack.c.b16 %v6952, %v6951
        %v7090 = vpack.c.b16 %v6954, %v6953
        %v7091 = vpack.c.b16 %v6956, %v6955
        %v7092 = vpack.c.b16 %v6958, %v6957
        %v7093 = vpack.c.b16 %v6960, %v6959
        %v7094 = vpack.c.b16 %v6962, %v6961
        %v7095 = vpack.c.b16 %v6964, %v6963
        %v7096 = vpack.c.b16 %v6966, %v6965
        %v7097 = vpack.c.b16 %v6968, %v6967
        %v7098 = vpack.c.b16 %v6970, %v6969
        %v7099 = vpack.c.b16 %v6972, %v6971
        %v7100 = vpack.c.b16 %v6974, %v6973
        %v7101 = vpack.c.b16 %v6976, %v6975
        %v7102 = vpack.c.b16 %v6978, %v6977
        %v7103 = vpack.c.b16 %v6980, %v6979
        %v7104 = vpack.c.b16 %v6982, %v6981
        %v7105 = vpack.c.b16 %v6984, %v6983
        %v7106 = vpack.c.b16 %v6986, %v6985
        %v7107 = vpack.c.b16 %v6988, %v6987
        %v7108 = vpack.c.b16 %v6990, %v6989
        %v7109 = vpack.c.b16 %v6992, %v6991
        %v7110 = vpack.c.b16 %v6994, %v6993
        %v7111 = vpack.c.b16 %v6996, %v6995
        %v7112 = vpack.c.b16 %v6998, %v6997
        %v7113 = vpack.c.b16 %v7000, %v6999
        %v7114 = vpack.c.b16 %v7002, %v7001
        %v7115 = vpack.c.b16 %v7004, %v7003
        %v7116 = vpack.c.b16 %v7006, %v7005
        %v7117 = vpack.c.b16 %v7008, %v7007
        %v7118 = vpack.c.b16 %v7010, %v7009
        %v7119 = vpack.c.b16 %v7012, %v7011
        %v7120 = vpack.c.b16 %v7014, %v7013
        %v7121 = vpack.c.b16 %v7016, %v7015
        %v7122 = vpack.c.b16 %v7018, %v7017
        %v7123 = vpack.c.b16 %v7020, %v7019
        %v7124 = vpack.c.b16 %v7022, %v7021
        %v7125 = vpack.c.b16 %v7024, %v7023
        %v7126 = vpack.c.b16 %v7026, %v7025
        %v7127 = vpack.c.b16 %v7028, %v7027
        %v7128 = vpack.c.b16 %v7030, %v7029
        %v7129 = vpack.c.b16 %v7032, %v7031
        %v7130 = vpack.c.b16 %v7034, %v7033
        %v7131 = vpack.c.b16 %v7036, %v7035
        %v7132 = vpack.c.b16 %v7038, %v7037
        %v7133 = vpack.c.b16 %v7040, %v7039
        %v7134 = vpack.c.b16 %v7042, %v7041
        %v7135 = vpack.c.b16 %v7044, %v7043
        %v7136 = vpack.c.b16 %v7046, %v7045
        %v7137 = vpack.c.b16 %v7048, %v7047
        %v7138 = vpack.c.b16 %v7050, %v7049
        %v7139 = vpack.c.b16 %v7052, %v7051
        %v7140 = vpack.c.b16 %v7054, %v7053
        %v7141 = vpack.c.b16 %v7056, %v7055
        %v7142 = vpack.c.b16 %v7058, %v7057
        %v7143 = vpack.c.b16 %v7060, %v7059
        %v7144 = vpack.c.b16 %v7062, %v7061
        %v7145 = vpack.c.b16 %v7064, %v7063
        %v7146 = vpack.c.b16 %v7066, %v7065
        %7227 = vmatprep.subr.bf16.mxu0 0
        %7228 = vmatpush1.bf16.msra.mxu0 %v7067
        %7229 = vmatprep.subr.bf16.mxu0 0
        %7230 = vmatpush1.bf16.msra.mxu0 %v7068
        %7231 = vmatprep.subr.bf16.mxu0 0
        %7232 = vmatpush1.bf16.msra.mxu0 %v7069
        %7233 = vmatprep.subr.bf16.mxu0 0
        %7234 = vmatpush1.bf16.msra.mxu0 %v7070
        %7235 = vmatprep.subr.bf16.mxu0 0
        %7236 = vmatpush1.bf16.msra.mxu0 %v7071
        %7237 = vmatprep.subr.bf16.mxu0 0
        %7238 = vmatpush1.bf16.msra.mxu0 %v7072
        %7239 = vmatprep.subr.bf16.mxu0 0
        %7240 = vmatpush1.bf16.msra.mxu0 %v7073
        %7241 = vmatprep.subr.bf16.mxu0 0
        %7242 = vmatpush1.bf16.msra.mxu0 %v7074
        %7243 = vmatprep.subr.bf16.mxu0 0
        %7244 = vmatpush1.bf16.msra.mxu0 %v7075
        %7245 = vmatprep.subr.bf16.mxu0 0
        %7246 = vmatpush1.bf16.msra.mxu0 %v7076
        %7247 = vmatprep.subr.bf16.mxu0 0
        %7248 = vmatpush1.bf16.msra.mxu0 %v7077
        %7249 = vmatprep.subr.bf16.mxu0 0
        %7250 = vmatpush1.bf16.msra.mxu0 %v7078
        %7251 = vmatprep.subr.bf16.mxu0 0
        %7252 = vmatpush1.bf16.msra.mxu0 %v7079
        %7253 = vmatprep.subr.bf16.mxu0 0
        %7254 = vmatpush1.bf16.msra.mxu0 %v7080
        %7255 = vmatprep.subr.bf16.mxu0 0
        %7256 = vmatpush1.bf16.msra.mxu0 %v7081
        %7257 = vmatprep.subr.bf16.mxu0 0
        %7258 = vmatpush1.bf16.msra.mxu0 %v7082
        %7259 = vmatprep.mubr.bf16.mxu0 %v6738
        %7260 = vmatmul.mubr.bf16.gmra.mrb[0].mxu0 %v6737
        %v7261 = vpop.f32.mrb[0].mxu0
        %v7262 = vadd.f32 0.0, %v7261
        %v7263 = vpop.f32.mrb[0].mxu0
        %v7264 = vpop.f32.mrb[0].mxu0
        %v7265 = vpop.f32.mrb[0].mxu0
        %7266 = vdwg.mxu0
        %7267 = vmatprep.subr.bf16.mxu0 0
        %7268 = vmatpush1.bf16.msra.mxu0 %v7083
        %7269 = vmatprep.subr.bf16.mxu0 0
        %7270 = vmatpush1.bf16.msra.mxu0 %v7084
        %7271 = vmatprep.subr.bf16.mxu0 0
        %7272 = vmatpush1.bf16.msra.mxu0 %v7085
        %7273 = vmatprep.subr.bf16.mxu0 0
        %7274 = vmatpush1.bf16.msra.mxu0 %v7086
        %7275 = vmatprep.subr.bf16.mxu0 0
        %7276 = vmatpush1.bf16.msra.mxu0 %v7087
        %7277 = vmatprep.subr.bf16.mxu0 0
        %7278 = vmatpush1.bf16.msra.mxu0 %v7088
        %7279 = vmatprep.subr.bf16.mxu0 0
        %7280 = vmatpush1.bf16.msra.mxu0 %v7089
        %7281 = vmatprep.subr.bf16.mxu0 0
        %7282 = vmatpush1.bf16.msra.mxu0 %v7090
        %7283 = vmatprep.subr.bf16.mxu0 0
        %7284 = vmatpush1.bf16.msra.mxu0 %v7091
        %7285 = vmatprep.subr.bf16.mxu0 0
        %7286 = vmatpush1.bf16.msra.mxu0 %v7092
        %7287 = vmatprep.subr.bf16.mxu0 0
        %7288 = vmatpush1.bf16.msra.mxu0 %v7093
        %7289 = vmatprep.subr.bf16.mxu0 0
        %7290 = vmatpush1.bf16.msra.mxu0 %v7094
        %7291 = vmatprep.subr.bf16.mxu0 0
        %7292 = vmatpush1.bf16.msra.mxu0 %v7095
        %7293 = vmatprep.subr.bf16.mxu0 0
        %7294 = vmatpush1.bf16.msra.mxu0 %v7096
        %7295 = vmatprep.subr.bf16.mxu0 0
        %7296 = vmatpush1.bf16.msra.mxu0 %v7097
        %7297 = vmatprep.subr.bf16.mxu0 0
        %7298 = vmatpush1.bf16.msra.mxu0 %v7098
        %7299 = vmatprep.mubr.bf16.mxu0 %v6740
        %7300 = vmatmul.mubr.bf16.gmra.mrb[0].mxu0 %v6739
        %v7301 = vpop.f32.mrb[0].mxu0
        %v7302 = vadd.f32 %v7262, %v7301
        %v7303 = vpop.f32.mrb[0].mxu0
        %v7304 = vpop.f32.mrb[0].mxu0
        %v7305 = vpop.f32.mrb[0].mxu0
        %7306 = vdwg.mxu0
        %7307 = vmatprep.subr.bf16.mxu0 0
        %7308 = vmatpush1.bf16.msra.mxu0 %v7099
        %7309 = vmatprep.subr.bf16.mxu0 0
        %7310 = vmatpush1.bf16.msra.mxu0 %v7100
        %7311 = vmatprep.subr.bf16.mxu0 0
        %7312 = vmatpush1.bf16.msra.mxu0 %v7101
        %7313 = vmatprep.subr.bf16.mxu0 0
        %7314 = vmatpush1.bf16.msra.mxu0 %v7102
        %7315 = vmatprep.subr.bf16.mxu0 0
        %7316 = vmatpush1.bf16.msra.mxu0 %v7103
        %7317 = vmatprep.subr.bf16.mxu0 0
        %7318 = vmatpush1.bf16.msra.mxu0 %v7104
        %7319 = vmatprep.subr.bf16.mxu0 0
        %7320 = vmatpush1.bf16.msra.mxu0 %v7105
        %7321 = vmatprep.subr.bf16.mxu0 0
        %7322 = vmatpush1.bf16.msra.mxu0 %v7106
        %7323 = vmatprep.subr.bf16.mxu0 0
        %7324 = vmatpush1.bf16.msra.mxu0 %v7107
        %7325 = vmatprep.subr.bf16.mxu0 0
        %7326 = vmatpush1.bf16.msra.mxu0 %v7108
        %7327 = vmatprep.subr.bf16.mxu0 0
        %7328 = vmatpush1.bf16.msra.mxu0 %v7109
        %7329 = vmatprep.subr.bf16.mxu0 0
        %7330 = vmatpush1.bf16.msra.mxu0 %v7110
        %7331 = vmatprep.subr.bf16.mxu0 0
        %7332 = vmatpush1.bf16.msra.mxu0 %v7111
        %7333 = vmatprep.subr.bf16.mxu0 0
        %7334 = vmatpush1.bf16.msra.mxu0 %v7112
        %7335 = vmatprep.subr.bf16.mxu0 0
        %7336 = vmatpush1.bf16.msra.mxu0 %v7113
        %7337 = vmatprep.subr.bf16.mxu0 0
        %7338 = vmatpush1.bf16.msra.mxu0 %v7114
        %7339 = vmatprep.mubr.bf16.mxu0 %v6742
        %7340 = vmatmul.mubr.bf16.gmra.mrb[0].mxu0 %v6741
        %v7341 = vpop.f32.mrb[0].mxu0
        %v7342 = vadd.f32 %v7302, %v7341
        %v7343 = vpop.f32.mrb[0].mxu0
        %v7344 = vpop.f32.mrb[0].mxu0
        %v7345 = vpop.f32.mrb[0].mxu0
        %7346 = vdwg.mxu0
        %7347 = vmatprep.subr.bf16.mxu0 0
        %7348 = vmatpush1.bf16.msra.mxu0 %v7115
        %7349 = vmatprep.subr.bf16.mxu0 0
        %7350 = vmatpush1.bf16.msra.mxu0 %v7116
        %7351 = vmatprep.subr.bf16.mxu0 0
        %7352 = vmatpush1.bf16.msra.mxu0 %v7117
        %7353 = vmatprep.subr.bf16.mxu0 0
        %7354 = vmatpush1.bf16.msra.mxu0 %v7118
        %7355 = vmatprep.subr.bf16.mxu0 0
        %7356 = vmatpush1.bf16.msra.mxu0 %v7119
        %7357 = vmatprep.subr.bf16.mxu0 0
        %7358 = vmatpush1.bf16.msra.mxu0 %v7120
        %7359 = vmatprep.subr.bf16.mxu0 0
        %7360 = vmatpush1.bf16.msra.mxu0 %v7121
        %7361 = vmatprep.subr.bf16.mxu0 0
        %7362 = vmatpush1.bf16.msra.mxu0 %v7122
        %7363 = vmatprep.subr.bf16.mxu0 0
        %7364 = vmatpush1.bf16.msra.mxu0 %v7123
        %7365 = vmatprep.subr.bf16.mxu0 0
        %7366 = vmatpush1.bf16.msra.mxu0 %v7124
        %7367 = vmatprep.subr.bf16.mxu0 0
        %7368 = vmatpush1.bf16.msra.mxu0 %v7125
        %7369 = vmatprep.subr.bf16.mxu0 0
        %7370 = vmatpush1.bf16.msra.mxu0 %v7126
        %7371 = vmatprep.subr.bf16.mxu0 0
        %7372 = vmatpush1.bf16.msra.mxu0 %v7127
        %7373 = vmatprep.subr.bf16.mxu0 0
        %7374 = vmatpush1.bf16.msra.mxu0 %v7128
        %7375 = vmatprep.subr.bf16.mxu0 0
        %7376 = vmatpush1.bf16.msra.mxu0 %v7129
        %7377 = vmatprep.subr.bf16.mxu0 0
        %7378 = vmatpush1.bf16.msra.mxu0 %v7130
        %7379 = vmatprep.mubr.bf16.mxu0 %v6744
        %7380 = vmatmul.mubr.bf16.gmra.mrb[0].mxu0 %v6743
        %v7381 = vpop.f32.mrb[0].mxu0
        %v7382 = vadd.f32 %v7342, %v7381
        %v7383 = vpop.f32.mrb[0].mxu0
        %v7384 = vpop.f32.mrb[0].mxu0
        %v7385 = vpop.f32.mrb[0].mxu0
        %7386 = vdwg.mxu0
        %7387 = vmatprep.subr.bf16.mxu0 0
        %7388 = vmatpush1.bf16.msra.mxu0 %v7131
        %7389 = vmatprep.subr.bf16.mxu0 0
        %7390 = vmatpush1.bf16.msra.mxu0 %v7132
        %7391 = vmatprep.subr.bf16.mxu0 0
        %7392 = vmatpush1.bf16.msra.mxu0 %v7133
        %7393 = vmatprep.subr.bf16.mxu0 0
        %7394 = vmatpush1.bf16.msra.mxu0 %v7134
        %7395 = vmatprep.subr.bf16.mxu0 0
        %7396 = vmatpush1.bf16.msra.mxu0 %v7135
        %7397 = vmatprep.subr.bf16.mxu0 0
        %7398 = vmatpush1.bf16.msra.mxu0 %v7136
        %7399 = vmatprep.subr.bf16.mxu0 0
        %7400 = vmatpush1.bf16.msra.mxu0 %v7137
        %7401 = vmatprep.subr.bf16.mxu0 0
        %7402 = vmatpush1.bf16.msra.mxu0 %v7138
        %7403 = vmatprep.subr.bf16.mxu0 0
        %7404 = vmatpush1.bf16.msra.mxu0 %v7139
        %7405 = vmatprep.subr.bf16.mxu0 0
        %7406 = vmatpush1.bf16.msra.mxu0 %v7140
        %7407 = vmatprep.subr.bf16.mxu0 0
        %7408 = vmatpush1.bf16.msra.mxu0 %v7141
        %7409 = vmatprep.subr.bf16.mxu0 0
        %7410 = vmatpush1.bf16.msra.mxu0 %v7142
        %7411 = vmatprep.subr.bf16.mxu0 0
        %7412 = vmatpush1.bf16.msra.mxu0 %v7143
        %7413 = vmatprep.subr.bf16.mxu0 0
        %7414 = vmatpush1.bf16.msra.mxu0 %v7144
        %7415 = vmatprep.subr.bf16.mxu0 0
        %7416 = vmatpush1.bf16.msra.mxu0 %v7145
        %7417 = vmatprep.subr.bf16.mxu0 0
        %7418 = vmatpush1.bf16.msra.mxu0 %v7146
        %7419 = vmatprep.mubr.bf16.mxu0 %v6746
        %7420 = vmatmul.mubr.bf16.gmra.mrb[0].mxu0 %v6745
        %v7421 = vpop.f32.mrb[0].mxu0
        %v7422 = vadd.f32 %v7382, %v7421
        %v7423 = vpop.f32.mrb[0].mxu0
        %v7424 = vpop.f32.mrb[0].mxu0
        %v7425 = vpop.f32.mrb[0].mxu0
        %7426 = vdwg.mxu0
        %v7427 = vadd.f32 %v6736, %v7422
        %vm7428 = vcmask 254976
        %7429 = vst.msk [vmem:[#allocation3] sm:$0x3] %vm7428, %v7427
        %p7430 = scmp.eq.s32.totalorder %s41, 1
        // Predicated region
        $region141: #{encoder_2d_attn_forward.1} parent=87 // pred_check
          %p7431 = pneg %p7430
        $region142: #{encoder_2d_attn_forward.1} parent=87 // pred_check_branch
          %7433 = sbr.rel (%p7431) target = $region144
        $region143: #{encoder_2d_attn_forward.1} parent=87 // pred_region
          %v7434 = vld [vmem:[#allocation3] sm:$0x3]
          %v7435 = vld [vmem:[#allocation22] sm:$0x1]
          %v7437 = vlaneseq
          %v7438 = vshrl.u32 %v7437, 7
          %v7439 = vsub.s32 0, %v7438
          %v7440 = vrot.slane %v7435, %v7439
          %v7442 = vadd.f32 %v7434, %v7440
          %7443 = vst.msk [vmem:[#allocation24] sm:$0x3] %vm7428, %v7442
        $region144: #{encoder_2d_attn_forward.1} parent=87 // pred_fallthru
          _
        // Predicated region
        $region145: #{encoder_2d_attn_forward.1} parent=87 // pred_check
          %p7444 = pneg %p421
        $region146: #{encoder_2d_attn_forward.1} parent=87 // pred_check_branch
          %7446 = sbr.rel (%p7444) target = $region148
        $region147: #{encoder_2d_attn_forward.1} parent=87 // pred_region
          %s7448 = ssub.s32 32, 32
          %7449 = vsyncadd [#allocation6], %s7448
          %s7451 = sshll.u32 [#allocation24], 4
          %s7452 = int_to_ptr.vmem [resolvable:$true] %s7451
          %7454 = dma.vmem_to_hbm [thread:$0]  %s7452, 32, %s17, [#allocation6]
        $region148: #{encoder_2d_attn_forward.1} parent=87 // pred_fallthru
          _
        // Predicated region
        $region149: #{encoder_2d_attn_forward.1} parent=87 // pred_check
          %p7455 = pneg %p442
        $region150: #{encoder_2d_attn_forward.1} parent=87 // pred_check_branch
          %7457 = sbr.rel (%p7455) target = $region152
        $region151: #{encoder_2d_attn_forward.1} parent=87 // pred_region
          %s7459 = ssub.s32 512, 512
          %7460 = vsyncadd [#allocation26], %s7459
          %s7461 = sshll.u32 [#allocation25], 4
          %s7462 = int_to_ptr.vmem [resolvable:$true] %s7461
          %7467 = dma.vmem_to_hbm [thread:$0]  %s7462, 512, %s18, [#allocation26], 128, 128, 8
        $region152: #{encoder_2d_attn_forward.1} parent=87 // pred_fallthru
          _
        // Predicated region
        $region153: #{encoder_2d_attn_forward.1} parent=87 // pred_check
          %p7468 = pneg %p421
        $region154: #{encoder_2d_attn_forward.1} parent=87 // pred_check_branch
          %7470 = sbr.rel (%p7468) target = $region156
        $region155: #{encoder_2d_attn_forward.1} parent=87 // pred_region
          %7471 = dma.done [#allocation6], 32
        $region156: #{encoder_2d_attn_forward.1} parent=87 // pred_fallthru
          _
        // Predicated region
        $region157: #{encoder_2d_attn_forward.1} parent=87 // pred_check
          %p7472 = pneg %p442
        $region158: #{encoder_2d_attn_forward.1} parent=87 // pred_check_branch
          %7474 = sbr.rel (%p7472) target = $region160
        $region159: #{encoder_2d_attn_forward.1} parent=87 // pred_region
          %7475 = dma.done [#allocation26], 512
        $region160: #{encoder_2d_attn_forward.1} parent=87 // pred_fallthru
          _
      $region88: #{encoder_2d_attn_forward.1} parent=5 // pred_fallthru
        _
      %p7476 = scmp.le.s32.totalorder 2, %s36
      // Predicated region
      $region161: #{encoder_2d_attn_forward.1} parent=5 // pred_check
        %p7477 = pneg %p7476
      $region162: #{encoder_2d_attn_forward.1} parent=5 // pred_check_branch
        %7479 = sbr.rel (%p7477) target = $region164
      $region163: #{encoder_2d_attn_forward.1} parent=5 // pred_region
        %s7480 = ssub.s32 %s36, 2
      $region164: #{encoder_2d_attn_forward.1} parent=5 // pred_fallthru
        _
    $region6: #{encoder_2d_attn_forward.1} parent=1 // loop_footer
      %s40 = sadd.s32 1, %s36
    $region7: #{encoder_2d_attn_forward.1} parent=1 // loop_footer_branch
      %35 = sbr.rel target = $region3
    $region8: #{encoder_2d_attn_forward.1} parent=1 // loop_exit
      _
    %7481 = vsyncpa [#allocation5], 1
    %s7482 = scalar_lea.sflag [#allocation5], 1
    %7483 = vsyncpa %s7482, 1
    %7484 = vsyncpa [#allocation8], 1
    %7485 = vsyncpa [#allocation11], 1
    %7486 = vsyncpa [#allocation14], 1
    %7487 = vsyncpa [#allocation17], 1
    %7488 = vsyncpa [#allocation20], 1
    %s7489 = scalar_lea.sflag [#allocation20], 1
    %7490 = vsyncpa %s7489, 1
    %7491 = vsyncpa [#allocation23], 1
    %7492 = vsyncpa [#allocation6], 1
    %s7493 = scalar_lea.sflag [#allocation6], 1
    %7494 = vsyncpa %s7493, 1
    %7495 = vsyncpa [#allocation26], 1

</llo_original>
